<compile_context>
chip_gen: v7x
topology: tpu7x:2x2x1
jax: 0.10.0
libtpu: 0.0.40
codegen_flags: <defaults>
</compile_context>

<pallas_src>
import functools

import jax
import jax.numpy as jnp
from jax.experimental import pallas as pl
from jax.experimental.pallas import tpu as pltpu

HIDDEN = 512            # lin1 hard-codes 512 inputs -> hidden_channels must be 512
NUM_NODE_FEATURES = 1
FEAT_PAD = 128          # pad tiny input feature dim to a lane-friendly width (zeros)
HEAD_PAD = 128          # lane-dense width for lin3/lin4 outputs (real output is col 0)


def _round_up(v, m):
    return (v + m - 1) // m * m


def _vmem():
    return pl.BlockSpec(memory_space=pltpu.MemorySpace.VMEM)


# ---------------------------------------------------------------------------
# Fused forward kernel: 4x GraphConv + global_add_pool + 4-layer MLP head.
# All operands live in VMEM; matmuls run bf16 x bf16 -> f32 on the MXU.
# ---------------------------------------------------------------------------
def fused_forward_kernel(a_ref, x_ref, *refs):
    (wrel1, wroot1, bc1,
     wrel2, wroot2, bc2,
     wrel3, wroot3, bc3,
     wrel4, wroot4, bc4,
     p_ref,
     w1, b1, w2, b2, w3, b3, w4, b4,
     o_ref) = refs

    a = a_ref[...]                       # bf16 [NPAD, NPAD], exact integer counts

    def conv(x_f32, wrel, wroot, bias, relu, residual):
        x_bf = x_f32.astype(jnp.bfloat16)
        agg = jnp.dot(a, x_bf, preferred_element_type=jnp.float32)
        out = (jnp.dot(agg.astype(jnp.bfloat16), wrel[...],
                       preferred_element_type=jnp.float32)
               + jnp.dot(x_bf, wroot[...], preferred_element_type=jnp.float32)
               + bias[...])                       # bias kept f32
        if relu:
            out = jnp.maximum(out, 0.0)           # f32 elementwise (v5e-safe)
        if residual:
            out = out + x_f32
        return out

    x0 = x_ref[...].astype(jnp.float32)           # [NPAD, FEAT_PAD]
    x1 = conv(x0, wrel1, wroot1, bc1, relu=True,  residual=False)
    x2 = conv(x1, wrel2, wroot2, bc2, relu=True,  residual=True)
    x3 = conv(x2, wrel3, wroot3, bc3, relu=False, residual=True)
    x4 = conv(x3, wrel4, wroot4, bc4, relu=False, residual=True)

    # global_add_pool (P @ x4) fused with the MLP head; everything lane-dense.
    h = jnp.dot(p_ref[...], x4.astype(jnp.bfloat16),
                preferred_element_type=jnp.float32)
    h = jnp.maximum(jnp.dot(h.astype(jnp.bfloat16), w1[...],
                            preferred_element_type=jnp.float32) + b1[...], 0.0)
    h = jnp.maximum(jnp.dot(h.astype(jnp.bfloat16), w2[...],
                            preferred_element_type=jnp.float32) + b2[...], 0.0)
    h = jnp.maximum(jnp.dot(h.astype(jnp.bfloat16), w3[...],
                            preferred_element_type=jnp.float32) + b3[...], 0.0)
    # Lane-dense (Gpad, 128) store; real scalar output lives in column 0.
    o_ref[...] = jnp.dot(h.astype(jnp.bfloat16), w4[...],
                         preferred_element_type=jnp.float32) + b4[...]


# ---------------------------------------------------------------------------
# Parameter init (deterministic, PyTorch-Linear-style uniform bounds).
# Weights stored already transposed: W has shape [in, out] so kernels do x @ W.
# ---------------------------------------------------------------------------
def init_linear(key, in_dim, out_dim, bias=True):
    kw, kb = jax.random.split(key)
    bound = 1.0 / (in_dim ** 0.5)
    w = jax.random.uniform(kw, (in_dim, out_dim), jnp.float32, -bound, bound)
    b = (jax.random.uniform(kb, (1, out_dim), jnp.float32, -bound, bound)
         if bias else None)
    return w, b


def init_graphconv(key, in_dim, out_dim):
    k1, k2 = jax.random.split(key)
    wrel, brel = init_linear(k1, in_dim, out_dim, bias=True)
    wroot, _ = init_linear(k2, in_dim, out_dim, bias=False)
    return wrel, wroot, brel


def init_params(key):
    keys = jax.random.split(key, 8)
    params = {
        "conv1": init_graphconv(keys[0], NUM_NODE_FEATURES, HIDDEN),
        "conv2": init_graphconv(keys[1], HIDDEN, HIDDEN),
        "conv3": init_graphconv(keys[2], HIDDEN, HIDDEN),
        "conv4": init_graphconv(keys[3], HIDDEN, HIDDEN),
    }
    w1, b1 = init_linear(keys[4], 512, 256)
    w2, b2 = init_linear(keys[5], 256, 128)
    w3, b3 = init_linear(keys[6], 128, 64)
    w4, b4 = init_linear(keys[7], 64, 1)
    params["head"] = (w1, b1, w2, b2, w3, b3, w4, b4)
    return params


def pack_params(p):
    """Pad + cast f32 params into kernel-ready (bf16 weights, f32 biases)."""
    # conv1: pad the tiny input feature dim (1 -> FEAT_PAD) with zero rows.
    wrel1, wroot1, bc1 = p["conv1"]
    wrel1p = jnp.zeros((FEAT_PAD, HIDDEN), jnp.float32).at[:wrel1.shape[0]].set(wrel1)
    wroot1p = jnp.zeros((FEAT_PAD, HIDDEN), jnp.float32).at[:wroot1.shape[0]].set(wroot1)

    convs = []
    for wr, wo, bc in [(wrel1p, wroot1p, bc1), p["conv2"], p["conv3"], p["conv4"]]:
        convs += [wr.astype(jnp.bfloat16), wo.astype(jnp.bfloat16), bc]

    w1, b1, w2, b2, w3, b3, w4, b4 = p["head"]
    # Lane-dense head tail: lin3 out 64 -> 128 (zero cols), lin4 in 64 -> 128
    # (zero rows), lin4 out 1 -> 128 (zero cols).  Numerically inert.
    w3p = jnp.zeros((w3.shape[0], HEAD_PAD), jnp.float32).at[:, : w3.shape[1]].set(w3)
    b3p = jnp.zeros((1, HEAD_PAD), jnp.float32).at[:, : b3.shape[1]].set(b3)
    w4p = (jnp.zeros((HEAD_PAD, HEAD_PAD), jnp.float32)
           .at[: w4.shape[0], : w4.shape[1]].set(w4))
    b4p = jnp.zeros((1, HEAD_PAD), jnp.float32).at[:, : b4.shape[1]].set(b4)

    head = [w1.astype(jnp.bfloat16), b1, w2.astype(jnp.bfloat16), b2,
            w3p.astype(jnp.bfloat16), b3p, w4p.astype(jnp.bfloat16), b4p]
    return {"convs": tuple(convs), "head": tuple(head)}


# ---------------------------------------------------------------------------
# Full forward pass (glue: densify graph, pad, then one fused Pallas call).
# ---------------------------------------------------------------------------
@functools.partial(jax.jit, static_argnames=("num_graphs",))
def latency_model(x, edge_index, batch, packed_params, num_graphs):
    n = x.shape[0]
    npad = _round_up(max(n, 1), 128)          # feed the MXU with M >= 128
    gpad = _round_up(max(num_graphs, 1), 8)   # sublane-aligned pooled batch

    src, dst = edge_index[0], edge_index[1]
    # Dense adjacency for 'add' aggregation of incoming messages (j -> i).
    a = (jnp.zeros((npad, npad), jnp.float32).at[dst, src].add(1.0)
         ).astype(jnp.bfloat16)
    # Pooling matrix for global_add_pool (padded nodes/graphs contribute nothing).
    p = (jnp.zeros((gpad, npad), jnp.float32).at[batch, jnp.arange(n)].set(1.0)
         ).astype(jnp.bfloat16)
    # Zero-pad node count and feature dim (numerically identical).
    x_pad = (jnp.zeros((npad, FEAT_PAD), jnp.float32).at[:n, : x.shape[1]].set(x)
             ).astype(jnp.bfloat16)

    inputs = (a, x_pad) + packed_params["convs"] + (p,) + packed_params["head"]

    flops = (2 * npad * npad * FEAT_PAD + 4 * npad * FEAT_PAD * HIDDEN
             + 3 * (2 * npad * npad * HIDDEN + 4 * npad * HIDDEN * HIDDEN)
             + 2 * gpad * npad * HIDDEN
             + 2 * gpad * (HIDDEN * 256 + 256 * 128 + 128 * HEAD_PAD
                           + HEAD_PAD * HEAD_PAD))
    in_bytes = sum(int(t.size) * t.dtype.itemsize for t in inputs)
    out_bytes = gpad * HEAD_PAD * 4
    # Working set: a handful of f32/bf16 [npad, HIDDEN] activation temps.
    work_bytes = 8 * npad * HIDDEN * 4
    vmem_limit = int(min(56 * 1024 * 1024,
                         max(32 * 1024 * 1024,
                             2 * (in_bytes + out_bytes + work_bytes))))

    out = pl.pallas_call(
        fused_forward_kernel,
        out_shape=jax.ShapeDtypeStruct((gpad, HEAD_PAD), jnp.float32),
        in_specs=[_vmem()] * len(inputs),
        out_specs=_vmem(),
        compiler_params=pltpu.CompilerParams(vmem_limit_bytes=vmem_limit),
        cost_estimate=pl.CostEstimate(flops=flops, transcendentals=0,
                                      bytes_accessed=in_bytes + out_bytes),
    )(*inputs)
    return out[:num_graphs, :1]


# ---------------------------------------------------------------------------
# Pure-JAX f32 reference (unpadded) for a tolerance check.
# ---------------------------------------------------------------------------
def reference_forward(x, edge_index, batch, params, num_graphs):
    n = x.shape[0]
    src, dst = edge_index[0], edge_index[1]
    a = jnp.zeros((n, n), jnp.float32).at[dst, src].add(1.0)

    def conv(xin, wrel, wroot, b):
        return (a @ xin) @ wrel + b + xin @ wroot

    x1 = jax.nn.relu(conv(x, *params["conv1"]))
    x2 = jax.nn.relu(conv(x1, *params["conv2"])) + x1
    x3 = conv(x2, *params["conv3"]) + x2
    x4 = conv(x3, *params["conv4"]) + x3
    pooled = jnp.zeros((num_graphs, HIDDEN), jnp.float32).at[batch].add(x4)
    w1, b1, w2, b2, w3, b3, w4, b4 = params["head"]
    h = jax.nn.relu(pooled @ w1 + b1)
    h = jax.nn.relu(h @ w2 + b2)
    h = jax.nn.relu(h @ w3 + b3)
    return h @ w4 + b4


if __name__ == "__main__":
    key = jax.random.PRNGKey(0)
    kx, kp = jax.random.split(key)

    N, G = 16, 2                       # 2 graphs of 8 nodes each
    x = jax.random.normal(kx, (N, NUM_NODE_FEATURES), jnp.float32)

    # Bidirectional chain edges inside each graph.
    src, dst = [], []
    per = N // G
    for g in range(G):
        base = g * per
        for i in range(per - 1):
            src += [base + i, base + i + 1]
            dst += [base + i + 1, base + i]
    edge_index = jnp.array([src, dst], dtype=jnp.int32)      # [2, 28]
    batch = jnp.concatenate(
        [jnp.full((per,), g, jnp.int32) for g in range(G)])  # [16]

    params = init_params(kp)
    packed = pack_params(params)

    out = latency_model(x, edge_index, batch, packed, num_graphs=G)
    jax.block_until_ready(out)
    assert out.shape == (G, 1)

    ref = reference_forward(x, edge_index, batch, params, num_graphs=G)
    rel = float(jnp.max(jnp.abs(out - ref)) / (jnp.max(jnp.abs(ref)) + 1e-6))
    assert rel < 0.1, f"mismatch vs f32 reference: rel={rel}"
    print("KERNEL_OK")
</pallas_src>

<mosaic_0001>
module attributes {stable_mosaic.version = 11 : i64} {
  func.func @fused_forward_kernel(%arg0: memref<128x128xbf16, #tpu.memory_space<vmem>>, %arg1: memref<128x128xbf16, #tpu.memory_space<vmem>>, %arg2: memref<128x512xbf16, #tpu.memory_space<vmem>>, %arg3: memref<128x512xbf16, #tpu.memory_space<vmem>>, %arg4: memref<1x512xf32, #tpu.memory_space<vmem>>, %arg5: memref<512x512xbf16, #tpu.memory_space<vmem>>, %arg6: memref<512x512xbf16, #tpu.memory_space<vmem>>, %arg7: memref<1x512xf32, #tpu.memory_space<vmem>>, %arg8: memref<512x512xbf16, #tpu.memory_space<vmem>>, %arg9: memref<512x512xbf16, #tpu.memory_space<vmem>>, %arg10: memref<1x512xf32, #tpu.memory_space<vmem>>, %arg11: memref<512x512xbf16, #tpu.memory_space<vmem>>, %arg12: memref<512x512xbf16, #tpu.memory_space<vmem>>, %arg13: memref<1x512xf32, #tpu.memory_space<vmem>>, %arg14: memref<8x128xbf16, #tpu.memory_space<vmem>>, %arg15: memref<512x256xbf16, #tpu.memory_space<vmem>>, %arg16: memref<1x256xf32, #tpu.memory_space<vmem>>, %arg17: memref<256x128xbf16, #tpu.memory_space<vmem>>, %arg18: memref<1x128xf32, #tpu.memory_space<vmem>>, %arg19: memref<128x128xbf16, #tpu.memory_space<vmem>>, %arg20: memref<1x128xf32, #tpu.memory_space<vmem>>, %arg21: memref<128x128xbf16, #tpu.memory_space<vmem>>, %arg22: memref<1x128xf32, #tpu.memory_space<vmem>>, %arg23: memref<8x128xf32, #tpu.memory_space<vmem>>) attributes {dimension_semantics = [], scalar_prefetch = 0 : i64, scratch_operands = 0 : i64, tpu.core_type = #tpu.core_type<tc>} {
    %c0 = arith.constant 0 : index
    %c0_0 = arith.constant 0 : index
    %0 = vector.load %arg0[%c0, %c0_0] : memref<128x128xbf16, #tpu.memory_space<vmem>>, vector<128x128xbf16>
    %c0_1 = arith.constant 0 : index
    %c0_2 = arith.constant 0 : index
    %1 = vector.load %arg1[%c0_1, %c0_2] : memref<128x128xbf16, #tpu.memory_space<vmem>>, vector<128x128xbf16>
    %2 = arith.extf %1 : vector<128x128xbf16> to vector<128x128xf32>
    %3 = arith.truncf %2 : vector<128x128xf32> to vector<128x128xbf16>
    %cst = arith.constant dense<0.000000e+00> : vector<128x128xf32>
    %4 = tpu.matmul %0, %3, %cst {dimension_numbers = #tpu.dot_dimension_numbers<[1], [0], [0], [1], [0, 0, 1, 1], [], []>} : vector<128x128xbf16>, vector<128x128xbf16>, vector<128x128xf32> -> vector<128x128xf32>
    %5 = arith.truncf %4 : vector<128x128xf32> to vector<128x128xbf16>
    %c0_3 = arith.constant 0 : index
    %c0_4 = arith.constant 0 : index
    %6 = vector.load %arg2[%c0_3, %c0_4] : memref<128x512xbf16, #tpu.memory_space<vmem>>, vector<128x512xbf16>
    %cst_5 = arith.constant dense<0.000000e+00> : vector<128x512xf32>
    %7 = tpu.matmul %5, %6, %cst_5 {dimension_numbers = #tpu.dot_dimension_numbers<[1], [0], [0], [1], [0, 0, 1, 1], [], []>} : vector<128x128xbf16>, vector<128x512xbf16>, vector<128x512xf32> -> vector<128x512xf32>
    %c0_6 = arith.constant 0 : index
    %c0_7 = arith.constant 0 : index
    %8 = vector.load %arg3[%c0_6, %c0_7] : memref<128x512xbf16, #tpu.memory_space<vmem>>, vector<128x512xbf16>
    %cst_8 = arith.constant dense<0.000000e+00> : vector<128x512xf32>
    %9 = tpu.matmul %3, %8, %cst_8 {dimension_numbers = #tpu.dot_dimension_numbers<[1], [0], [0], [1], [0, 0, 1, 1], [], []>} : vector<128x128xbf16>, vector<128x512xbf16>, vector<128x512xf32> -> vector<128x512xf32>
    %10 = arith.addf %7, %9 : vector<128x512xf32>
    %c0_9 = arith.constant 0 : index
    %c0_10 = arith.constant 0 : index
    %11 = vector.load %arg4[%c0_9, %c0_10] : memref<1x512xf32, #tpu.memory_space<vmem>>, vector<1x512xf32>
    %12 = vector.broadcast %11 : vector<1x512xf32> to vector<128x512xf32>
    %13 = arith.addf %10, %12 : vector<128x512xf32>
    %cst_11 = arith.constant 0.000000e+00 : f32
    %14 = vector.broadcast %cst_11 : f32 to vector<128x512xf32>
    %15 = arith.maximumf %13, %14 : vector<128x512xf32>
    %16 = arith.truncf %15 : vector<128x512xf32> to vector<128x512xbf16>
    %cst_12 = arith.constant dense<0.000000e+00> : vector<128x512xf32>
    %17 = tpu.matmul %0, %16, %cst_12 {dimension_numbers = #tpu.dot_dimension_numbers<[1], [0], [0], [1], [0, 0, 1, 1], [], []>} : vector<128x128xbf16>, vector<128x512xbf16>, vector<128x512xf32> -> vector<128x512xf32>
    %18 = arith.truncf %17 : vector<128x512xf32> to vector<128x512xbf16>
    %c0_13 = arith.constant 0 : index
    %c0_14 = arith.constant 0 : index
    %19 = vector.load %arg5[%c0_13, %c0_14] : memref<512x512xbf16, #tpu.memory_space<vmem>>, vector<512x512xbf16>
    %cst_15 = arith.constant dense<0.000000e+00> : vector<128x512xf32>
    %20 = tpu.matmul %18, %19, %cst_15 {dimension_numbers = #tpu.dot_dimension_numbers<[1], [0], [0], [1], [0, 0, 1, 1], [], []>} : vector<128x512xbf16>, vector<512x512xbf16>, vector<128x512xf32> -> vector<128x512xf32>
    %c0_16 = arith.constant 0 : index
    %c0_17 = arith.constant 0 : index
    %21 = vector.load %arg6[%c0_16, %c0_17] : memref<512x512xbf16, #tpu.memory_space<vmem>>, vector<512x512xbf16>
    %cst_18 = arith.constant dense<0.000000e+00> : vector<128x512xf32>
    %22 = tpu.matmul %16, %21, %cst_18 {dimension_numbers = #tpu.dot_dimension_numbers<[1], [0], [0], [1], [0, 0, 1, 1], [], []>} : vector<128x512xbf16>, vector<512x512xbf16>, vector<128x512xf32> -> vector<128x512xf32>
    %23 = arith.addf %20, %22 : vector<128x512xf32>
    %c0_19 = arith.constant 0 : index
    %c0_20 = arith.constant 0 : index
    %24 = vector.load %arg7[%c0_19, %c0_20] : memref<1x512xf32, #tpu.memory_space<vmem>>, vector<1x512xf32>
    %25 = vector.broadcast %24 : vector<1x512xf32> to vector<128x512xf32>
    %26 = arith.addf %23, %25 : vector<128x512xf32>
    %cst_21 = arith.constant 0.000000e+00 : f32
    %27 = vector.broadcast %cst_21 : f32 to vector<128x512xf32>
    %28 = arith.maximumf %26, %27 : vector<128x512xf32>
    %29 = arith.addf %28, %15 : vector<128x512xf32>
    %30 = arith.truncf %29 : vector<128x512xf32> to vector<128x512xbf16>
    %cst_22 = arith.constant dense<0.000000e+00> : vector<128x512xf32>
    %31 = tpu.matmul %0, %30, %cst_22 {dimension_numbers = #tpu.dot_dimension_numbers<[1], [0], [0], [1], [0, 0, 1, 1], [], []>} : vector<128x128xbf16>, vector<128x512xbf16>, vector<128x512xf32> -> vector<128x512xf32>
    %32 = arith.truncf %31 : vector<128x512xf32> to vector<128x512xbf16>
    %c0_23 = arith.constant 0 : index
    %c0_24 = arith.constant 0 : index
    %33 = vector.load %arg8[%c0_23, %c0_24] : memref<512x512xbf16, #tpu.memory_space<vmem>>, vector<512x512xbf16>
    %cst_25 = arith.constant dense<0.000000e+00> : vector<128x512xf32>
    %34 = tpu.matmul %32, %33, %cst_25 {dimension_numbers = #tpu.dot_dimension_numbers<[1], [0], [0], [1], [0, 0, 1, 1], [], []>} : vector<128x512xbf16>, vector<512x512xbf16>, vector<128x512xf32> -> vector<128x512xf32>
    %c0_26 = arith.constant 0 : index
    %c0_27 = arith.constant 0 : index
    %35 = vector.load %arg9[%c0_26, %c0_27] : memref<512x512xbf16, #tpu.memory_space<vmem>>, vector<512x512xbf16>
    %cst_28 = arith.constant dense<0.000000e+00> : vector<128x512xf32>
    %36 = tpu.matmul %30, %35, %cst_28 {dimension_numbers = #tpu.dot_dimension_numbers<[1], [0], [0], [1], [0, 0, 1, 1], [], []>} : vector<128x512xbf16>, vector<512x512xbf16>, vector<128x512xf32> -> vector<128x512xf32>
    %37 = arith.addf %34, %36 : vector<128x512xf32>
    %c0_29 = arith.constant 0 : index
    %c0_30 = arith.constant 0 : index
    %38 = vector.load %arg10[%c0_29, %c0_30] : memref<1x512xf32, #tpu.memory_space<vmem>>, vector<1x512xf32>
    %39 = vector.broadcast %38 : vector<1x512xf32> to vector<128x512xf32>
    %40 = arith.addf %37, %39 : vector<128x512xf32>
    %41 = arith.addf %40, %29 : vector<128x512xf32>
    %42 = arith.truncf %41 : vector<128x512xf32> to vector<128x512xbf16>
    %cst_31 = arith.constant dense<0.000000e+00> : vector<128x512xf32>
    %43 = tpu.matmul %0, %42, %cst_31 {dimension_numbers = #tpu.dot_dimension_numbers<[1], [0], [0], [1], [0, 0, 1, 1], [], []>} : vector<128x128xbf16>, vector<128x512xbf16>, vector<128x512xf32> -> vector<128x512xf32>
    %44 = arith.truncf %43 : vector<128x512xf32> to vector<128x512xbf16>
    %c0_32 = arith.constant 0 : index
    %c0_33 = arith.constant 0 : index
    %45 = vector.load %arg11[%c0_32, %c0_33] : memref<512x512xbf16, #tpu.memory_space<vmem>>, vector<512x512xbf16>
    %cst_34 = arith.constant dense<0.000000e+00> : vector<128x512xf32>
    %46 = tpu.matmul %44, %45, %cst_34 {dimension_numbers = #tpu.dot_dimension_numbers<[1], [0], [0], [1], [0, 0, 1, 1], [], []>} : vector<128x512xbf16>, vector<512x512xbf16>, vector<128x512xf32> -> vector<128x512xf32>
    %c0_35 = arith.constant 0 : index
    %c0_36 = arith.constant 0 : index
    %47 = vector.load %arg12[%c0_35, %c0_36] : memref<512x512xbf16, #tpu.memory_space<vmem>>, vector<512x512xbf16>
    %cst_37 = arith.constant dense<0.000000e+00> : vector<128x512xf32>
    %48 = tpu.matmul %42, %47, %cst_37 {dimension_numbers = #tpu.dot_dimension_numbers<[1], [0], [0], [1], [0, 0, 1, 1], [], []>} : vector<128x512xbf16>, vector<512x512xbf16>, vector<128x512xf32> -> vector<128x512xf32>
    %49 = arith.addf %46, %48 : vector<128x512xf32>
    %c0_38 = arith.constant 0 : index
    %c0_39 = arith.constant 0 : index
    %50 = vector.load %arg13[%c0_38, %c0_39] : memref<1x512xf32, #tpu.memory_space<vmem>>, vector<1x512xf32>
    %51 = vector.broadcast %50 : vector<1x512xf32> to vector<128x512xf32>
    %52 = arith.addf %49, %51 : vector<128x512xf32>
    %53 = arith.addf %52, %41 : vector<128x512xf32>
    %c0_40 = arith.constant 0 : index
    %c0_41 = arith.constant 0 : index
    %54 = vector.load %arg14[%c0_40, %c0_41] : memref<8x128xbf16, #tpu.memory_space<vmem>>, vector<8x128xbf16>
    %55 = arith.truncf %53 : vector<128x512xf32> to vector<128x512xbf16>
    %cst_42 = arith.constant dense<0.000000e+00> : vector<8x512xf32>
    %56 = tpu.matmul %54, %55, %cst_42 {dimension_numbers = #tpu.dot_dimension_numbers<[1], [0], [0], [1], [0, 0, 1, 1], [], []>} : vector<8x128xbf16>, vector<128x512xbf16>, vector<8x512xf32> -> vector<8x512xf32>
    %57 = arith.truncf %56 : vector<8x512xf32> to vector<8x512xbf16>
    %c0_43 = arith.constant 0 : index
    %c0_44 = arith.constant 0 : index
    %58 = vector.load %arg15[%c0_43, %c0_44] : memref<512x256xbf16, #tpu.memory_space<vmem>>, vector<512x256xbf16>
    %cst_45 = arith.constant dense<0.000000e+00> : vector<8x256xf32>
    %59 = tpu.matmul %57, %58, %cst_45 {dimension_numbers = #tpu.dot_dimension_numbers<[1], [0], [0], [1], [0, 0, 1, 1], [], []>} : vector<8x512xbf16>, vector<512x256xbf16>, vector<8x256xf32> -> vector<8x256xf32>
    %c0_46 = arith.constant 0 : index
    %c0_47 = arith.constant 0 : index
    %60 = vector.load %arg16[%c0_46, %c0_47] : memref<1x256xf32, #tpu.memory_space<vmem>>, vector<1x256xf32>
    %61 = vector.broadcast %60 : vector<1x256xf32> to vector<8x256xf32>
    %62 = arith.addf %59, %61 : vector<8x256xf32>
    %cst_48 = arith.constant 0.000000e+00 : f32
    %63 = vector.broadcast %cst_48 : f32 to vector<8x256xf32>
    %64 = arith.maximumf %62, %63 : vector<8x256xf32>
    %65 = arith.truncf %64 : vector<8x256xf32> to vector<8x256xbf16>
    %c0_49 = arith.constant 0 : index
    %c0_50 = arith.constant 0 : index
    %66 = vector.load %arg17[%c0_49, %c0_50] : memref<256x128xbf16, #tpu.memory_space<vmem>>, vector<256x128xbf16>
    %cst_51 = arith.constant dense<0.000000e+00> : vector<8x128xf32>
    %67 = tpu.matmul %65, %66, %cst_51 {dimension_numbers = #tpu.dot_dimension_numbers<[1], [0], [0], [1], [0, 0, 1, 1], [], []>} : vector<8x256xbf16>, vector<256x128xbf16>, vector<8x128xf32> -> vector<8x128xf32>
    %c0_52 = arith.constant 0 : index
    %c0_53 = arith.constant 0 : index
    %68 = vector.load %arg18[%c0_52, %c0_53] : memref<1x128xf32, #tpu.memory_space<vmem>>, vector<1x128xf32>
    %69 = vector.broadcast %68 : vector<1x128xf32> to vector<8x128xf32>
    %70 = arith.addf %67, %69 : vector<8x128xf32>
    %cst_54 = arith.constant 0.000000e+00 : f32
    %71 = vector.broadcast %cst_54 : f32 to vector<8x128xf32>
    %72 = arith.maximumf %70, %71 : vector<8x128xf32>
    %73 = arith.truncf %72 : vector<8x128xf32> to vector<8x128xbf16>
    %c0_55 = arith.constant 0 : index
    %c0_56 = arith.constant 0 : index
    %74 = vector.load %arg19[%c0_55, %c0_56] : memref<128x128xbf16, #tpu.memory_space<vmem>>, vector<128x128xbf16>
    %cst_57 = arith.constant dense<0.000000e+00> : vector<8x128xf32>
    %75 = tpu.matmul %73, %74, %cst_57 {dimension_numbers = #tpu.dot_dimension_numbers<[1], [0], [0], [1], [0, 0, 1, 1], [], []>} : vector<8x128xbf16>, vector<128x128xbf16>, vector<8x128xf32> -> vector<8x128xf32>
    %c0_58 = arith.constant 0 : index
    %c0_59 = arith.constant 0 : index
    %76 = vector.load %arg20[%c0_58, %c0_59] : memref<1x128xf32, #tpu.memory_space<vmem>>, vector<1x128xf32>
    %77 = vector.broadcast %76 : vector<1x128xf32> to vector<8x128xf32>
    %78 = arith.addf %75, %77 : vector<8x128xf32>
    %cst_60 = arith.constant 0.000000e+00 : f32
    %79 = vector.broadcast %cst_60 : f32 to vector<8x128xf32>
    %80 = arith.maximumf %78, %79 : vector<8x128xf32>
    %81 = arith.truncf %80 : vector<8x128xf32> to vector<8x128xbf16>
    %c0_61 = arith.constant 0 : index
    %c0_62 = arith.constant 0 : index
    %82 = vector.load %arg21[%c0_61, %c0_62] : memref<128x128xbf16, #tpu.memory_space<vmem>>, vector<128x128xbf16>
    %cst_63 = arith.constant dense<0.000000e+00> : vector<8x128xf32>
    %83 = tpu.matmul %81, %82, %cst_63 {dimension_numbers = #tpu.dot_dimension_numbers<[1], [0], [0], [1], [0, 0, 1, 1], [], []>} : vector<8x128xbf16>, vector<128x128xbf16>, vector<8x128xf32> -> vector<8x128xf32>
    %c0_64 = arith.constant 0 : index
    %c0_65 = arith.constant 0 : index
    %84 = vector.load %arg22[%c0_64, %c0_65] : memref<1x128xf32, #tpu.memory_space<vmem>>, vector<1x128xf32>
    %85 = vector.broadcast %84 : vector<1x128xf32> to vector<8x128xf32>
    %86 = arith.addf %83, %85 : vector<8x128xf32>
    %c0_66 = arith.constant 0 : index
    %c0_67 = arith.constant 0 : index
    %87 = vector.load %arg23[%c0_66, %c0_67] : memref<8x128xf32, #tpu.memory_space<vmem>>, vector<8x128xf32>
    tpu.vector_store %arg23[%c0_66, %c0_67], %86 {strides = array<i32>} : memref<8x128xf32, #tpu.memory_space<vmem>>, vector<8x128xf32>,
    return
  }
}

</mosaic_0001>

<llo_original>
// kernel: latency_model.1
$region0: #{latency_model.1}
  #allocation0 [shape = 'u32[]', space=smem, size = 0x4, offset = 0x4, fixed_abs, tag = 'smem constant byte address 0x4 - core index']
  #allocation1 [shape = 'u32[144,128]{1,0:T(1,128)}', space=vmem, size = 0x12000, scoped, tag = 'internal scratch']
  %s0 = inlined_call_operand.vmem [shape: bf16[128,128], index: 0, kind: input, shape index: {}]
  %s1 = inlined_call_operand.vmem [shape: bf16[128,128], index: 1, kind: input, shape index: {}]
  %s2 = inlined_call_operand.vmem [shape: bf16[128,512], index: 2, kind: input, shape index: {}]
  %s3 = inlined_call_operand.vmem [shape: bf16[128,512], index: 3, kind: input, shape index: {}]
  %s4 = inlined_call_operand.vmem [shape: f32[1,512], index: 4, kind: input, shape index: {}]
  %s5 = inlined_call_operand.vmem [shape: bf16[512,512], index: 5, kind: input, shape index: {}]
  %s6 = inlined_call_operand.vmem [shape: bf16[512,512], index: 6, kind: input, shape index: {}]
  %s7 = inlined_call_operand.vmem [shape: f32[1,512], index: 7, kind: input, shape index: {}]
  %s8 = inlined_call_operand.vmem [shape: bf16[512,512], index: 8, kind: input, shape index: {}]
  %s9 = inlined_call_operand.vmem [shape: bf16[512,512], index: 9, kind: input, shape index: {}]
  %s10 = inlined_call_operand.vmem [shape: f32[1,512], index: 10, kind: input, shape index: {}]
  %s11 = inlined_call_operand.hbm [shape: bf16[512,512], index: 11, kind: input, shape index: {}]
  %s12 = inlined_call_operand.hbm [shape: bf16[512,512], index: 12, kind: input, shape index: {}]
  %s13 = inlined_call_operand.vmem [shape: f32[1,512], index: 13, kind: input, shape index: {}]
  %s14 = inlined_call_operand.vmem [shape: bf16[8,128], index: 14, kind: input, shape index: {}]
  %s15 = inlined_call_operand.hbm [shape: bf16[512,256], index: 15, kind: input, shape index: {}]
  %s16 = inlined_call_operand.vmem [shape: f32[1,256], index: 16, kind: input, shape index: {}]
  %s17 = inlined_call_operand.hbm [shape: bf16[256,128], index: 17, kind: input, shape index: {}]
  %s18 = inlined_call_operand.vmem [shape: f32[1,128], index: 18, kind: input, shape index: {}]
  %s19 = inlined_call_operand.hbm [shape: bf16[128,128], index: 19, kind: input, shape index: {}]
  %s20 = inlined_call_operand.vmem [shape: f32[1,128], index: 20, kind: input, shape index: {}]
  %s21 = inlined_call_operand.hbm [shape: bf16[128,128], index: 21, kind: input, shape index: {}]
  %s22 = inlined_call_operand.vmem [shape: f32[1,128], index: 22, kind: input, shape index: {}]
  %s23 = inlined_call_operand.vmem [shape: f32[8,128], index: 23, kind: output, shape index: {}]
  %s24 = sld [smem:[#allocation0]]
  $region126: #{latency_model.1} parent=0
    _
  %s26 = ssub.s32 1, %s24
  %s27 = scalar_select 0, %s26, %s24
  $region1: #{latency_model.1} parent=0
    #allocation2 [shape = 'u8[524288]{0}', space=vmem, size = 0x80000, scoped, tag = 'input window, operand 11, single buffered']
    #allocation3 [shape = 's32[1]{0}', space=sflag, size = 0x4, scoped, tag = 'scoped memory for latency_model.1']
    #allocation4 [shape = 'u8[524288]{0}', space=vmem, size = 0x80000, scoped, tag = 'input window, operand 12, single buffered']
    #allocation5 [shape = 's32[1]{0}', space=sflag, size = 0x4, scoped, tag = 'scoped memory for latency_model.1']
    #allocation6 [shape = 'u8[262144]{0}', space=vmem, size = 0x40000, scoped, tag = 'input window, operand 15, single buffered']
    #allocation7 [shape = 'u8[65536]{0}', space=vmem, size = 0x10000, scoped, tag = 'input window, operand 17, single buffered']
    #allocation8 [shape = 's32[1]{0}', space=sflag, size = 0x4, scoped, tag = 'scoped memory for latency_model.1']
    #allocation9 [shape = 'u8[32768]{0}', space=vmem, size = 0x8000, scoped, tag = 'input window, operand 19, single buffered']
    #allocation10 [shape = 'u8[32768]{0}', space=vmem, size = 0x8000, scoped, tag = 'input window, operand 21, single buffered']
    #allocation11 [shape = 's32[1]{0}', space=sflag, size = 0x4, scoped, tag = 'scoped memory for latency_model.1']
    %28 = vsyncpa [#allocation3], 0
    %29 = vsyncpa [#allocation5], 0
    %30 = vsyncpa [#allocation8], 0
    %31 = vsyncpa [#allocation11], 0
    // Predicated region
    $region2: #{latency_model.1} parent=1 // pred_check
      _
    $region3: #{latency_model.1} parent=1 // pred_check_branch
      %33 = sbr.rel (0) target = $region5
    $region4: #{latency_model.1} parent=1 // pred_region
      _
    $region5: #{latency_model.1} parent=1 // pred_fallthru
      _
    // Predicated region
    $region6: #{latency_model.1} parent=1 // pred_check
      _
    $region7: #{latency_model.1} parent=1 // pred_check_branch
      %35 = sbr.rel (0) target = $region9
    $region8: #{latency_model.1} parent=1 // pred_region
      _
    $region9: #{latency_model.1} parent=1 // pred_fallthru
      _
    // Predicated region
    $region10: #{latency_model.1} parent=1 // pred_check
      _
    $region11: #{latency_model.1} parent=1 // pred_check_branch
      %37 = sbr.rel (0) target = $region13
    $region12: #{latency_model.1} parent=1 // pred_region
      _
    $region13: #{latency_model.1} parent=1 // pred_fallthru
      _
    // Predicated region
    $region14: #{latency_model.1} parent=1 // pred_check
      _
    $region15: #{latency_model.1} parent=1 // pred_check_branch
      %39 = sbr.rel (0) target = $region17
    $region16: #{latency_model.1} parent=1 // pred_region
      _
    $region17: #{latency_model.1} parent=1 // pred_fallthru
      _
    // Predicated region
    $region18: #{latency_model.1} parent=1 // pred_check
      _
    $region19: #{latency_model.1} parent=1 // pred_check_branch
      %41 = sbr.rel (0) target = $region21
    $region20: #{latency_model.1} parent=1 // pred_region
      _
    $region21: #{latency_model.1} parent=1 // pred_fallthru
      _
    // Predicated region
    $region22: #{latency_model.1} parent=1 // pred_check
      _
    $region23: #{latency_model.1} parent=1 // pred_check_branch
      %43 = sbr.rel (0) target = $region25
    $region24: #{latency_model.1} parent=1 // pred_region
      _
    $region25: #{latency_model.1} parent=1 // pred_fallthru
      _
    // Predicated region
    $region26: #{latency_model.1} parent=1 // pred_check
      _
    $region27: #{latency_model.1} parent=1 // pred_check_branch
      %45 = sbr.rel (0) target = $region29
    $region28: #{latency_model.1} parent=1 // pred_region
      _
    $region29: #{latency_model.1} parent=1 // pred_fallthru
      _
    // Predicated region
    $region30: #{latency_model.1} parent=1 // pred_check
      _
    $region31: #{latency_model.1} parent=1 // pred_check_branch
      %47 = sbr.rel (0) target = $region33
    $region32: #{latency_model.1} parent=1 // pred_region
      _
    $region33: #{latency_model.1} parent=1 // pred_fallthru
      _
    // Predicated region
    $region34: #{latency_model.1} parent=1 // pred_check
      _
    $region35: #{latency_model.1} parent=1 // pred_check_branch
      %49 = sbr.rel (0) target = $region37
    $region36: #{latency_model.1} parent=1 // pred_region
      _
    $region37: #{latency_model.1} parent=1 // pred_fallthru
      _
    // Predicated region
    $region38: #{latency_model.1} parent=1 // pred_check
      _
    $region39: #{latency_model.1} parent=1 // pred_check_branch
      %51 = sbr.rel (0) target = $region41
    $region40: #{latency_model.1} parent=1 // pred_region
      _
    $region41: #{latency_model.1} parent=1 // pred_fallthru
      _
    // Predicated region
    $region42: #{latency_model.1} parent=1 // pred_check
      _
    $region43: #{latency_model.1} parent=1 // pred_check_branch
      %53 = sbr.rel (0) target = $region45
    $region44: #{latency_model.1} parent=1 // pred_region
      _
    $region45: #{latency_model.1} parent=1 // pred_fallthru
      _
    // Predicated region
    $region46: #{latency_model.1} parent=1 // pred_check
      _
    $region47: #{latency_model.1} parent=1 // pred_check_branch
      %55 = sbr.rel (0) target = $region49
    $region48: #{latency_model.1} parent=1 // pred_region
      %s57 = ssub.s32 16384, 16384
      %58 = vsyncadd [#allocation3], %s57
      %s59 = sshll.u32 [#allocation2], 4
      %s60 = int_to_ptr.vmem [resolvable:$true] %s59
      %65 = dma.hbm_to_vmem [thread:$0]  %s11, 16384, %s60, [#allocation3], 256, 256, 16
    $region49: #{latency_model.1} parent=1 // pred_fallthru
      _
    // Predicated region
    $region50: #{latency_model.1} parent=1 // pred_check
      _
    $region51: #{latency_model.1} parent=1 // pred_check_branch
      %67 = sbr.rel (0) target = $region53
    $region52: #{latency_model.1} parent=1 // pred_region
      %s69 = ssub.s32 16384, 16384
      %70 = vsyncadd [#allocation5], %s69
      %s71 = sshll.u32 [#allocation4], 4
      %s72 = int_to_ptr.vmem [resolvable:$true] %s71
      %77 = dma.hbm_to_vmem [thread:$0]  %s12, 16384, %s72, [#allocation5], 256, 256, 16
    $region53: #{latency_model.1} parent=1 // pred_fallthru
      _
    // Predicated region
    $region54: #{latency_model.1} parent=1 // pred_check
      _
    $region55: #{latency_model.1} parent=1 // pred_check_branch
      %79 = sbr.rel (0) target = $region57
    $region56: #{latency_model.1} parent=1 // pred_region
      _
    $region57: #{latency_model.1} parent=1 // pred_fallthru
      _
    // Predicated region
    $region58: #{latency_model.1} parent=1 // pred_check
      _
    $region59: #{latency_model.1} parent=1 // pred_check_branch
      %81 = sbr.rel (0) target = $region61
    $region60: #{latency_model.1} parent=1 // pred_region
      _
    $region61: #{latency_model.1} parent=1 // pred_fallthru
      _
    // Predicated region
    $region62: #{latency_model.1} parent=1 // pred_check
      _
    $region63: #{latency_model.1} parent=1 // pred_check_branch
      %83 = sbr.rel (0) target = $region65
    $region64: #{latency_model.1} parent=1 // pred_region
      %s85 = ssub.s32 8192, 8192
      %86 = vsyncadd [#allocation5], %s85
      %s87 = sshll.u32 [#allocation6], 4
      %s88 = int_to_ptr.vmem [resolvable:$true] %s87
      %93 = dma.hbm_to_vmem [thread:$0]  %s15, 8192, %s88, [#allocation5], 128, 128, 8
    $region65: #{latency_model.1} parent=1 // pred_fallthru
      _
    // Predicated region
    $region66: #{latency_model.1} parent=1 // pred_check
      _
    $region67: #{latency_model.1} parent=1 // pred_check_branch
      %95 = sbr.rel (0) target = $region69
    $region68: #{latency_model.1} parent=1 // pred_region
      _
    $region69: #{latency_model.1} parent=1 // pred_fallthru
      _
    // Predicated region
    $region70: #{latency_model.1} parent=1 // pred_check
      _
    $region71: #{latency_model.1} parent=1 // pred_check_branch
      %97 = sbr.rel (0) target = $region73
    $region72: #{latency_model.1} parent=1 // pred_region
      %s99 = ssub.s32 2048, 2048
      %100 = vsyncadd [#allocation8], %s99
      %s101 = sshll.u32 [#allocation7], 4
      %s102 = int_to_ptr.vmem [resolvable:$true] %s101
      %107 = dma.hbm_to_vmem [thread:$0]  %s17, 2048, %s102, [#allocation8], 64, 64, 4
    $region73: #{latency_model.1} parent=1 // pred_fallthru
      _
    // Predicated region
    $region74: #{latency_model.1} parent=1 // pred_check
      _
    $region75: #{latency_model.1} parent=1 // pred_check_branch
      %109 = sbr.rel (0) target = $region77
    $region76: #{latency_model.1} parent=1 // pred_region
      _
    $region77: #{latency_model.1} parent=1 // pred_fallthru
      _
    // Predicated region
    $region78: #{latency_model.1} parent=1 // pred_check
      _
    $region79: #{latency_model.1} parent=1 // pred_check_branch
      %111 = sbr.rel (0) target = $region81
    $region80: #{latency_model.1} parent=1 // pred_region
      %s113 = ssub.s32 1024, 1024
      %114 = vsyncadd [#allocation8], %s113
      %s115 = sshll.u32 [#allocation9], 4
      %s116 = int_to_ptr.vmem [resolvable:$true] %s115
      %121 = dma.hbm_to_vmem [thread:$0]  %s19, 1024, %s116, [#allocation8], 64, 64, 4
    $region81: #{latency_model.1} parent=1 // pred_fallthru
      _
    // Predicated region
    $region82: #{latency_model.1} parent=1 // pred_check
      _
    $region83: #{latency_model.1} parent=1 // pred_check_branch
      %123 = sbr.rel (0) target = $region85
    $region84: #{latency_model.1} parent=1 // pred_region
      _
    $region85: #{latency_model.1} parent=1 // pred_fallthru
      _
    // Predicated region
    $region86: #{latency_model.1} parent=1 // pred_check
      _
    $region87: #{latency_model.1} parent=1 // pred_check_branch
      %125 = sbr.rel (0) target = $region89
    $region88: #{latency_model.1} parent=1 // pred_region
      %s127 = ssub.s32 1024, 1024
      %128 = vsyncadd [#allocation11], %s127
      %s129 = sshll.u32 [#allocation10], 4
      %s130 = int_to_ptr.vmem [resolvable:$true] %s129
      %135 = dma.hbm_to_vmem [thread:$0]  %s21, 1024, %s130, [#allocation11], 64, 64, 4
    $region89: #{latency_model.1} parent=1 // pred_fallthru
      _
    // Predicated region
    $region90: #{latency_model.1} parent=1 // pred_check
      _
    $region91: #{latency_model.1} parent=1 // pred_check_branch
      %137 = sbr.rel (0) target = $region93
    $region92: #{latency_model.1} parent=1 // pred_region
      _
    $region93: #{latency_model.1} parent=1 // pred_fallthru
      _
    // Predicated region
    $region94: #{latency_model.1} parent=1 // pred_check
      _
    $region95: #{latency_model.1} parent=1 // pred_check_branch
      %139 = sbr.rel (0) target = $region97
    $region96: #{latency_model.1} parent=1 // pred_region
      %140 = dma.done [#allocation3], 16384
    $region97: #{latency_model.1} parent=1 // pred_fallthru
      _
    // Predicated region
    $region98: #{latency_model.1} parent=1 // pred_check
      _
    $region99: #{latency_model.1} parent=1 // pred_check_branch
      %142 = sbr.rel (0) target = $region101
    $region100: #{latency_model.1} parent=1 // pred_region
      %143 = dma.done [#allocation5], 16384
    $region101: #{latency_model.1} parent=1 // pred_fallthru
      _
    // Predicated region
    $region102: #{latency_model.1} parent=1 // pred_check
      _
    $region103: #{latency_model.1} parent=1 // pred_check_branch
      %145 = sbr.rel (0) target = $region105
    $region104: #{latency_model.1} parent=1 // pred_region
      %146 = dma.done [#allocation5], 8192
    $region105: #{latency_model.1} parent=1 // pred_fallthru
      _
    // Predicated region
    $region106: #{latency_model.1} parent=1 // pred_check
      _
    $region107: #{latency_model.1} parent=1 // pred_check_branch
      %148 = sbr.rel (0) target = $region109
    $region108: #{latency_model.1} parent=1 // pred_region
      %149 = dma.done [#allocation8], 2048
    $region109: #{latency_model.1} parent=1 // pred_fallthru
      _
    // Predicated region
    $region110: #{latency_model.1} parent=1 // pred_check
      _
    $region111: #{latency_model.1} parent=1 // pred_check_branch
      %151 = sbr.rel (0) target = $region113
    $region112: #{latency_model.1} parent=1 // pred_region
      %152 = dma.done [#allocation8], 1024
    $region113: #{latency_model.1} parent=1 // pred_fallthru
      _
    // Predicated region
    $region114: #{latency_model.1} parent=1 // pred_check
      _
    $region115: #{latency_model.1} parent=1 // pred_check_branch
      %154 = sbr.rel (0) target = $region117
    $region116: #{latency_model.1} parent=1 // pred_region
      %155 = dma.done [#allocation11], 1024
    $region117: #{latency_model.1} parent=1 // pred_fallthru
      _
    %v157 = vld [vmem:[%s0] sm:$0xf]
    %v158 = vld [vmem:[%s0 + $0x4] sm:$0xf]
    %v159 = vld [vmem:[%s0 + $0x8] sm:$0xf]
    %v160 = vld [vmem:[%s0 + $0xc] sm:$0xf]
    %v161 = vld [vmem:[%s0 + $0x10] sm:$0xf]
    %v162 = vld [vmem:[%s0 + $0x14] sm:$0xf]
    %v163 = vld [vmem:[%s0 + $0x18] sm:$0xf]
    %v164 = vld [vmem:[%s0 + $0x1c] sm:$0xf]
    %v165 = vld [vmem:[%s0 + $0x20] sm:$0xf]
    %v166 = vld [vmem:[%s0 + $0x24] sm:$0xf]
    %v167 = vld [vmem:[%s0 + $0x28] sm:$0xf]
    %v168 = vld [vmem:[%s0 + $0x2c] sm:$0xf]
    %v169 = vld [vmem:[%s0 + $0x30] sm:$0xf]
    %v170 = vld [vmem:[%s0 + $0x34] sm:$0xf]
    %v171 = vld [vmem:[%s0 + $0x38] sm:$0xf]
    %v172 = vld [vmem:[%s0 + $0x3c] sm:$0xf]
    %v173 = vld [vmem:[%s1] sm:$0xf]
    %v174 = vld [vmem:[%s1 + $0x4] sm:$0xf]
    %v175 = vld [vmem:[%s1 + $0x8] sm:$0xf]
    %v176 = vld [vmem:[%s1 + $0xc] sm:$0xf]
    %v177 = vld [vmem:[%s1 + $0x10] sm:$0xf]
    %v178 = vld [vmem:[%s1 + $0x14] sm:$0xf]
    %v179 = vld [vmem:[%s1 + $0x18] sm:$0xf]
    %v180 = vld [vmem:[%s1 + $0x1c] sm:$0xf]
    %v181 = vld [vmem:[%s1 + $0x20] sm:$0xf]
    %v182 = vld [vmem:[%s1 + $0x24] sm:$0xf]
    %v183 = vld [vmem:[%s1 + $0x28] sm:$0xf]
    %v184 = vld [vmem:[%s1 + $0x2c] sm:$0xf]
    %v185 = vld [vmem:[%s1 + $0x30] sm:$0xf]
    %v186 = vld [vmem:[%s1 + $0x34] sm:$0xf]
    %v187 = vld [vmem:[%s1 + $0x38] sm:$0xf]
    %v188 = vld [vmem:[%s1 + $0x3c] sm:$0xf]
    %v205 = vunpack.c.l.b16 %v157
    %v206 = vunpack.c.l.b16 %v158
    %v207 = vunpack.c.l.b16 %v159
    %v208 = vunpack.c.l.b16 %v160
    %v209 = vunpack.c.l.b16 %v161
    %v210 = vunpack.c.l.b16 %v162
    %v211 = vunpack.c.l.b16 %v163
    %v212 = vunpack.c.l.b16 %v164
    %v213 = vunpack.c.l.b16 %v165
    %v214 = vunpack.c.l.b16 %v166
    %v215 = vunpack.c.l.b16 %v167
    %v216 = vunpack.c.l.b16 %v168
    %v217 = vunpack.c.l.b16 %v169
    %v218 = vunpack.c.l.b16 %v170
    %v219 = vunpack.c.l.b16 %v171
    %v220 = vunpack.c.l.b16 %v172
    %v221 = vpack.c.b16 %v206, %v205
    %v222 = vpack.c.b16 %v208, %v207
    %v223 = vpack.c.b16 %v210, %v209
    %v224 = vpack.c.b16 %v212, %v211
    %v225 = vpack.c.b16 %v214, %v213
    %v226 = vpack.c.b16 %v216, %v215
    %v227 = vpack.c.b16 %v218, %v217
    %v228 = vpack.c.b16 %v220, %v219
    %v253 = vunpack.c.l.b16 %v173
    %v254 = vunpack.c.l.b16 %v174
    %v255 = vunpack.c.l.b16 %v175
    %v256 = vunpack.c.l.b16 %v176
    %v257 = vunpack.c.l.b16 %v177
    %v258 = vunpack.c.l.b16 %v178
    %v259 = vunpack.c.l.b16 %v179
    %v260 = vunpack.c.l.b16 %v180
    %v261 = vunpack.c.l.b16 %v181
    %v262 = vunpack.c.l.b16 %v182
    %v263 = vunpack.c.l.b16 %v183
    %v264 = vunpack.c.l.b16 %v184
    %v265 = vunpack.c.l.b16 %v185
    %v266 = vunpack.c.l.b16 %v186
    %v267 = vunpack.c.l.b16 %v187
    %v268 = vunpack.c.l.b16 %v188
    %v269 = vpack.c.b16 %v254, %v253
    %v270 = vpack.c.b16 %v256, %v255
    %v271 = vpack.c.b16 %v258, %v257
    %v272 = vpack.c.b16 %v260, %v259
    %v273 = vpack.c.b16 %v262, %v261
    %v274 = vpack.c.b16 %v264, %v263
    %v275 = vpack.c.b16 %v266, %v265
    %v276 = vpack.c.b16 %v268, %v267
    %285 = vmatprep.subr.bf16.mxu0 0
    %286 = vmatpush1.bf16.msra.mxu0 %v269
    %287 = vmatprep.subr.bf16.mxu0 0
    %288 = vmatpush1.bf16.msra.mxu0 %v270
    %289 = vmatprep.subr.bf16.mxu0 0
    %290 = vmatpush1.bf16.msra.mxu0 %v271
    %291 = vmatprep.subr.bf16.mxu0 0
    %292 = vmatpush1.bf16.msra.mxu0 %v272
    %293 = vmatprep.subr.bf16.mxu0 0
    %294 = vmatpush1.bf16.msra.mxu0 %v273
    %295 = vmatprep.subr.bf16.mxu0 0
    %296 = vmatpush1.bf16.msra.mxu0 %v274
    %297 = vmatprep.subr.bf16.mxu0 0
    %298 = vmatpush1.bf16.msra.mxu0 %v275
    %299 = vmatprep.subr.bf16.mxu0 0
    %300 = vmatpush1.bf16.msra.mxu0 %v276
    %301 = vmatprep.subr.bf16.mxu0 0
    %302 = vmatpush1.bf16.msra.mxu0 0
    %303 = vmatprep.subr.bf16.mxu0 0
    %304 = vmatpush1.bf16.msra.mxu0 0
    %305 = vmatprep.subr.bf16.mxu0 0
    %306 = vmatpush1.bf16.msra.mxu0 0
    %307 = vmatprep.subr.bf16.mxu0 0
    %308 = vmatpush1.bf16.msra.mxu0 0
    %309 = vmatprep.subr.bf16.mxu0 0
    %310 = vmatpush1.bf16.msra.mxu0 0
    %311 = vmatprep.subr.bf16.mxu0 0
    %312 = vmatpush1.bf16.msra.mxu0 0
    %313 = vmatprep.subr.bf16.mxu0 0
    %314 = vmatpush1.bf16.msra.mxu0 0
    %315 = vmatprep.subr.bf16.mxu0 0
    %316 = vmatpush1.bf16.msra.mxu0 0
    %317 = vmatprep.mubr.bf16.mxu0 0
    %318 = vmatmul.mubr.bf16.gmra.mrb[0].mxu0 %v221
    %v319 = vpop.f32.mrb[0].mxu0
    %v320 = vadd.f32 0.0, %v319
    %v321 = vpop.f32.mrb[0].mxu0
    %v322 = vpop.f32.mrb[0].mxu0
    %v323 = vadd.f32 0.0, %v322
    %v324 = vpop.f32.mrb[0].mxu0
    %325 = vmatprep.mubr.bf16.mxu0 0
    %326 = vmatmul.mubr.bf16.gmra.mrb[0].mxu0 %v222
    %v327 = vpop.f32.mrb[0].mxu0
    %v328 = vadd.f32 0.0, %v327
    %v329 = vpop.f32.mrb[0].mxu0
    %v330 = vpop.f32.mrb[0].mxu0
    %v331 = vadd.f32 0.0, %v330
    %v332 = vpop.f32.mrb[0].mxu0
    %333 = vmatprep.mubr.bf16.mxu0 0
    %334 = vmatmul.mubr.bf16.gmra.mrb[0].mxu0 %v223
    %v335 = vpop.f32.mrb[0].mxu0
    %v336 = vadd.f32 0.0, %v335
    %v337 = vpop.f32.mrb[0].mxu0
    %v338 = vpop.f32.mrb[0].mxu0
    %v339 = vadd.f32 0.0, %v338
    %v340 = vpop.f32.mrb[0].mxu0
    %341 = vmatprep.mubr.bf16.mxu0 0
    %342 = vmatmul.mubr.bf16.gmra.mrb[0].mxu0 %v224
    %v343 = vpop.f32.mrb[0].mxu0
    %v344 = vadd.f32 0.0, %v343
    %v345 = vpop.f32.mrb[0].mxu0
    %v346 = vpop.f32.mrb[0].mxu0
    %v347 = vadd.f32 0.0, %v346
    %v348 = vpop.f32.mrb[0].mxu0
    %349 = vmatprep.mubr.bf16.mxu0 0
    %350 = vmatmul.mubr.bf16.gmra.mrb[0].mxu0 %v225
    %v351 = vpop.f32.mrb[0].mxu0
    %v352 = vadd.f32 0.0, %v351
    %v353 = vpop.f32.mrb[0].mxu0
    %v354 = vpop.f32.mrb[0].mxu0
    %v355 = vadd.f32 0.0, %v354
    %v356 = vpop.f32.mrb[0].mxu0
    %357 = vmatprep.mubr.bf16.mxu0 0
    %358 = vmatmul.mubr.bf16.gmra.mrb[0].mxu0 %v226
    %v359 = vpop.f32.mrb[0].mxu0
    %v360 = vadd.f32 0.0, %v359
    %v361 = vpop.f32.mrb[0].mxu0
    %v362 = vpop.f32.mrb[0].mxu0
    %v363 = vadd.f32 0.0, %v362
    %v364 = vpop.f32.mrb[0].mxu0
    %365 = vmatprep.mubr.bf16.mxu0 0
    %366 = vmatmul.mubr.bf16.gmra.mrb[0].mxu0 %v227
    %v367 = vpop.f32.mrb[0].mxu0
    %v368 = vadd.f32 0.0, %v367
    %v369 = vpop.f32.mrb[0].mxu0
    %v370 = vpop.f32.mrb[0].mxu0
    %v371 = vadd.f32 0.0, %v370
    %v372 = vpop.f32.mrb[0].mxu0
    %373 = vmatprep.mubr.bf16.mxu0 0
    %374 = vmatmul.mubr.bf16.gmra.mrb[0].mxu0 %v228
    %v375 = vpop.f32.mrb[0].mxu0
    %v376 = vadd.f32 0.0, %v375
    %v377 = vpop.f32.mrb[0].mxu0
    %v378 = vpop.f32.mrb[0].mxu0
    %v379 = vadd.f32 0.0, %v378
    %v380 = vpop.f32.mrb[0].mxu0
    %381 = vdwg.mxu0
    %v382 = vpack.c.bf16 %v323, %v320
    %v383 = vpack.c.bf16 %v331, %v328
    %v384 = vpack.c.bf16 %v339, %v336
    %v385 = vpack.c.bf16 %v347, %v344
    %v386 = vpack.c.bf16 %v355, %v352
    %v387 = vpack.c.bf16 %v363, %v360
    %v388 = vpack.c.bf16 %v371, %v368
    %v389 = vpack.c.bf16 %v379, %v376
    %v390 = vld [vmem:[%s2] sm:$0xff]
    %v391 = vld [vmem:[%s2 + $0x8] sm:$0xff]
    %v392 = vld [vmem:[%s2 + $0x10] sm:$0xff]
    %v393 = vld [vmem:[%s2 + $0x18] sm:$0xff]
    %v394 = vld [vmem:[%s2 + $0x20] sm:$0xff]
    %v395 = vld [vmem:[%s2 + $0x28] sm:$0xff]
    %v396 = vld [vmem:[%s2 + $0x30] sm:$0xff]
    %v397 = vld [vmem:[%s2 + $0x38] sm:$0xff]
    %v398 = vld [vmem:[%s2 + $0x40] sm:$0xff]
    %v399 = vld [vmem:[%s2 + $0x48] sm:$0xff]
    %v400 = vld [vmem:[%s2 + $0x50] sm:$0xff]
    %v401 = vld [vmem:[%s2 + $0x58] sm:$0xff]
    %v402 = vld [vmem:[%s2 + $0x60] sm:$0xff]
    %v403 = vld [vmem:[%s2 + $0x68] sm:$0xff]
    %v404 = vld [vmem:[%s2 + $0x70] sm:$0xff]
    %v405 = vld [vmem:[%s2 + $0x78] sm:$0xff]
    %v406 = vld [vmem:[%s2 + $0x80] sm:$0xff]
    %v407 = vld [vmem:[%s2 + $0x88] sm:$0xff]
    %v408 = vld [vmem:[%s2 + $0x90] sm:$0xff]
    %v409 = vld [vmem:[%s2 + $0x98] sm:$0xff]
    %v410 = vld [vmem:[%s2 + $0xa0] sm:$0xff]
    %v411 = vld [vmem:[%s2 + $0xa8] sm:$0xff]
    %v412 = vld [vmem:[%s2 + $0xb0] sm:$0xff]
    %v413 = vld [vmem:[%s2 + $0xb8] sm:$0xff]
    %v414 = vld [vmem:[%s2 + $0xc0] sm:$0xff]
    %v415 = vld [vmem:[%s2 + $0xc8] sm:$0xff]
    %v416 = vld [vmem:[%s2 + $0xd0] sm:$0xff]
    %v417 = vld [vmem:[%s2 + $0xd8] sm:$0xff]
    %v418 = vld [vmem:[%s2 + $0xe0] sm:$0xff]
    %v419 = vld [vmem:[%s2 + $0xe8] sm:$0xff]
    %v420 = vld [vmem:[%s2 + $0xf0] sm:$0xff]
    %v421 = vld [vmem:[%s2 + $0xf8] sm:$0xff]
    %v422 = vld [vmem:[%s3] sm:$0xff]
    %v423 = vld [vmem:[%s3 + $0x8] sm:$0xff]
    %v424 = vld [vmem:[%s3 + $0x10] sm:$0xff]
    %v425 = vld [vmem:[%s3 + $0x18] sm:$0xff]
    %v426 = vld [vmem:[%s3 + $0x20] sm:$0xff]
    %v427 = vld [vmem:[%s3 + $0x28] sm:$0xff]
    %v428 = vld [vmem:[%s3 + $0x30] sm:$0xff]
    %v429 = vld [vmem:[%s3 + $0x38] sm:$0xff]
    %v430 = vld [vmem:[%s3 + $0x40] sm:$0xff]
    %v431 = vld [vmem:[%s3 + $0x48] sm:$0xff]
    %v432 = vld [vmem:[%s3 + $0x50] sm:$0xff]
    %v433 = vld [vmem:[%s3 + $0x58] sm:$0xff]
    %v434 = vld [vmem:[%s3 + $0x60] sm:$0xff]
    %v435 = vld [vmem:[%s3 + $0x68] sm:$0xff]
    %v436 = vld [vmem:[%s3 + $0x70] sm:$0xff]
    %v437 = vld [vmem:[%s3 + $0x78] sm:$0xff]
    %v438 = vld [vmem:[%s3 + $0x80] sm:$0xff]
    %v439 = vld [vmem:[%s3 + $0x88] sm:$0xff]
    %v440 = vld [vmem:[%s3 + $0x90] sm:$0xff]
    %v441 = vld [vmem:[%s3 + $0x98] sm:$0xff]
    %v442 = vld [vmem:[%s3 + $0xa0] sm:$0xff]
    %v443 = vld [vmem:[%s3 + $0xa8] sm:$0xff]
    %v444 = vld [vmem:[%s3 + $0xb0] sm:$0xff]
    %v445 = vld [vmem:[%s3 + $0xb8] sm:$0xff]
    %v446 = vld [vmem:[%s3 + $0xc0] sm:$0xff]
    %v447 = vld [vmem:[%s3 + $0xc8] sm:$0xff]
    %v448 = vld [vmem:[%s3 + $0xd0] sm:$0xff]
    %v449 = vld [vmem:[%s3 + $0xd8] sm:$0xff]
    %v450 = vld [vmem:[%s3 + $0xe0] sm:$0xff]
    %v451 = vld [vmem:[%s3 + $0xe8] sm:$0xff]
    %v452 = vld [vmem:[%s3 + $0xf0] sm:$0xff]
    %v453 = vld [vmem:[%s3 + $0xf8] sm:$0xff]
    %v486 = vunpack.c.l.b16 %v422
    %v487 = vunpack.c.h.b16 %v422
    %v488 = vunpack.c.l.b16 %v423
    %v489 = vunpack.c.h.b16 %v423
    %v490 = vunpack.c.l.b16 %v424
    %v491 = vunpack.c.h.b16 %v424
    %v492 = vunpack.c.l.b16 %v425
    %v493 = vunpack.c.h.b16 %v425
    %v494 = vunpack.c.l.b16 %v426
    %v495 = vunpack.c.h.b16 %v426
    %v496 = vunpack.c.l.b16 %v427
    %v497 = vunpack.c.h.b16 %v427
    %v498 = vunpack.c.l.b16 %v428
    %v499 = vunpack.c.h.b16 %v428
    %v500 = vunpack.c.l.b16 %v429
    %v501 = vunpack.c.h.b16 %v429
    %v502 = vunpack.c.l.b16 %v430
    %v503 = vunpack.c.h.b16 %v430
    %v504 = vunpack.c.l.b16 %v431
    %v505 = vunpack.c.h.b16 %v431
    %v506 = vunpack.c.l.b16 %v432
    %v507 = vunpack.c.h.b16 %v432
    %v508 = vunpack.c.l.b16 %v433
    %v509 = vunpack.c.h.b16 %v433
    %v510 = vunpack.c.l.b16 %v434
    %v511 = vunpack.c.h.b16 %v434
    %v512 = vunpack.c.l.b16 %v435
    %v513 = vunpack.c.h.b16 %v435
    %v514 = vunpack.c.l.b16 %v436
    %v515 = vunpack.c.h.b16 %v436
    %v516 = vunpack.c.l.b16 %v437
    %v517 = vunpack.c.h.b16 %v437
    %v518 = vunpack.c.l.b16 %v438
    %v519 = vunpack.c.h.b16 %v438
    %v520 = vunpack.c.l.b16 %v439
    %v521 = vunpack.c.h.b16 %v439
    %v522 = vunpack.c.l.b16 %v440
    %v523 = vunpack.c.h.b16 %v440
    %v524 = vunpack.c.l.b16 %v441
    %v525 = vunpack.c.h.b16 %v441
    %v526 = vunpack.c.l.b16 %v442
    %v527 = vunpack.c.h.b16 %v442
    %v528 = vunpack.c.l.b16 %v443
    %v529 = vunpack.c.h.b16 %v443
    %v530 = vunpack.c.l.b16 %v444
    %v531 = vunpack.c.h.b16 %v444
    %v532 = vunpack.c.l.b16 %v445
    %v533 = vunpack.c.h.b16 %v445
    %v534 = vunpack.c.l.b16 %v446
    %v535 = vunpack.c.h.b16 %v446
    %v536 = vunpack.c.l.b16 %v447
    %v537 = vunpack.c.h.b16 %v447
    %v538 = vunpack.c.l.b16 %v448
    %v539 = vunpack.c.h.b16 %v448
    %v540 = vunpack.c.l.b16 %v449
    %v541 = vunpack.c.h.b16 %v449
    %v542 = vunpack.c.l.b16 %v450
    %v543 = vunpack.c.h.b16 %v450
    %v544 = vunpack.c.l.b16 %v451
    %v545 = vunpack.c.h.b16 %v451
    %v546 = vunpack.c.l.b16 %v452
    %v547 = vunpack.c.h.b16 %v452
    %v548 = vunpack.c.l.b16 %v453
    %v549 = vunpack.c.h.b16 %v453
    %v550 = vpack.c.b16 %v490, %v486
    %v551 = vpack.c.b16 %v491, %v487
    %v552 = vpack.c.b16 %v492, %v488
    %v553 = vpack.c.b16 %v493, %v489
    %v554 = vpack.c.b16 %v498, %v494
    %v555 = vpack.c.b16 %v499, %v495
    %v556 = vpack.c.b16 %v500, %v496
    %v557 = vpack.c.b16 %v501, %v497
    %v558 = vpack.c.b16 %v506, %v502
    %v559 = vpack.c.b16 %v507, %v503
    %v560 = vpack.c.b16 %v508, %v504
    %v561 = vpack.c.b16 %v509, %v505
    %v562 = vpack.c.b16 %v514, %v510
    %v563 = vpack.c.b16 %v515, %v511
    %v564 = vpack.c.b16 %v516, %v512
    %v565 = vpack.c.b16 %v517, %v513
    %v566 = vpack.c.b16 %v522, %v518
    %v567 = vpack.c.b16 %v523, %v519
    %v568 = vpack.c.b16 %v524, %v520
    %v569 = vpack.c.b16 %v525, %v521
    %v570 = vpack.c.b16 %v530, %v526
    %v571 = vpack.c.b16 %v531, %v527
    %v572 = vpack.c.b16 %v532, %v528
    %v573 = vpack.c.b16 %v533, %v529
    %v574 = vpack.c.b16 %v538, %v534
    %v575 = vpack.c.b16 %v539, %v535
    %v576 = vpack.c.b16 %v540, %v536
    %v577 = vpack.c.b16 %v541, %v537
    %v578 = vpack.c.b16 %v546, %v542
    %v579 = vpack.c.b16 %v547, %v543
    %v580 = vpack.c.b16 %v548, %v544
    %v581 = vpack.c.b16 %v549, %v545
    %614 = vmatprep.subr.bf16.mxu0 %v551
    %615 = vmatpush1.bf16.msra.mxu0 %v550
    %616 = vmatprep.subr.bf16.mxu0 %v555
    %617 = vmatpush1.bf16.msra.mxu0 %v554
    %618 = vmatprep.subr.bf16.mxu0 %v559
    %619 = vmatpush1.bf16.msra.mxu0 %v558
    %620 = vmatprep.subr.bf16.mxu0 %v563
    %621 = vmatpush1.bf16.msra.mxu0 %v562
    %622 = vmatprep.subr.bf16.mxu0 %v567
    %623 = vmatpush1.bf16.msra.mxu0 %v566
    %624 = vmatprep.subr.bf16.mxu0 %v571
    %625 = vmatpush1.bf16.msra.mxu0 %v570
    %626 = vmatprep.subr.bf16.mxu0 %v575
    %627 = vmatpush1.bf16.msra.mxu0 %v574
    %628 = vmatprep.subr.bf16.mxu0 %v579
    %629 = vmatpush1.bf16.msra.mxu0 %v578
    %630 = vmatprep.subr.bf16.mxu0 0
    %631 = vmatpush1.bf16.msra.mxu0 0
    %632 = vmatprep.subr.bf16.mxu0 0
    %633 = vmatpush1.bf16.msra.mxu0 0
    %634 = vmatprep.subr.bf16.mxu0 0
    %635 = vmatpush1.bf16.msra.mxu0 0
    %636 = vmatprep.subr.bf16.mxu0 0
    %637 = vmatpush1.bf16.msra.mxu0 0
    %638 = vmatprep.subr.bf16.mxu0 0
    %639 = vmatpush1.bf16.msra.mxu0 0
    %640 = vmatprep.subr.bf16.mxu0 0
    %641 = vmatpush1.bf16.msra.mxu0 0
    %642 = vmatprep.subr.bf16.mxu0 0
    %643 = vmatpush1.bf16.msra.mxu0 0
    %644 = vmatprep.subr.bf16.mxu0 0
    %645 = vmatpush1.bf16.msra.mxu0 0
    %646 = vmatprep.mubr.bf16.mxu0 0
    %647 = vmatmul.mubr.bf16.gmra.mrb[0].mxu0 %v269
    %v648 = vpop.f32.mrb[0].mxu0
    %v649 = vadd.f32 0.0, %v648
    %v650 = vpop.f32.mrb[0].mxu0
    %v651 = vadd.f32 0.0, %v650
    %v652 = vpop.f32.mrb[0].mxu0
    %v653 = vadd.f32 0.0, %v652
    %v654 = vpop.f32.mrb[0].mxu0
    %v655 = vadd.f32 0.0, %v654
    %656 = vmatprep.mubr.bf16.mxu0 0
    %657 = vmatmul.mubr.bf16.gmra.mrb[0].mxu0 %v270
    %v658 = vpop.f32.mrb[0].mxu0
    %v659 = vadd.f32 0.0, %v658
    %v660 = vpop.f32.mrb[0].mxu0
    %v661 = vadd.f32 0.0, %v660
    %v662 = vpop.f32.mrb[0].mxu0
    %v663 = vadd.f32 0.0, %v662
    %v664 = vpop.f32.mrb[0].mxu0
    %v665 = vadd.f32 0.0, %v664
    %666 = vmatprep.mubr.bf16.mxu0 0
    %667 = vmatmul.mubr.bf16.gmra.mrb[0].mxu0 %v271
    %v668 = vpop.f32.mrb[0].mxu0
    %v669 = vadd.f32 0.0, %v668
    %v670 = vpop.f32.mrb[0].mxu0
    %v671 = vadd.f32 0.0, %v670
    %v672 = vpop.f32.mrb[0].mxu0
    %v673 = vadd.f32 0.0, %v672
    %v674 = vpop.f32.mrb[0].mxu0
    %v675 = vadd.f32 0.0, %v674
    %676 = vmatprep.mubr.bf16.mxu0 0
    %677 = vmatmul.mubr.bf16.gmra.mrb[0].mxu0 %v272
    %v678 = vpop.f32.mrb[0].mxu0
    %v679 = vadd.f32 0.0, %v678
    %v680 = vpop.f32.mrb[0].mxu0
    %v681 = vadd.f32 0.0, %v680
    %v682 = vpop.f32.mrb[0].mxu0
    %v683 = vadd.f32 0.0, %v682
    %v684 = vpop.f32.mrb[0].mxu0
    %v685 = vadd.f32 0.0, %v684
    %686 = vmatprep.mubr.bf16.mxu0 0
    %687 = vmatmul.mubr.bf16.gmra.mrb[0].mxu0 %v273
    %v688 = vpop.f32.mrb[0].mxu0
    %v689 = vadd.f32 0.0, %v688
    %v690 = vpop.f32.mrb[0].mxu0
    %v691 = vadd.f32 0.0, %v690
    %v692 = vpop.f32.mrb[0].mxu0
    %v693 = vadd.f32 0.0, %v692
    %v694 = vpop.f32.mrb[0].mxu0
    %v695 = vadd.f32 0.0, %v694
    %696 = vmatprep.mubr.bf16.mxu0 0
    %697 = vmatmul.mubr.bf16.gmra.mrb[0].mxu0 %v274
    %v698 = vpop.f32.mrb[0].mxu0
    %v699 = vadd.f32 0.0, %v698
    %v700 = vpop.f32.mrb[0].mxu0
    %v701 = vadd.f32 0.0, %v700
    %v702 = vpop.f32.mrb[0].mxu0
    %v703 = vadd.f32 0.0, %v702
    %v704 = vpop.f32.mrb[0].mxu0
    %v705 = vadd.f32 0.0, %v704
    %706 = vmatprep.mubr.bf16.mxu0 0
    %707 = vmatmul.mubr.bf16.gmra.mrb[0].mxu0 %v275
    %v708 = vpop.f32.mrb[0].mxu0
    %v709 = vadd.f32 0.0, %v708
    %v710 = vpop.f32.mrb[0].mxu0
    %v711 = vadd.f32 0.0, %v710
    %v712 = vpop.f32.mrb[0].mxu0
    %v713 = vadd.f32 0.0, %v712
    %v714 = vpop.f32.mrb[0].mxu0
    %v715 = vadd.f32 0.0, %v714
    %716 = vmatprep.mubr.bf16.mxu0 0
    %717 = vmatmul.mubr.bf16.gmra.mrb[0].mxu0 %v276
    %v718 = vpop.f32.mrb[0].mxu0
    %v719 = vadd.f32 0.0, %v718
    %v720 = vpop.f32.mrb[0].mxu0
    %v721 = vadd.f32 0.0, %v720
    %v722 = vpop.f32.mrb[0].mxu0
    %v723 = vadd.f32 0.0, %v722
    %v724 = vpop.f32.mrb[0].mxu0
    %v725 = vadd.f32 0.0, %v724
    %726 = vdwg.mxu0
    %727 = vmatprep.subr.bf16.mxu0 %v553
    %728 = vmatpush1.bf16.msra.mxu0 %v552
    %729 = vmatprep.subr.bf16.mxu0 %v557
    %730 = vmatpush1.bf16.msra.mxu0 %v556
    %731 = vmatprep.subr.bf16.mxu0 %v561
    %732 = vmatpush1.bf16.msra.mxu0 %v560
    %733 = vmatprep.subr.bf16.mxu0 %v565
    %734 = vmatpush1.bf16.msra.mxu0 %v564
    %735 = vmatprep.subr.bf16.mxu0 %v569
    %736 = vmatpush1.bf16.msra.mxu0 %v568
    %737 = vmatprep.subr.bf16.mxu0 %v573
    %738 = vmatpush1.bf16.msra.mxu0 %v572
    %739 = vmatprep.subr.bf16.mxu0 %v577
    %740 = vmatpush1.bf16.msra.mxu0 %v576
    %741 = vmatprep.subr.bf16.mxu0 %v581
    %742 = vmatpush1.bf16.msra.mxu0 %v580
    %743 = vmatprep.subr.bf16.mxu0 0
    %744 = vmatpush1.bf16.msra.mxu0 0
    %745 = vmatprep.subr.bf16.mxu0 0
    %746 = vmatpush1.bf16.msra.mxu0 0
    %747 = vmatprep.subr.bf16.mxu0 0
    %748 = vmatpush1.bf16.msra.mxu0 0
    %749 = vmatprep.subr.bf16.mxu0 0
    %750 = vmatpush1.bf16.msra.mxu0 0
    %751 = vmatprep.subr.bf16.mxu0 0
    %752 = vmatpush1.bf16.msra.mxu0 0
    %753 = vmatprep.subr.bf16.mxu0 0
    %754 = vmatpush1.bf16.msra.mxu0 0
    %755 = vmatprep.subr.bf16.mxu0 0
    %756 = vmatpush1.bf16.msra.mxu0 0
    %757 = vmatprep.subr.bf16.mxu0 0
    %758 = vmatpush1.bf16.msra.mxu0 0
    %759 = vmatprep.mubr.bf16.mxu0 0
    %760 = vmatmul.mubr.bf16.gmra.mrb[0].mxu0 %v269
    %v761 = vpop.f32.mrb[0].mxu0
    %v762 = vadd.f32 0.0, %v761
    %v763 = vpop.f32.mrb[0].mxu0
    %v764 = vadd.f32 0.0, %v763
    %v765 = vpop.f32.mrb[0].mxu0
    %v766 = vadd.f32 0.0, %v765
    %v767 = vpop.f32.mrb[0].mxu0
    %v768 = vadd.f32 0.0, %v767
    %769 = vmatprep.mubr.bf16.mxu0 0
    %770 = vmatmul.mubr.bf16.gmra.mrb[0].mxu0 %v270
    %v771 = vpop.f32.mrb[0].mxu0
    %v772 = vadd.f32 0.0, %v771
    %v773 = vpop.f32.mrb[0].mxu0
    %v774 = vadd.f32 0.0, %v773
    %v775 = vpop.f32.mrb[0].mxu0
    %v776 = vadd.f32 0.0, %v775
    %v777 = vpop.f32.mrb[0].mxu0
    %v778 = vadd.f32 0.0, %v777
    %779 = vmatprep.mubr.bf16.mxu0 0
    %780 = vmatmul.mubr.bf16.gmra.mrb[0].mxu0 %v271
    %v781 = vpop.f32.mrb[0].mxu0
    %v782 = vadd.f32 0.0, %v781
    %v783 = vpop.f32.mrb[0].mxu0
    %v784 = vadd.f32 0.0, %v783
    %v785 = vpop.f32.mrb[0].mxu0
    %v786 = vadd.f32 0.0, %v785
    %v787 = vpop.f32.mrb[0].mxu0
    %v788 = vadd.f32 0.0, %v787
    %789 = vmatprep.mubr.bf16.mxu0 0
    %790 = vmatmul.mubr.bf16.gmra.mrb[0].mxu0 %v272
    %v791 = vpop.f32.mrb[0].mxu0
    %v792 = vadd.f32 0.0, %v791
    %v793 = vpop.f32.mrb[0].mxu0
    %v794 = vadd.f32 0.0, %v793
    %v795 = vpop.f32.mrb[0].mxu0
    %v796 = vadd.f32 0.0, %v795
    %v797 = vpop.f32.mrb[0].mxu0
    %v798 = vadd.f32 0.0, %v797
    %799 = vmatprep.mubr.bf16.mxu0 0
    %800 = vmatmul.mubr.bf16.gmra.mrb[0].mxu0 %v273
    %v801 = vpop.f32.mrb[0].mxu0
    %v802 = vadd.f32 0.0, %v801
    %v803 = vpop.f32.mrb[0].mxu0
    %v804 = vadd.f32 0.0, %v803
    %v805 = vpop.f32.mrb[0].mxu0
    %v806 = vadd.f32 0.0, %v805
    %v807 = vpop.f32.mrb[0].mxu0
    %v808 = vadd.f32 0.0, %v807
    %809 = vmatprep.mubr.bf16.mxu0 0
    %810 = vmatmul.mubr.bf16.gmra.mrb[0].mxu0 %v274
    %v811 = vpop.f32.mrb[0].mxu0
    %v812 = vadd.f32 0.0, %v811
    %v813 = vpop.f32.mrb[0].mxu0
    %v814 = vadd.f32 0.0, %v813
    %v815 = vpop.f32.mrb[0].mxu0
    %v816 = vadd.f32 0.0, %v815
    %v817 = vpop.f32.mrb[0].mxu0
    %v818 = vadd.f32 0.0, %v817
    %819 = vmatprep.mubr.bf16.mxu0 0
    %820 = vmatmul.mubr.bf16.gmra.mrb[0].mxu0 %v275
    %v821 = vpop.f32.mrb[0].mxu0
    %v822 = vadd.f32 0.0, %v821
    %v823 = vpop.f32.mrb[0].mxu0
    %v824 = vadd.f32 0.0, %v823
    %v825 = vpop.f32.mrb[0].mxu0
    %v826 = vadd.f32 0.0, %v825
    %v827 = vpop.f32.mrb[0].mxu0
    %v828 = vadd.f32 0.0, %v827
    %829 = vmatprep.mubr.bf16.mxu0 0
    %830 = vmatmul.mubr.bf16.gmra.mrb[0].mxu0 %v276
    %v831 = vpop.f32.mrb[0].mxu0
    %v832 = vadd.f32 0.0, %v831
    %v833 = vpop.f32.mrb[0].mxu0
    %v834 = vadd.f32 0.0, %v833
    %v835 = vpop.f32.mrb[0].mxu0
    %v836 = vadd.f32 0.0, %v835
    %v837 = vpop.f32.mrb[0].mxu0
    %v838 = vadd.f32 0.0, %v837
    %839 = vdwg.mxu0
    %v872 = vunpack.c.l.b16 %v390
    %v873 = vunpack.c.h.b16 %v390
    %v874 = vunpack.c.l.b16 %v391
    %v875 = vunpack.c.h.b16 %v391
    %v876 = vunpack.c.l.b16 %v392
    %v877 = vunpack.c.h.b16 %v392
    %v878 = vunpack.c.l.b16 %v393
    %v879 = vunpack.c.h.b16 %v393
    %v880 = vunpack.c.l.b16 %v394
    %v881 = vunpack.c.h.b16 %v394
    %v882 = vunpack.c.l.b16 %v395
    %v883 = vunpack.c.h.b16 %v395
    %v884 = vunpack.c.l.b16 %v396
    %v885 = vunpack.c.h.b16 %v396
    %v886 = vunpack.c.l.b16 %v397
    %v887 = vunpack.c.h.b16 %v397
    %v888 = vunpack.c.l.b16 %v398
    %v889 = vunpack.c.h.b16 %v398
    %v890 = vunpack.c.l.b16 %v399
    %v891 = vunpack.c.h.b16 %v399
    %v892 = vunpack.c.l.b16 %v400
    %v893 = vunpack.c.h.b16 %v400
    %v894 = vunpack.c.l.b16 %v401
    %v895 = vunpack.c.h.b16 %v401
    %v896 = vunpack.c.l.b16 %v402
    %v897 = vunpack.c.h.b16 %v402
    %v898 = vunpack.c.l.b16 %v403
    %v899 = vunpack.c.h.b16 %v403
    %v900 = vunpack.c.l.b16 %v404
    %v901 = vunpack.c.h.b16 %v404
    %v902 = vunpack.c.l.b16 %v405
    %v903 = vunpack.c.h.b16 %v405
    %v904 = vunpack.c.l.b16 %v406
    %v905 = vunpack.c.h.b16 %v406
    %v906 = vunpack.c.l.b16 %v407
    %v907 = vunpack.c.h.b16 %v407
    %v908 = vunpack.c.l.b16 %v408
    %v909 = vunpack.c.h.b16 %v408
    %v910 = vunpack.c.l.b16 %v409
    %v911 = vunpack.c.h.b16 %v409
    %v912 = vunpack.c.l.b16 %v410
    %v913 = vunpack.c.h.b16 %v410
    %v914 = vunpack.c.l.b16 %v411
    %v915 = vunpack.c.h.b16 %v411
    %v916 = vunpack.c.l.b16 %v412
    %v917 = vunpack.c.h.b16 %v412
    %v918 = vunpack.c.l.b16 %v413
    %v919 = vunpack.c.h.b16 %v413
    %v920 = vunpack.c.l.b16 %v414
    %v921 = vunpack.c.h.b16 %v414
    %v922 = vunpack.c.l.b16 %v415
    %v923 = vunpack.c.h.b16 %v415
    %v924 = vunpack.c.l.b16 %v416
    %v925 = vunpack.c.h.b16 %v416
    %v926 = vunpack.c.l.b16 %v417
    %v927 = vunpack.c.h.b16 %v417
    %v928 = vunpack.c.l.b16 %v418
    %v929 = vunpack.c.h.b16 %v418
    %v930 = vunpack.c.l.b16 %v419
    %v931 = vunpack.c.h.b16 %v419
    %v932 = vunpack.c.l.b16 %v420
    %v933 = vunpack.c.h.b16 %v420
    %v934 = vunpack.c.l.b16 %v421
    %v935 = vunpack.c.h.b16 %v421
    %v936 = vpack.c.b16 %v876, %v872
    %v937 = vpack.c.b16 %v877, %v873
    %v938 = vpack.c.b16 %v878, %v874
    %v939 = vpack.c.b16 %v879, %v875
    %v940 = vpack.c.b16 %v884, %v880
    %v941 = vpack.c.b16 %v885, %v881
    %v942 = vpack.c.b16 %v886, %v882
    %v943 = vpack.c.b16 %v887, %v883
    %v944 = vpack.c.b16 %v892, %v888
    %v945 = vpack.c.b16 %v893, %v889
    %v946 = vpack.c.b16 %v894, %v890
    %v947 = vpack.c.b16 %v895, %v891
    %v948 = vpack.c.b16 %v900, %v896
    %v949 = vpack.c.b16 %v901, %v897
    %v950 = vpack.c.b16 %v902, %v898
    %v951 = vpack.c.b16 %v903, %v899
    %v952 = vpack.c.b16 %v908, %v904
    %v953 = vpack.c.b16 %v909, %v905
    %v954 = vpack.c.b16 %v910, %v906
    %v955 = vpack.c.b16 %v911, %v907
    %v956 = vpack.c.b16 %v916, %v912
    %v957 = vpack.c.b16 %v917, %v913
    %v958 = vpack.c.b16 %v918, %v914
    %v959 = vpack.c.b16 %v919, %v915
    %v960 = vpack.c.b16 %v924, %v920
    %v961 = vpack.c.b16 %v925, %v921
    %v962 = vpack.c.b16 %v926, %v922
    %v963 = vpack.c.b16 %v927, %v923
    %v964 = vpack.c.b16 %v932, %v928
    %v965 = vpack.c.b16 %v933, %v929
    %v966 = vpack.c.b16 %v934, %v930
    %v967 = vpack.c.b16 %v935, %v931
    %1000 = vmatprep.subr.bf16.mxu0 %v937
    %1001 = vmatpush1.bf16.msra.mxu0 %v936
    %1002 = vmatprep.subr.bf16.mxu0 %v941
    %1003 = vmatpush1.bf16.msra.mxu0 %v940
    %1004 = vmatprep.subr.bf16.mxu0 %v945
    %1005 = vmatpush1.bf16.msra.mxu0 %v944
    %1006 = vmatprep.subr.bf16.mxu0 %v949
    %1007 = vmatpush1.bf16.msra.mxu0 %v948
    %1008 = vmatprep.subr.bf16.mxu0 %v953
    %1009 = vmatpush1.bf16.msra.mxu0 %v952
    %1010 = vmatprep.subr.bf16.mxu0 %v957
    %1011 = vmatpush1.bf16.msra.mxu0 %v956
    %1012 = vmatprep.subr.bf16.mxu0 %v961
    %1013 = vmatpush1.bf16.msra.mxu0 %v960
    %1014 = vmatprep.subr.bf16.mxu0 %v965
    %1015 = vmatpush1.bf16.msra.mxu0 %v964
    %1016 = vmatprep.subr.bf16.mxu0 0
    %1017 = vmatpush1.bf16.msra.mxu0 0
    %1018 = vmatprep.subr.bf16.mxu0 0
    %1019 = vmatpush1.bf16.msra.mxu0 0
    %1020 = vmatprep.subr.bf16.mxu0 0
    %1021 = vmatpush1.bf16.msra.mxu0 0
    %1022 = vmatprep.subr.bf16.mxu0 0
    %1023 = vmatpush1.bf16.msra.mxu0 0
    %1024 = vmatprep.subr.bf16.mxu0 0
    %1025 = vmatpush1.bf16.msra.mxu0 0
    %1026 = vmatprep.subr.bf16.mxu0 0
    %1027 = vmatpush1.bf16.msra.mxu0 0
    %1028 = vmatprep.subr.bf16.mxu0 0
    %1029 = vmatpush1.bf16.msra.mxu0 0
    %1030 = vmatprep.subr.bf16.mxu0 0
    %1031 = vmatpush1.bf16.msra.mxu0 0
    %1032 = vmatprep.mubr.bf16.mxu0 0
    %1033 = vmatmul.mubr.bf16.gmra.mrb[0].mxu0 %v382
    %v1034 = vpop.f32.mrb[0].mxu0
    %v1035 = vadd.f32 %v649, %v1034
    %v1036 = vpop.f32.mrb[0].mxu0
    %v1037 = vadd.f32 %v651, %v1036
    %v1038 = vpop.f32.mrb[0].mxu0
    %v1039 = vadd.f32 %v653, %v1038
    %v1040 = vpop.f32.mrb[0].mxu0
    %v1041 = vadd.f32 %v655, %v1040
    %1042 = vmatprep.mubr.bf16.mxu0 0
    %1043 = vmatmul.mubr.bf16.gmra.mrb[0].mxu0 %v383
    %v1044 = vpop.f32.mrb[0].mxu0
    %v1045 = vadd.f32 %v659, %v1044
    %v1046 = vpop.f32.mrb[0].mxu0
    %v1047 = vadd.f32 %v661, %v1046
    %v1048 = vpop.f32.mrb[0].mxu0
    %v1049 = vadd.f32 %v663, %v1048
    %v1050 = vpop.f32.mrb[0].mxu0
    %v1051 = vadd.f32 %v665, %v1050
    %1052 = vmatprep.mubr.bf16.mxu0 0
    %1053 = vmatmul.mubr.bf16.gmra.mrb[0].mxu0 %v384
    %v1054 = vpop.f32.mrb[0].mxu0
    %v1055 = vadd.f32 %v669, %v1054
    %v1056 = vpop.f32.mrb[0].mxu0
    %v1057 = vadd.f32 %v671, %v1056
    %v1058 = vpop.f32.mrb[0].mxu0
    %v1059 = vadd.f32 %v673, %v1058
    %v1060 = vpop.f32.mrb[0].mxu0
    %v1061 = vadd.f32 %v675, %v1060
    %1062 = vmatprep.mubr.bf16.mxu0 0
    %1063 = vmatmul.mubr.bf16.gmra.mrb[0].mxu0 %v385
    %v1064 = vpop.f32.mrb[0].mxu0
    %v1065 = vadd.f32 %v679, %v1064
    %v1066 = vpop.f32.mrb[0].mxu0
    %v1067 = vadd.f32 %v681, %v1066
    %v1068 = vpop.f32.mrb[0].mxu0
    %v1069 = vadd.f32 %v683, %v1068
    %v1070 = vpop.f32.mrb[0].mxu0
    %v1071 = vadd.f32 %v685, %v1070
    %1072 = vmatprep.mubr.bf16.mxu0 0
    %1073 = vmatmul.mubr.bf16.gmra.mrb[0].mxu0 %v386
    %v1074 = vpop.f32.mrb[0].mxu0
    %v1075 = vadd.f32 %v689, %v1074
    %v1076 = vpop.f32.mrb[0].mxu0
    %v1077 = vadd.f32 %v691, %v1076
    %v1078 = vpop.f32.mrb[0].mxu0
    %v1079 = vadd.f32 %v693, %v1078
    %v1080 = vpop.f32.mrb[0].mxu0
    %v1081 = vadd.f32 %v695, %v1080
    %1082 = vmatprep.mubr.bf16.mxu0 0
    %1083 = vmatmul.mubr.bf16.gmra.mrb[0].mxu0 %v387
    %v1084 = vpop.f32.mrb[0].mxu0
    %v1085 = vadd.f32 %v699, %v1084
    %v1086 = vpop.f32.mrb[0].mxu0
    %v1087 = vadd.f32 %v701, %v1086
    %v1088 = vpop.f32.mrb[0].mxu0
    %v1089 = vadd.f32 %v703, %v1088
    %v1090 = vpop.f32.mrb[0].mxu0
    %v1091 = vadd.f32 %v705, %v1090
    %1092 = vmatprep.mubr.bf16.mxu0 0
    %1093 = vmatmul.mubr.bf16.gmra.mrb[0].mxu0 %v388
    %v1094 = vpop.f32.mrb[0].mxu0
    %v1095 = vadd.f32 %v709, %v1094
    %v1096 = vpop.f32.mrb[0].mxu0
    %v1097 = vadd.f32 %v711, %v1096
    %v1098 = vpop.f32.mrb[0].mxu0
    %v1099 = vadd.f32 %v713, %v1098
    %v1100 = vpop.f32.mrb[0].mxu0
    %v1101 = vadd.f32 %v715, %v1100
    %1102 = vmatprep.mubr.bf16.mxu0 0
    %1103 = vmatmul.mubr.bf16.gmra.mrb[0].mxu0 %v389
    %v1104 = vpop.f32.mrb[0].mxu0
    %v1105 = vadd.f32 %v719, %v1104
    %v1106 = vpop.f32.mrb[0].mxu0
    %v1107 = vadd.f32 %v721, %v1106
    %v1108 = vpop.f32.mrb[0].mxu0
    %v1109 = vadd.f32 %v723, %v1108
    %v1110 = vpop.f32.mrb[0].mxu0
    %v1111 = vadd.f32 %v725, %v1110
    %1112 = vdwg.mxu0
    %1113 = vmatprep.subr.bf16.mxu0 %v939
    %1114 = vmatpush1.bf16.msra.mxu0 %v938
    %1115 = vmatprep.subr.bf16.mxu0 %v943
    %1116 = vmatpush1.bf16.msra.mxu0 %v942
    %1117 = vmatprep.subr.bf16.mxu0 %v947
    %1118 = vmatpush1.bf16.msra.mxu0 %v946
    %1119 = vmatprep.subr.bf16.mxu0 %v951
    %1120 = vmatpush1.bf16.msra.mxu0 %v950
    %1121 = vmatprep.subr.bf16.mxu0 %v955
    %1122 = vmatpush1.bf16.msra.mxu0 %v954
    %1123 = vmatprep.subr.bf16.mxu0 %v959
    %1124 = vmatpush1.bf16.msra.mxu0 %v958
    %1125 = vmatprep.subr.bf16.mxu0 %v963
    %1126 = vmatpush1.bf16.msra.mxu0 %v962
    %1127 = vmatprep.subr.bf16.mxu0 %v967
    %1128 = vmatpush1.bf16.msra.mxu0 %v966
    %1129 = vmatprep.subr.bf16.mxu0 0
    %1130 = vmatpush1.bf16.msra.mxu0 0
    %1131 = vmatprep.subr.bf16.mxu0 0
    %1132 = vmatpush1.bf16.msra.mxu0 0
    %1133 = vmatprep.subr.bf16.mxu0 0
    %1134 = vmatpush1.bf16.msra.mxu0 0
    %1135 = vmatprep.subr.bf16.mxu0 0
    %1136 = vmatpush1.bf16.msra.mxu0 0
    %1137 = vmatprep.subr.bf16.mxu0 0
    %1138 = vmatpush1.bf16.msra.mxu0 0
    %1139 = vmatprep.subr.bf16.mxu0 0
    %1140 = vmatpush1.bf16.msra.mxu0 0
    %1141 = vmatprep.subr.bf16.mxu0 0
    %1142 = vmatpush1.bf16.msra.mxu0 0
    %1143 = vmatprep.subr.bf16.mxu0 0
    %1144 = vmatpush1.bf16.msra.mxu0 0
    %1145 = vmatprep.mubr.bf16.mxu0 0
    %1146 = vmatmul.mubr.bf16.gmra.mrb[0].mxu0 %v382
    %v1147 = vpop.f32.mrb[0].mxu0
    %v1148 = vadd.f32 %v762, %v1147
    %v1149 = vpop.f32.mrb[0].mxu0
    %v1150 = vadd.f32 %v764, %v1149
    %v1151 = vpop.f32.mrb[0].mxu0
    %v1152 = vadd.f32 %v766, %v1151
    %v1153 = vpop.f32.mrb[0].mxu0
    %v1154 = vadd.f32 %v768, %v1153
    %1155 = vmatprep.mubr.bf16.mxu0 0
    %1156 = vmatmul.mubr.bf16.gmra.mrb[0].mxu0 %v383
    %v1157 = vpop.f32.mrb[0].mxu0
    %v1158 = vadd.f32 %v772, %v1157
    %v1159 = vpop.f32.mrb[0].mxu0
    %v1160 = vadd.f32 %v774, %v1159
    %v1161 = vpop.f32.mrb[0].mxu0
    %v1162 = vadd.f32 %v776, %v1161
    %v1163 = vpop.f32.mrb[0].mxu0
    %v1164 = vadd.f32 %v778, %v1163
    %1165 = vmatprep.mubr.bf16.mxu0 0
    %1166 = vmatmul.mubr.bf16.gmra.mrb[0].mxu0 %v384
    %v1167 = vpop.f32.mrb[0].mxu0
    %v1168 = vadd.f32 %v782, %v1167
    %v1169 = vpop.f32.mrb[0].mxu0
    %v1170 = vadd.f32 %v784, %v1169
    %v1171 = vpop.f32.mrb[0].mxu0
    %v1172 = vadd.f32 %v786, %v1171
    %v1173 = vpop.f32.mrb[0].mxu0
    %v1174 = vadd.f32 %v788, %v1173
    %1175 = vmatprep.mubr.bf16.mxu0 0
    %1176 = vmatmul.mubr.bf16.gmra.mrb[0].mxu0 %v385
    %v1177 = vpop.f32.mrb[0].mxu0
    %v1178 = vadd.f32 %v792, %v1177
    %v1179 = vpop.f32.mrb[0].mxu0
    %v1180 = vadd.f32 %v794, %v1179
    %v1181 = vpop.f32.mrb[0].mxu0
    %v1182 = vadd.f32 %v796, %v1181
    %v1183 = vpop.f32.mrb[0].mxu0
    %v1184 = vadd.f32 %v798, %v1183
    %1185 = vmatprep.mubr.bf16.mxu0 0
    %1186 = vmatmul.mubr.bf16.gmra.mrb[0].mxu0 %v386
    %v1187 = vpop.f32.mrb[0].mxu0
    %v1188 = vadd.f32 %v802, %v1187
    %v1189 = vpop.f32.mrb[0].mxu0
    %v1190 = vadd.f32 %v804, %v1189
    %v1191 = vpop.f32.mrb[0].mxu0
    %v1192 = vadd.f32 %v806, %v1191
    %v1193 = vpop.f32.mrb[0].mxu0
    %v1194 = vadd.f32 %v808, %v1193
    %1195 = vmatprep.mubr.bf16.mxu0 0
    %1196 = vmatmul.mubr.bf16.gmra.mrb[0].mxu0 %v387
    %v1197 = vpop.f32.mrb[0].mxu0
    %v1198 = vadd.f32 %v812, %v1197
    %v1199 = vpop.f32.mrb[0].mxu0
    %v1200 = vadd.f32 %v814, %v1199
    %v1201 = vpop.f32.mrb[0].mxu0
    %v1202 = vadd.f32 %v816, %v1201
    %v1203 = vpop.f32.mrb[0].mxu0
    %v1204 = vadd.f32 %v818, %v1203
    %1205 = vmatprep.mubr.bf16.mxu0 0
    %1206 = vmatmul.mubr.bf16.gmra.mrb[0].mxu0 %v388
    %v1207 = vpop.f32.mrb[0].mxu0
    %v1208 = vadd.f32 %v822, %v1207
    %v1209 = vpop.f32.mrb[0].mxu0
    %v1210 = vadd.f32 %v824, %v1209
    %v1211 = vpop.f32.mrb[0].mxu0
    %v1212 = vadd.f32 %v826, %v1211
    %v1213 = vpop.f32.mrb[0].mxu0
    %v1214 = vadd.f32 %v828, %v1213
    %1215 = vmatprep.mubr.bf16.mxu0 0
    %1216 = vmatmul.mubr.bf16.gmra.mrb[0].mxu0 %v389
    %v1217 = vpop.f32.mrb[0].mxu0
    %v1218 = vadd.f32 %v832, %v1217
    %v1219 = vpop.f32.mrb[0].mxu0
    %v1220 = vadd.f32 %v834, %v1219
    %v1221 = vpop.f32.mrb[0].mxu0
    %v1222 = vadd.f32 %v836, %v1221
    %v1223 = vpop.f32.mrb[0].mxu0
    %v1224 = vadd.f32 %v838, %v1223
    %1225 = vdwg.mxu0
    %v1226 = vld [vmem:[%s4] sm:$0xf]
    %v1228 = vlaneseq
    %v1229 = vshrl.u32 %v1228, 7
    %v1230 = vsub.s32 0, %v1229
    %v1231 = vrot.slane %v1226, %v1230
    %v1232 = vlaneseq
    %v1233 = vshrl.u32 %v1232, 7
    %v1234 = vsub.s32 1, %v1233
    %v1235 = vrot.slane %v1226, %v1234
    %v1236 = vlaneseq
    %v1237 = vshrl.u32 %v1236, 7
    %v1238 = vsub.s32 2, %v1237
    %v1239 = vrot.slane %v1226, %v1238
    %v1240 = vlaneseq
    %v1241 = vshrl.u32 %v1240, 7
    %v1242 = vsub.s32 3, %v1241
    %v1243 = vrot.slane %v1226, %v1242
    %v1248 = vadd.f32 %v1035, %v1231
    %v1249 = vadd.f32 %v1037, %v1235
    %v1250 = vadd.f32 %v1148, %v1239
    %v1251 = vadd.f32 %v1150, %v1243
    %v1252 = vadd.f32 %v1039, %v1231
    %v1253 = vadd.f32 %v1041, %v1235
    %v1254 = vadd.f32 %v1152, %v1239
    %v1255 = vadd.f32 %v1154, %v1243
    %v1256 = vadd.f32 %v1045, %v1231
    %v1257 = vadd.f32 %v1047, %v1235
    %v1258 = vadd.f32 %v1158, %v1239
    %v1259 = vadd.f32 %v1160, %v1243
    %v1260 = vadd.f32 %v1049, %v1231
    %v1261 = vadd.f32 %v1051, %v1235
    %v1262 = vadd.f32 %v1162, %v1239
    %v1263 = vadd.f32 %v1164, %v1243
    %v1264 = vadd.f32 %v1055, %v1231
    %v1265 = vadd.f32 %v1057, %v1235
    %v1266 = vadd.f32 %v1168, %v1239
    %v1267 = vadd.f32 %v1170, %v1243
    %v1268 = vadd.f32 %v1059, %v1231
    %v1269 = vadd.f32 %v1061, %v1235
    %v1270 = vadd.f32 %v1172, %v1239
    %v1271 = vadd.f32 %v1174, %v1243
    %v1272 = vadd.f32 %v1065, %v1231
    %v1273 = vadd.f32 %v1067, %v1235
    %v1274 = vadd.f32 %v1178, %v1239
    %v1275 = vadd.f32 %v1180, %v1243
    %v1276 = vadd.f32 %v1069, %v1231
    %v1277 = vadd.f32 %v1071, %v1235
    %v1278 = vadd.f32 %v1182, %v1239
    %v1279 = vadd.f32 %v1184, %v1243
    %v1280 = vadd.f32 %v1075, %v1231
    %v1281 = vadd.f32 %v1077, %v1235
    %v1282 = vadd.f32 %v1188, %v1239
    %v1283 = vadd.f32 %v1190, %v1243
    %v1284 = vadd.f32 %v1079, %v1231
    %v1285 = vadd.f32 %v1081, %v1235
    %v1286 = vadd.f32 %v1192, %v1239
    %v1287 = vadd.f32 %v1194, %v1243
    %v1288 = vadd.f32 %v1085, %v1231
    %v1289 = vadd.f32 %v1087, %v1235
    %v1290 = vadd.f32 %v1198, %v1239
    %v1291 = vadd.f32 %v1200, %v1243
    %v1292 = vadd.f32 %v1089, %v1231
    %v1293 = vadd.f32 %v1091, %v1235
    %v1294 = vadd.f32 %v1202, %v1239
    %v1295 = vadd.f32 %v1204, %v1243
    %v1296 = vadd.f32 %v1095, %v1231
    %v1297 = vadd.f32 %v1097, %v1235
    %v1298 = vadd.f32 %v1208, %v1239
    %v1299 = vadd.f32 %v1210, %v1243
    %v1300 = vadd.f32 %v1099, %v1231
    %v1301 = vadd.f32 %v1101, %v1235
    %v1302 = vadd.f32 %v1212, %v1239
    %v1303 = vadd.f32 %v1214, %v1243
    %v1304 = vadd.f32 %v1105, %v1231
    %v1305 = vadd.f32 %v1107, %v1235
    %v1306 = vadd.f32 %v1218, %v1239
    %v1307 = vadd.f32 %v1220, %v1243
    %v1308 = vadd.f32 %v1109, %v1231
    %v1309 = vadd.f32 %v1111, %v1235
    %v1310 = vadd.f32 %v1222, %v1239
    %v1311 = vadd.f32 %v1224, %v1243
    %v1312 = vmax.f32 %v1248, 0.0
    %v1313 = vmax.f32 %v1249, 0.0
    %v1314 = vmax.f32 %v1250, 0.0
    %v1315 = vmax.f32 %v1251, 0.0
    %v1316 = vmax.f32 %v1252, 0.0
    %v1317 = vmax.f32 %v1253, 0.0
    %v1318 = vmax.f32 %v1254, 0.0
    %v1319 = vmax.f32 %v1255, 0.0
    %v1320 = vmax.f32 %v1256, 0.0
    %v1321 = vmax.f32 %v1257, 0.0
    %v1322 = vmax.f32 %v1258, 0.0
    %v1323 = vmax.f32 %v1259, 0.0
    %v1324 = vmax.f32 %v1260, 0.0
    %v1325 = vmax.f32 %v1261, 0.0
    %v1326 = vmax.f32 %v1262, 0.0
    %v1327 = vmax.f32 %v1263, 0.0
    %v1328 = vmax.f32 %v1264, 0.0
    %v1329 = vmax.f32 %v1265, 0.0
    %v1330 = vmax.f32 %v1266, 0.0
    %v1331 = vmax.f32 %v1267, 0.0
    %v1332 = vmax.f32 %v1268, 0.0
    %v1333 = vmax.f32 %v1269, 0.0
    %v1334 = vmax.f32 %v1270, 0.0
    %v1335 = vmax.f32 %v1271, 0.0
    %v1336 = vmax.f32 %v1272, 0.0
    %v1337 = vmax.f32 %v1273, 0.0
    %v1338 = vmax.f32 %v1274, 0.0
    %v1339 = vmax.f32 %v1275, 0.0
    %v1340 = vmax.f32 %v1276, 0.0
    %v1341 = vmax.f32 %v1277, 0.0
    %v1342 = vmax.f32 %v1278, 0.0
    %v1343 = vmax.f32 %v1279, 0.0
    %v1344 = vmax.f32 %v1280, 0.0
    %v1345 = vmax.f32 %v1281, 0.0
    %v1346 = vmax.f32 %v1282, 0.0
    %v1347 = vmax.f32 %v1283, 0.0
    %v1348 = vmax.f32 %v1284, 0.0
    %v1349 = vmax.f32 %v1285, 0.0
    %v1350 = vmax.f32 %v1286, 0.0
    %v1351 = vmax.f32 %v1287, 0.0
    %v1352 = vmax.f32 %v1288, 0.0
    %v1353 = vmax.f32 %v1289, 0.0
    %v1354 = vmax.f32 %v1290, 0.0
    %v1355 = vmax.f32 %v1291, 0.0
    %v1356 = vmax.f32 %v1292, 0.0
    %v1357 = vmax.f32 %v1293, 0.0
    %v1358 = vmax.f32 %v1294, 0.0
    %v1359 = vmax.f32 %v1295, 0.0
    %v1360 = vmax.f32 %v1296, 0.0
    %v1361 = vmax.f32 %v1297, 0.0
    %v1362 = vmax.f32 %v1298, 0.0
    %v1363 = vmax.f32 %v1299, 0.0
    %v1364 = vmax.f32 %v1300, 0.0
    %v1365 = vmax.f32 %v1301, 0.0
    %v1366 = vmax.f32 %v1302, 0.0
    %v1367 = vmax.f32 %v1303, 0.0
    %v1368 = vmax.f32 %v1304, 0.0
    %v1369 = vmax.f32 %v1305, 0.0
    %v1370 = vmax.f32 %v1306, 0.0
    %v1371 = vmax.f32 %v1307, 0.0
    %v1372 = vmax.f32 %v1308, 0.0
    %v1373 = vmax.f32 %v1309, 0.0
    %v1374 = vmax.f32 %v1310, 0.0
    %v1375 = vmax.f32 %v1311, 0.0
    %v1376 = vpack.c.bf16 %v1316, %v1312
    %v1377 = vpack.c.bf16 %v1317, %v1313
    %v1378 = vpack.c.bf16 %v1318, %v1314
    %v1379 = vpack.c.bf16 %v1319, %v1315
    %v1380 = vpack.c.bf16 %v1324, %v1320
    %v1381 = vpack.c.bf16 %v1325, %v1321
    %v1382 = vpack.c.bf16 %v1326, %v1322
    %v1383 = vpack.c.bf16 %v1327, %v1323
    %v1384 = vpack.c.bf16 %v1332, %v1328
    %v1385 = vpack.c.bf16 %v1333, %v1329
    %v1386 = vpack.c.bf16 %v1334, %v1330
    %v1387 = vpack.c.bf16 %v1335, %v1331
    %v1388 = vpack.c.bf16 %v1340, %v1336
    %v1389 = vpack.c.bf16 %v1341, %v1337
    %v1390 = vpack.c.bf16 %v1342, %v1338
    %v1391 = vpack.c.bf16 %v1343, %v1339
    %v1392 = vpack.c.bf16 %v1348, %v1344
    %v1393 = vpack.c.bf16 %v1349, %v1345
    %v1394 = vpack.c.bf16 %v1350, %v1346
    %v1395 = vpack.c.bf16 %v1351, %v1347
    %v1396 = vpack.c.bf16 %v1356, %v1352
    %v1397 = vpack.c.bf16 %v1357, %v1353
    %v1398 = vpack.c.bf16 %v1358, %v1354
    %v1399 = vpack.c.bf16 %v1359, %v1355
    %v1400 = vpack.c.bf16 %v1364, %v1360
    %v1401 = vpack.c.bf16 %v1365, %v1361
    %v1402 = vpack.c.bf16 %v1366, %v1362
    %v1403 = vpack.c.bf16 %v1367, %v1363
    %v1404 = vpack.c.bf16 %v1372, %v1368
    %v1405 = vpack.c.bf16 %v1373, %v1369
    %v1406 = vpack.c.bf16 %v1374, %v1370
    %v1407 = vpack.c.bf16 %v1375, %v1371
    %1408 = vmatprep.subr.bf16.mxu0 %v1377
    %1409 = vmatpush1.bf16.msra.mxu0 %v1376
    %1410 = vmatprep.subr.bf16.mxu0 %v1381
    %1411 = vmatpush1.bf16.msra.mxu0 %v1380
    %1412 = vmatprep.subr.bf16.mxu0 %v1385
    %1413 = vmatpush1.bf16.msra.mxu0 %v1384
    %1414 = vmatprep.subr.bf16.mxu0 %v1389
    %1415 = vmatpush1.bf16.msra.mxu0 %v1388
    %1416 = vmatprep.subr.bf16.mxu0 %v1393
    %1417 = vmatpush1.bf16.msra.mxu0 %v1392
    %1418 = vmatprep.subr.bf16.mxu0 %v1397
    %1419 = vmatpush1.bf16.msra.mxu0 %v1396
    %1420 = vmatprep.subr.bf16.mxu0 %v1401
    %1421 = vmatpush1.bf16.msra.mxu0 %v1400
    %1422 = vmatprep.subr.bf16.mxu0 %v1405
    %1423 = vmatpush1.bf16.msra.mxu0 %v1404
    %1424 = vmatprep.subr.bf16.mxu0 0
    %1425 = vmatpush1.bf16.msra.mxu0 0
    %1426 = vmatprep.subr.bf16.mxu0 0
    %1427 = vmatpush1.bf16.msra.mxu0 0
    %1428 = vmatprep.subr.bf16.mxu0 0
    %1429 = vmatpush1.bf16.msra.mxu0 0
    %1430 = vmatprep.subr.bf16.mxu0 0
    %1431 = vmatpush1.bf16.msra.mxu0 0
    %1432 = vmatprep.subr.bf16.mxu0 0
    %1433 = vmatpush1.bf16.msra.mxu0 0
    %1434 = vmatprep.subr.bf16.mxu0 0
    %1435 = vmatpush1.bf16.msra.mxu0 0
    %1436 = vmatprep.subr.bf16.mxu0 0
    %1437 = vmatpush1.bf16.msra.mxu0 0
    %1438 = vmatprep.subr.bf16.mxu0 0
    %1439 = vmatpush1.bf16.msra.mxu0 0
    %1440 = vmatprep.mubr.bf16.mxu0 0
    %1441 = vmatmul.mubr.bf16.gmra.mrb[0].mxu0 %v221
    %v1442 = vpop.f32.mrb[0].mxu0
    %v1443 = vadd.f32 0.0, %v1442
    %v1444 = vpop.f32.mrb[0].mxu0
    %v1445 = vadd.f32 0.0, %v1444
    %v1446 = vpop.f32.mrb[0].mxu0
    %v1447 = vadd.f32 0.0, %v1446
    %v1448 = vpop.f32.mrb[0].mxu0
    %v1449 = vadd.f32 0.0, %v1448
    %1450 = vmatprep.mubr.bf16.mxu0 0
    %1451 = vmatmul.mubr.bf16.gmra.mrb[0].mxu0 %v222
    %v1452 = vpop.f32.mrb[0].mxu0
    %v1453 = vadd.f32 0.0, %v1452
    %v1454 = vpop.f32.mrb[0].mxu0
    %v1455 = vadd.f32 0.0, %v1454
    %v1456 = vpop.f32.mrb[0].mxu0
    %v1457 = vadd.f32 0.0, %v1456
    %v1458 = vpop.f32.mrb[0].mxu0
    %v1459 = vadd.f32 0.0, %v1458
    %1460 = vmatprep.mubr.bf16.mxu0 0
    %1461 = vmatmul.mubr.bf16.gmra.mrb[0].mxu0 %v223
    %v1462 = vpop.f32.mrb[0].mxu0
    %v1463 = vadd.f32 0.0, %v1462
    %v1464 = vpop.f32.mrb[0].mxu0
    %v1465 = vadd.f32 0.0, %v1464
    %v1466 = vpop.f32.mrb[0].mxu0
    %v1467 = vadd.f32 0.0, %v1466
    %v1468 = vpop.f32.mrb[0].mxu0
    %v1469 = vadd.f32 0.0, %v1468
    %1470 = vmatprep.mubr.bf16.mxu0 0
    %1471 = vmatmul.mubr.bf16.gmra.mrb[0].mxu0 %v224
    %v1472 = vpop.f32.mrb[0].mxu0
    %v1473 = vadd.f32 0.0, %v1472
    %v1474 = vpop.f32.mrb[0].mxu0
    %v1475 = vadd.f32 0.0, %v1474
    %v1476 = vpop.f32.mrb[0].mxu0
    %v1477 = vadd.f32 0.0, %v1476
    %v1478 = vpop.f32.mrb[0].mxu0
    %v1479 = vadd.f32 0.0, %v1478
    %1480 = vmatprep.mubr.bf16.mxu0 0
    %1481 = vmatmul.mubr.bf16.gmra.mrb[0].mxu0 %v225
    %v1482 = vpop.f32.mrb[0].mxu0
    %v1483 = vadd.f32 0.0, %v1482
    %v1484 = vpop.f32.mrb[0].mxu0
    %v1485 = vadd.f32 0.0, %v1484
    %v1486 = vpop.f32.mrb[0].mxu0
    %v1487 = vadd.f32 0.0, %v1486
    %v1488 = vpop.f32.mrb[0].mxu0
    %v1489 = vadd.f32 0.0, %v1488
    %1490 = vmatprep.mubr.bf16.mxu0 0
    %1491 = vmatmul.mubr.bf16.gmra.mrb[0].mxu0 %v226
    %v1492 = vpop.f32.mrb[0].mxu0
    %v1493 = vadd.f32 0.0, %v1492
    %v1494 = vpop.f32.mrb[0].mxu0
    %v1495 = vadd.f32 0.0, %v1494
    %v1496 = vpop.f32.mrb[0].mxu0
    %v1497 = vadd.f32 0.0, %v1496
    %v1498 = vpop.f32.mrb[0].mxu0
    %v1499 = vadd.f32 0.0, %v1498
    %1500 = vmatprep.mubr.bf16.mxu0 0
    %1501 = vmatmul.mubr.bf16.gmra.mrb[0].mxu0 %v227
    %v1502 = vpop.f32.mrb[0].mxu0
    %v1503 = vadd.f32 0.0, %v1502
    %v1504 = vpop.f32.mrb[0].mxu0
    %v1505 = vadd.f32 0.0, %v1504
    %v1506 = vpop.f32.mrb[0].mxu0
    %v1507 = vadd.f32 0.0, %v1506
    %v1508 = vpop.f32.mrb[0].mxu0
    %v1509 = vadd.f32 0.0, %v1508
    %1510 = vmatprep.mubr.bf16.mxu0 0
    %1511 = vmatmul.mubr.bf16.gmra.mrb[0].mxu0 %v228
    %v1512 = vpop.f32.mrb[0].mxu0
    %v1513 = vadd.f32 0.0, %v1512
    %v1514 = vpop.f32.mrb[0].mxu0
    %v1515 = vadd.f32 0.0, %v1514
    %v1516 = vpop.f32.mrb[0].mxu0
    %v1517 = vadd.f32 0.0, %v1516
    %v1518 = vpop.f32.mrb[0].mxu0
    %v1519 = vadd.f32 0.0, %v1518
    %1520 = vdwg.mxu0
    %1521 = vmatprep.subr.bf16.mxu0 %v1379
    %1522 = vmatpush1.bf16.msra.mxu0 %v1378
    %1523 = vmatprep.subr.bf16.mxu0 %v1383
    %1524 = vmatpush1.bf16.msra.mxu0 %v1382
    %1525 = vmatprep.subr.bf16.mxu0 %v1387
    %1526 = vmatpush1.bf16.msra.mxu0 %v1386
    %1527 = vmatprep.subr.bf16.mxu0 %v1391
    %1528 = vmatpush1.bf16.msra.mxu0 %v1390
    %1529 = vmatprep.subr.bf16.mxu0 %v1395
    %1530 = vmatpush1.bf16.msra.mxu0 %v1394
    %1531 = vmatprep.subr.bf16.mxu0 %v1399
    %1532 = vmatpush1.bf16.msra.mxu0 %v1398
    %1533 = vmatprep.subr.bf16.mxu0 %v1403
    %1534 = vmatpush1.bf16.msra.mxu0 %v1402
    %1535 = vmatprep.subr.bf16.mxu0 %v1407
    %1536 = vmatpush1.bf16.msra.mxu0 %v1406
    %1537 = vmatprep.subr.bf16.mxu0 0
    %1538 = vmatpush1.bf16.msra.mxu0 0
    %1539 = vmatprep.subr.bf16.mxu0 0
    %1540 = vmatpush1.bf16.msra.mxu0 0
    %1541 = vmatprep.subr.bf16.mxu0 0
    %1542 = vmatpush1.bf16.msra.mxu0 0
    %1543 = vmatprep.subr.bf16.mxu0 0
    %1544 = vmatpush1.bf16.msra.mxu0 0
    %1545 = vmatprep.subr.bf16.mxu0 0
    %1546 = vmatpush1.bf16.msra.mxu0 0
    %1547 = vmatprep.subr.bf16.mxu0 0
    %1548 = vmatpush1.bf16.msra.mxu0 0
    %1549 = vmatprep.subr.bf16.mxu0 0
    %1550 = vmatpush1.bf16.msra.mxu0 0
    %1551 = vmatprep.subr.bf16.mxu0 0
    %1552 = vmatpush1.bf16.msra.mxu0 0
    %1553 = vmatprep.mubr.bf16.mxu0 0
    %1554 = vmatmul.mubr.bf16.gmra.mrb[0].mxu0 %v221
    %v1555 = vpop.f32.mrb[0].mxu0
    %v1556 = vadd.f32 0.0, %v1555
    %v1557 = vpop.f32.mrb[0].mxu0
    %v1558 = vadd.f32 0.0, %v1557
    %v1559 = vpop.f32.mrb[0].mxu0
    %v1560 = vadd.f32 0.0, %v1559
    %v1561 = vpop.f32.mrb[0].mxu0
    %v1562 = vadd.f32 0.0, %v1561
    %1563 = vmatprep.mubr.bf16.mxu0 0
    %1564 = vmatmul.mubr.bf16.gmra.mrb[0].mxu0 %v222
    %v1565 = vpop.f32.mrb[0].mxu0
    %v1566 = vadd.f32 0.0, %v1565
    %v1567 = vpop.f32.mrb[0].mxu0
    %v1568 = vadd.f32 0.0, %v1567
    %v1569 = vpop.f32.mrb[0].mxu0
    %v1570 = vadd.f32 0.0, %v1569
    %v1571 = vpop.f32.mrb[0].mxu0
    %v1572 = vadd.f32 0.0, %v1571
    %1573 = vmatprep.mubr.bf16.mxu0 0
    %1574 = vmatmul.mubr.bf16.gmra.mrb[0].mxu0 %v223
    %v1575 = vpop.f32.mrb[0].mxu0
    %v1576 = vadd.f32 0.0, %v1575
    %v1577 = vpop.f32.mrb[0].mxu0
    %v1578 = vadd.f32 0.0, %v1577
    %v1579 = vpop.f32.mrb[0].mxu0
    %v1580 = vadd.f32 0.0, %v1579
    %v1581 = vpop.f32.mrb[0].mxu0
    %v1582 = vadd.f32 0.0, %v1581
    %1583 = vmatprep.mubr.bf16.mxu0 0
    %1584 = vmatmul.mubr.bf16.gmra.mrb[0].mxu0 %v224
    %v1585 = vpop.f32.mrb[0].mxu0
    %v1586 = vadd.f32 0.0, %v1585
    %v1587 = vpop.f32.mrb[0].mxu0
    %v1588 = vadd.f32 0.0, %v1587
    %v1589 = vpop.f32.mrb[0].mxu0
    %v1590 = vadd.f32 0.0, %v1589
    %v1591 = vpop.f32.mrb[0].mxu0
    %v1592 = vadd.f32 0.0, %v1591
    %1593 = vmatprep.mubr.bf16.mxu0 0
    %1594 = vmatmul.mubr.bf16.gmra.mrb[0].mxu0 %v225
    %v1595 = vpop.f32.mrb[0].mxu0
    %v1596 = vadd.f32 0.0, %v1595
    %v1597 = vpop.f32.mrb[0].mxu0
    %v1598 = vadd.f32 0.0, %v1597
    %v1599 = vpop.f32.mrb[0].mxu0
    %v1600 = vadd.f32 0.0, %v1599
    %v1601 = vpop.f32.mrb[0].mxu0
    %v1602 = vadd.f32 0.0, %v1601
    %1603 = vmatprep.mubr.bf16.mxu0 0
    %1604 = vmatmul.mubr.bf16.gmra.mrb[0].mxu0 %v226
    %v1605 = vpop.f32.mrb[0].mxu0
    %v1606 = vadd.f32 0.0, %v1605
    %v1607 = vpop.f32.mrb[0].mxu0
    %v1608 = vadd.f32 0.0, %v1607
    %v1609 = vpop.f32.mrb[0].mxu0
    %v1610 = vadd.f32 0.0, %v1609
    %v1611 = vpop.f32.mrb[0].mxu0
    %v1612 = vadd.f32 0.0, %v1611
    %1613 = vmatprep.mubr.bf16.mxu0 0
    %1614 = vmatmul.mubr.bf16.gmra.mrb[0].mxu0 %v227
    %v1615 = vpop.f32.mrb[0].mxu0
    %v1616 = vadd.f32 0.0, %v1615
    %v1617 = vpop.f32.mrb[0].mxu0
    %v1618 = vadd.f32 0.0, %v1617
    %v1619 = vpop.f32.mrb[0].mxu0
    %v1620 = vadd.f32 0.0, %v1619
    %v1621 = vpop.f32.mrb[0].mxu0
    %v1622 = vadd.f32 0.0, %v1621
    %1623 = vmatprep.mubr.bf16.mxu0 0
    %1624 = vmatmul.mubr.bf16.gmra.mrb[0].mxu0 %v228
    %v1625 = vpop.f32.mrb[0].mxu0
    %v1626 = vadd.f32 0.0, %v1625
    %v1627 = vpop.f32.mrb[0].mxu0
    %v1628 = vadd.f32 0.0, %v1627
    %v1629 = vpop.f32.mrb[0].mxu0
    %v1630 = vadd.f32 0.0, %v1629
    %v1631 = vpop.f32.mrb[0].mxu0
    %v1632 = vadd.f32 0.0, %v1631
    %1633 = vdwg.mxu0
    %v1634 = vpack.c.bf16 %v1447, %v1443
    %v1635 = vpack.c.bf16 %v1449, %v1445
    %v1636 = vpack.c.bf16 %v1560, %v1556
    %v1637 = vpack.c.bf16 %v1562, %v1558
    %v1638 = vpack.c.bf16 %v1457, %v1453
    %v1639 = vpack.c.bf16 %v1459, %v1455
    %v1640 = vpack.c.bf16 %v1570, %v1566
    %v1641 = vpack.c.bf16 %v1572, %v1568
    %v1642 = vpack.c.bf16 %v1467, %v1463
    %v1643 = vpack.c.bf16 %v1469, %v1465
    %v1644 = vpack.c.bf16 %v1580, %v1576
    %v1645 = vpack.c.bf16 %v1582, %v1578
    %v1646 = vpack.c.bf16 %v1477, %v1473
    %v1647 = vpack.c.bf16 %v1479, %v1475
    %v1648 = vpack.c.bf16 %v1590, %v1586
    %v1649 = vpack.c.bf16 %v1592, %v1588
    %v1650 = vpack.c.bf16 %v1487, %v1483
    %v1651 = vpack.c.bf16 %v1489, %v1485
    %v1652 = vpack.c.bf16 %v1600, %v1596
    %v1653 = vpack.c.bf16 %v1602, %v1598
    %v1654 = vpack.c.bf16 %v1497, %v1493
    %v1655 = vpack.c.bf16 %v1499, %v1495
    %v1656 = vpack.c.bf16 %v1610, %v1606
    %v1657 = vpack.c.bf16 %v1612, %v1608
    %v1658 = vpack.c.bf16 %v1507, %v1503
    %v1659 = vpack.c.bf16 %v1509, %v1505
    %v1660 = vpack.c.bf16 %v1620, %v1616
    %v1661 = vpack.c.bf16 %v1622, %v1618
    %v1662 = vpack.c.bf16 %v1517, %v1513
    %v1663 = vpack.c.bf16 %v1519, %v1515
    %v1664 = vpack.c.bf16 %v1630, %v1626
    %v1665 = vpack.c.bf16 %v1632, %v1628
    %v1666 = vld [vmem:[%s5] sm:$0xff]
    %v1667 = vld [vmem:[%s5 + $0x8] sm:$0xff]
    %v1668 = vld [vmem:[%s5 + $0x10] sm:$0xff]
    %v1669 = vld [vmem:[%s5 + $0x18] sm:$0xff]
    %v1670 = vld [vmem:[%s5 + $0x20] sm:$0xff]
    %v1671 = vld [vmem:[%s5 + $0x28] sm:$0xff]
    %v1672 = vld [vmem:[%s5 + $0x30] sm:$0xff]
    %v1673 = vld [vmem:[%s5 + $0x38] sm:$0xff]
    %v1674 = vld [vmem:[%s5 + $0x40] sm:$0xff]
    %v1675 = vld [vmem:[%s5 + $0x48] sm:$0xff]
    %v1676 = vld [vmem:[%s5 + $0x50] sm:$0xff]
    %v1677 = vld [vmem:[%s5 + $0x58] sm:$0xff]
    %v1678 = vld [vmem:[%s5 + $0x60] sm:$0xff]
    %v1679 = vld [vmem:[%s5 + $0x68] sm:$0xff]
    %v1680 = vld [vmem:[%s5 + $0x70] sm:$0xff]
    %v1681 = vld [vmem:[%s5 + $0x78] sm:$0xff]
    %v1682 = vld [vmem:[%s5 + $0x80] sm:$0xff]
    %v1683 = vld [vmem:[%s5 + $0x88] sm:$0xff]
    %v1684 = vld [vmem:[%s5 + $0x90] sm:$0xff]
    %v1685 = vld [vmem:[%s5 + $0x98] sm:$0xff]
    %v1686 = vld [vmem:[%s5 + $0xa0] sm:$0xff]
    %v1687 = vld [vmem:[%s5 + $0xa8] sm:$0xff]
    %v1688 = vld [vmem:[%s5 + $0xb0] sm:$0xff]
    %v1689 = vld [vmem:[%s5 + $0xb8] sm:$0xff]
    %v1690 = vld [vmem:[%s5 + $0xc0] sm:$0xff]
    %v1691 = vld [vmem:[%s5 + $0xc8] sm:$0xff]
    %v1692 = vld [vmem:[%s5 + $0xd0] sm:$0xff]
    %v1693 = vld [vmem:[%s5 + $0xd8] sm:$0xff]
    %v1694 = vld [vmem:[%s5 + $0xe0] sm:$0xff]
    %v1695 = vld [vmem:[%s5 + $0xe8] sm:$0xff]
    %v1696 = vld [vmem:[%s5 + $0xf0] sm:$0xff]
    %v1697 = vld [vmem:[%s5 + $0xf8] sm:$0xff]
    %v1698 = vld [vmem:[%s5 + $0x100] sm:$0xff]
    %v1699 = vld [vmem:[%s5 + $0x108] sm:$0xff]
    %v1700 = vld [vmem:[%s5 + $0x110] sm:$0xff]
    %v1701 = vld [vmem:[%s5 + $0x118] sm:$0xff]
    %v1702 = vld [vmem:[%s5 + $0x120] sm:$0xff]
    %v1703 = vld [vmem:[%s5 + $0x128] sm:$0xff]
    %v1704 = vld [vmem:[%s5 + $0x130] sm:$0xff]
    %v1705 = vld [vmem:[%s5 + $0x138] sm:$0xff]
    %v1706 = vld [vmem:[%s5 + $0x140] sm:$0xff]
    %v1707 = vld [vmem:[%s5 + $0x148] sm:$0xff]
    %v1708 = vld [vmem:[%s5 + $0x150] sm:$0xff]
    %v1709 = vld [vmem:[%s5 + $0x158] sm:$0xff]
    %v1710 = vld [vmem:[%s5 + $0x160] sm:$0xff]
    %v1711 = vld [vmem:[%s5 + $0x168] sm:$0xff]
    %v1712 = vld [vmem:[%s5 + $0x170] sm:$0xff]
    %v1713 = vld [vmem:[%s5 + $0x178] sm:$0xff]
    %v1714 = vld [vmem:[%s5 + $0x180] sm:$0xff]
    %v1715 = vld [vmem:[%s5 + $0x188] sm:$0xff]
    %v1716 = vld [vmem:[%s5 + $0x190] sm:$0xff]
    %v1717 = vld [vmem:[%s5 + $0x198] sm:$0xff]
    %v1718 = vld [vmem:[%s5 + $0x1a0] sm:$0xff]
    %v1719 = vld [vmem:[%s5 + $0x1a8] sm:$0xff]
    %v1720 = vld [vmem:[%s5 + $0x1b0] sm:$0xff]
    %v1721 = vld [vmem:[%s5 + $0x1b8] sm:$0xff]
    %v1722 = vld [vmem:[%s5 + $0x1c0] sm:$0xff]
    %v1723 = vld [vmem:[%s5 + $0x1c8] sm:$0xff]
    %v1724 = vld [vmem:[%s5 + $0x1d0] sm:$0xff]
    %v1725 = vld [vmem:[%s5 + $0x1d8] sm:$0xff]
    %v1726 = vld [vmem:[%s5 + $0x1e0] sm:$0xff]
    %v1727 = vld [vmem:[%s5 + $0x1e8] sm:$0xff]
    %v1728 = vld [vmem:[%s5 + $0x1f0] sm:$0xff]
    %v1729 = vld [vmem:[%s5 + $0x1f8] sm:$0xff]
    %v1730 = vld [vmem:[%s5 + $0x200] sm:$0xff]
    %v1731 = vld [vmem:[%s5 + $0x208] sm:$0xff]
    %v1732 = vld [vmem:[%s5 + $0x210] sm:$0xff]
    %v1733 = vld [vmem:[%s5 + $0x218] sm:$0xff]
    %v1734 = vld [vmem:[%s5 + $0x220] sm:$0xff]
    %v1735 = vld [vmem:[%s5 + $0x228] sm:$0xff]
    %v1736 = vld [vmem:[%s5 + $0x230] sm:$0xff]
    %v1737 = vld [vmem:[%s5 + $0x238] sm:$0xff]
    %v1738 = vld [vmem:[%s5 + $0x240] sm:$0xff]
    %v1739 = vld [vmem:[%s5 + $0x248] sm:$0xff]
    %v1740 = vld [vmem:[%s5 + $0x250] sm:$0xff]
    %v1741 = vld [vmem:[%s5 + $0x258] sm:$0xff]
    %v1742 = vld [vmem:[%s5 + $0x260] sm:$0xff]
    %v1743 = vld [vmem:[%s5 + $0x268] sm:$0xff]
    %v1744 = vld [vmem:[%s5 + $0x270] sm:$0xff]
    %v1745 = vld [vmem:[%s5 + $0x278] sm:$0xff]
    %v1746 = vld [vmem:[%s5 + $0x280] sm:$0xff]
    %v1747 = vld [vmem:[%s5 + $0x288] sm:$0xff]
    %v1748 = vld [vmem:[%s5 + $0x290] sm:$0xff]
    %v1749 = vld [vmem:[%s5 + $0x298] sm:$0xff]
    %v1750 = vld [vmem:[%s5 + $0x2a0] sm:$0xff]
    %v1751 = vld [vmem:[%s5 + $0x2a8] sm:$0xff]
    %v1752 = vld [vmem:[%s5 + $0x2b0] sm:$0xff]
    %v1753 = vld [vmem:[%s5 + $0x2b8] sm:$0xff]
    %v1754 = vld [vmem:[%s5 + $0x2c0] sm:$0xff]
    %v1755 = vld [vmem:[%s5 + $0x2c8] sm:$0xff]
    %v1756 = vld [vmem:[%s5 + $0x2d0] sm:$0xff]
    %v1757 = vld [vmem:[%s5 + $0x2d8] sm:$0xff]
    %v1758 = vld [vmem:[%s5 + $0x2e0] sm:$0xff]
    %v1759 = vld [vmem:[%s5 + $0x2e8] sm:$0xff]
    %v1760 = vld [vmem:[%s5 + $0x2f0] sm:$0xff]
    %v1761 = vld [vmem:[%s5 + $0x2f8] sm:$0xff]
    %v1762 = vld [vmem:[%s5 + $0x300] sm:$0xff]
    %v1763 = vld [vmem:[%s5 + $0x308] sm:$0xff]
    %v1764 = vld [vmem:[%s5 + $0x310] sm:$0xff]
    %v1765 = vld [vmem:[%s5 + $0x318] sm:$0xff]
    %v1766 = vld [vmem:[%s5 + $0x320] sm:$0xff]
    %v1767 = vld [vmem:[%s5 + $0x328] sm:$0xff]
    %v1768 = vld [vmem:[%s5 + $0x330] sm:$0xff]
    %v1769 = vld [vmem:[%s5 + $0x338] sm:$0xff]
    %v1770 = vld [vmem:[%s5 + $0x340] sm:$0xff]
    %v1771 = vld [vmem:[%s5 + $0x348] sm:$0xff]
    %v1772 = vld [vmem:[%s5 + $0x350] sm:$0xff]
    %v1773 = vld [vmem:[%s5 + $0x358] sm:$0xff]
    %v1774 = vld [vmem:[%s5 + $0x360] sm:$0xff]
    %v1775 = vld [vmem:[%s5 + $0x368] sm:$0xff]
    %v1776 = vld [vmem:[%s5 + $0x370] sm:$0xff]
    %v1777 = vld [vmem:[%s5 + $0x378] sm:$0xff]
    %v1778 = vld [vmem:[%s5 + $0x380] sm:$0xff]
    %v1779 = vld [vmem:[%s5 + $0x388] sm:$0xff]
    %v1780 = vld [vmem:[%s5 + $0x390] sm:$0xff]
    %v1781 = vld [vmem:[%s5 + $0x398] sm:$0xff]
    %v1782 = vld [vmem:[%s5 + $0x3a0] sm:$0xff]
    %v1783 = vld [vmem:[%s5 + $0x3a8] sm:$0xff]
    %v1784 = vld [vmem:[%s5 + $0x3b0] sm:$0xff]
    %v1785 = vld [vmem:[%s5 + $0x3b8] sm:$0xff]
    %v1786 = vld [vmem:[%s5 + $0x3c0] sm:$0xff]
    %v1787 = vld [vmem:[%s5 + $0x3c8] sm:$0xff]
    %v1788 = vld [vmem:[%s5 + $0x3d0] sm:$0xff]
    %v1789 = vld [vmem:[%s5 + $0x3d8] sm:$0xff]
    %v1790 = vld [vmem:[%s5 + $0x3e0] sm:$0xff]
    %v1791 = vld [vmem:[%s5 + $0x3e8] sm:$0xff]
    %v1792 = vld [vmem:[%s5 + $0x3f0] sm:$0xff]
    %v1793 = vld [vmem:[%s5 + $0x3f8] sm:$0xff]
    %v1794 = vld [vmem:[%s6] sm:$0xff]
    %v1795 = vld [vmem:[%s6 + $0x8] sm:$0xff]
    %v1796 = vld [vmem:[%s6 + $0x10] sm:$0xff]
    %v1797 = vld [vmem:[%s6 + $0x18] sm:$0xff]
    %v1798 = vld [vmem:[%s6 + $0x20] sm:$0xff]
    %v1799 = vld [vmem:[%s6 + $0x28] sm:$0xff]
    %v1800 = vld [vmem:[%s6 + $0x30] sm:$0xff]
    %v1801 = vld [vmem:[%s6 + $0x38] sm:$0xff]
    %v1802 = vld [vmem:[%s6 + $0x40] sm:$0xff]
    %v1803 = vld [vmem:[%s6 + $0x48] sm:$0xff]
    %v1804 = vld [vmem:[%s6 + $0x50] sm:$0xff]
    %v1805 = vld [vmem:[%s6 + $0x58] sm:$0xff]
    %v1806 = vld [vmem:[%s6 + $0x60] sm:$0xff]
    %v1807 = vld [vmem:[%s6 + $0x68] sm:$0xff]
    %v1808 = vld [vmem:[%s6 + $0x70] sm:$0xff]
    %v1809 = vld [vmem:[%s6 + $0x78] sm:$0xff]
    %v1810 = vld [vmem:[%s6 + $0x80] sm:$0xff]
    %v1811 = vld [vmem:[%s6 + $0x88] sm:$0xff]
    %v1812 = vld [vmem:[%s6 + $0x90] sm:$0xff]
    %v1813 = vld [vmem:[%s6 + $0x98] sm:$0xff]
    %v1814 = vld [vmem:[%s6 + $0xa0] sm:$0xff]
    %v1815 = vld [vmem:[%s6 + $0xa8] sm:$0xff]
    %v1816 = vld [vmem:[%s6 + $0xb0] sm:$0xff]
    %v1817 = vld [vmem:[%s6 + $0xb8] sm:$0xff]
    %v1818 = vld [vmem:[%s6 + $0xc0] sm:$0xff]
    %v1819 = vld [vmem:[%s6 + $0xc8] sm:$0xff]
    %v1820 = vld [vmem:[%s6 + $0xd0] sm:$0xff]
    %v1821 = vld [vmem:[%s6 + $0xd8] sm:$0xff]
    %v1822 = vld [vmem:[%s6 + $0xe0] sm:$0xff]
    %v1823 = vld [vmem:[%s6 + $0xe8] sm:$0xff]
    %v1824 = vld [vmem:[%s6 + $0xf0] sm:$0xff]
    %v1825 = vld [vmem:[%s6 + $0xf8] sm:$0xff]
    %v1826 = vld [vmem:[%s6 + $0x100] sm:$0xff]
    %v1827 = vld [vmem:[%s6 + $0x108] sm:$0xff]
    %v1828 = vld [vmem:[%s6 + $0x110] sm:$0xff]
    %v1829 = vld [vmem:[%s6 + $0x118] sm:$0xff]
    %v1830 = vld [vmem:[%s6 + $0x120] sm:$0xff]
    %v1831 = vld [vmem:[%s6 + $0x128] sm:$0xff]
    %v1832 = vld [vmem:[%s6 + $0x130] sm:$0xff]
    %v1833 = vld [vmem:[%s6 + $0x138] sm:$0xff]
    %v1834 = vld [vmem:[%s6 + $0x140] sm:$0xff]
    %v1835 = vld [vmem:[%s6 + $0x148] sm:$0xff]
    %v1836 = vld [vmem:[%s6 + $0x150] sm:$0xff]
    %v1837 = vld [vmem:[%s6 + $0x158] sm:$0xff]
    %v1838 = vld [vmem:[%s6 + $0x160] sm:$0xff]
    %v1839 = vld [vmem:[%s6 + $0x168] sm:$0xff]
    %v1840 = vld [vmem:[%s6 + $0x170] sm:$0xff]
    %v1841 = vld [vmem:[%s6 + $0x178] sm:$0xff]
    %v1842 = vld [vmem:[%s6 + $0x180] sm:$0xff]
    %v1843 = vld [vmem:[%s6 + $0x188] sm:$0xff]
    %v1844 = vld [vmem:[%s6 + $0x190] sm:$0xff]
    %v1845 = vld [vmem:[%s6 + $0x198] sm:$0xff]
    %v1846 = vld [vmem:[%s6 + $0x1a0] sm:$0xff]
    %v1847 = vld [vmem:[%s6 + $0x1a8] sm:$0xff]
    %v1848 = vld [vmem:[%s6 + $0x1b0] sm:$0xff]
    %v1849 = vld [vmem:[%s6 + $0x1b8] sm:$0xff]
    %v1850 = vld [vmem:[%s6 + $0x1c0] sm:$0xff]
    %v1851 = vld [vmem:[%s6 + $0x1c8] sm:$0xff]
    %v1852 = vld [vmem:[%s6 + $0x1d0] sm:$0xff]
    %v1853 = vld [vmem:[%s6 + $0x1d8] sm:$0xff]
    %v1854 = vld [vmem:[%s6 + $0x1e0] sm:$0xff]
    %v1855 = vld [vmem:[%s6 + $0x1e8] sm:$0xff]
    %v1856 = vld [vmem:[%s6 + $0x1f0] sm:$0xff]
    %v1857 = vld [vmem:[%s6 + $0x1f8] sm:$0xff]
    %v1858 = vld [vmem:[%s6 + $0x200] sm:$0xff]
    %v1859 = vld [vmem:[%s6 + $0x208] sm:$0xff]
    %v1860 = vld [vmem:[%s6 + $0x210] sm:$0xff]
    %v1861 = vld [vmem:[%s6 + $0x218] sm:$0xff]
    %v1862 = vld [vmem:[%s6 + $0x220] sm:$0xff]
    %v1863 = vld [vmem:[%s6 + $0x228] sm:$0xff]
    %v1864 = vld [vmem:[%s6 + $0x230] sm:$0xff]
    %v1865 = vld [vmem:[%s6 + $0x238] sm:$0xff]
    %v1866 = vld [vmem:[%s6 + $0x240] sm:$0xff]
    %v1867 = vld [vmem:[%s6 + $0x248] sm:$0xff]
    %v1868 = vld [vmem:[%s6 + $0x250] sm:$0xff]
    %v1869 = vld [vmem:[%s6 + $0x258] sm:$0xff]
    %v1870 = vld [vmem:[%s6 + $0x260] sm:$0xff]
    %v1871 = vld [vmem:[%s6 + $0x268] sm:$0xff]
    %v1872 = vld [vmem:[%s6 + $0x270] sm:$0xff]
    %v1873 = vld [vmem:[%s6 + $0x278] sm:$0xff]
    %v1874 = vld [vmem:[%s6 + $0x280] sm:$0xff]
    %v1875 = vld [vmem:[%s6 + $0x288] sm:$0xff]
    %v1876 = vld [vmem:[%s6 + $0x290] sm:$0xff]
    %v1877 = vld [vmem:[%s6 + $0x298] sm:$0xff]
    %v1878 = vld [vmem:[%s6 + $0x2a0] sm:$0xff]
    %v1879 = vld [vmem:[%s6 + $0x2a8] sm:$0xff]
    %v1880 = vld [vmem:[%s6 + $0x2b0] sm:$0xff]
    %v1881 = vld [vmem:[%s6 + $0x2b8] sm:$0xff]
    %v1882 = vld [vmem:[%s6 + $0x2c0] sm:$0xff]
    %v1883 = vld [vmem:[%s6 + $0x2c8] sm:$0xff]
    %v1884 = vld [vmem:[%s6 + $0x2d0] sm:$0xff]
    %v1885 = vld [vmem:[%s6 + $0x2d8] sm:$0xff]
    %v1886 = vld [vmem:[%s6 + $0x2e0] sm:$0xff]
    %v1887 = vld [vmem:[%s6 + $0x2e8] sm:$0xff]
    %v1888 = vld [vmem:[%s6 + $0x2f0] sm:$0xff]
    %v1889 = vld [vmem:[%s6 + $0x2f8] sm:$0xff]
    %v1890 = vld [vmem:[%s6 + $0x300] sm:$0xff]
    %v1891 = vld [vmem:[%s6 + $0x308] sm:$0xff]
    %v1892 = vld [vmem:[%s6 + $0x310] sm:$0xff]
    %v1893 = vld [vmem:[%s6 + $0x318] sm:$0xff]
    %v1894 = vld [vmem:[%s6 + $0x320] sm:$0xff]
    %v1895 = vld [vmem:[%s6 + $0x328] sm:$0xff]
    %v1896 = vld [vmem:[%s6 + $0x330] sm:$0xff]
    %v1897 = vld [vmem:[%s6 + $0x338] sm:$0xff]
    %v1898 = vld [vmem:[%s6 + $0x340] sm:$0xff]
    %v1899 = vld [vmem:[%s6 + $0x348] sm:$0xff]
    %v1900 = vld [vmem:[%s6 + $0x350] sm:$0xff]
    %v1901 = vld [vmem:[%s6 + $0x358] sm:$0xff]
    %v1902 = vld [vmem:[%s6 + $0x360] sm:$0xff]
    %v1903 = vld [vmem:[%s6 + $0x368] sm:$0xff]
    %v1904 = vld [vmem:[%s6 + $0x370] sm:$0xff]
    %v1905 = vld [vmem:[%s6 + $0x378] sm:$0xff]
    %v1906 = vld [vmem:[%s6 + $0x380] sm:$0xff]
    %v1907 = vld [vmem:[%s6 + $0x388] sm:$0xff]
    %v1908 = vld [vmem:[%s6 + $0x390] sm:$0xff]
    %v1909 = vld [vmem:[%s6 + $0x398] sm:$0xff]
    %v1910 = vld [vmem:[%s6 + $0x3a0] sm:$0xff]
    %v1911 = vld [vmem:[%s6 + $0x3a8] sm:$0xff]
    %v1912 = vld [vmem:[%s6 + $0x3b0] sm:$0xff]
    %v1913 = vld [vmem:[%s6 + $0x3b8] sm:$0xff]
    %v1914 = vld [vmem:[%s6 + $0x3c0] sm:$0xff]
    %v1915 = vld [vmem:[%s6 + $0x3c8] sm:$0xff]
    %v1916 = vld [vmem:[%s6 + $0x3d0] sm:$0xff]
    %v1917 = vld [vmem:[%s6 + $0x3d8] sm:$0xff]
    %v1918 = vld [vmem:[%s6 + $0x3e0] sm:$0xff]
    %v1919 = vld [vmem:[%s6 + $0x3e8] sm:$0xff]
    %v1920 = vld [vmem:[%s6 + $0x3f0] sm:$0xff]
    %v1921 = vld [vmem:[%s6 + $0x3f8] sm:$0xff]
    %v2050 = vunpack.c.l.b16 %v1794
    %v2051 = vunpack.c.h.b16 %v1794
    %v2052 = vunpack.c.l.b16 %v1795
    %v2053 = vunpack.c.h.b16 %v1795
    %v2054 = vunpack.c.l.b16 %v1796
    %v2055 = vunpack.c.h.b16 %v1796
    %v2056 = vunpack.c.l.b16 %v1797
    %v2057 = vunpack.c.h.b16 %v1797
    %v2058 = vunpack.c.l.b16 %v1798
    %v2059 = vunpack.c.h.b16 %v1798
    %v2060 = vunpack.c.l.b16 %v1799
    %v2061 = vunpack.c.h.b16 %v1799
    %v2062 = vunpack.c.l.b16 %v1800
    %v2063 = vunpack.c.h.b16 %v1800
    %v2064 = vunpack.c.l.b16 %v1801
    %v2065 = vunpack.c.h.b16 %v1801
    %v2066 = vunpack.c.l.b16 %v1802
    %v2067 = vunpack.c.h.b16 %v1802
    %v2068 = vunpack.c.l.b16 %v1803
    %v2069 = vunpack.c.h.b16 %v1803
    %v2070 = vunpack.c.l.b16 %v1804
    %v2071 = vunpack.c.h.b16 %v1804
    %v2072 = vunpack.c.l.b16 %v1805
    %v2073 = vunpack.c.h.b16 %v1805
    %v2074 = vunpack.c.l.b16 %v1806
    %v2075 = vunpack.c.h.b16 %v1806
    %v2076 = vunpack.c.l.b16 %v1807
    %v2077 = vunpack.c.h.b16 %v1807
    %v2078 = vunpack.c.l.b16 %v1808
    %v2079 = vunpack.c.h.b16 %v1808
    %v2080 = vunpack.c.l.b16 %v1809
    %v2081 = vunpack.c.h.b16 %v1809
    %v2082 = vunpack.c.l.b16 %v1810
    %v2083 = vunpack.c.h.b16 %v1810
    %v2084 = vunpack.c.l.b16 %v1811
    %v2085 = vunpack.c.h.b16 %v1811
    %v2086 = vunpack.c.l.b16 %v1812
    %v2087 = vunpack.c.h.b16 %v1812
    %v2088 = vunpack.c.l.b16 %v1813
    %v2089 = vunpack.c.h.b16 %v1813
    %v2090 = vunpack.c.l.b16 %v1814
    %v2091 = vunpack.c.h.b16 %v1814
    %v2092 = vunpack.c.l.b16 %v1815
    %v2093 = vunpack.c.h.b16 %v1815
    %v2094 = vunpack.c.l.b16 %v1816
    %v2095 = vunpack.c.h.b16 %v1816
    %v2096 = vunpack.c.l.b16 %v1817
    %v2097 = vunpack.c.h.b16 %v1817
    %v2098 = vunpack.c.l.b16 %v1818
    %v2099 = vunpack.c.h.b16 %v1818
    %v2100 = vunpack.c.l.b16 %v1819
    %v2101 = vunpack.c.h.b16 %v1819
    %v2102 = vunpack.c.l.b16 %v1820
    %v2103 = vunpack.c.h.b16 %v1820
    %v2104 = vunpack.c.l.b16 %v1821
    %v2105 = vunpack.c.h.b16 %v1821
    %v2106 = vunpack.c.l.b16 %v1822
    %v2107 = vunpack.c.h.b16 %v1822
    %v2108 = vunpack.c.l.b16 %v1823
    %v2109 = vunpack.c.h.b16 %v1823
    %v2110 = vunpack.c.l.b16 %v1824
    %v2111 = vunpack.c.h.b16 %v1824
    %v2112 = vunpack.c.l.b16 %v1825
    %v2113 = vunpack.c.h.b16 %v1825
    %v2114 = vunpack.c.l.b16 %v1826
    %v2115 = vunpack.c.h.b16 %v1826
    %v2116 = vunpack.c.l.b16 %v1827
    %v2117 = vunpack.c.h.b16 %v1827
    %v2118 = vunpack.c.l.b16 %v1828
    %v2119 = vunpack.c.h.b16 %v1828
    %v2120 = vunpack.c.l.b16 %v1829
    %v2121 = vunpack.c.h.b16 %v1829
    %v2122 = vunpack.c.l.b16 %v1830
    %v2123 = vunpack.c.h.b16 %v1830
    %v2124 = vunpack.c.l.b16 %v1831
    %v2125 = vunpack.c.h.b16 %v1831
    %v2126 = vunpack.c.l.b16 %v1832
    %v2127 = vunpack.c.h.b16 %v1832
    %v2128 = vunpack.c.l.b16 %v1833
    %v2129 = vunpack.c.h.b16 %v1833
    %v2130 = vunpack.c.l.b16 %v1834
    %v2131 = vunpack.c.h.b16 %v1834
    %v2132 = vunpack.c.l.b16 %v1835
    %v2133 = vunpack.c.h.b16 %v1835
    %v2134 = vunpack.c.l.b16 %v1836
    %v2135 = vunpack.c.h.b16 %v1836
    %v2136 = vunpack.c.l.b16 %v1837
    %v2137 = vunpack.c.h.b16 %v1837
    %v2138 = vunpack.c.l.b16 %v1838
    %v2139 = vunpack.c.h.b16 %v1838
    %v2140 = vunpack.c.l.b16 %v1839
    %v2141 = vunpack.c.h.b16 %v1839
    %v2142 = vunpack.c.l.b16 %v1840
    %v2143 = vunpack.c.h.b16 %v1840
    %v2144 = vunpack.c.l.b16 %v1841
    %v2145 = vunpack.c.h.b16 %v1841
    %v2146 = vunpack.c.l.b16 %v1842
    %v2147 = vunpack.c.h.b16 %v1842
    %v2148 = vunpack.c.l.b16 %v1843
    %v2149 = vunpack.c.h.b16 %v1843
    %v2150 = vunpack.c.l.b16 %v1844
    %v2151 = vunpack.c.h.b16 %v1844
    %v2152 = vunpack.c.l.b16 %v1845
    %v2153 = vunpack.c.h.b16 %v1845
    %v2154 = vunpack.c.l.b16 %v1846
    %v2155 = vunpack.c.h.b16 %v1846
    %v2156 = vunpack.c.l.b16 %v1847
    %v2157 = vunpack.c.h.b16 %v1847
    %v2158 = vunpack.c.l.b16 %v1848
    %v2159 = vunpack.c.h.b16 %v1848
    %v2160 = vunpack.c.l.b16 %v1849
    %v2161 = vunpack.c.h.b16 %v1849
    %v2162 = vunpack.c.l.b16 %v1850
    %v2163 = vunpack.c.h.b16 %v1850
    %v2164 = vunpack.c.l.b16 %v1851
    %v2165 = vunpack.c.h.b16 %v1851
    %v2166 = vunpack.c.l.b16 %v1852
    %v2167 = vunpack.c.h.b16 %v1852
    %v2168 = vunpack.c.l.b16 %v1853
    %v2169 = vunpack.c.h.b16 %v1853
    %v2170 = vunpack.c.l.b16 %v1854
    %v2171 = vunpack.c.h.b16 %v1854
    %v2172 = vunpack.c.l.b16 %v1855
    %v2173 = vunpack.c.h.b16 %v1855
    %v2174 = vunpack.c.l.b16 %v1856
    %v2175 = vunpack.c.h.b16 %v1856
    %v2176 = vunpack.c.l.b16 %v1857
    %v2177 = vunpack.c.h.b16 %v1857
    %v2178 = vunpack.c.l.b16 %v1858
    %v2179 = vunpack.c.h.b16 %v1858
    %v2180 = vunpack.c.l.b16 %v1859
    %v2181 = vunpack.c.h.b16 %v1859
    %v2182 = vunpack.c.l.b16 %v1860
    %v2183 = vunpack.c.h.b16 %v1860
    %v2184 = vunpack.c.l.b16 %v1861
    %v2185 = vunpack.c.h.b16 %v1861
    %v2186 = vunpack.c.l.b16 %v1862
    %v2187 = vunpack.c.h.b16 %v1862
    %v2188 = vunpack.c.l.b16 %v1863
    %v2189 = vunpack.c.h.b16 %v1863
    %v2190 = vunpack.c.l.b16 %v1864
    %v2191 = vunpack.c.h.b16 %v1864
    %v2192 = vunpack.c.l.b16 %v1865
    %v2193 = vunpack.c.h.b16 %v1865
    %v2194 = vunpack.c.l.b16 %v1866
    %v2195 = vunpack.c.h.b16 %v1866
    %v2196 = vunpack.c.l.b16 %v1867
    %v2197 = vunpack.c.h.b16 %v1867
    %v2198 = vunpack.c.l.b16 %v1868
    %v2199 = vunpack.c.h.b16 %v1868
    %v2200 = vunpack.c.l.b16 %v1869
    %v2201 = vunpack.c.h.b16 %v1869
    %v2202 = vunpack.c.l.b16 %v1870
    %v2203 = vunpack.c.h.b16 %v1870
    %v2204 = vunpack.c.l.b16 %v1871
    %v2205 = vunpack.c.h.b16 %v1871
    %v2206 = vunpack.c.l.b16 %v1872
    %v2207 = vunpack.c.h.b16 %v1872
    %v2208 = vunpack.c.l.b16 %v1873
    %v2209 = vunpack.c.h.b16 %v1873
    %v2210 = vunpack.c.l.b16 %v1874
    %v2211 = vunpack.c.h.b16 %v1874
    %v2212 = vunpack.c.l.b16 %v1875
    %v2213 = vunpack.c.h.b16 %v1875
    %v2214 = vunpack.c.l.b16 %v1876
    %v2215 = vunpack.c.h.b16 %v1876
    %v2216 = vunpack.c.l.b16 %v1877
    %v2217 = vunpack.c.h.b16 %v1877
    %v2218 = vunpack.c.l.b16 %v1878
    %v2219 = vunpack.c.h.b16 %v1878
    %v2220 = vunpack.c.l.b16 %v1879
    %v2221 = vunpack.c.h.b16 %v1879
    %v2222 = vunpack.c.l.b16 %v1880
    %v2223 = vunpack.c.h.b16 %v1880
    %v2224 = vunpack.c.l.b16 %v1881
    %v2225 = vunpack.c.h.b16 %v1881
    %v2226 = vunpack.c.l.b16 %v1882
    %v2227 = vunpack.c.h.b16 %v1882
    %v2228 = vunpack.c.l.b16 %v1883
    %v2229 = vunpack.c.h.b16 %v1883
    %v2230 = vunpack.c.l.b16 %v1884
    %v2231 = vunpack.c.h.b16 %v1884
    %v2232 = vunpack.c.l.b16 %v1885
    %v2233 = vunpack.c.h.b16 %v1885
    %v2234 = vunpack.c.l.b16 %v1886
    %v2235 = vunpack.c.h.b16 %v1886
    %v2236 = vunpack.c.l.b16 %v1887
    %v2237 = vunpack.c.h.b16 %v1887
    %v2238 = vunpack.c.l.b16 %v1888
    %v2239 = vunpack.c.h.b16 %v1888
    %v2240 = vunpack.c.l.b16 %v1889
    %v2241 = vunpack.c.h.b16 %v1889
    %v2242 = vunpack.c.l.b16 %v1890
    %v2243 = vunpack.c.h.b16 %v1890
    %v2244 = vunpack.c.l.b16 %v1891
    %v2245 = vunpack.c.h.b16 %v1891
    %v2246 = vunpack.c.l.b16 %v1892
    %v2247 = vunpack.c.h.b16 %v1892
    %v2248 = vunpack.c.l.b16 %v1893
    %v2249 = vunpack.c.h.b16 %v1893
    %v2250 = vunpack.c.l.b16 %v1894
    %v2251 = vunpack.c.h.b16 %v1894
    %v2252 = vunpack.c.l.b16 %v1895
    %v2253 = vunpack.c.h.b16 %v1895
    %v2254 = vunpack.c.l.b16 %v1896
    %v2255 = vunpack.c.h.b16 %v1896
    %v2256 = vunpack.c.l.b16 %v1897
    %v2257 = vunpack.c.h.b16 %v1897
    %v2258 = vunpack.c.l.b16 %v1898
    %v2259 = vunpack.c.h.b16 %v1898
    %v2260 = vunpack.c.l.b16 %v1899
    %v2261 = vunpack.c.h.b16 %v1899
    %v2262 = vunpack.c.l.b16 %v1900
    %v2263 = vunpack.c.h.b16 %v1900
    %v2264 = vunpack.c.l.b16 %v1901
    %v2265 = vunpack.c.h.b16 %v1901
    %v2266 = vunpack.c.l.b16 %v1902
    %v2267 = vunpack.c.h.b16 %v1902
    %v2268 = vunpack.c.l.b16 %v1903
    %v2269 = vunpack.c.h.b16 %v1903
    %v2270 = vunpack.c.l.b16 %v1904
    %v2271 = vunpack.c.h.b16 %v1904
    %v2272 = vunpack.c.l.b16 %v1905
    %v2273 = vunpack.c.h.b16 %v1905
    %v2274 = vunpack.c.l.b16 %v1906
    %v2275 = vunpack.c.h.b16 %v1906
    %v2276 = vunpack.c.l.b16 %v1907
    %v2277 = vunpack.c.h.b16 %v1907
    %v2278 = vunpack.c.l.b16 %v1908
    %v2279 = vunpack.c.h.b16 %v1908
    %v2280 = vunpack.c.l.b16 %v1909
    %v2281 = vunpack.c.h.b16 %v1909
    %v2282 = vunpack.c.l.b16 %v1910
    %v2283 = vunpack.c.h.b16 %v1910
    %v2284 = vunpack.c.l.b16 %v1911
    %v2285 = vunpack.c.h.b16 %v1911
    %v2286 = vunpack.c.l.b16 %v1912
    %v2287 = vunpack.c.h.b16 %v1912
    %v2288 = vunpack.c.l.b16 %v1913
    %v2289 = vunpack.c.h.b16 %v1913
    %v2290 = vunpack.c.l.b16 %v1914
    %v2291 = vunpack.c.h.b16 %v1914
    %v2292 = vunpack.c.l.b16 %v1915
    %v2293 = vunpack.c.h.b16 %v1915
    %v2294 = vunpack.c.l.b16 %v1916
    %v2295 = vunpack.c.h.b16 %v1916
    %v2296 = vunpack.c.l.b16 %v1917
    %v2297 = vunpack.c.h.b16 %v1917
    %v2298 = vunpack.c.l.b16 %v1918
    %v2299 = vunpack.c.h.b16 %v1918
    %v2300 = vunpack.c.l.b16 %v1919
    %v2301 = vunpack.c.h.b16 %v1919
    %v2302 = vunpack.c.l.b16 %v1920
    %v2303 = vunpack.c.h.b16 %v1920
    %v2304 = vunpack.c.l.b16 %v1921
    %v2305 = vunpack.c.h.b16 %v1921
    %v2306 = vpack.c.b16 %v2054, %v2050
    %v2307 = vpack.c.b16 %v2055, %v2051
    %v2308 = vpack.c.b16 %v2056, %v2052
    %v2309 = vpack.c.b16 %v2057, %v2053
    %v2310 = vpack.c.b16 %v2062, %v2058
    %v2311 = vpack.c.b16 %v2063, %v2059
    %v2312 = vpack.c.b16 %v2064, %v2060
    %v2313 = vpack.c.b16 %v2065, %v2061
    %v2314 = vpack.c.b16 %v2070, %v2066
    %v2315 = vpack.c.b16 %v2071, %v2067
    %v2316 = vpack.c.b16 %v2072, %v2068
    %v2317 = vpack.c.b16 %v2073, %v2069
    %v2318 = vpack.c.b16 %v2078, %v2074
    %v2319 = vpack.c.b16 %v2079, %v2075
    %v2320 = vpack.c.b16 %v2080, %v2076
    %v2321 = vpack.c.b16 %v2081, %v2077
    %v2322 = vpack.c.b16 %v2086, %v2082
    %v2323 = vpack.c.b16 %v2087, %v2083
    %v2324 = vpack.c.b16 %v2088, %v2084
    %v2325 = vpack.c.b16 %v2089, %v2085
    %v2326 = vpack.c.b16 %v2094, %v2090
    %v2327 = vpack.c.b16 %v2095, %v2091
    %v2328 = vpack.c.b16 %v2096, %v2092
    %v2329 = vpack.c.b16 %v2097, %v2093
    %v2330 = vpack.c.b16 %v2102, %v2098
    %v2331 = vpack.c.b16 %v2103, %v2099
    %v2332 = vpack.c.b16 %v2104, %v2100
    %v2333 = vpack.c.b16 %v2105, %v2101
    %v2334 = vpack.c.b16 %v2110, %v2106
    %v2335 = vpack.c.b16 %v2111, %v2107
    %v2336 = vpack.c.b16 %v2112, %v2108
    %v2337 = vpack.c.b16 %v2113, %v2109
    %v2338 = vpack.c.b16 %v2118, %v2114
    %v2339 = vpack.c.b16 %v2119, %v2115
    %v2340 = vpack.c.b16 %v2120, %v2116
    %v2341 = vpack.c.b16 %v2121, %v2117
    %v2342 = vpack.c.b16 %v2126, %v2122
    %v2343 = vpack.c.b16 %v2127, %v2123
    %v2344 = vpack.c.b16 %v2128, %v2124
    %v2345 = vpack.c.b16 %v2129, %v2125
    %v2346 = vpack.c.b16 %v2134, %v2130
    %v2347 = vpack.c.b16 %v2135, %v2131
    %v2348 = vpack.c.b16 %v2136, %v2132
    %v2349 = vpack.c.b16 %v2137, %v2133
    %v2350 = vpack.c.b16 %v2142, %v2138
    %v2351 = vpack.c.b16 %v2143, %v2139
    %v2352 = vpack.c.b16 %v2144, %v2140
    %v2353 = vpack.c.b16 %v2145, %v2141
    %v2354 = vpack.c.b16 %v2150, %v2146
    %v2355 = vpack.c.b16 %v2151, %v2147
    %v2356 = vpack.c.b16 %v2152, %v2148
    %v2357 = vpack.c.b16 %v2153, %v2149
    %v2358 = vpack.c.b16 %v2158, %v2154
    %v2359 = vpack.c.b16 %v2159, %v2155
    %v2360 = vpack.c.b16 %v2160, %v2156
    %v2361 = vpack.c.b16 %v2161, %v2157
    %v2362 = vpack.c.b16 %v2166, %v2162
    %v2363 = vpack.c.b16 %v2167, %v2163
    %v2364 = vpack.c.b16 %v2168, %v2164
    %v2365 = vpack.c.b16 %v2169, %v2165
    %v2366 = vpack.c.b16 %v2174, %v2170
    %v2367 = vpack.c.b16 %v2175, %v2171
    %v2368 = vpack.c.b16 %v2176, %v2172
    %v2369 = vpack.c.b16 %v2177, %v2173
    %v2370 = vpack.c.b16 %v2182, %v2178
    %v2371 = vpack.c.b16 %v2183, %v2179
    %v2372 = vpack.c.b16 %v2184, %v2180
    %v2373 = vpack.c.b16 %v2185, %v2181
    %v2374 = vpack.c.b16 %v2190, %v2186
    %v2375 = vpack.c.b16 %v2191, %v2187
    %v2376 = vpack.c.b16 %v2192, %v2188
    %v2377 = vpack.c.b16 %v2193, %v2189
    %v2378 = vpack.c.b16 %v2198, %v2194
    %v2379 = vpack.c.b16 %v2199, %v2195
    %v2380 = vpack.c.b16 %v2200, %v2196
    %v2381 = vpack.c.b16 %v2201, %v2197
    %v2382 = vpack.c.b16 %v2206, %v2202
    %v2383 = vpack.c.b16 %v2207, %v2203
    %v2384 = vpack.c.b16 %v2208, %v2204
    %v2385 = vpack.c.b16 %v2209, %v2205
    %v2386 = vpack.c.b16 %v2214, %v2210
    %v2387 = vpack.c.b16 %v2215, %v2211
    %v2388 = vpack.c.b16 %v2216, %v2212
    %v2389 = vpack.c.b16 %v2217, %v2213
    %v2390 = vpack.c.b16 %v2222, %v2218
    %v2391 = vpack.c.b16 %v2223, %v2219
    %v2392 = vpack.c.b16 %v2224, %v2220
    %v2393 = vpack.c.b16 %v2225, %v2221
    %v2394 = vpack.c.b16 %v2230, %v2226
    %v2395 = vpack.c.b16 %v2231, %v2227
    %v2396 = vpack.c.b16 %v2232, %v2228
    %v2397 = vpack.c.b16 %v2233, %v2229
    %v2398 = vpack.c.b16 %v2238, %v2234
    %v2399 = vpack.c.b16 %v2239, %v2235
    %v2400 = vpack.c.b16 %v2240, %v2236
    %v2401 = vpack.c.b16 %v2241, %v2237
    %v2402 = vpack.c.b16 %v2246, %v2242
    %v2403 = vpack.c.b16 %v2247, %v2243
    %v2404 = vpack.c.b16 %v2248, %v2244
    %v2405 = vpack.c.b16 %v2249, %v2245
    %v2406 = vpack.c.b16 %v2254, %v2250
    %v2407 = vpack.c.b16 %v2255, %v2251
    %v2408 = vpack.c.b16 %v2256, %v2252
    %v2409 = vpack.c.b16 %v2257, %v2253
    %v2410 = vpack.c.b16 %v2262, %v2258
    %v2411 = vpack.c.b16 %v2263, %v2259
    %v2412 = vpack.c.b16 %v2264, %v2260
    %v2413 = vpack.c.b16 %v2265, %v2261
    %v2414 = vpack.c.b16 %v2270, %v2266
    %v2415 = vpack.c.b16 %v2271, %v2267
    %v2416 = vpack.c.b16 %v2272, %v2268
    %v2417 = vpack.c.b16 %v2273, %v2269
    %v2418 = vpack.c.b16 %v2278, %v2274
    %v2419 = vpack.c.b16 %v2279, %v2275
    %v2420 = vpack.c.b16 %v2280, %v2276
    %v2421 = vpack.c.b16 %v2281, %v2277
    %v2422 = vpack.c.b16 %v2286, %v2282
    %v2423 = vpack.c.b16 %v2287, %v2283
    %v2424 = vpack.c.b16 %v2288, %v2284
    %v2425 = vpack.c.b16 %v2289, %v2285
    %v2426 = vpack.c.b16 %v2294, %v2290
    %v2427 = vpack.c.b16 %v2295, %v2291
    %v2428 = vpack.c.b16 %v2296, %v2292
    %v2429 = vpack.c.b16 %v2297, %v2293
    %v2430 = vpack.c.b16 %v2302, %v2298
    %v2431 = vpack.c.b16 %v2303, %v2299
    %v2432 = vpack.c.b16 %v2304, %v2300
    %v2433 = vpack.c.b16 %v2305, %v2301
    %2562 = vmatprep.subr.bf16.mxu0 %v2307
    %2563 = vmatpush1.bf16.msra.mxu0 %v2306
    %2564 = vmatprep.subr.bf16.mxu0 %v2311
    %2565 = vmatpush1.bf16.msra.mxu0 %v2310
    %2566 = vmatprep.subr.bf16.mxu0 %v2315
    %2567 = vmatpush1.bf16.msra.mxu0 %v2314
    %2568 = vmatprep.subr.bf16.mxu0 %v2319
    %2569 = vmatpush1.bf16.msra.mxu0 %v2318
    %2570 = vmatprep.subr.bf16.mxu0 %v2323
    %2571 = vmatpush1.bf16.msra.mxu0 %v2322
    %2572 = vmatprep.subr.bf16.mxu0 %v2327
    %2573 = vmatpush1.bf16.msra.mxu0 %v2326
    %2574 = vmatprep.subr.bf16.mxu0 %v2331
    %2575 = vmatpush1.bf16.msra.mxu0 %v2330
    %2576 = vmatprep.subr.bf16.mxu0 %v2335
    %2577 = vmatpush1.bf16.msra.mxu0 %v2334
    %2578 = vmatprep.subr.bf16.mxu0 %v2339
    %2579 = vmatpush1.bf16.msra.mxu0 %v2338
    %2580 = vmatprep.subr.bf16.mxu0 %v2343
    %2581 = vmatpush1.bf16.msra.mxu0 %v2342
    %2582 = vmatprep.subr.bf16.mxu0 %v2347
    %2583 = vmatpush1.bf16.msra.mxu0 %v2346
    %2584 = vmatprep.subr.bf16.mxu0 %v2351
    %2585 = vmatpush1.bf16.msra.mxu0 %v2350
    %2586 = vmatprep.subr.bf16.mxu0 %v2355
    %2587 = vmatpush1.bf16.msra.mxu0 %v2354
    %2588 = vmatprep.subr.bf16.mxu0 %v2359
    %2589 = vmatpush1.bf16.msra.mxu0 %v2358
    %2590 = vmatprep.subr.bf16.mxu0 %v2363
    %2591 = vmatpush1.bf16.msra.mxu0 %v2362
    %2592 = vmatprep.subr.bf16.mxu0 %v2367
    %2593 = vmatpush1.bf16.msra.mxu0 %v2366
    %2594 = vmatprep.mubr.bf16.mxu0 %v1377
    %2595 = vmatmul.mubr.bf16.gmra.mrb[0].mxu0 %v1376
    %v2596 = vpop.f32.mrb[0].mxu0
    %v2597 = vadd.f32 0.0, %v2596
    %v2598 = vpop.f32.mrb[0].mxu0
    %v2599 = vadd.f32 0.0, %v2598
    %v2600 = vpop.f32.mrb[0].mxu0
    %v2601 = vadd.f32 0.0, %v2600
    %v2602 = vpop.f32.mrb[0].mxu0
    %v2603 = vadd.f32 0.0, %v2602
    %2604 = vmatprep.mubr.bf16.mxu0 %v1381
    %2605 = vmatmul.mubr.bf16.gmra.mrb[0].mxu0 %v1380
    %v2606 = vpop.f32.mrb[0].mxu0
    %v2607 = vadd.f32 0.0, %v2606
    %v2608 = vpop.f32.mrb[0].mxu0
    %v2609 = vadd.f32 0.0, %v2608
    %v2610 = vpop.f32.mrb[0].mxu0
    %v2611 = vadd.f32 0.0, %v2610
    %v2612 = vpop.f32.mrb[0].mxu0
    %v2613 = vadd.f32 0.0, %v2612
    %2614 = vmatprep.mubr.bf16.mxu0 %v1385
    %2615 = vmatmul.mubr.bf16.gmra.mrb[0].mxu0 %v1384
    %v2616 = vpop.f32.mrb[0].mxu0
    %v2617 = vadd.f32 0.0, %v2616
    %v2618 = vpop.f32.mrb[0].mxu0
    %v2619 = vadd.f32 0.0, %v2618
    %v2620 = vpop.f32.mrb[0].mxu0
    %v2621 = vadd.f32 0.0, %v2620
    %v2622 = vpop.f32.mrb[0].mxu0
    %v2623 = vadd.f32 0.0, %v2622
    %2624 = vmatprep.mubr.bf16.mxu0 %v1389
    %2625 = vmatmul.mubr.bf16.gmra.mrb[0].mxu0 %v1388
    %v2626 = vpop.f32.mrb[0].mxu0
    %v2627 = vadd.f32 0.0, %v2626
    %v2628 = vpop.f32.mrb[0].mxu0
    %v2629 = vadd.f32 0.0, %v2628
    %v2630 = vpop.f32.mrb[0].mxu0
    %v2631 = vadd.f32 0.0, %v2630
    %v2632 = vpop.f32.mrb[0].mxu0
    %v2633 = vadd.f32 0.0, %v2632
    %2634 = vmatprep.mubr.bf16.mxu0 %v1393
    %2635 = vmatmul.mubr.bf16.gmra.mrb[0].mxu0 %v1392
    %v2636 = vpop.f32.mrb[0].mxu0
    %v2637 = vadd.f32 0.0, %v2636
    %v2638 = vpop.f32.mrb[0].mxu0
    %v2639 = vadd.f32 0.0, %v2638
    %v2640 = vpop.f32.mrb[0].mxu0
    %v2641 = vadd.f32 0.0, %v2640
    %v2642 = vpop.f32.mrb[0].mxu0
    %v2643 = vadd.f32 0.0, %v2642
    %2644 = vmatprep.mubr.bf16.mxu0 %v1397
    %2645 = vmatmul.mubr.bf16.gmra.mrb[0].mxu0 %v1396
    %v2646 = vpop.f32.mrb[0].mxu0
    %v2647 = vadd.f32 0.0, %v2646
    %v2648 = vpop.f32.mrb[0].mxu0
    %v2649 = vadd.f32 0.0, %v2648
    %v2650 = vpop.f32.mrb[0].mxu0
    %v2651 = vadd.f32 0.0, %v2650
    %v2652 = vpop.f32.mrb[0].mxu0
    %v2653 = vadd.f32 0.0, %v2652
    %2654 = vmatprep.mubr.bf16.mxu0 %v1401
    %2655 = vmatmul.mubr.bf16.gmra.mrb[0].mxu0 %v1400
    %v2656 = vpop.f32.mrb[0].mxu0
    %v2657 = vadd.f32 0.0, %v2656
    %v2658 = vpop.f32.mrb[0].mxu0
    %v2659 = vadd.f32 0.0, %v2658
    %v2660 = vpop.f32.mrb[0].mxu0
    %v2661 = vadd.f32 0.0, %v2660
    %v2662 = vpop.f32.mrb[0].mxu0
    %v2663 = vadd.f32 0.0, %v2662
    %2664 = vmatprep.mubr.bf16.mxu0 %v1405
    %2665 = vmatmul.mubr.bf16.gmra.mrb[0].mxu0 %v1404
    %v2666 = vpop.f32.mrb[0].mxu0
    %v2667 = vadd.f32 0.0, %v2666
    %v2668 = vpop.f32.mrb[0].mxu0
    %v2669 = vadd.f32 0.0, %v2668
    %v2670 = vpop.f32.mrb[0].mxu0
    %v2671 = vadd.f32 0.0, %v2670
    %v2672 = vpop.f32.mrb[0].mxu0
    %v2673 = vadd.f32 0.0, %v2672
    %2674 = vdwg.mxu0
    %2675 = vmatprep.subr.bf16.mxu0 %v2371
    %2676 = vmatpush1.bf16.msra.mxu0 %v2370
    %2677 = vmatprep.subr.bf16.mxu0 %v2375
    %2678 = vmatpush1.bf16.msra.mxu0 %v2374
    %2679 = vmatprep.subr.bf16.mxu0 %v2379
    %2680 = vmatpush1.bf16.msra.mxu0 %v2378
    %2681 = vmatprep.subr.bf16.mxu0 %v2383
    %2682 = vmatpush1.bf16.msra.mxu0 %v2382
    %2683 = vmatprep.subr.bf16.mxu0 %v2387
    %2684 = vmatpush1.bf16.msra.mxu0 %v2386
    %2685 = vmatprep.subr.bf16.mxu0 %v2391
    %2686 = vmatpush1.bf16.msra.mxu0 %v2390
    %2687 = vmatprep.subr.bf16.mxu0 %v2395
    %2688 = vmatpush1.bf16.msra.mxu0 %v2394
    %2689 = vmatprep.subr.bf16.mxu0 %v2399
    %2690 = vmatpush1.bf16.msra.mxu0 %v2398
    %2691 = vmatprep.subr.bf16.mxu0 %v2403
    %2692 = vmatpush1.bf16.msra.mxu0 %v2402
    %2693 = vmatprep.subr.bf16.mxu0 %v2407
    %2694 = vmatpush1.bf16.msra.mxu0 %v2406
    %2695 = vmatprep.subr.bf16.mxu0 %v2411
    %2696 = vmatpush1.bf16.msra.mxu0 %v2410
    %2697 = vmatprep.subr.bf16.mxu0 %v2415
    %2698 = vmatpush1.bf16.msra.mxu0 %v2414
    %2699 = vmatprep.subr.bf16.mxu0 %v2419
    %2700 = vmatpush1.bf16.msra.mxu0 %v2418
    %2701 = vmatprep.subr.bf16.mxu0 %v2423
    %2702 = vmatpush1.bf16.msra.mxu0 %v2422
    %2703 = vmatprep.subr.bf16.mxu0 %v2427
    %2704 = vmatpush1.bf16.msra.mxu0 %v2426
    %2705 = vmatprep.subr.bf16.mxu0 %v2431
    %2706 = vmatpush1.bf16.msra.mxu0 %v2430
    %2707 = vmatprep.mubr.bf16.mxu0 %v1379
    %2708 = vmatmul.mubr.bf16.gmra.mrb[0].mxu0 %v1378
    %v2709 = vpop.f32.mrb[0].mxu0
    %v2710 = vadd.f32 %v2597, %v2709
    %v2711 = vpop.f32.mrb[0].mxu0
    %v2712 = vadd.f32 %v2599, %v2711
    %v2713 = vpop.f32.mrb[0].mxu0
    %v2714 = vadd.f32 %v2601, %v2713
    %v2715 = vpop.f32.mrb[0].mxu0
    %v2716 = vadd.f32 %v2603, %v2715
    %2717 = vmatprep.mubr.bf16.mxu0 %v1383
    %2718 = vmatmul.mubr.bf16.gmra.mrb[0].mxu0 %v1382
    %v2719 = vpop.f32.mrb[0].mxu0
    %v2720 = vadd.f32 %v2607, %v2719
    %v2721 = vpop.f32.mrb[0].mxu0
    %v2722 = vadd.f32 %v2609, %v2721
    %v2723 = vpop.f32.mrb[0].mxu0
    %v2724 = vadd.f32 %v2611, %v2723
    %v2725 = vpop.f32.mrb[0].mxu0
    %v2726 = vadd.f32 %v2613, %v2725
    %2727 = vmatprep.mubr.bf16.mxu0 %v1387
    %2728 = vmatmul.mubr.bf16.gmra.mrb[0].mxu0 %v1386
    %v2729 = vpop.f32.mrb[0].mxu0
    %v2730 = vadd.f32 %v2617, %v2729
    %v2731 = vpop.f32.mrb[0].mxu0
    %v2732 = vadd.f32 %v2619, %v2731
    %v2733 = vpop.f32.mrb[0].mxu0
    %v2734 = vadd.f32 %v2621, %v2733
    %v2735 = vpop.f32.mrb[0].mxu0
    %v2736 = vadd.f32 %v2623, %v2735
    %2737 = vmatprep.mubr.bf16.mxu0 %v1391
    %2738 = vmatmul.mubr.bf16.gmra.mrb[0].mxu0 %v1390
    %v2739 = vpop.f32.mrb[0].mxu0
    %v2740 = vadd.f32 %v2627, %v2739
    %v2741 = vpop.f32.mrb[0].mxu0
    %v2742 = vadd.f32 %v2629, %v2741
    %v2743 = vpop.f32.mrb[0].mxu0
    %v2744 = vadd.f32 %v2631, %v2743
    %v2745 = vpop.f32.mrb[0].mxu0
    %v2746 = vadd.f32 %v2633, %v2745
    %2747 = vmatprep.mubr.bf16.mxu0 %v1395
    %2748 = vmatmul.mubr.bf16.gmra.mrb[0].mxu0 %v1394
    %v2749 = vpop.f32.mrb[0].mxu0
    %v2750 = vadd.f32 %v2637, %v2749
    %v2751 = vpop.f32.mrb[0].mxu0
    %v2752 = vadd.f32 %v2639, %v2751
    %v2753 = vpop.f32.mrb[0].mxu0
    %v2754 = vadd.f32 %v2641, %v2753
    %v2755 = vpop.f32.mrb[0].mxu0
    %v2756 = vadd.f32 %v2643, %v2755
    %2757 = vmatprep.mubr.bf16.mxu0 %v1399
    %2758 = vmatmul.mubr.bf16.gmra.mrb[0].mxu0 %v1398
    %v2759 = vpop.f32.mrb[0].mxu0
    %v2760 = vadd.f32 %v2647, %v2759
    %v2761 = vpop.f32.mrb[0].mxu0
    %v2762 = vadd.f32 %v2649, %v2761
    %v2763 = vpop.f32.mrb[0].mxu0
    %v2764 = vadd.f32 %v2651, %v2763
    %v2765 = vpop.f32.mrb[0].mxu0
    %v2766 = vadd.f32 %v2653, %v2765
    %2767 = vmatprep.mubr.bf16.mxu0 %v1403
    %2768 = vmatmul.mubr.bf16.gmra.mrb[0].mxu0 %v1402
    %v2769 = vpop.f32.mrb[0].mxu0
    %v2770 = vadd.f32 %v2657, %v2769
    %v2771 = vpop.f32.mrb[0].mxu0
    %v2772 = vadd.f32 %v2659, %v2771
    %v2773 = vpop.f32.mrb[0].mxu0
    %v2774 = vadd.f32 %v2661, %v2773
    %v2775 = vpop.f32.mrb[0].mxu0
    %v2776 = vadd.f32 %v2663, %v2775
    %2777 = vmatprep.mubr.bf16.mxu0 %v1407
    %2778 = vmatmul.mubr.bf16.gmra.mrb[0].mxu0 %v1406
    %v2779 = vpop.f32.mrb[0].mxu0
    %v2780 = vadd.f32 %v2667, %v2779
    %v2781 = vpop.f32.mrb[0].mxu0
    %v2782 = vadd.f32 %v2669, %v2781
    %v2783 = vpop.f32.mrb[0].mxu0
    %v2784 = vadd.f32 %v2671, %v2783
    %v2785 = vpop.f32.mrb[0].mxu0
    %v2786 = vadd.f32 %v2673, %v2785
    %2787 = vdwg.mxu0
    %2788 = vmatprep.subr.bf16.mxu0 %v2309
    %2789 = vmatpush1.bf16.msra.mxu0 %v2308
    %2790 = vmatprep.subr.bf16.mxu0 %v2313
    %2791 = vmatpush1.bf16.msra.mxu0 %v2312
    %2792 = vmatprep.subr.bf16.mxu0 %v2317
    %2793 = vmatpush1.bf16.msra.mxu0 %v2316
    %2794 = vmatprep.subr.bf16.mxu0 %v2321
    %2795 = vmatpush1.bf16.msra.mxu0 %v2320
    %2796 = vmatprep.subr.bf16.mxu0 %v2325
    %2797 = vmatpush1.bf16.msra.mxu0 %v2324
    %2798 = vmatprep.subr.bf16.mxu0 %v2329
    %2799 = vmatpush1.bf16.msra.mxu0 %v2328
    %2800 = vmatprep.subr.bf16.mxu0 %v2333
    %2801 = vmatpush1.bf16.msra.mxu0 %v2332
    %2802 = vmatprep.subr.bf16.mxu0 %v2337
    %2803 = vmatpush1.bf16.msra.mxu0 %v2336
    %2804 = vmatprep.subr.bf16.mxu0 %v2341
    %2805 = vmatpush1.bf16.msra.mxu0 %v2340
    %2806 = vmatprep.subr.bf16.mxu0 %v2345
    %2807 = vmatpush1.bf16.msra.mxu0 %v2344
    %2808 = vmatprep.subr.bf16.mxu0 %v2349
    %2809 = vmatpush1.bf16.msra.mxu0 %v2348
    %2810 = vmatprep.subr.bf16.mxu0 %v2353
    %2811 = vmatpush1.bf16.msra.mxu0 %v2352
    %2812 = vmatprep.subr.bf16.mxu0 %v2357
    %2813 = vmatpush1.bf16.msra.mxu0 %v2356
    %2814 = vmatprep.subr.bf16.mxu0 %v2361
    %2815 = vmatpush1.bf16.msra.mxu0 %v2360
    %2816 = vmatprep.subr.bf16.mxu0 %v2365
    %2817 = vmatpush1.bf16.msra.mxu0 %v2364
    %2818 = vmatprep.subr.bf16.mxu0 %v2369
    %2819 = vmatpush1.bf16.msra.mxu0 %v2368
    %2820 = vmatprep.mubr.bf16.mxu0 %v1377
    %2821 = vmatmul.mubr.bf16.gmra.mrb[0].mxu0 %v1376
    %v2822 = vpop.f32.mrb[0].mxu0
    %v2823 = vadd.f32 0.0, %v2822
    %v2824 = vpop.f32.mrb[0].mxu0
    %v2825 = vadd.f32 0.0, %v2824
    %v2826 = vpop.f32.mrb[0].mxu0
    %v2827 = vadd.f32 0.0, %v2826
    %v2828 = vpop.f32.mrb[0].mxu0
    %v2829 = vadd.f32 0.0, %v2828
    %2830 = vmatprep.mubr.bf16.mxu0 %v1381
    %2831 = vmatmul.mubr.bf16.gmra.mrb[0].mxu0 %v1380
    %v2832 = vpop.f32.mrb[0].mxu0
    %v2833 = vadd.f32 0.0, %v2832
    %v2834 = vpop.f32.mrb[0].mxu0
    %v2835 = vadd.f32 0.0, %v2834
    %v2836 = vpop.f32.mrb[0].mxu0
    %v2837 = vadd.f32 0.0, %v2836
    %v2838 = vpop.f32.mrb[0].mxu0
    %v2839 = vadd.f32 0.0, %v2838
    %2840 = vmatprep.mubr.bf16.mxu0 %v1385
    %2841 = vmatmul.mubr.bf16.gmra.mrb[0].mxu0 %v1384
    %v2842 = vpop.f32.mrb[0].mxu0
    %v2843 = vadd.f32 0.0, %v2842
    %v2844 = vpop.f32.mrb[0].mxu0
    %v2845 = vadd.f32 0.0, %v2844
    %v2846 = vpop.f32.mrb[0].mxu0
    %v2847 = vadd.f32 0.0, %v2846
    %v2848 = vpop.f32.mrb[0].mxu0
    %v2849 = vadd.f32 0.0, %v2848
    %2850 = vmatprep.mubr.bf16.mxu0 %v1389
    %2851 = vmatmul.mubr.bf16.gmra.mrb[0].mxu0 %v1388
    %v2852 = vpop.f32.mrb[0].mxu0
    %v2853 = vadd.f32 0.0, %v2852
    %v2854 = vpop.f32.mrb[0].mxu0
    %v2855 = vadd.f32 0.0, %v2854
    %v2856 = vpop.f32.mrb[0].mxu0
    %v2857 = vadd.f32 0.0, %v2856
    %v2858 = vpop.f32.mrb[0].mxu0
    %v2859 = vadd.f32 0.0, %v2858
    %2860 = vmatprep.mubr.bf16.mxu0 %v1393
    %2861 = vmatmul.mubr.bf16.gmra.mrb[0].mxu0 %v1392
    %v2862 = vpop.f32.mrb[0].mxu0
    %v2863 = vadd.f32 0.0, %v2862
    %v2864 = vpop.f32.mrb[0].mxu0
    %v2865 = vadd.f32 0.0, %v2864
    %v2866 = vpop.f32.mrb[0].mxu0
    %v2867 = vadd.f32 0.0, %v2866
    %v2868 = vpop.f32.mrb[0].mxu0
    %v2869 = vadd.f32 0.0, %v2868
    %2870 = vmatprep.mubr.bf16.mxu0 %v1397
    %2871 = vmatmul.mubr.bf16.gmra.mrb[0].mxu0 %v1396
    %v2872 = vpop.f32.mrb[0].mxu0
    %v2873 = vadd.f32 0.0, %v2872
    %v2874 = vpop.f32.mrb[0].mxu0
    %v2875 = vadd.f32 0.0, %v2874
    %v2876 = vpop.f32.mrb[0].mxu0
    %v2877 = vadd.f32 0.0, %v2876
    %v2878 = vpop.f32.mrb[0].mxu0
    %v2879 = vadd.f32 0.0, %v2878
    %2880 = vmatprep.mubr.bf16.mxu0 %v1401
    %2881 = vmatmul.mubr.bf16.gmra.mrb[0].mxu0 %v1400
    %v2882 = vpop.f32.mrb[0].mxu0
    %v2883 = vadd.f32 0.0, %v2882
    %v2884 = vpop.f32.mrb[0].mxu0
    %v2885 = vadd.f32 0.0, %v2884
    %v2886 = vpop.f32.mrb[0].mxu0
    %v2887 = vadd.f32 0.0, %v2886
    %v2888 = vpop.f32.mrb[0].mxu0
    %v2889 = vadd.f32 0.0, %v2888
    %2890 = vmatprep.mubr.bf16.mxu0 %v1405
    %2891 = vmatmul.mubr.bf16.gmra.mrb[0].mxu0 %v1404
    %v2892 = vpop.f32.mrb[0].mxu0
    %v2893 = vadd.f32 0.0, %v2892
    %v2894 = vpop.f32.mrb[0].mxu0
    %v2895 = vadd.f32 0.0, %v2894
    %v2896 = vpop.f32.mrb[0].mxu0
    %v2897 = vadd.f32 0.0, %v2896
    %v2898 = vpop.f32.mrb[0].mxu0
    %v2899 = vadd.f32 0.0, %v2898
    %2900 = vdwg.mxu0
    %2901 = vmatprep.subr.bf16.mxu0 %v2373
    %2902 = vmatpush1.bf16.msra.mxu0 %v2372
    %2903 = vmatprep.subr.bf16.mxu0 %v2377
    %2904 = vmatpush1.bf16.msra.mxu0 %v2376
    %2905 = vmatprep.subr.bf16.mxu0 %v2381
    %2906 = vmatpush1.bf16.msra.mxu0 %v2380
    %2907 = vmatprep.subr.bf16.mxu0 %v2385
    %2908 = vmatpush1.bf16.msra.mxu0 %v2384
    %2909 = vmatprep.subr.bf16.mxu0 %v2389
    %2910 = vmatpush1.bf16.msra.mxu0 %v2388
    %2911 = vmatprep.subr.bf16.mxu0 %v2393
    %2912 = vmatpush1.bf16.msra.mxu0 %v2392
    %2913 = vmatprep.subr.bf16.mxu0 %v2397
    %2914 = vmatpush1.bf16.msra.mxu0 %v2396
    %2915 = vmatprep.subr.bf16.mxu0 %v2401
    %2916 = vmatpush1.bf16.msra.mxu0 %v2400
    %2917 = vmatprep.subr.bf16.mxu0 %v2405
    %2918 = vmatpush1.bf16.msra.mxu0 %v2404
    %2919 = vmatprep.subr.bf16.mxu0 %v2409
    %2920 = vmatpush1.bf16.msra.mxu0 %v2408
    %2921 = vmatprep.subr.bf16.mxu0 %v2413
    %2922 = vmatpush1.bf16.msra.mxu0 %v2412
    %2923 = vmatprep.subr.bf16.mxu0 %v2417
    %2924 = vmatpush1.bf16.msra.mxu0 %v2416
    %2925 = vmatprep.subr.bf16.mxu0 %v2421
    %2926 = vmatpush1.bf16.msra.mxu0 %v2420
    %2927 = vmatprep.subr.bf16.mxu0 %v2425
    %2928 = vmatpush1.bf16.msra.mxu0 %v2424
    %2929 = vmatprep.subr.bf16.mxu0 %v2429
    %2930 = vmatpush1.bf16.msra.mxu0 %v2428
    %2931 = vmatprep.subr.bf16.mxu0 %v2433
    %2932 = vmatpush1.bf16.msra.mxu0 %v2432
    %2933 = vmatprep.mubr.bf16.mxu0 %v1379
    %2934 = vmatmul.mubr.bf16.gmra.mrb[0].mxu0 %v1378
    %v2935 = vpop.f32.mrb[0].mxu0
    %v2936 = vadd.f32 %v2823, %v2935
    %v2937 = vpop.f32.mrb[0].mxu0
    %v2938 = vadd.f32 %v2825, %v2937
    %v2939 = vpop.f32.mrb[0].mxu0
    %v2940 = vadd.f32 %v2827, %v2939
    %v2941 = vpop.f32.mrb[0].mxu0
    %v2942 = vadd.f32 %v2829, %v2941
    %2943 = vmatprep.mubr.bf16.mxu0 %v1383
    %2944 = vmatmul.mubr.bf16.gmra.mrb[0].mxu0 %v1382
    %v2945 = vpop.f32.mrb[0].mxu0
    %v2946 = vadd.f32 %v2833, %v2945
    %v2947 = vpop.f32.mrb[0].mxu0
    %v2948 = vadd.f32 %v2835, %v2947
    %v2949 = vpop.f32.mrb[0].mxu0
    %v2950 = vadd.f32 %v2837, %v2949
    %v2951 = vpop.f32.mrb[0].mxu0
    %v2952 = vadd.f32 %v2839, %v2951
    %2953 = vmatprep.mubr.bf16.mxu0 %v1387
    %2954 = vmatmul.mubr.bf16.gmra.mrb[0].mxu0 %v1386
    %v2955 = vpop.f32.mrb[0].mxu0
    %v2956 = vadd.f32 %v2843, %v2955
    %v2957 = vpop.f32.mrb[0].mxu0
    %v2958 = vadd.f32 %v2845, %v2957
    %v2959 = vpop.f32.mrb[0].mxu0
    %v2960 = vadd.f32 %v2847, %v2959
    %v2961 = vpop.f32.mrb[0].mxu0
    %v2962 = vadd.f32 %v2849, %v2961
    %2963 = vmatprep.mubr.bf16.mxu0 %v1391
    %2964 = vmatmul.mubr.bf16.gmra.mrb[0].mxu0 %v1390
    %v2965 = vpop.f32.mrb[0].mxu0
    %v2966 = vadd.f32 %v2853, %v2965
    %v2967 = vpop.f32.mrb[0].mxu0
    %v2968 = vadd.f32 %v2855, %v2967
    %v2969 = vpop.f32.mrb[0].mxu0
    %v2970 = vadd.f32 %v2857, %v2969
    %v2971 = vpop.f32.mrb[0].mxu0
    %v2972 = vadd.f32 %v2859, %v2971
    %2973 = vmatprep.mubr.bf16.mxu0 %v1395
    %2974 = vmatmul.mubr.bf16.gmra.mrb[0].mxu0 %v1394
    %v2975 = vpop.f32.mrb[0].mxu0
    %v2976 = vadd.f32 %v2863, %v2975
    %v2977 = vpop.f32.mrb[0].mxu0
    %v2978 = vadd.f32 %v2865, %v2977
    %v2979 = vpop.f32.mrb[0].mxu0
    %v2980 = vadd.f32 %v2867, %v2979
    %v2981 = vpop.f32.mrb[0].mxu0
    %v2982 = vadd.f32 %v2869, %v2981
    %2983 = vmatprep.mubr.bf16.mxu0 %v1399
    %2984 = vmatmul.mubr.bf16.gmra.mrb[0].mxu0 %v1398
    %v2985 = vpop.f32.mrb[0].mxu0
    %v2986 = vadd.f32 %v2873, %v2985
    %v2987 = vpop.f32.mrb[0].mxu0
    %v2988 = vadd.f32 %v2875, %v2987
    %v2989 = vpop.f32.mrb[0].mxu0
    %v2990 = vadd.f32 %v2877, %v2989
    %v2991 = vpop.f32.mrb[0].mxu0
    %v2992 = vadd.f32 %v2879, %v2991
    %2993 = vmatprep.mubr.bf16.mxu0 %v1403
    %2994 = vmatmul.mubr.bf16.gmra.mrb[0].mxu0 %v1402
    %v2995 = vpop.f32.mrb[0].mxu0
    %v2996 = vadd.f32 %v2883, %v2995
    %v2997 = vpop.f32.mrb[0].mxu0
    %v2998 = vadd.f32 %v2885, %v2997
    %v2999 = vpop.f32.mrb[0].mxu0
    %v3000 = vadd.f32 %v2887, %v2999
    %v3001 = vpop.f32.mrb[0].mxu0
    %v3002 = vadd.f32 %v2889, %v3001
    %3003 = vmatprep.mubr.bf16.mxu0 %v1407
    %3004 = vmatmul.mubr.bf16.gmra.mrb[0].mxu0 %v1406
    %v3005 = vpop.f32.mrb[0].mxu0
    %v3006 = vadd.f32 %v2893, %v3005
    %v3007 = vpop.f32.mrb[0].mxu0
    %v3008 = vadd.f32 %v2895, %v3007
    %v3009 = vpop.f32.mrb[0].mxu0
    %v3010 = vadd.f32 %v2897, %v3009
    %v3011 = vpop.f32.mrb[0].mxu0
    %v3012 = vadd.f32 %v2899, %v3011
    %3013 = vdwg.mxu0
    %v3142 = vunpack.c.l.b16 %v1666
    %v3143 = vunpack.c.h.b16 %v1666
    %v3144 = vunpack.c.l.b16 %v1667
    %v3145 = vunpack.c.h.b16 %v1667
    %v3146 = vunpack.c.l.b16 %v1668
    %v3147 = vunpack.c.h.b16 %v1668
    %v3148 = vunpack.c.l.b16 %v1669
    %v3149 = vunpack.c.h.b16 %v1669
    %v3150 = vunpack.c.l.b16 %v1670
    %v3151 = vunpack.c.h.b16 %v1670
    %v3152 = vunpack.c.l.b16 %v1671
    %v3153 = vunpack.c.h.b16 %v1671
    %v3154 = vunpack.c.l.b16 %v1672
    %v3155 = vunpack.c.h.b16 %v1672
    %v3156 = vunpack.c.l.b16 %v1673
    %v3157 = vunpack.c.h.b16 %v1673
    %v3158 = vunpack.c.l.b16 %v1674
    %v3159 = vunpack.c.h.b16 %v1674
    %v3160 = vunpack.c.l.b16 %v1675
    %v3161 = vunpack.c.h.b16 %v1675
    %v3162 = vunpack.c.l.b16 %v1676
    %v3163 = vunpack.c.h.b16 %v1676
    %v3164 = vunpack.c.l.b16 %v1677
    %v3165 = vunpack.c.h.b16 %v1677
    %v3166 = vunpack.c.l.b16 %v1678
    %v3167 = vunpack.c.h.b16 %v1678
    %v3168 = vunpack.c.l.b16 %v1679
    %v3169 = vunpack.c.h.b16 %v1679
    %v3170 = vunpack.c.l.b16 %v1680
    %v3171 = vunpack.c.h.b16 %v1680
    %v3172 = vunpack.c.l.b16 %v1681
    %v3173 = vunpack.c.h.b16 %v1681
    %v3174 = vunpack.c.l.b16 %v1682
    %v3175 = vunpack.c.h.b16 %v1682
    %v3176 = vunpack.c.l.b16 %v1683
    %v3177 = vunpack.c.h.b16 %v1683
    %v3178 = vunpack.c.l.b16 %v1684
    %v3179 = vunpack.c.h.b16 %v1684
    %v3180 = vunpack.c.l.b16 %v1685
    %v3181 = vunpack.c.h.b16 %v1685
    %v3182 = vunpack.c.l.b16 %v1686
    %v3183 = vunpack.c.h.b16 %v1686
    %v3184 = vunpack.c.l.b16 %v1687
    %v3185 = vunpack.c.h.b16 %v1687
    %v3186 = vunpack.c.l.b16 %v1688
    %v3187 = vunpack.c.h.b16 %v1688
    %v3188 = vunpack.c.l.b16 %v1689
    %v3189 = vunpack.c.h.b16 %v1689
    %v3190 = vunpack.c.l.b16 %v1690
    %v3191 = vunpack.c.h.b16 %v1690
    %v3192 = vunpack.c.l.b16 %v1691
    %v3193 = vunpack.c.h.b16 %v1691
    %v3194 = vunpack.c.l.b16 %v1692
    %v3195 = vunpack.c.h.b16 %v1692
    %v3196 = vunpack.c.l.b16 %v1693
    %v3197 = vunpack.c.h.b16 %v1693
    %v3198 = vunpack.c.l.b16 %v1694
    %v3199 = vunpack.c.h.b16 %v1694
    %v3200 = vunpack.c.l.b16 %v1695
    %v3201 = vunpack.c.h.b16 %v1695
    %v3202 = vunpack.c.l.b16 %v1696
    %v3203 = vunpack.c.h.b16 %v1696
    %v3204 = vunpack.c.l.b16 %v1697
    %v3205 = vunpack.c.h.b16 %v1697
    %v3206 = vunpack.c.l.b16 %v1698
    %v3207 = vunpack.c.h.b16 %v1698
    %v3208 = vunpack.c.l.b16 %v1699
    %v3209 = vunpack.c.h.b16 %v1699
    %v3210 = vunpack.c.l.b16 %v1700
    %v3211 = vunpack.c.h.b16 %v1700
    %v3212 = vunpack.c.l.b16 %v1701
    %v3213 = vunpack.c.h.b16 %v1701
    %v3214 = vunpack.c.l.b16 %v1702
    %v3215 = vunpack.c.h.b16 %v1702
    %v3216 = vunpack.c.l.b16 %v1703
    %v3217 = vunpack.c.h.b16 %v1703
    %v3218 = vunpack.c.l.b16 %v1704
    %v3219 = vunpack.c.h.b16 %v1704
    %v3220 = vunpack.c.l.b16 %v1705
    %v3221 = vunpack.c.h.b16 %v1705
    %v3222 = vunpack.c.l.b16 %v1706
    %v3223 = vunpack.c.h.b16 %v1706
    %v3224 = vunpack.c.l.b16 %v1707
    %v3225 = vunpack.c.h.b16 %v1707
    %v3226 = vunpack.c.l.b16 %v1708
    %v3227 = vunpack.c.h.b16 %v1708
    %v3228 = vunpack.c.l.b16 %v1709
    %v3229 = vunpack.c.h.b16 %v1709
    %v3230 = vunpack.c.l.b16 %v1710
    %v3231 = vunpack.c.h.b16 %v1710
    %v3232 = vunpack.c.l.b16 %v1711
    %v3233 = vunpack.c.h.b16 %v1711
    %v3234 = vunpack.c.l.b16 %v1712
    %v3235 = vunpack.c.h.b16 %v1712
    %v3236 = vunpack.c.l.b16 %v1713
    %v3237 = vunpack.c.h.b16 %v1713
    %v3238 = vunpack.c.l.b16 %v1714
    %v3239 = vunpack.c.h.b16 %v1714
    %v3240 = vunpack.c.l.b16 %v1715
    %v3241 = vunpack.c.h.b16 %v1715
    %v3242 = vunpack.c.l.b16 %v1716
    %v3243 = vunpack.c.h.b16 %v1716
    %v3244 = vunpack.c.l.b16 %v1717
    %v3245 = vunpack.c.h.b16 %v1717
    %v3246 = vunpack.c.l.b16 %v1718
    %v3247 = vunpack.c.h.b16 %v1718
    %v3248 = vunpack.c.l.b16 %v1719
    %v3249 = vunpack.c.h.b16 %v1719
    %v3250 = vunpack.c.l.b16 %v1720
    %v3251 = vunpack.c.h.b16 %v1720
    %v3252 = vunpack.c.l.b16 %v1721
    %v3253 = vunpack.c.h.b16 %v1721
    %v3254 = vunpack.c.l.b16 %v1722
    %v3255 = vunpack.c.h.b16 %v1722
    %v3256 = vunpack.c.l.b16 %v1723
    %v3257 = vunpack.c.h.b16 %v1723
    %v3258 = vunpack.c.l.b16 %v1724
    %v3259 = vunpack.c.h.b16 %v1724
    %v3260 = vunpack.c.l.b16 %v1725
    %v3261 = vunpack.c.h.b16 %v1725
    %v3262 = vunpack.c.l.b16 %v1726
    %v3263 = vunpack.c.h.b16 %v1726
    %v3264 = vunpack.c.l.b16 %v1727
    %v3265 = vunpack.c.h.b16 %v1727
    %v3266 = vunpack.c.l.b16 %v1728
    %v3267 = vunpack.c.h.b16 %v1728
    %v3268 = vunpack.c.l.b16 %v1729
    %v3269 = vunpack.c.h.b16 %v1729
    %v3270 = vunpack.c.l.b16 %v1730
    %v3271 = vunpack.c.h.b16 %v1730
    %v3272 = vunpack.c.l.b16 %v1731
    %v3273 = vunpack.c.h.b16 %v1731
    %v3274 = vunpack.c.l.b16 %v1732
    %v3275 = vunpack.c.h.b16 %v1732
    %v3276 = vunpack.c.l.b16 %v1733
    %v3277 = vunpack.c.h.b16 %v1733
    %v3278 = vunpack.c.l.b16 %v1734
    %v3279 = vunpack.c.h.b16 %v1734
    %v3280 = vunpack.c.l.b16 %v1735
    %v3281 = vunpack.c.h.b16 %v1735
    %v3282 = vunpack.c.l.b16 %v1736
    %v3283 = vunpack.c.h.b16 %v1736
    %v3284 = vunpack.c.l.b16 %v1737
    %v3285 = vunpack.c.h.b16 %v1737
    %v3286 = vunpack.c.l.b16 %v1738
    %v3287 = vunpack.c.h.b16 %v1738
    %v3288 = vunpack.c.l.b16 %v1739
    %v3289 = vunpack.c.h.b16 %v1739
    %v3290 = vunpack.c.l.b16 %v1740
    %v3291 = vunpack.c.h.b16 %v1740
    %v3292 = vunpack.c.l.b16 %v1741
    %v3293 = vunpack.c.h.b16 %v1741
    %v3294 = vunpack.c.l.b16 %v1742
    %v3295 = vunpack.c.h.b16 %v1742
    %v3296 = vunpack.c.l.b16 %v1743
    %v3297 = vunpack.c.h.b16 %v1743
    %v3298 = vunpack.c.l.b16 %v1744
    %v3299 = vunpack.c.h.b16 %v1744
    %v3300 = vunpack.c.l.b16 %v1745
    %v3301 = vunpack.c.h.b16 %v1745
    %v3302 = vunpack.c.l.b16 %v1746
    %v3303 = vunpack.c.h.b16 %v1746
    %v3304 = vunpack.c.l.b16 %v1747
    %v3305 = vunpack.c.h.b16 %v1747
    %v3306 = vunpack.c.l.b16 %v1748
    %v3307 = vunpack.c.h.b16 %v1748
    %v3308 = vunpack.c.l.b16 %v1749
    %v3309 = vunpack.c.h.b16 %v1749
    %v3310 = vunpack.c.l.b16 %v1750
    %v3311 = vunpack.c.h.b16 %v1750
    %v3312 = vunpack.c.l.b16 %v1751
    %v3313 = vunpack.c.h.b16 %v1751
    %v3314 = vunpack.c.l.b16 %v1752
    %v3315 = vunpack.c.h.b16 %v1752
    %v3316 = vunpack.c.l.b16 %v1753
    %v3317 = vunpack.c.h.b16 %v1753
    %v3318 = vunpack.c.l.b16 %v1754
    %v3319 = vunpack.c.h.b16 %v1754
    %v3320 = vunpack.c.l.b16 %v1755
    %v3321 = vunpack.c.h.b16 %v1755
    %v3322 = vunpack.c.l.b16 %v1756
    %v3323 = vunpack.c.h.b16 %v1756
    %v3324 = vunpack.c.l.b16 %v1757
    %v3325 = vunpack.c.h.b16 %v1757
    %v3326 = vunpack.c.l.b16 %v1758
    %v3327 = vunpack.c.h.b16 %v1758
    %v3328 = vunpack.c.l.b16 %v1759
    %v3329 = vunpack.c.h.b16 %v1759
    %v3330 = vunpack.c.l.b16 %v1760
    %v3331 = vunpack.c.h.b16 %v1760
    %v3332 = vunpack.c.l.b16 %v1761
    %v3333 = vunpack.c.h.b16 %v1761
    %v3334 = vunpack.c.l.b16 %v1762
    %v3335 = vunpack.c.h.b16 %v1762
    %v3336 = vunpack.c.l.b16 %v1763
    %v3337 = vunpack.c.h.b16 %v1763
    %v3338 = vunpack.c.l.b16 %v1764
    %v3339 = vunpack.c.h.b16 %v1764
    %v3340 = vunpack.c.l.b16 %v1765
    %v3341 = vunpack.c.h.b16 %v1765
    %v3342 = vunpack.c.l.b16 %v1766
    %v3343 = vunpack.c.h.b16 %v1766
    %v3344 = vunpack.c.l.b16 %v1767
    %v3345 = vunpack.c.h.b16 %v1767
    %v3346 = vunpack.c.l.b16 %v1768
    %v3347 = vunpack.c.h.b16 %v1768
    %v3348 = vunpack.c.l.b16 %v1769
    %v3349 = vunpack.c.h.b16 %v1769
    %v3350 = vunpack.c.l.b16 %v1770
    %v3351 = vunpack.c.h.b16 %v1770
    %v3352 = vunpack.c.l.b16 %v1771
    %v3353 = vunpack.c.h.b16 %v1771
    %v3354 = vunpack.c.l.b16 %v1772
    %v3355 = vunpack.c.h.b16 %v1772
    %v3356 = vunpack.c.l.b16 %v1773
    %v3357 = vunpack.c.h.b16 %v1773
    %v3358 = vunpack.c.l.b16 %v1774
    %v3359 = vunpack.c.h.b16 %v1774
    %v3360 = vunpack.c.l.b16 %v1775
    %v3361 = vunpack.c.h.b16 %v1775
    %v3362 = vunpack.c.l.b16 %v1776
    %v3363 = vunpack.c.h.b16 %v1776
    %v3364 = vunpack.c.l.b16 %v1777
    %v3365 = vunpack.c.h.b16 %v1777
    %v3366 = vunpack.c.l.b16 %v1778
    %v3367 = vunpack.c.h.b16 %v1778
    %v3368 = vunpack.c.l.b16 %v1779
    %v3369 = vunpack.c.h.b16 %v1779
    %v3370 = vunpack.c.l.b16 %v1780
    %v3371 = vunpack.c.h.b16 %v1780
    %v3372 = vunpack.c.l.b16 %v1781
    %v3373 = vunpack.c.h.b16 %v1781
    %v3374 = vunpack.c.l.b16 %v1782
    %v3375 = vunpack.c.h.b16 %v1782
    %v3376 = vunpack.c.l.b16 %v1783
    %v3377 = vunpack.c.h.b16 %v1783
    %v3378 = vunpack.c.l.b16 %v1784
    %v3379 = vunpack.c.h.b16 %v1784
    %v3380 = vunpack.c.l.b16 %v1785
    %v3381 = vunpack.c.h.b16 %v1785
    %v3382 = vunpack.c.l.b16 %v1786
    %v3383 = vunpack.c.h.b16 %v1786
    %v3384 = vunpack.c.l.b16 %v1787
    %v3385 = vunpack.c.h.b16 %v1787
    %v3386 = vunpack.c.l.b16 %v1788
    %v3387 = vunpack.c.h.b16 %v1788
    %v3388 = vunpack.c.l.b16 %v1789
    %v3389 = vunpack.c.h.b16 %v1789
    %v3390 = vunpack.c.l.b16 %v1790
    %v3391 = vunpack.c.h.b16 %v1790
    %v3392 = vunpack.c.l.b16 %v1791
    %v3393 = vunpack.c.h.b16 %v1791
    %v3394 = vunpack.c.l.b16 %v1792
    %v3395 = vunpack.c.h.b16 %v1792
    %v3396 = vunpack.c.l.b16 %v1793
    %v3397 = vunpack.c.h.b16 %v1793
    %v3398 = vpack.c.b16 %v3146, %v3142
    %v3399 = vpack.c.b16 %v3147, %v3143
    %v3400 = vpack.c.b16 %v3148, %v3144
    %v3401 = vpack.c.b16 %v3149, %v3145
    %v3402 = vpack.c.b16 %v3154, %v3150
    %v3403 = vpack.c.b16 %v3155, %v3151
    %v3404 = vpack.c.b16 %v3156, %v3152
    %v3405 = vpack.c.b16 %v3157, %v3153
    %v3406 = vpack.c.b16 %v3162, %v3158
    %v3407 = vpack.c.b16 %v3163, %v3159
    %v3408 = vpack.c.b16 %v3164, %v3160
    %v3409 = vpack.c.b16 %v3165, %v3161
    %v3410 = vpack.c.b16 %v3170, %v3166
    %v3411 = vpack.c.b16 %v3171, %v3167
    %v3412 = vpack.c.b16 %v3172, %v3168
    %v3413 = vpack.c.b16 %v3173, %v3169
    %v3414 = vpack.c.b16 %v3178, %v3174
    %v3415 = vpack.c.b16 %v3179, %v3175
    %v3416 = vpack.c.b16 %v3180, %v3176
    %v3417 = vpack.c.b16 %v3181, %v3177
    %v3418 = vpack.c.b16 %v3186, %v3182
    %v3419 = vpack.c.b16 %v3187, %v3183
    %v3420 = vpack.c.b16 %v3188, %v3184
    %v3421 = vpack.c.b16 %v3189, %v3185
    %v3422 = vpack.c.b16 %v3194, %v3190
    %v3423 = vpack.c.b16 %v3195, %v3191
    %v3424 = vpack.c.b16 %v3196, %v3192
    %v3425 = vpack.c.b16 %v3197, %v3193
    %v3426 = vpack.c.b16 %v3202, %v3198
    %v3427 = vpack.c.b16 %v3203, %v3199
    %v3428 = vpack.c.b16 %v3204, %v3200
    %v3429 = vpack.c.b16 %v3205, %v3201
    %v3430 = vpack.c.b16 %v3210, %v3206
    %v3431 = vpack.c.b16 %v3211, %v3207
    %v3432 = vpack.c.b16 %v3212, %v3208
    %v3433 = vpack.c.b16 %v3213, %v3209
    %v3434 = vpack.c.b16 %v3218, %v3214
    %v3435 = vpack.c.b16 %v3219, %v3215
    %v3436 = vpack.c.b16 %v3220, %v3216
    %v3437 = vpack.c.b16 %v3221, %v3217
    %v3438 = vpack.c.b16 %v3226, %v3222
    %v3439 = vpack.c.b16 %v3227, %v3223
    %v3440 = vpack.c.b16 %v3228, %v3224
    %v3441 = vpack.c.b16 %v3229, %v3225
    %v3442 = vpack.c.b16 %v3234, %v3230
    %v3443 = vpack.c.b16 %v3235, %v3231
    %v3444 = vpack.c.b16 %v3236, %v3232
    %v3445 = vpack.c.b16 %v3237, %v3233
    %v3446 = vpack.c.b16 %v3242, %v3238
    %v3447 = vpack.c.b16 %v3243, %v3239
    %v3448 = vpack.c.b16 %v3244, %v3240
    %v3449 = vpack.c.b16 %v3245, %v3241
    %v3450 = vpack.c.b16 %v3250, %v3246
    %v3451 = vpack.c.b16 %v3251, %v3247
    %v3452 = vpack.c.b16 %v3252, %v3248
    %v3453 = vpack.c.b16 %v3253, %v3249
    %v3454 = vpack.c.b16 %v3258, %v3254
    %v3455 = vpack.c.b16 %v3259, %v3255
    %v3456 = vpack.c.b16 %v3260, %v3256
    %v3457 = vpack.c.b16 %v3261, %v3257
    %v3458 = vpack.c.b16 %v3266, %v3262
    %v3459 = vpack.c.b16 %v3267, %v3263
    %v3460 = vpack.c.b16 %v3268, %v3264
    %v3461 = vpack.c.b16 %v3269, %v3265
    %v3462 = vpack.c.b16 %v3274, %v3270
    %v3463 = vpack.c.b16 %v3275, %v3271
    %v3464 = vpack.c.b16 %v3276, %v3272
    %v3465 = vpack.c.b16 %v3277, %v3273
    %v3466 = vpack.c.b16 %v3282, %v3278
    %v3467 = vpack.c.b16 %v3283, %v3279
    %v3468 = vpack.c.b16 %v3284, %v3280
    %v3469 = vpack.c.b16 %v3285, %v3281
    %v3470 = vpack.c.b16 %v3290, %v3286
    %v3471 = vpack.c.b16 %v3291, %v3287
    %v3472 = vpack.c.b16 %v3292, %v3288
    %v3473 = vpack.c.b16 %v3293, %v3289
    %v3474 = vpack.c.b16 %v3298, %v3294
    %v3475 = vpack.c.b16 %v3299, %v3295
    %v3476 = vpack.c.b16 %v3300, %v3296
    %v3477 = vpack.c.b16 %v3301, %v3297
    %v3478 = vpack.c.b16 %v3306, %v3302
    %v3479 = vpack.c.b16 %v3307, %v3303
    %v3480 = vpack.c.b16 %v3308, %v3304
    %v3481 = vpack.c.b16 %v3309, %v3305
    %v3482 = vpack.c.b16 %v3314, %v3310
    %v3483 = vpack.c.b16 %v3315, %v3311
    %v3484 = vpack.c.b16 %v3316, %v3312
    %v3485 = vpack.c.b16 %v3317, %v3313
    %v3486 = vpack.c.b16 %v3322, %v3318
    %v3487 = vpack.c.b16 %v3323, %v3319
    %v3488 = vpack.c.b16 %v3324, %v3320
    %v3489 = vpack.c.b16 %v3325, %v3321
    %v3490 = vpack.c.b16 %v3330, %v3326
    %v3491 = vpack.c.b16 %v3331, %v3327
    %v3492 = vpack.c.b16 %v3332, %v3328
    %v3493 = vpack.c.b16 %v3333, %v3329
    %v3494 = vpack.c.b16 %v3338, %v3334
    %v3495 = vpack.c.b16 %v3339, %v3335
    %v3496 = vpack.c.b16 %v3340, %v3336
    %v3497 = vpack.c.b16 %v3341, %v3337
    %v3498 = vpack.c.b16 %v3346, %v3342
    %v3499 = vpack.c.b16 %v3347, %v3343
    %v3500 = vpack.c.b16 %v3348, %v3344
    %v3501 = vpack.c.b16 %v3349, %v3345
    %v3502 = vpack.c.b16 %v3354, %v3350
    %v3503 = vpack.c.b16 %v3355, %v3351
    %v3504 = vpack.c.b16 %v3356, %v3352
    %v3505 = vpack.c.b16 %v3357, %v3353
    %v3506 = vpack.c.b16 %v3362, %v3358
    %v3507 = vpack.c.b16 %v3363, %v3359
    %v3508 = vpack.c.b16 %v3364, %v3360
    %v3509 = vpack.c.b16 %v3365, %v3361
    %v3510 = vpack.c.b16 %v3370, %v3366
    %v3511 = vpack.c.b16 %v3371, %v3367
    %v3512 = vpack.c.b16 %v3372, %v3368
    %v3513 = vpack.c.b16 %v3373, %v3369
    %v3514 = vpack.c.b16 %v3378, %v3374
    %v3515 = vpack.c.b16 %v3379, %v3375
    %v3516 = vpack.c.b16 %v3380, %v3376
    %v3517 = vpack.c.b16 %v3381, %v3377
    %v3518 = vpack.c.b16 %v3386, %v3382
    %v3519 = vpack.c.b16 %v3387, %v3383
    %v3520 = vpack.c.b16 %v3388, %v3384
    %v3521 = vpack.c.b16 %v3389, %v3385
    %v3522 = vpack.c.b16 %v3394, %v3390
    %v3523 = vpack.c.b16 %v3395, %v3391
    %v3524 = vpack.c.b16 %v3396, %v3392
    %v3525 = vpack.c.b16 %v3397, %v3393
    %3654 = vmatprep.subr.bf16.mxu0 %v3399
    %3655 = vmatpush1.bf16.msra.mxu0 %v3398
    %3656 = vmatprep.subr.bf16.mxu0 %v3403
    %3657 = vmatpush1.bf16.msra.mxu0 %v3402
    %3658 = vmatprep.subr.bf16.mxu0 %v3407
    %3659 = vmatpush1.bf16.msra.mxu0 %v3406
    %3660 = vmatprep.subr.bf16.mxu0 %v3411
    %3661 = vmatpush1.bf16.msra.mxu0 %v3410
    %3662 = vmatprep.subr.bf16.mxu0 %v3415
    %3663 = vmatpush1.bf16.msra.mxu0 %v3414
    %3664 = vmatprep.subr.bf16.mxu0 %v3419
    %3665 = vmatpush1.bf16.msra.mxu0 %v3418
    %3666 = vmatprep.subr.bf16.mxu0 %v3423
    %3667 = vmatpush1.bf16.msra.mxu0 %v3422
    %3668 = vmatprep.subr.bf16.mxu0 %v3427
    %3669 = vmatpush1.bf16.msra.mxu0 %v3426
    %3670 = vmatprep.subr.bf16.mxu0 %v3431
    %3671 = vmatpush1.bf16.msra.mxu0 %v3430
    %3672 = vmatprep.subr.bf16.mxu0 %v3435
    %3673 = vmatpush1.bf16.msra.mxu0 %v3434
    %3674 = vmatprep.subr.bf16.mxu0 %v3439
    %3675 = vmatpush1.bf16.msra.mxu0 %v3438
    %3676 = vmatprep.subr.bf16.mxu0 %v3443
    %3677 = vmatpush1.bf16.msra.mxu0 %v3442
    %3678 = vmatprep.subr.bf16.mxu0 %v3447
    %3679 = vmatpush1.bf16.msra.mxu0 %v3446
    %3680 = vmatprep.subr.bf16.mxu0 %v3451
    %3681 = vmatpush1.bf16.msra.mxu0 %v3450
    %3682 = vmatprep.subr.bf16.mxu0 %v3455
    %3683 = vmatpush1.bf16.msra.mxu0 %v3454
    %3684 = vmatprep.subr.bf16.mxu0 %v3459
    %3685 = vmatpush1.bf16.msra.mxu0 %v3458
    %3686 = vmatprep.mubr.bf16.mxu0 %v1635
    %3687 = vmatmul.mubr.bf16.gmra.mrb[0].mxu0 %v1634
    %v3688 = vpop.f32.mrb[0].mxu0
    %v3689 = vadd.f32 %v2710, %v3688
    %v3690 = vpop.f32.mrb[0].mxu0
    %v3691 = vadd.f32 %v2712, %v3690
    %v3692 = vpop.f32.mrb[0].mxu0
    %v3693 = vadd.f32 %v2714, %v3692
    %v3694 = vpop.f32.mrb[0].mxu0
    %v3695 = vadd.f32 %v2716, %v3694
    %3696 = vmatprep.mubr.bf16.mxu0 %v1639
    %3697 = vmatmul.mubr.bf16.gmra.mrb[0].mxu0 %v1638
    %v3698 = vpop.f32.mrb[0].mxu0
    %v3699 = vadd.f32 %v2720, %v3698
    %v3700 = vpop.f32.mrb[0].mxu0
    %v3701 = vadd.f32 %v2722, %v3700
    %v3702 = vpop.f32.mrb[0].mxu0
    %v3703 = vadd.f32 %v2724, %v3702
    %v3704 = vpop.f32.mrb[0].mxu0
    %v3705 = vadd.f32 %v2726, %v3704
    %3706 = vmatprep.mubr.bf16.mxu0 %v1643
    %3707 = vmatmul.mubr.bf16.gmra.mrb[0].mxu0 %v1642
    %v3708 = vpop.f32.mrb[0].mxu0
    %v3709 = vadd.f32 %v2730, %v3708
    %v3710 = vpop.f32.mrb[0].mxu0
    %v3711 = vadd.f32 %v2732, %v3710
    %v3712 = vpop.f32.mrb[0].mxu0
    %v3713 = vadd.f32 %v2734, %v3712
    %v3714 = vpop.f32.mrb[0].mxu0
    %v3715 = vadd.f32 %v2736, %v3714
    %3716 = vmatprep.mubr.bf16.mxu0 %v1647
    %3717 = vmatmul.mubr.bf16.gmra.mrb[0].mxu0 %v1646
    %v3718 = vpop.f32.mrb[0].mxu0
    %v3719 = vadd.f32 %v2740, %v3718
    %v3720 = vpop.f32.mrb[0].mxu0
    %v3721 = vadd.f32 %v2742, %v3720
    %v3722 = vpop.f32.mrb[0].mxu0
    %v3723 = vadd.f32 %v2744, %v3722
    %v3724 = vpop.f32.mrb[0].mxu0
    %v3725 = vadd.f32 %v2746, %v3724
    %3726 = vmatprep.mubr.bf16.mxu0 %v1651
    %3727 = vmatmul.mubr.bf16.gmra.mrb[0].mxu0 %v1650
    %v3728 = vpop.f32.mrb[0].mxu0
    %v3729 = vadd.f32 %v2750, %v3728
    %v3730 = vpop.f32.mrb[0].mxu0
    %v3731 = vadd.f32 %v2752, %v3730
    %v3732 = vpop.f32.mrb[0].mxu0
    %v3733 = vadd.f32 %v2754, %v3732
    %v3734 = vpop.f32.mrb[0].mxu0
    %v3735 = vadd.f32 %v2756, %v3734
    %3736 = vmatprep.mubr.bf16.mxu0 %v1655
    %3737 = vmatmul.mubr.bf16.gmra.mrb[0].mxu0 %v1654
    %v3738 = vpop.f32.mrb[0].mxu0
    %v3739 = vadd.f32 %v2760, %v3738
    %v3740 = vpop.f32.mrb[0].mxu0
    %v3741 = vadd.f32 %v2762, %v3740
    %v3742 = vpop.f32.mrb[0].mxu0
    %v3743 = vadd.f32 %v2764, %v3742
    %v3744 = vpop.f32.mrb[0].mxu0
    %v3745 = vadd.f32 %v2766, %v3744
    %3746 = vmatprep.mubr.bf16.mxu0 %v1659
    %3747 = vmatmul.mubr.bf16.gmra.mrb[0].mxu0 %v1658
    %v3748 = vpop.f32.mrb[0].mxu0
    %v3749 = vadd.f32 %v2770, %v3748
    %v3750 = vpop.f32.mrb[0].mxu0
    %v3751 = vadd.f32 %v2772, %v3750
    %v3752 = vpop.f32.mrb[0].mxu0
    %v3753 = vadd.f32 %v2774, %v3752
    %v3754 = vpop.f32.mrb[0].mxu0
    %v3755 = vadd.f32 %v2776, %v3754
    %3756 = vmatprep.mubr.bf16.mxu0 %v1663
    %3757 = vmatmul.mubr.bf16.gmra.mrb[0].mxu0 %v1662
    %v3758 = vpop.f32.mrb[0].mxu0
    %v3759 = vadd.f32 %v2780, %v3758
    %v3760 = vpop.f32.mrb[0].mxu0
    %v3761 = vadd.f32 %v2782, %v3760
    %v3762 = vpop.f32.mrb[0].mxu0
    %v3763 = vadd.f32 %v2784, %v3762
    %v3764 = vpop.f32.mrb[0].mxu0
    %v3765 = vadd.f32 %v2786, %v3764
    %3766 = vdwg.mxu0
    %3767 = vmatprep.subr.bf16.mxu0 %v3463
    %3768 = vmatpush1.bf16.msra.mxu0 %v3462
    %3769 = vmatprep.subr.bf16.mxu0 %v3467
    %3770 = vmatpush1.bf16.msra.mxu0 %v3466
    %3771 = vmatprep.subr.bf16.mxu0 %v3471
    %3772 = vmatpush1.bf16.msra.mxu0 %v3470
    %3773 = vmatprep.subr.bf16.mxu0 %v3475
    %3774 = vmatpush1.bf16.msra.mxu0 %v3474
    %3775 = vmatprep.subr.bf16.mxu0 %v3479
    %3776 = vmatpush1.bf16.msra.mxu0 %v3478
    %3777 = vmatprep.subr.bf16.mxu0 %v3483
    %3778 = vmatpush1.bf16.msra.mxu0 %v3482
    %3779 = vmatprep.subr.bf16.mxu0 %v3487
    %3780 = vmatpush1.bf16.msra.mxu0 %v3486
    %3781 = vmatprep.subr.bf16.mxu0 %v3491
    %3782 = vmatpush1.bf16.msra.mxu0 %v3490
    %3783 = vmatprep.subr.bf16.mxu0 %v3495
    %3784 = vmatpush1.bf16.msra.mxu0 %v3494
    %3785 = vmatprep.subr.bf16.mxu0 %v3499
    %3786 = vmatpush1.bf16.msra.mxu0 %v3498
    %3787 = vmatprep.subr.bf16.mxu0 %v3503
    %3788 = vmatpush1.bf16.msra.mxu0 %v3502
    %3789 = vmatprep.subr.bf16.mxu0 %v3507
    %3790 = vmatpush1.bf16.msra.mxu0 %v3506
    %3791 = vmatprep.subr.bf16.mxu0 %v3511
    %3792 = vmatpush1.bf16.msra.mxu0 %v3510
    %3793 = vmatprep.subr.bf16.mxu0 %v3515
    %3794 = vmatpush1.bf16.msra.mxu0 %v3514
    %3795 = vmatprep.subr.bf16.mxu0 %v3519
    %3796 = vmatpush1.bf16.msra.mxu0 %v3518
    %3797 = vmatprep.subr.bf16.mxu0 %v3523
    %3798 = vmatpush1.bf16.msra.mxu0 %v3522
    %3799 = vmatprep.mubr.bf16.mxu0 %v1637
    %3800 = vmatmul.mubr.bf16.gmra.mrb[0].mxu0 %v1636
    %v3801 = vpop.f32.mrb[0].mxu0
    %v3802 = vadd.f32 %v3689, %v3801
    %v3803 = vpop.f32.mrb[0].mxu0
    %v3804 = vadd.f32 %v3691, %v3803
    %v3805 = vpop.f32.mrb[0].mxu0
    %v3806 = vadd.f32 %v3693, %v3805
    %v3807 = vpop.f32.mrb[0].mxu0
    %v3808 = vadd.f32 %v3695, %v3807
    %3809 = vmatprep.mubr.bf16.mxu0 %v1641
    %3810 = vmatmul.mubr.bf16.gmra.mrb[0].mxu0 %v1640
    %v3811 = vpop.f32.mrb[0].mxu0
    %v3812 = vadd.f32 %v3699, %v3811
    %v3813 = vpop.f32.mrb[0].mxu0
    %v3814 = vadd.f32 %v3701, %v3813
    %v3815 = vpop.f32.mrb[0].mxu0
    %v3816 = vadd.f32 %v3703, %v3815
    %v3817 = vpop.f32.mrb[0].mxu0
    %v3818 = vadd.f32 %v3705, %v3817
    %3819 = vmatprep.mubr.bf16.mxu0 %v1645
    %3820 = vmatmul.mubr.bf16.gmra.mrb[0].mxu0 %v1644
    %v3821 = vpop.f32.mrb[0].mxu0
    %v3822 = vadd.f32 %v3709, %v3821
    %v3823 = vpop.f32.mrb[0].mxu0
    %v3824 = vadd.f32 %v3711, %v3823
    %v3825 = vpop.f32.mrb[0].mxu0
    %v3826 = vadd.f32 %v3713, %v3825
    %v3827 = vpop.f32.mrb[0].mxu0
    %v3828 = vadd.f32 %v3715, %v3827
    %3829 = vmatprep.mubr.bf16.mxu0 %v1649
    %3830 = vmatmul.mubr.bf16.gmra.mrb[0].mxu0 %v1648
    %v3831 = vpop.f32.mrb[0].mxu0
    %v3832 = vadd.f32 %v3719, %v3831
    %v3833 = vpop.f32.mrb[0].mxu0
    %v3834 = vadd.f32 %v3721, %v3833
    %v3835 = vpop.f32.mrb[0].mxu0
    %v3836 = vadd.f32 %v3723, %v3835
    %v3837 = vpop.f32.mrb[0].mxu0
    %v3838 = vadd.f32 %v3725, %v3837
    %3839 = vmatprep.mubr.bf16.mxu0 %v1653
    %3840 = vmatmul.mubr.bf16.gmra.mrb[0].mxu0 %v1652
    %v3841 = vpop.f32.mrb[0].mxu0
    %v3842 = vadd.f32 %v3729, %v3841
    %v3843 = vpop.f32.mrb[0].mxu0
    %v3844 = vadd.f32 %v3731, %v3843
    %v3845 = vpop.f32.mrb[0].mxu0
    %v3846 = vadd.f32 %v3733, %v3845
    %v3847 = vpop.f32.mrb[0].mxu0
    %v3848 = vadd.f32 %v3735, %v3847
    %3849 = vmatprep.mubr.bf16.mxu0 %v1657
    %3850 = vmatmul.mubr.bf16.gmra.mrb[0].mxu0 %v1656
    %v3851 = vpop.f32.mrb[0].mxu0
    %v3852 = vadd.f32 %v3739, %v3851
    %v3853 = vpop.f32.mrb[0].mxu0
    %v3854 = vadd.f32 %v3741, %v3853
    %v3855 = vpop.f32.mrb[0].mxu0
    %v3856 = vadd.f32 %v3743, %v3855
    %v3857 = vpop.f32.mrb[0].mxu0
    %v3858 = vadd.f32 %v3745, %v3857
    %3859 = vmatprep.mubr.bf16.mxu0 %v1661
    %3860 = vmatmul.mubr.bf16.gmra.mrb[0].mxu0 %v1660
    %v3861 = vpop.f32.mrb[0].mxu0
    %v3862 = vadd.f32 %v3749, %v3861
    %v3863 = vpop.f32.mrb[0].mxu0
    %v3864 = vadd.f32 %v3751, %v3863
    %v3865 = vpop.f32.mrb[0].mxu0
    %v3866 = vadd.f32 %v3753, %v3865
    %v3867 = vpop.f32.mrb[0].mxu0
    %v3868 = vadd.f32 %v3755, %v3867
    %3869 = vmatprep.mubr.bf16.mxu0 %v1665
    %3870 = vmatmul.mubr.bf16.gmra.mrb[0].mxu0 %v1664
    %v3871 = vpop.f32.mrb[0].mxu0
    %v3872 = vadd.f32 %v3759, %v3871
    %v3873 = vpop.f32.mrb[0].mxu0
    %v3874 = vadd.f32 %v3761, %v3873
    %v3875 = vpop.f32.mrb[0].mxu0
    %v3876 = vadd.f32 %v3763, %v3875
    %v3877 = vpop.f32.mrb[0].mxu0
    %v3878 = vadd.f32 %v3765, %v3877
    %3879 = vdwg.mxu0
    %3880 = vmatprep.subr.bf16.mxu0 %v3401
    %3881 = vmatpush1.bf16.msra.mxu0 %v3400
    %3882 = vmatprep.subr.bf16.mxu0 %v3405
    %3883 = vmatpush1.bf16.msra.mxu0 %v3404
    %3884 = vmatprep.subr.bf16.mxu0 %v3409
    %3885 = vmatpush1.bf16.msra.mxu0 %v3408
    %3886 = vmatprep.subr.bf16.mxu0 %v3413
    %3887 = vmatpush1.bf16.msra.mxu0 %v3412
    %3888 = vmatprep.subr.bf16.mxu0 %v3417
    %3889 = vmatpush1.bf16.msra.mxu0 %v3416
    %3890 = vmatprep.subr.bf16.mxu0 %v3421
    %3891 = vmatpush1.bf16.msra.mxu0 %v3420
    %3892 = vmatprep.subr.bf16.mxu0 %v3425
    %3893 = vmatpush1.bf16.msra.mxu0 %v3424
    %3894 = vmatprep.subr.bf16.mxu0 %v3429
    %3895 = vmatpush1.bf16.msra.mxu0 %v3428
    %3896 = vmatprep.subr.bf16.mxu0 %v3433
    %3897 = vmatpush1.bf16.msra.mxu0 %v3432
    %3898 = vmatprep.subr.bf16.mxu0 %v3437
    %3899 = vmatpush1.bf16.msra.mxu0 %v3436
    %3900 = vmatprep.subr.bf16.mxu0 %v3441
    %3901 = vmatpush1.bf16.msra.mxu0 %v3440
    %3902 = vmatprep.subr.bf16.mxu0 %v3445
    %3903 = vmatpush1.bf16.msra.mxu0 %v3444
    %3904 = vmatprep.subr.bf16.mxu0 %v3449
    %3905 = vmatpush1.bf16.msra.mxu0 %v3448
    %3906 = vmatprep.subr.bf16.mxu0 %v3453
    %3907 = vmatpush1.bf16.msra.mxu0 %v3452
    %3908 = vmatprep.subr.bf16.mxu0 %v3457
    %3909 = vmatpush1.bf16.msra.mxu0 %v3456
    %3910 = vmatprep.subr.bf16.mxu0 %v3461
    %3911 = vmatpush1.bf16.msra.mxu0 %v3460
    %3912 = vmatprep.mubr.bf16.mxu0 %v1635
    %3913 = vmatmul.mubr.bf16.gmra.mrb[0].mxu0 %v1634
    %v3914 = vpop.f32.mrb[0].mxu0
    %v3915 = vadd.f32 %v2936, %v3914
    %v3916 = vpop.f32.mrb[0].mxu0
    %v3917 = vadd.f32 %v2938, %v3916
    %v3918 = vpop.f32.mrb[0].mxu0
    %v3919 = vadd.f32 %v2940, %v3918
    %v3920 = vpop.f32.mrb[0].mxu0
    %v3921 = vadd.f32 %v2942, %v3920
    %3922 = vmatprep.mubr.bf16.mxu0 %v1639
    %3923 = vmatmul.mubr.bf16.gmra.mrb[0].mxu0 %v1638
    %v3924 = vpop.f32.mrb[0].mxu0
    %v3925 = vadd.f32 %v2946, %v3924
    %v3926 = vpop.f32.mrb[0].mxu0
    %v3927 = vadd.f32 %v2948, %v3926
    %v3928 = vpop.f32.mrb[0].mxu0
    %v3929 = vadd.f32 %v2950, %v3928
    %v3930 = vpop.f32.mrb[0].mxu0
    %v3931 = vadd.f32 %v2952, %v3930
    %3932 = vmatprep.mubr.bf16.mxu0 %v1643
    %3933 = vmatmul.mubr.bf16.gmra.mrb[0].mxu0 %v1642
    %v3934 = vpop.f32.mrb[0].mxu0
    %v3935 = vadd.f32 %v2956, %v3934
    %v3936 = vpop.f32.mrb[0].mxu0
    %v3937 = vadd.f32 %v2958, %v3936
    %v3938 = vpop.f32.mrb[0].mxu0
    %v3939 = vadd.f32 %v2960, %v3938
    %v3940 = vpop.f32.mrb[0].mxu0
    %v3941 = vadd.f32 %v2962, %v3940
    %3942 = vmatprep.mubr.bf16.mxu0 %v1647
    %3943 = vmatmul.mubr.bf16.gmra.mrb[0].mxu0 %v1646
    %v3944 = vpop.f32.mrb[0].mxu0
    %v3945 = vadd.f32 %v2966, %v3944
    %v3946 = vpop.f32.mrb[0].mxu0
    %v3947 = vadd.f32 %v2968, %v3946
    %v3948 = vpop.f32.mrb[0].mxu0
    %v3949 = vadd.f32 %v2970, %v3948
    %v3950 = vpop.f32.mrb[0].mxu0
    %v3951 = vadd.f32 %v2972, %v3950
    %3952 = vmatprep.mubr.bf16.mxu0 %v1651
    %3953 = vmatmul.mubr.bf16.gmra.mrb[0].mxu0 %v1650
    %v3954 = vpop.f32.mrb[0].mxu0
    %v3955 = vadd.f32 %v2976, %v3954
    %v3956 = vpop.f32.mrb[0].mxu0
    %v3957 = vadd.f32 %v2978, %v3956
    %v3958 = vpop.f32.mrb[0].mxu0
    %v3959 = vadd.f32 %v2980, %v3958
    %v3960 = vpop.f32.mrb[0].mxu0
    %v3961 = vadd.f32 %v2982, %v3960
    %3962 = vmatprep.mubr.bf16.mxu0 %v1655
    %3963 = vmatmul.mubr.bf16.gmra.mrb[0].mxu0 %v1654
    %v3964 = vpop.f32.mrb[0].mxu0
    %v3965 = vadd.f32 %v2986, %v3964
    %v3966 = vpop.f32.mrb[0].mxu0
    %v3967 = vadd.f32 %v2988, %v3966
    %v3968 = vpop.f32.mrb[0].mxu0
    %v3969 = vadd.f32 %v2990, %v3968
    %v3970 = vpop.f32.mrb[0].mxu0
    %v3971 = vadd.f32 %v2992, %v3970
    %3972 = vmatprep.mubr.bf16.mxu0 %v1659
    %3973 = vmatmul.mubr.bf16.gmra.mrb[0].mxu0 %v1658
    %v3974 = vpop.f32.mrb[0].mxu0
    %v3975 = vadd.f32 %v2996, %v3974
    %v3976 = vpop.f32.mrb[0].mxu0
    %v3977 = vadd.f32 %v2998, %v3976
    %v3978 = vpop.f32.mrb[0].mxu0
    %v3979 = vadd.f32 %v3000, %v3978
    %v3980 = vpop.f32.mrb[0].mxu0
    %v3981 = vadd.f32 %v3002, %v3980
    %3982 = vmatprep.mubr.bf16.mxu0 %v1663
    %3983 = vmatmul.mubr.bf16.gmra.mrb[0].mxu0 %v1662
    %v3984 = vpop.f32.mrb[0].mxu0
    %v3985 = vadd.f32 %v3006, %v3984
    %v3986 = vpop.f32.mrb[0].mxu0
    %v3987 = vadd.f32 %v3008, %v3986
    %v3988 = vpop.f32.mrb[0].mxu0
    %v3989 = vadd.f32 %v3010, %v3988
    %v3990 = vpop.f32.mrb[0].mxu0
    %v3991 = vadd.f32 %v3012, %v3990
    %3992 = vdwg.mxu0
    %3993 = vmatprep.subr.bf16.mxu0 %v3465
    %3994 = vmatpush1.bf16.msra.mxu0 %v3464
    %3995 = vmatprep.subr.bf16.mxu0 %v3469
    %3996 = vmatpush1.bf16.msra.mxu0 %v3468
    %3997 = vmatprep.subr.bf16.mxu0 %v3473
    %3998 = vmatpush1.bf16.msra.mxu0 %v3472
    %3999 = vmatprep.subr.bf16.mxu0 %v3477
    %4000 = vmatpush1.bf16.msra.mxu0 %v3476
    %4001 = vmatprep.subr.bf16.mxu0 %v3481
    %4002 = vmatpush1.bf16.msra.mxu0 %v3480
    %4003 = vmatprep.subr.bf16.mxu0 %v3485
    %4004 = vmatpush1.bf16.msra.mxu0 %v3484
    %4005 = vmatprep.subr.bf16.mxu0 %v3489
    %4006 = vmatpush1.bf16.msra.mxu0 %v3488
    %4007 = vmatprep.subr.bf16.mxu0 %v3493
    %4008 = vmatpush1.bf16.msra.mxu0 %v3492
    %4009 = vmatprep.subr.bf16.mxu0 %v3497
    %4010 = vmatpush1.bf16.msra.mxu0 %v3496
    %4011 = vmatprep.subr.bf16.mxu0 %v3501
    %4012 = vmatpush1.bf16.msra.mxu0 %v3500
    %4013 = vmatprep.subr.bf16.mxu0 %v3505
    %4014 = vmatpush1.bf16.msra.mxu0 %v3504
    %4015 = vmatprep.subr.bf16.mxu0 %v3509
    %4016 = vmatpush1.bf16.msra.mxu0 %v3508
    %4017 = vmatprep.subr.bf16.mxu0 %v3513
    %4018 = vmatpush1.bf16.msra.mxu0 %v3512
    %4019 = vmatprep.subr.bf16.mxu0 %v3517
    %4020 = vmatpush1.bf16.msra.mxu0 %v3516
    %4021 = vmatprep.subr.bf16.mxu0 %v3521
    %4022 = vmatpush1.bf16.msra.mxu0 %v3520
    %4023 = vmatprep.subr.bf16.mxu0 %v3525
    %4024 = vmatpush1.bf16.msra.mxu0 %v3524
    %4025 = vmatprep.mubr.bf16.mxu0 %v1637
    %4026 = vmatmul.mubr.bf16.gmra.mrb[0].mxu0 %v1636
    %v4027 = vpop.f32.mrb[0].mxu0
    %v4028 = vadd.f32 %v3915, %v4027
    %v4029 = vpop.f32.mrb[0].mxu0
    %v4030 = vadd.f32 %v3917, %v4029
    %v4031 = vpop.f32.mrb[0].mxu0
    %v4032 = vadd.f32 %v3919, %v4031
    %v4033 = vpop.f32.mrb[0].mxu0
    %v4034 = vadd.f32 %v3921, %v4033
    %4035 = vmatprep.mubr.bf16.mxu0 %v1641
    %4036 = vmatmul.mubr.bf16.gmra.mrb[0].mxu0 %v1640
    %v4037 = vpop.f32.mrb[0].mxu0
    %v4038 = vadd.f32 %v3925, %v4037
    %v4039 = vpop.f32.mrb[0].mxu0
    %v4040 = vadd.f32 %v3927, %v4039
    %v4041 = vpop.f32.mrb[0].mxu0
    %v4042 = vadd.f32 %v3929, %v4041
    %v4043 = vpop.f32.mrb[0].mxu0
    %v4044 = vadd.f32 %v3931, %v4043
    %4045 = vmatprep.mubr.bf16.mxu0 %v1645
    %4046 = vmatmul.mubr.bf16.gmra.mrb[0].mxu0 %v1644
    %v4047 = vpop.f32.mrb[0].mxu0
    %v4048 = vadd.f32 %v3935, %v4047
    %v4049 = vpop.f32.mrb[0].mxu0
    %v4050 = vadd.f32 %v3937, %v4049
    %v4051 = vpop.f32.mrb[0].mxu0
    %v4052 = vadd.f32 %v3939, %v4051
    %v4053 = vpop.f32.mrb[0].mxu0
    %v4054 = vadd.f32 %v3941, %v4053
    %4055 = vmatprep.mubr.bf16.mxu0 %v1649
    %4056 = vmatmul.mubr.bf16.gmra.mrb[0].mxu0 %v1648
    %v4057 = vpop.f32.mrb[0].mxu0
    %v4058 = vadd.f32 %v3945, %v4057
    %v4059 = vpop.f32.mrb[0].mxu0
    %v4060 = vadd.f32 %v3947, %v4059
    %v4061 = vpop.f32.mrb[0].mxu0
    %v4062 = vadd.f32 %v3949, %v4061
    %v4063 = vpop.f32.mrb[0].mxu0
    %v4064 = vadd.f32 %v3951, %v4063
    %4065 = vmatprep.mubr.bf16.mxu0 %v1653
    %4066 = vmatmul.mubr.bf16.gmra.mrb[0].mxu0 %v1652
    %v4067 = vpop.f32.mrb[0].mxu0
    %v4068 = vadd.f32 %v3955, %v4067
    %v4069 = vpop.f32.mrb[0].mxu0
    %v4070 = vadd.f32 %v3957, %v4069
    %v4071 = vpop.f32.mrb[0].mxu0
    %v4072 = vadd.f32 %v3959, %v4071
    %v4073 = vpop.f32.mrb[0].mxu0
    %v4074 = vadd.f32 %v3961, %v4073
    %4075 = vmatprep.mubr.bf16.mxu0 %v1657
    %4076 = vmatmul.mubr.bf16.gmra.mrb[0].mxu0 %v1656
    %v4077 = vpop.f32.mrb[0].mxu0
    %v4078 = vadd.f32 %v3965, %v4077
    %v4079 = vpop.f32.mrb[0].mxu0
    %v4080 = vadd.f32 %v3967, %v4079
    %v4081 = vpop.f32.mrb[0].mxu0
    %v4082 = vadd.f32 %v3969, %v4081
    %v4083 = vpop.f32.mrb[0].mxu0
    %v4084 = vadd.f32 %v3971, %v4083
    %4085 = vmatprep.mubr.bf16.mxu0 %v1661
    %4086 = vmatmul.mubr.bf16.gmra.mrb[0].mxu0 %v1660
    %v4087 = vpop.f32.mrb[0].mxu0
    %v4088 = vadd.f32 %v3975, %v4087
    %v4089 = vpop.f32.mrb[0].mxu0
    %v4090 = vadd.f32 %v3977, %v4089
    %v4091 = vpop.f32.mrb[0].mxu0
    %v4092 = vadd.f32 %v3979, %v4091
    %v4093 = vpop.f32.mrb[0].mxu0
    %v4094 = vadd.f32 %v3981, %v4093
    %4095 = vmatprep.mubr.bf16.mxu0 %v1665
    %4096 = vmatmul.mubr.bf16.gmra.mrb[0].mxu0 %v1664
    %v4097 = vpop.f32.mrb[0].mxu0
    %v4098 = vadd.f32 %v3985, %v4097
    %v4099 = vpop.f32.mrb[0].mxu0
    %v4100 = vadd.f32 %v3987, %v4099
    %v4101 = vpop.f32.mrb[0].mxu0
    %v4102 = vadd.f32 %v3989, %v4101
    %v4103 = vpop.f32.mrb[0].mxu0
    %v4104 = vadd.f32 %v3991, %v4103
    %4105 = vdwg.mxu0
    %v4106 = vld [vmem:[%s7] sm:$0xf]
    %v4108 = vlaneseq
    %v4109 = vshrl.u32 %v4108, 7
    %v4110 = vsub.s32 0, %v4109
    %v4111 = vrot.slane %v4106, %v4110
    %v4112 = vlaneseq
    %v4113 = vshrl.u32 %v4112, 7
    %v4114 = vsub.s32 1, %v4113
    %v4115 = vrot.slane %v4106, %v4114
    %v4116 = vlaneseq
    %v4117 = vshrl.u32 %v4116, 7
    %v4118 = vsub.s32 2, %v4117
    %v4119 = vrot.slane %v4106, %v4118
    %v4120 = vlaneseq
    %v4121 = vshrl.u32 %v4120, 7
    %v4122 = vsub.s32 3, %v4121
    %v4123 = vrot.slane %v4106, %v4122
    %v4128 = vadd.f32 %v3802, %v4111
    %v4129 = vadd.f32 %v3804, %v4115
    %v4130 = vadd.f32 %v4028, %v4119
    %v4131 = vadd.f32 %v4030, %v4123
    %v4132 = vadd.f32 %v3806, %v4111
    %v4133 = vadd.f32 %v3808, %v4115
    %v4134 = vadd.f32 %v4032, %v4119
    %v4135 = vadd.f32 %v4034, %v4123
    %v4136 = vadd.f32 %v3812, %v4111
    %v4137 = vadd.f32 %v3814, %v4115
    %v4138 = vadd.f32 %v4038, %v4119
    %v4139 = vadd.f32 %v4040, %v4123
    %v4140 = vadd.f32 %v3816, %v4111
    %v4141 = vadd.f32 %v3818, %v4115
    %v4142 = vadd.f32 %v4042, %v4119
    %v4143 = vadd.f32 %v4044, %v4123
    %v4144 = vadd.f32 %v3822, %v4111
    %v4145 = vadd.f32 %v3824, %v4115
    %v4146 = vadd.f32 %v4048, %v4119
    %v4147 = vadd.f32 %v4050, %v4123
    %v4148 = vadd.f32 %v3826, %v4111
    %v4149 = vadd.f32 %v3828, %v4115
    %v4150 = vadd.f32 %v4052, %v4119
    %v4151 = vadd.f32 %v4054, %v4123
    %v4152 = vadd.f32 %v3832, %v4111
    %v4153 = vadd.f32 %v3834, %v4115
    %v4154 = vadd.f32 %v4058, %v4119
    %v4155 = vadd.f32 %v4060, %v4123
    %v4156 = vadd.f32 %v3836, %v4111
    %v4157 = vadd.f32 %v3838, %v4115
    %v4158 = vadd.f32 %v4062, %v4119
    %v4159 = vadd.f32 %v4064, %v4123
    %v4160 = vadd.f32 %v3842, %v4111
    %v4161 = vadd.f32 %v3844, %v4115
    %v4162 = vadd.f32 %v4068, %v4119
    %v4163 = vadd.f32 %v4070, %v4123
    %v4164 = vadd.f32 %v3846, %v4111
    %v4165 = vadd.f32 %v3848, %v4115
    %v4166 = vadd.f32 %v4072, %v4119
    %v4167 = vadd.f32 %v4074, %v4123
    %v4168 = vadd.f32 %v3852, %v4111
    %v4169 = vadd.f32 %v3854, %v4115
    %v4170 = vadd.f32 %v4078, %v4119
    %v4171 = vadd.f32 %v4080, %v4123
    %v4172 = vadd.f32 %v3856, %v4111
    %v4173 = vadd.f32 %v3858, %v4115
    %v4174 = vadd.f32 %v4082, %v4119
    %v4175 = vadd.f32 %v4084, %v4123
    %v4176 = vadd.f32 %v3862, %v4111
    %v4177 = vadd.f32 %v3864, %v4115
    %v4178 = vadd.f32 %v4088, %v4119
    %v4179 = vadd.f32 %v4090, %v4123
    %v4180 = vadd.f32 %v3866, %v4111
    %v4181 = vadd.f32 %v3868, %v4115
    %v4182 = vadd.f32 %v4092, %v4119
    %v4183 = vadd.f32 %v4094, %v4123
    %v4184 = vadd.f32 %v3872, %v4111
    %v4185 = vadd.f32 %v3874, %v4115
    %v4186 = vadd.f32 %v4098, %v4119
    %v4187 = vadd.f32 %v4100, %v4123
    %v4188 = vadd.f32 %v3876, %v4111
    %v4189 = vadd.f32 %v3878, %v4115
    %v4190 = vadd.f32 %v4102, %v4119
    %v4191 = vadd.f32 %v4104, %v4123
    %v4192 = vmax.f32 %v4128, 0.0
    %v4193 = vmax.f32 %v4129, 0.0
    %v4194 = vmax.f32 %v4130, 0.0
    %v4195 = vmax.f32 %v4131, 0.0
    %v4196 = vmax.f32 %v4132, 0.0
    %v4197 = vmax.f32 %v4133, 0.0
    %v4198 = vmax.f32 %v4134, 0.0
    %v4199 = vmax.f32 %v4135, 0.0
    %v4200 = vmax.f32 %v4136, 0.0
    %v4201 = vmax.f32 %v4137, 0.0
    %v4202 = vmax.f32 %v4138, 0.0
    %v4203 = vmax.f32 %v4139, 0.0
    %v4204 = vmax.f32 %v4140, 0.0
    %v4205 = vmax.f32 %v4141, 0.0
    %v4206 = vmax.f32 %v4142, 0.0
    %v4207 = vmax.f32 %v4143, 0.0
    %v4208 = vmax.f32 %v4144, 0.0
    %v4209 = vmax.f32 %v4145, 0.0
    %v4210 = vmax.f32 %v4146, 0.0
    %v4211 = vmax.f32 %v4147, 0.0
    %v4212 = vmax.f32 %v4148, 0.0
    %v4213 = vmax.f32 %v4149, 0.0
    %v4214 = vmax.f32 %v4150, 0.0
    %v4215 = vmax.f32 %v4151, 0.0
    %v4216 = vmax.f32 %v4152, 0.0
    %v4217 = vmax.f32 %v4153, 0.0
    %v4218 = vmax.f32 %v4154, 0.0
    %v4219 = vmax.f32 %v4155, 0.0
    %v4220 = vmax.f32 %v4156, 0.0
    %v4221 = vmax.f32 %v4157, 0.0
    %v4222 = vmax.f32 %v4158, 0.0
    %v4223 = vmax.f32 %v4159, 0.0
    %v4224 = vmax.f32 %v4160, 0.0
    %v4225 = vmax.f32 %v4161, 0.0
    %v4226 = vmax.f32 %v4162, 0.0
    %v4227 = vmax.f32 %v4163, 0.0
    %v4228 = vmax.f32 %v4164, 0.0
    %v4229 = vmax.f32 %v4165, 0.0
    %v4230 = vmax.f32 %v4166, 0.0
    %v4231 = vmax.f32 %v4167, 0.0
    %v4232 = vmax.f32 %v4168, 0.0
    %v4233 = vmax.f32 %v4169, 0.0
    %v4234 = vmax.f32 %v4170, 0.0
    %v4235 = vmax.f32 %v4171, 0.0
    %v4236 = vmax.f32 %v4172, 0.0
    %v4237 = vmax.f32 %v4173, 0.0
    %v4238 = vmax.f32 %v4174, 0.0
    %v4239 = vmax.f32 %v4175, 0.0
    %v4240 = vmax.f32 %v4176, 0.0
    %v4241 = vmax.f32 %v4177, 0.0
    %v4242 = vmax.f32 %v4178, 0.0
    %v4243 = vmax.f32 %v4179, 0.0
    %v4244 = vmax.f32 %v4180, 0.0
    %v4245 = vmax.f32 %v4181, 0.0
    %v4246 = vmax.f32 %v4182, 0.0
    %v4247 = vmax.f32 %v4183, 0.0
    %v4248 = vmax.f32 %v4184, 0.0
    %v4249 = vmax.f32 %v4185, 0.0
    %v4250 = vmax.f32 %v4186, 0.0
    %v4251 = vmax.f32 %v4187, 0.0
    %v4252 = vmax.f32 %v4188, 0.0
    %v4253 = vmax.f32 %v4189, 0.0
    %v4254 = vmax.f32 %v4190, 0.0
    %v4255 = vmax.f32 %v4191, 0.0
    %v4256 = vadd.f32 %v4192, %v1312
    %v4257 = vadd.f32 %v4193, %v1313
    %v4258 = vadd.f32 %v4194, %v1314
    %v4259 = vadd.f32 %v4195, %v1315
    %v4260 = vadd.f32 %v4196, %v1316
    %v4261 = vadd.f32 %v4197, %v1317
    %v4262 = vadd.f32 %v4198, %v1318
    %v4263 = vadd.f32 %v4199, %v1319
    %v4264 = vadd.f32 %v4200, %v1320
    %v4265 = vadd.f32 %v4201, %v1321
    %v4266 = vadd.f32 %v4202, %v1322
    %v4267 = vadd.f32 %v4203, %v1323
    %v4268 = vadd.f32 %v4204, %v1324
    %v4269 = vadd.f32 %v4205, %v1325
    %v4270 = vadd.f32 %v4206, %v1326
    %v4271 = vadd.f32 %v4207, %v1327
    %v4272 = vadd.f32 %v4208, %v1328
    %v4273 = vadd.f32 %v4209, %v1329
    %v4274 = vadd.f32 %v4210, %v1330
    %v4275 = vadd.f32 %v4211, %v1331
    %v4276 = vadd.f32 %v4212, %v1332
    %v4277 = vadd.f32 %v4213, %v1333
    %v4278 = vadd.f32 %v4214, %v1334
    %v4279 = vadd.f32 %v4215, %v1335
    %v4280 = vadd.f32 %v4216, %v1336
    %v4281 = vadd.f32 %v4217, %v1337
    %v4282 = vadd.f32 %v4218, %v1338
    %v4283 = vadd.f32 %v4219, %v1339
    %v4284 = vadd.f32 %v4220, %v1340
    %v4285 = vadd.f32 %v4221, %v1341
    %v4286 = vadd.f32 %v4222, %v1342
    %v4287 = vadd.f32 %v4223, %v1343
    %v4288 = vadd.f32 %v4224, %v1344
    %v4289 = vadd.f32 %v4225, %v1345
    %v4290 = vadd.f32 %v4226, %v1346
    %v4291 = vadd.f32 %v4227, %v1347
    %v4292 = vadd.f32 %v4228, %v1348
    %v4293 = vadd.f32 %v4229, %v1349
    %v4294 = vadd.f32 %v4230, %v1350
    %v4295 = vadd.f32 %v4231, %v1351
    %v4296 = vadd.f32 %v4232, %v1352
    %v4297 = vadd.f32 %v4233, %v1353
    %v4298 = vadd.f32 %v4234, %v1354
    %v4299 = vadd.f32 %v4235, %v1355
    %v4300 = vadd.f32 %v4236, %v1356
    %v4301 = vadd.f32 %v4237, %v1357
    %v4302 = vadd.f32 %v4238, %v1358
    %v4303 = vadd.f32 %v4239, %v1359
    %v4304 = vadd.f32 %v4240, %v1360
    %v4305 = vadd.f32 %v4241, %v1361
    %v4306 = vadd.f32 %v4242, %v1362
    %v4307 = vadd.f32 %v4243, %v1363
    %v4308 = vadd.f32 %v4244, %v1364
    %v4309 = vadd.f32 %v4245, %v1365
    %v4310 = vadd.f32 %v4246, %v1366
    %v4311 = vadd.f32 %v4247, %v1367
    %v4312 = vadd.f32 %v4248, %v1368
    %v4313 = vadd.f32 %v4249, %v1369
    %v4314 = vadd.f32 %v4250, %v1370
    %v4315 = vadd.f32 %v4251, %v1371
    %v4316 = vadd.f32 %v4252, %v1372
    %v4317 = vadd.f32 %v4253, %v1373
    %v4318 = vadd.f32 %v4254, %v1374
    %v4319 = vadd.f32 %v4255, %v1375
    %v4320 = vpack.c.bf16 %v4260, %v4256
    %v4321 = vpack.c.bf16 %v4261, %v4257
    %v4322 = vpack.c.bf16 %v4262, %v4258
    %v4323 = vpack.c.bf16 %v4263, %v4259
    %v4324 = vpack.c.bf16 %v4268, %v4264
    %v4325 = vpack.c.bf16 %v4269, %v4265
    %v4326 = vpack.c.bf16 %v4270, %v4266
    %v4327 = vpack.c.bf16 %v4271, %v4267
    %v4328 = vpack.c.bf16 %v4276, %v4272
    %v4329 = vpack.c.bf16 %v4277, %v4273
    %v4330 = vpack.c.bf16 %v4278, %v4274
    %v4331 = vpack.c.bf16 %v4279, %v4275
    %v4332 = vpack.c.bf16 %v4284, %v4280
    %v4333 = vpack.c.bf16 %v4285, %v4281
    %v4334 = vpack.c.bf16 %v4286, %v4282
    %v4335 = vpack.c.bf16 %v4287, %v4283
    %v4336 = vpack.c.bf16 %v4292, %v4288
    %v4337 = vpack.c.bf16 %v4293, %v4289
    %v4338 = vpack.c.bf16 %v4294, %v4290
    %v4339 = vpack.c.bf16 %v4295, %v4291
    %v4340 = vpack.c.bf16 %v4300, %v4296
    %v4341 = vpack.c.bf16 %v4301, %v4297
    %v4342 = vpack.c.bf16 %v4302, %v4298
    %v4343 = vpack.c.bf16 %v4303, %v4299
    %v4344 = vpack.c.bf16 %v4308, %v4304
    %v4345 = vpack.c.bf16 %v4309, %v4305
    %v4346 = vpack.c.bf16 %v4310, %v4306
    %v4347 = vpack.c.bf16 %v4311, %v4307
    %v4348 = vpack.c.bf16 %v4316, %v4312
    %v4349 = vpack.c.bf16 %v4317, %v4313
    %v4350 = vpack.c.bf16 %v4318, %v4314
    %v4351 = vpack.c.bf16 %v4319, %v4315
    %4352 = vmatprep.subr.bf16.mxu0 %v4321
    %4353 = vmatpush1.bf16.msra.mxu0 %v4320
    %4354 = vmatprep.subr.bf16.mxu0 %v4325
    %4355 = vmatpush1.bf16.msra.mxu0 %v4324
    %4356 = vmatprep.subr.bf16.mxu0 %v4329
    %4357 = vmatpush1.bf16.msra.mxu0 %v4328
    %4358 = vmatprep.subr.bf16.mxu0 %v4333
    %4359 = vmatpush1.bf16.msra.mxu0 %v4332
    %4360 = vmatprep.subr.bf16.mxu0 %v4337
    %4361 = vmatpush1.bf16.msra.mxu0 %v4336
    %4362 = vmatprep.subr.bf16.mxu0 %v4341
    %4363 = vmatpush1.bf16.msra.mxu0 %v4340
    %4364 = vmatprep.subr.bf16.mxu0 %v4345
    %4365 = vmatpush1.bf16.msra.mxu0 %v4344
    %4366 = vmatprep.subr.bf16.mxu0 %v4349
    %4367 = vmatpush1.bf16.msra.mxu0 %v4348
    %4368 = vmatprep.subr.bf16.mxu0 0
    %4369 = vmatpush1.bf16.msra.mxu0 0
    %4370 = vmatprep.subr.bf16.mxu0 0
    %4371 = vmatpush1.bf16.msra.mxu0 0
    %4372 = vmatprep.subr.bf16.mxu0 0
    %4373 = vmatpush1.bf16.msra.mxu0 0
    %4374 = vmatprep.subr.bf16.mxu0 0
    %4375 = vmatpush1.bf16.msra.mxu0 0
    %4376 = vmatprep.subr.bf16.mxu0 0
    %4377 = vmatpush1.bf16.msra.mxu0 0
    %4378 = vmatprep.subr.bf16.mxu0 0
    %4379 = vmatpush1.bf16.msra.mxu0 0
    %4380 = vmatprep.subr.bf16.mxu0 0
    %4381 = vmatpush1.bf16.msra.mxu0 0
    %4382 = vmatprep.subr.bf16.mxu0 0
    %4383 = vmatpush1.bf16.msra.mxu0 0
    %4384 = vmatprep.mubr.bf16.mxu0 0
    %4385 = vmatmul.mubr.bf16.gmra.mrb[0].mxu0 %v221
    %v4386 = vpop.f32.mrb[0].mxu0
    %v4387 = vadd.f32 0.0, %v4386
    %v4388 = vpop.f32.mrb[0].mxu0
    %v4389 = vadd.f32 0.0, %v4388
    %v4390 = vpop.f32.mrb[0].mxu0
    %v4391 = vadd.f32 0.0, %v4390
    %v4392 = vpop.f32.mrb[0].mxu0
    %v4393 = vadd.f32 0.0, %v4392
    %4394 = vmatprep.mubr.bf16.mxu0 0
    %4395 = vmatmul.mubr.bf16.gmra.mrb[0].mxu0 %v222
    %v4396 = vpop.f32.mrb[0].mxu0
    %v4397 = vadd.f32 0.0, %v4396
    %v4398 = vpop.f32.mrb[0].mxu0
    %v4399 = vadd.f32 0.0, %v4398
    %v4400 = vpop.f32.mrb[0].mxu0
    %v4401 = vadd.f32 0.0, %v4400
    %v4402 = vpop.f32.mrb[0].mxu0
    %v4403 = vadd.f32 0.0, %v4402
    %4404 = vmatprep.mubr.bf16.mxu0 0
    %4405 = vmatmul.mubr.bf16.gmra.mrb[0].mxu0 %v223
    %v4406 = vpop.f32.mrb[0].mxu0
    %v4407 = vadd.f32 0.0, %v4406
    %v4408 = vpop.f32.mrb[0].mxu0
    %v4409 = vadd.f32 0.0, %v4408
    %v4410 = vpop.f32.mrb[0].mxu0
    %v4411 = vadd.f32 0.0, %v4410
    %v4412 = vpop.f32.mrb[0].mxu0
    %v4413 = vadd.f32 0.0, %v4412
    %4414 = vmatprep.mubr.bf16.mxu0 0
    %4415 = vmatmul.mubr.bf16.gmra.mrb[0].mxu0 %v224
    %v4416 = vpop.f32.mrb[0].mxu0
    %v4417 = vadd.f32 0.0, %v4416
    %v4418 = vpop.f32.mrb[0].mxu0
    %v4419 = vadd.f32 0.0, %v4418
    %v4420 = vpop.f32.mrb[0].mxu0
    %v4421 = vadd.f32 0.0, %v4420
    %v4422 = vpop.f32.mrb[0].mxu0
    %v4423 = vadd.f32 0.0, %v4422
    %4424 = vmatprep.mubr.bf16.mxu0 0
    %4425 = vmatmul.mubr.bf16.gmra.mrb[0].mxu0 %v225
    %v4426 = vpop.f32.mrb[0].mxu0
    %v4427 = vadd.f32 0.0, %v4426
    %v4428 = vpop.f32.mrb[0].mxu0
    %v4429 = vadd.f32 0.0, %v4428
    %v4430 = vpop.f32.mrb[0].mxu0
    %v4431 = vadd.f32 0.0, %v4430
    %v4432 = vpop.f32.mrb[0].mxu0
    %v4433 = vadd.f32 0.0, %v4432
    %4434 = vmatprep.mubr.bf16.mxu0 0
    %4435 = vmatmul.mubr.bf16.gmra.mrb[0].mxu0 %v226
    %v4436 = vpop.f32.mrb[0].mxu0
    %v4437 = vadd.f32 0.0, %v4436
    %v4438 = vpop.f32.mrb[0].mxu0
    %v4439 = vadd.f32 0.0, %v4438
    %v4440 = vpop.f32.mrb[0].mxu0
    %v4441 = vadd.f32 0.0, %v4440
    %v4442 = vpop.f32.mrb[0].mxu0
    %v4443 = vadd.f32 0.0, %v4442
    %4444 = vmatprep.mubr.bf16.mxu0 0
    %4445 = vmatmul.mubr.bf16.gmra.mrb[0].mxu0 %v227
    %v4446 = vpop.f32.mrb[0].mxu0
    %v4447 = vadd.f32 0.0, %v4446
    %v4448 = vpop.f32.mrb[0].mxu0
    %v4449 = vadd.f32 0.0, %v4448
    %v4450 = vpop.f32.mrb[0].mxu0
    %v4451 = vadd.f32 0.0, %v4450
    %v4452 = vpop.f32.mrb[0].mxu0
    %v4453 = vadd.f32 0.0, %v4452
    %4454 = vmatprep.mubr.bf16.mxu0 0
    %4455 = vmatmul.mubr.bf16.gmra.mrb[0].mxu0 %v228
    %v4456 = vpop.f32.mrb[0].mxu0
    %v4457 = vadd.f32 0.0, %v4456
    %v4458 = vpop.f32.mrb[0].mxu0
    %v4459 = vadd.f32 0.0, %v4458
    %v4460 = vpop.f32.mrb[0].mxu0
    %v4461 = vadd.f32 0.0, %v4460
    %v4462 = vpop.f32.mrb[0].mxu0
    %v4463 = vadd.f32 0.0, %v4462
    %4464 = vdwg.mxu0
    %4465 = vmatprep.subr.bf16.mxu0 %v4323
    %4466 = vmatpush1.bf16.msra.mxu0 %v4322
    %4467 = vmatprep.subr.bf16.mxu0 %v4327
    %4468 = vmatpush1.bf16.msra.mxu0 %v4326
    %4469 = vmatprep.subr.bf16.mxu0 %v4331
    %4470 = vmatpush1.bf16.msra.mxu0 %v4330
    %4471 = vmatprep.subr.bf16.mxu0 %v4335
    %4472 = vmatpush1.bf16.msra.mxu0 %v4334
    %4473 = vmatprep.subr.bf16.mxu0 %v4339
    %4474 = vmatpush1.bf16.msra.mxu0 %v4338
    %4475 = vmatprep.subr.bf16.mxu0 %v4343
    %4476 = vmatpush1.bf16.msra.mxu0 %v4342
    %4477 = vmatprep.subr.bf16.mxu0 %v4347
    %4478 = vmatpush1.bf16.msra.mxu0 %v4346
    %4479 = vmatprep.subr.bf16.mxu0 %v4351
    %4480 = vmatpush1.bf16.msra.mxu0 %v4350
    %4481 = vmatprep.subr.bf16.mxu0 0
    %4482 = vmatpush1.bf16.msra.mxu0 0
    %4483 = vmatprep.subr.bf16.mxu0 0
    %4484 = vmatpush1.bf16.msra.mxu0 0
    %4485 = vmatprep.subr.bf16.mxu0 0
    %4486 = vmatpush1.bf16.msra.mxu0 0
    %4487 = vmatprep.subr.bf16.mxu0 0
    %4488 = vmatpush1.bf16.msra.mxu0 0
    %4489 = vmatprep.subr.bf16.mxu0 0
    %4490 = vmatpush1.bf16.msra.mxu0 0
    %4491 = vmatprep.subr.bf16.mxu0 0
    %4492 = vmatpush1.bf16.msra.mxu0 0
    %4493 = vmatprep.subr.bf16.mxu0 0
    %4494 = vmatpush1.bf16.msra.mxu0 0
    %4495 = vmatprep.subr.bf16.mxu0 0
    %4496 = vmatpush1.bf16.msra.mxu0 0
    %4497 = vmatprep.mubr.bf16.mxu0 0
    %4498 = vmatmul.mubr.bf16.gmra.mrb[0].mxu0 %v221
    %v4499 = vpop.f32.mrb[0].mxu0
    %v4500 = vadd.f32 0.0, %v4499
    %v4501 = vpop.f32.mrb[0].mxu0
    %v4502 = vadd.f32 0.0, %v4501
    %v4503 = vpop.f32.mrb[0].mxu0
    %v4504 = vadd.f32 0.0, %v4503
    %v4505 = vpop.f32.mrb[0].mxu0
    %v4506 = vadd.f32 0.0, %v4505
    %4507 = vmatprep.mubr.bf16.mxu0 0
    %4508 = vmatmul.mubr.bf16.gmra.mrb[0].mxu0 %v222
    %v4509 = vpop.f32.mrb[0].mxu0
    %v4510 = vadd.f32 0.0, %v4509
    %v4511 = vpop.f32.mrb[0].mxu0
    %v4512 = vadd.f32 0.0, %v4511
    %v4513 = vpop.f32.mrb[0].mxu0
    %v4514 = vadd.f32 0.0, %v4513
    %v4515 = vpop.f32.mrb[0].mxu0
    %v4516 = vadd.f32 0.0, %v4515
    %4517 = vmatprep.mubr.bf16.mxu0 0
    %4518 = vmatmul.mubr.bf16.gmra.mrb[0].mxu0 %v223
    %v4519 = vpop.f32.mrb[0].mxu0
    %v4520 = vadd.f32 0.0, %v4519
    %v4521 = vpop.f32.mrb[0].mxu0
    %v4522 = vadd.f32 0.0, %v4521
    %v4523 = vpop.f32.mrb[0].mxu0
    %v4524 = vadd.f32 0.0, %v4523
    %v4525 = vpop.f32.mrb[0].mxu0
    %v4526 = vadd.f32 0.0, %v4525
    %4527 = vmatprep.mubr.bf16.mxu0 0
    %4528 = vmatmul.mubr.bf16.gmra.mrb[0].mxu0 %v224
    %v4529 = vpop.f32.mrb[0].mxu0
    %v4530 = vadd.f32 0.0, %v4529
    %v4531 = vpop.f32.mrb[0].mxu0
    %v4532 = vadd.f32 0.0, %v4531
    %v4533 = vpop.f32.mrb[0].mxu0
    %v4534 = vadd.f32 0.0, %v4533
    %v4535 = vpop.f32.mrb[0].mxu0
    %v4536 = vadd.f32 0.0, %v4535
    %4537 = vmatprep.mubr.bf16.mxu0 0
    %4538 = vmatmul.mubr.bf16.gmra.mrb[0].mxu0 %v225
    %v4539 = vpop.f32.mrb[0].mxu0
    %v4540 = vadd.f32 0.0, %v4539
    %v4541 = vpop.f32.mrb[0].mxu0
    %v4542 = vadd.f32 0.0, %v4541
    %v4543 = vpop.f32.mrb[0].mxu0
    %v4544 = vadd.f32 0.0, %v4543
    %v4545 = vpop.f32.mrb[0].mxu0
    %v4546 = vadd.f32 0.0, %v4545
    %4547 = vmatprep.mubr.bf16.mxu0 0
    %4548 = vmatmul.mubr.bf16.gmra.mrb[0].mxu0 %v226
    %v4549 = vpop.f32.mrb[0].mxu0
    %v4550 = vadd.f32 0.0, %v4549
    %v4551 = vpop.f32.mrb[0].mxu0
    %v4552 = vadd.f32 0.0, %v4551
    %v4553 = vpop.f32.mrb[0].mxu0
    %v4554 = vadd.f32 0.0, %v4553
    %v4555 = vpop.f32.mrb[0].mxu0
    %v4556 = vadd.f32 0.0, %v4555
    %4557 = vmatprep.mubr.bf16.mxu0 0
    %4558 = vmatmul.mubr.bf16.gmra.mrb[0].mxu0 %v227
    %v4559 = vpop.f32.mrb[0].mxu0
    %v4560 = vadd.f32 0.0, %v4559
    %v4561 = vpop.f32.mrb[0].mxu0
    %v4562 = vadd.f32 0.0, %v4561
    %v4563 = vpop.f32.mrb[0].mxu0
    %v4564 = vadd.f32 0.0, %v4563
    %v4565 = vpop.f32.mrb[0].mxu0
    %v4566 = vadd.f32 0.0, %v4565
    %4567 = vmatprep.mubr.bf16.mxu0 0
    %4568 = vmatmul.mubr.bf16.gmra.mrb[0].mxu0 %v228
    %v4569 = vpop.f32.mrb[0].mxu0
    %v4570 = vadd.f32 0.0, %v4569
    %v4571 = vpop.f32.mrb[0].mxu0
    %v4572 = vadd.f32 0.0, %v4571
    %v4573 = vpop.f32.mrb[0].mxu0
    %v4574 = vadd.f32 0.0, %v4573
    %v4575 = vpop.f32.mrb[0].mxu0
    %v4576 = vadd.f32 0.0, %v4575
    %4577 = vdwg.mxu0
    %v4578 = vpack.c.bf16 %v4391, %v4387
    %v4579 = vpack.c.bf16 %v4393, %v4389
    %v4580 = vpack.c.bf16 %v4504, %v4500
    %v4581 = vpack.c.bf16 %v4506, %v4502
    %v4582 = vpack.c.bf16 %v4401, %v4397
    %v4583 = vpack.c.bf16 %v4403, %v4399
    %v4584 = vpack.c.bf16 %v4514, %v4510
    %v4585 = vpack.c.bf16 %v4516, %v4512
    %v4586 = vpack.c.bf16 %v4411, %v4407
    %v4587 = vpack.c.bf16 %v4413, %v4409
    %v4588 = vpack.c.bf16 %v4524, %v4520
    %v4589 = vpack.c.bf16 %v4526, %v4522
    %v4590 = vpack.c.bf16 %v4421, %v4417
    %v4591 = vpack.c.bf16 %v4423, %v4419
    %v4592 = vpack.c.bf16 %v4534, %v4530
    %v4593 = vpack.c.bf16 %v4536, %v4532
    %v4594 = vpack.c.bf16 %v4431, %v4427
    %v4595 = vpack.c.bf16 %v4433, %v4429
    %v4596 = vpack.c.bf16 %v4544, %v4540
    %v4597 = vpack.c.bf16 %v4546, %v4542
    %v4598 = vpack.c.bf16 %v4441, %v4437
    %v4599 = vpack.c.bf16 %v4443, %v4439
    %v4600 = vpack.c.bf16 %v4554, %v4550
    %v4601 = vpack.c.bf16 %v4556, %v4552
    %v4602 = vpack.c.bf16 %v4451, %v4447
    %v4603 = vpack.c.bf16 %v4453, %v4449
    %v4604 = vpack.c.bf16 %v4564, %v4560
    %v4605 = vpack.c.bf16 %v4566, %v4562
    %v4606 = vpack.c.bf16 %v4461, %v4457
    %v4607 = vpack.c.bf16 %v4463, %v4459
    %v4608 = vpack.c.bf16 %v4574, %v4570
    %v4609 = vpack.c.bf16 %v4576, %v4572
    %v4610 = vld [vmem:[%s8] sm:$0xff]
    %v4611 = vld [vmem:[%s8 + $0x8] sm:$0xff]
    %v4612 = vld [vmem:[%s8 + $0x10] sm:$0xff]
    %v4613 = vld [vmem:[%s8 + $0x18] sm:$0xff]
    %v4614 = vld [vmem:[%s8 + $0x20] sm:$0xff]
    %v4615 = vld [vmem:[%s8 + $0x28] sm:$0xff]
    %v4616 = vld [vmem:[%s8 + $0x30] sm:$0xff]
    %v4617 = vld [vmem:[%s8 + $0x38] sm:$0xff]
    %v4618 = vld [vmem:[%s8 + $0x40] sm:$0xff]
    %v4619 = vld [vmem:[%s8 + $0x48] sm:$0xff]
    %v4620 = vld [vmem:[%s8 + $0x50] sm:$0xff]
    %v4621 = vld [vmem:[%s8 + $0x58] sm:$0xff]
    %v4622 = vld [vmem:[%s8 + $0x60] sm:$0xff]
    %v4623 = vld [vmem:[%s8 + $0x68] sm:$0xff]
    %v4624 = vld [vmem:[%s8 + $0x70] sm:$0xff]
    %v4625 = vld [vmem:[%s8 + $0x78] sm:$0xff]
    %v4626 = vld [vmem:[%s8 + $0x80] sm:$0xff]
    %v4627 = vld [vmem:[%s8 + $0x88] sm:$0xff]
    %v4628 = vld [vmem:[%s8 + $0x90] sm:$0xff]
    %v4629 = vld [vmem:[%s8 + $0x98] sm:$0xff]
    %v4630 = vld [vmem:[%s8 + $0xa0] sm:$0xff]
    %v4631 = vld [vmem:[%s8 + $0xa8] sm:$0xff]
    %v4632 = vld [vmem:[%s8 + $0xb0] sm:$0xff]
    %v4633 = vld [vmem:[%s8 + $0xb8] sm:$0xff]
    %v4634 = vld [vmem:[%s8 + $0xc0] sm:$0xff]
    %v4635 = vld [vmem:[%s8 + $0xc8] sm:$0xff]
    %v4636 = vld [vmem:[%s8 + $0xd0] sm:$0xff]
    %v4637 = vld [vmem:[%s8 + $0xd8] sm:$0xff]
    %v4638 = vld [vmem:[%s8 + $0xe0] sm:$0xff]
    %v4639 = vld [vmem:[%s8 + $0xe8] sm:$0xff]
    %v4640 = vld [vmem:[%s8 + $0xf0] sm:$0xff]
    %v4641 = vld [vmem:[%s8 + $0xf8] sm:$0xff]
    %v4642 = vld [vmem:[%s8 + $0x100] sm:$0xff]
    %v4643 = vld [vmem:[%s8 + $0x108] sm:$0xff]
    %v4644 = vld [vmem:[%s8 + $0x110] sm:$0xff]
    %v4645 = vld [vmem:[%s8 + $0x118] sm:$0xff]
    %v4646 = vld [vmem:[%s8 + $0x120] sm:$0xff]
    %v4647 = vld [vmem:[%s8 + $0x128] sm:$0xff]
    %v4648 = vld [vmem:[%s8 + $0x130] sm:$0xff]
    %v4649 = vld [vmem:[%s8 + $0x138] sm:$0xff]
    %v4650 = vld [vmem:[%s8 + $0x140] sm:$0xff]
    %v4651 = vld [vmem:[%s8 + $0x148] sm:$0xff]
    %v4652 = vld [vmem:[%s8 + $0x150] sm:$0xff]
    %v4653 = vld [vmem:[%s8 + $0x158] sm:$0xff]
    %v4654 = vld [vmem:[%s8 + $0x160] sm:$0xff]
    %v4655 = vld [vmem:[%s8 + $0x168] sm:$0xff]
    %v4656 = vld [vmem:[%s8 + $0x170] sm:$0xff]
    %v4657 = vld [vmem:[%s8 + $0x178] sm:$0xff]
    %v4658 = vld [vmem:[%s8 + $0x180] sm:$0xff]
    %v4659 = vld [vmem:[%s8 + $0x188] sm:$0xff]
    %v4660 = vld [vmem:[%s8 + $0x190] sm:$0xff]
    %v4661 = vld [vmem:[%s8 + $0x198] sm:$0xff]
    %v4662 = vld [vmem:[%s8 + $0x1a0] sm:$0xff]
    %v4663 = vld [vmem:[%s8 + $0x1a8] sm:$0xff]
    %v4664 = vld [vmem:[%s8 + $0x1b0] sm:$0xff]
    %v4665 = vld [vmem:[%s8 + $0x1b8] sm:$0xff]
    %v4666 = vld [vmem:[%s8 + $0x1c0] sm:$0xff]
    %v4667 = vld [vmem:[%s8 + $0x1c8] sm:$0xff]
    %v4668 = vld [vmem:[%s8 + $0x1d0] sm:$0xff]
    %v4669 = vld [vmem:[%s8 + $0x1d8] sm:$0xff]
    %v4670 = vld [vmem:[%s8 + $0x1e0] sm:$0xff]
    %v4671 = vld [vmem:[%s8 + $0x1e8] sm:$0xff]
    %v4672 = vld [vmem:[%s8 + $0x1f0] sm:$0xff]
    %v4673 = vld [vmem:[%s8 + $0x1f8] sm:$0xff]
    %v4674 = vld [vmem:[%s8 + $0x200] sm:$0xff]
    %v4675 = vld [vmem:[%s8 + $0x208] sm:$0xff]
    %v4676 = vld [vmem:[%s8 + $0x210] sm:$0xff]
    %v4677 = vld [vmem:[%s8 + $0x218] sm:$0xff]
    %v4678 = vld [vmem:[%s8 + $0x220] sm:$0xff]
    %v4679 = vld [vmem:[%s8 + $0x228] sm:$0xff]
    %v4680 = vld [vmem:[%s8 + $0x230] sm:$0xff]
    %v4681 = vld [vmem:[%s8 + $0x238] sm:$0xff]
    %v4682 = vld [vmem:[%s8 + $0x240] sm:$0xff]
    %v4683 = vld [vmem:[%s8 + $0x248] sm:$0xff]
    %v4684 = vld [vmem:[%s8 + $0x250] sm:$0xff]
    %v4685 = vld [vmem:[%s8 + $0x258] sm:$0xff]
    %v4686 = vld [vmem:[%s8 + $0x260] sm:$0xff]
    %v4687 = vld [vmem:[%s8 + $0x268] sm:$0xff]
    %v4688 = vld [vmem:[%s8 + $0x270] sm:$0xff]
    %v4689 = vld [vmem:[%s8 + $0x278] sm:$0xff]
    %v4690 = vld [vmem:[%s8 + $0x280] sm:$0xff]
    %v4691 = vld [vmem:[%s8 + $0x288] sm:$0xff]
    %v4692 = vld [vmem:[%s8 + $0x290] sm:$0xff]
    %v4693 = vld [vmem:[%s8 + $0x298] sm:$0xff]
    %v4694 = vld [vmem:[%s8 + $0x2a0] sm:$0xff]
    %v4695 = vld [vmem:[%s8 + $0x2a8] sm:$0xff]
    %v4696 = vld [vmem:[%s8 + $0x2b0] sm:$0xff]
    %v4697 = vld [vmem:[%s8 + $0x2b8] sm:$0xff]
    %v4698 = vld [vmem:[%s8 + $0x2c0] sm:$0xff]
    %v4699 = vld [vmem:[%s8 + $0x2c8] sm:$0xff]
    %v4700 = vld [vmem:[%s8 + $0x2d0] sm:$0xff]
    %v4701 = vld [vmem:[%s8 + $0x2d8] sm:$0xff]
    %v4702 = vld [vmem:[%s8 + $0x2e0] sm:$0xff]
    %v4703 = vld [vmem:[%s8 + $0x2e8] sm:$0xff]
    %v4704 = vld [vmem:[%s8 + $0x2f0] sm:$0xff]
    %v4705 = vld [vmem:[%s8 + $0x2f8] sm:$0xff]
    %v4706 = vld [vmem:[%s8 + $0x300] sm:$0xff]
    %v4707 = vld [vmem:[%s8 + $0x308] sm:$0xff]
    %v4708 = vld [vmem:[%s8 + $0x310] sm:$0xff]
    %v4709 = vld [vmem:[%s8 + $0x318] sm:$0xff]
    %v4710 = vld [vmem:[%s8 + $0x320] sm:$0xff]
    %v4711 = vld [vmem:[%s8 + $0x328] sm:$0xff]
    %v4712 = vld [vmem:[%s8 + $0x330] sm:$0xff]
    %v4713 = vld [vmem:[%s8 + $0x338] sm:$0xff]
    %v4714 = vld [vmem:[%s8 + $0x340] sm:$0xff]
    %v4715 = vld [vmem:[%s8 + $0x348] sm:$0xff]
    %v4716 = vld [vmem:[%s8 + $0x350] sm:$0xff]
    %v4717 = vld [vmem:[%s8 + $0x358] sm:$0xff]
    %v4718 = vld [vmem:[%s8 + $0x360] sm:$0xff]
    %v4719 = vld [vmem:[%s8 + $0x368] sm:$0xff]
    %v4720 = vld [vmem:[%s8 + $0x370] sm:$0xff]
    %v4721 = vld [vmem:[%s8 + $0x378] sm:$0xff]
    %v4722 = vld [vmem:[%s8 + $0x380] sm:$0xff]
    %v4723 = vld [vmem:[%s8 + $0x388] sm:$0xff]
    %v4724 = vld [vmem:[%s8 + $0x390] sm:$0xff]
    %v4725 = vld [vmem:[%s8 + $0x398] sm:$0xff]
    %v4726 = vld [vmem:[%s8 + $0x3a0] sm:$0xff]
    %v4727 = vld [vmem:[%s8 + $0x3a8] sm:$0xff]
    %v4728 = vld [vmem:[%s8 + $0x3b0] sm:$0xff]
    %v4729 = vld [vmem:[%s8 + $0x3b8] sm:$0xff]
    %v4730 = vld [vmem:[%s8 + $0x3c0] sm:$0xff]
    %v4731 = vld [vmem:[%s8 + $0x3c8] sm:$0xff]
    %v4732 = vld [vmem:[%s8 + $0x3d0] sm:$0xff]
    %v4733 = vld [vmem:[%s8 + $0x3d8] sm:$0xff]
    %v4734 = vld [vmem:[%s8 + $0x3e0] sm:$0xff]
    %v4735 = vld [vmem:[%s8 + $0x3e8] sm:$0xff]
    %v4736 = vld [vmem:[%s8 + $0x3f0] sm:$0xff]
    %v4737 = vld [vmem:[%s8 + $0x3f8] sm:$0xff]
    %v4738 = vld [vmem:[%s9] sm:$0xff]
    %v4739 = vld [vmem:[%s9 + $0x8] sm:$0xff]
    %v4740 = vld [vmem:[%s9 + $0x10] sm:$0xff]
    %v4741 = vld [vmem:[%s9 + $0x18] sm:$0xff]
    %v4742 = vld [vmem:[%s9 + $0x20] sm:$0xff]
    %v4743 = vld [vmem:[%s9 + $0x28] sm:$0xff]
    %v4744 = vld [vmem:[%s9 + $0x30] sm:$0xff]
    %v4745 = vld [vmem:[%s9 + $0x38] sm:$0xff]
    %v4746 = vld [vmem:[%s9 + $0x40] sm:$0xff]
    %v4747 = vld [vmem:[%s9 + $0x48] sm:$0xff]
    %v4748 = vld [vmem:[%s9 + $0x50] sm:$0xff]
    %v4749 = vld [vmem:[%s9 + $0x58] sm:$0xff]
    %v4750 = vld [vmem:[%s9 + $0x60] sm:$0xff]
    %v4751 = vld [vmem:[%s9 + $0x68] sm:$0xff]
    %v4752 = vld [vmem:[%s9 + $0x70] sm:$0xff]
    %v4753 = vld [vmem:[%s9 + $0x78] sm:$0xff]
    %v4754 = vld [vmem:[%s9 + $0x80] sm:$0xff]
    %v4755 = vld [vmem:[%s9 + $0x88] sm:$0xff]
    %v4756 = vld [vmem:[%s9 + $0x90] sm:$0xff]
    %v4757 = vld [vmem:[%s9 + $0x98] sm:$0xff]
    %v4758 = vld [vmem:[%s9 + $0xa0] sm:$0xff]
    %v4759 = vld [vmem:[%s9 + $0xa8] sm:$0xff]
    %v4760 = vld [vmem:[%s9 + $0xb0] sm:$0xff]
    %v4761 = vld [vmem:[%s9 + $0xb8] sm:$0xff]
    %v4762 = vld [vmem:[%s9 + $0xc0] sm:$0xff]
    %v4763 = vld [vmem:[%s9 + $0xc8] sm:$0xff]
    %v4764 = vld [vmem:[%s9 + $0xd0] sm:$0xff]
    %v4765 = vld [vmem:[%s9 + $0xd8] sm:$0xff]
    %v4766 = vld [vmem:[%s9 + $0xe0] sm:$0xff]
    %v4767 = vld [vmem:[%s9 + $0xe8] sm:$0xff]
    %v4768 = vld [vmem:[%s9 + $0xf0] sm:$0xff]
    %v4769 = vld [vmem:[%s9 + $0xf8] sm:$0xff]
    %v4770 = vld [vmem:[%s9 + $0x100] sm:$0xff]
    %v4771 = vld [vmem:[%s9 + $0x108] sm:$0xff]
    %v4772 = vld [vmem:[%s9 + $0x110] sm:$0xff]
    %v4773 = vld [vmem:[%s9 + $0x118] sm:$0xff]
    %v4774 = vld [vmem:[%s9 + $0x120] sm:$0xff]
    %v4775 = vld [vmem:[%s9 + $0x128] sm:$0xff]
    %v4776 = vld [vmem:[%s9 + $0x130] sm:$0xff]
    %v4777 = vld [vmem:[%s9 + $0x138] sm:$0xff]
    %v4778 = vld [vmem:[%s9 + $0x140] sm:$0xff]
    %v4779 = vld [vmem:[%s9 + $0x148] sm:$0xff]
    %v4780 = vld [vmem:[%s9 + $0x150] sm:$0xff]
    %v4781 = vld [vmem:[%s9 + $0x158] sm:$0xff]
    %v4782 = vld [vmem:[%s9 + $0x160] sm:$0xff]
    %v4783 = vld [vmem:[%s9 + $0x168] sm:$0xff]
    %v4784 = vld [vmem:[%s9 + $0x170] sm:$0xff]
    %v4785 = vld [vmem:[%s9 + $0x178] sm:$0xff]
    %v4786 = vld [vmem:[%s9 + $0x180] sm:$0xff]
    %v4787 = vld [vmem:[%s9 + $0x188] sm:$0xff]
    %v4788 = vld [vmem:[%s9 + $0x190] sm:$0xff]
    %v4789 = vld [vmem:[%s9 + $0x198] sm:$0xff]
    %v4790 = vld [vmem:[%s9 + $0x1a0] sm:$0xff]
    %v4791 = vld [vmem:[%s9 + $0x1a8] sm:$0xff]
    %v4792 = vld [vmem:[%s9 + $0x1b0] sm:$0xff]
    %v4793 = vld [vmem:[%s9 + $0x1b8] sm:$0xff]
    %v4794 = vld [vmem:[%s9 + $0x1c0] sm:$0xff]
    %v4795 = vld [vmem:[%s9 + $0x1c8] sm:$0xff]
    %v4796 = vld [vmem:[%s9 + $0x1d0] sm:$0xff]
    %v4797 = vld [vmem:[%s9 + $0x1d8] sm:$0xff]
    %v4798 = vld [vmem:[%s9 + $0x1e0] sm:$0xff]
    %v4799 = vld [vmem:[%s9 + $0x1e8] sm:$0xff]
    %v4800 = vld [vmem:[%s9 + $0x1f0] sm:$0xff]
    %v4801 = vld [vmem:[%s9 + $0x1f8] sm:$0xff]
    %v4802 = vld [vmem:[%s9 + $0x200] sm:$0xff]
    %v4803 = vld [vmem:[%s9 + $0x208] sm:$0xff]
    %v4804 = vld [vmem:[%s9 + $0x210] sm:$0xff]
    %v4805 = vld [vmem:[%s9 + $0x218] sm:$0xff]
    %v4806 = vld [vmem:[%s9 + $0x220] sm:$0xff]
    %v4807 = vld [vmem:[%s9 + $0x228] sm:$0xff]
    %v4808 = vld [vmem:[%s9 + $0x230] sm:$0xff]
    %v4809 = vld [vmem:[%s9 + $0x238] sm:$0xff]
    %v4810 = vld [vmem:[%s9 + $0x240] sm:$0xff]
    %v4811 = vld [vmem:[%s9 + $0x248] sm:$0xff]
    %v4812 = vld [vmem:[%s9 + $0x250] sm:$0xff]
    %v4813 = vld [vmem:[%s9 + $0x258] sm:$0xff]
    %v4814 = vld [vmem:[%s9 + $0x260] sm:$0xff]
    %v4815 = vld [vmem:[%s9 + $0x268] sm:$0xff]
    %v4816 = vld [vmem:[%s9 + $0x270] sm:$0xff]
    %v4817 = vld [vmem:[%s9 + $0x278] sm:$0xff]
    %v4818 = vld [vmem:[%s9 + $0x280] sm:$0xff]
    %v4819 = vld [vmem:[%s9 + $0x288] sm:$0xff]
    %v4820 = vld [vmem:[%s9 + $0x290] sm:$0xff]
    %v4821 = vld [vmem:[%s9 + $0x298] sm:$0xff]
    %v4822 = vld [vmem:[%s9 + $0x2a0] sm:$0xff]
    %v4823 = vld [vmem:[%s9 + $0x2a8] sm:$0xff]
    %v4824 = vld [vmem:[%s9 + $0x2b0] sm:$0xff]
    %v4825 = vld [vmem:[%s9 + $0x2b8] sm:$0xff]
    %v4826 = vld [vmem:[%s9 + $0x2c0] sm:$0xff]
    %v4827 = vld [vmem:[%s9 + $0x2c8] sm:$0xff]
    %v4828 = vld [vmem:[%s9 + $0x2d0] sm:$0xff]
    %v4829 = vld [vmem:[%s9 + $0x2d8] sm:$0xff]
    %v4830 = vld [vmem:[%s9 + $0x2e0] sm:$0xff]
    %v4831 = vld [vmem:[%s9 + $0x2e8] sm:$0xff]
    %v4832 = vld [vmem:[%s9 + $0x2f0] sm:$0xff]
    %v4833 = vld [vmem:[%s9 + $0x2f8] sm:$0xff]
    %v4834 = vld [vmem:[%s9 + $0x300] sm:$0xff]
    %v4835 = vld [vmem:[%s9 + $0x308] sm:$0xff]
    %v4836 = vld [vmem:[%s9 + $0x310] sm:$0xff]
    %v4837 = vld [vmem:[%s9 + $0x318] sm:$0xff]
    %v4838 = vld [vmem:[%s9 + $0x320] sm:$0xff]
    %v4839 = vld [vmem:[%s9 + $0x328] sm:$0xff]
    %v4840 = vld [vmem:[%s9 + $0x330] sm:$0xff]
    %v4841 = vld [vmem:[%s9 + $0x338] sm:$0xff]
    %v4842 = vld [vmem:[%s9 + $0x340] sm:$0xff]
    %v4843 = vld [vmem:[%s9 + $0x348] sm:$0xff]
    %v4844 = vld [vmem:[%s9 + $0x350] sm:$0xff]
    %v4845 = vld [vmem:[%s9 + $0x358] sm:$0xff]
    %v4846 = vld [vmem:[%s9 + $0x360] sm:$0xff]
    %v4847 = vld [vmem:[%s9 + $0x368] sm:$0xff]
    %v4848 = vld [vmem:[%s9 + $0x370] sm:$0xff]
    %v4849 = vld [vmem:[%s9 + $0x378] sm:$0xff]
    %v4850 = vld [vmem:[%s9 + $0x380] sm:$0xff]
    %v4851 = vld [vmem:[%s9 + $0x388] sm:$0xff]
    %v4852 = vld [vmem:[%s9 + $0x390] sm:$0xff]
    %v4853 = vld [vmem:[%s9 + $0x398] sm:$0xff]
    %v4854 = vld [vmem:[%s9 + $0x3a0] sm:$0xff]
    %v4855 = vld [vmem:[%s9 + $0x3a8] sm:$0xff]
    %v4856 = vld [vmem:[%s9 + $0x3b0] sm:$0xff]
    %v4857 = vld [vmem:[%s9 + $0x3b8] sm:$0xff]
    %v4858 = vld [vmem:[%s9 + $0x3c0] sm:$0xff]
    %v4859 = vld [vmem:[%s9 + $0x3c8] sm:$0xff]
    %v4860 = vld [vmem:[%s9 + $0x3d0] sm:$0xff]
    %v4861 = vld [vmem:[%s9 + $0x3d8] sm:$0xff]
    %v4862 = vld [vmem:[%s9 + $0x3e0] sm:$0xff]
    %v4863 = vld [vmem:[%s9 + $0x3e8] sm:$0xff]
    %v4864 = vld [vmem:[%s9 + $0x3f0] sm:$0xff]
    %v4865 = vld [vmem:[%s9 + $0x3f8] sm:$0xff]
    %v4994 = vunpack.c.l.b16 %v4738
    %v4995 = vunpack.c.h.b16 %v4738
    %v4996 = vunpack.c.l.b16 %v4739
    %v4997 = vunpack.c.h.b16 %v4739
    %v4998 = vunpack.c.l.b16 %v4740
    %v4999 = vunpack.c.h.b16 %v4740
    %v5000 = vunpack.c.l.b16 %v4741
    %v5001 = vunpack.c.h.b16 %v4741
    %v5002 = vunpack.c.l.b16 %v4742
    %v5003 = vunpack.c.h.b16 %v4742
    %v5004 = vunpack.c.l.b16 %v4743
    %v5005 = vunpack.c.h.b16 %v4743
    %v5006 = vunpack.c.l.b16 %v4744
    %v5007 = vunpack.c.h.b16 %v4744
    %v5008 = vunpack.c.l.b16 %v4745
    %v5009 = vunpack.c.h.b16 %v4745
    %v5010 = vunpack.c.l.b16 %v4746
    %v5011 = vunpack.c.h.b16 %v4746
    %v5012 = vunpack.c.l.b16 %v4747
    %v5013 = vunpack.c.h.b16 %v4747
    %v5014 = vunpack.c.l.b16 %v4748
    %v5015 = vunpack.c.h.b16 %v4748
    %v5016 = vunpack.c.l.b16 %v4749
    %v5017 = vunpack.c.h.b16 %v4749
    %v5018 = vunpack.c.l.b16 %v4750
    %v5019 = vunpack.c.h.b16 %v4750
    %v5020 = vunpack.c.l.b16 %v4751
    %v5021 = vunpack.c.h.b16 %v4751
    %v5022 = vunpack.c.l.b16 %v4752
    %v5023 = vunpack.c.h.b16 %v4752
    %v5024 = vunpack.c.l.b16 %v4753
    %v5025 = vunpack.c.h.b16 %v4753
    %v5026 = vunpack.c.l.b16 %v4754
    %v5027 = vunpack.c.h.b16 %v4754
    %v5028 = vunpack.c.l.b16 %v4755
    %v5029 = vunpack.c.h.b16 %v4755
    %v5030 = vunpack.c.l.b16 %v4756
    %v5031 = vunpack.c.h.b16 %v4756
    %v5032 = vunpack.c.l.b16 %v4757
    %v5033 = vunpack.c.h.b16 %v4757
    %v5034 = vunpack.c.l.b16 %v4758
    %v5035 = vunpack.c.h.b16 %v4758
    %v5036 = vunpack.c.l.b16 %v4759
    %v5037 = vunpack.c.h.b16 %v4759
    %v5038 = vunpack.c.l.b16 %v4760
    %v5039 = vunpack.c.h.b16 %v4760
    %v5040 = vunpack.c.l.b16 %v4761
    %v5041 = vunpack.c.h.b16 %v4761
    %v5042 = vunpack.c.l.b16 %v4762
    %v5043 = vunpack.c.h.b16 %v4762
    %v5044 = vunpack.c.l.b16 %v4763
    %v5045 = vunpack.c.h.b16 %v4763
    %v5046 = vunpack.c.l.b16 %v4764
    %v5047 = vunpack.c.h.b16 %v4764
    %v5048 = vunpack.c.l.b16 %v4765
    %v5049 = vunpack.c.h.b16 %v4765
    %v5050 = vunpack.c.l.b16 %v4766
    %v5051 = vunpack.c.h.b16 %v4766
    %v5052 = vunpack.c.l.b16 %v4767
    %v5053 = vunpack.c.h.b16 %v4767
    %v5054 = vunpack.c.l.b16 %v4768
    %v5055 = vunpack.c.h.b16 %v4768
    %v5056 = vunpack.c.l.b16 %v4769
    %v5057 = vunpack.c.h.b16 %v4769
    %v5058 = vunpack.c.l.b16 %v4770
    %v5059 = vunpack.c.h.b16 %v4770
    %v5060 = vunpack.c.l.b16 %v4771
    %v5061 = vunpack.c.h.b16 %v4771
    %v5062 = vunpack.c.l.b16 %v4772
    %v5063 = vunpack.c.h.b16 %v4772
    %v5064 = vunpack.c.l.b16 %v4773
    %v5065 = vunpack.c.h.b16 %v4773
    %v5066 = vunpack.c.l.b16 %v4774
    %v5067 = vunpack.c.h.b16 %v4774
    %v5068 = vunpack.c.l.b16 %v4775
    %v5069 = vunpack.c.h.b16 %v4775
    %v5070 = vunpack.c.l.b16 %v4776
    %v5071 = vunpack.c.h.b16 %v4776
    %v5072 = vunpack.c.l.b16 %v4777
    %v5073 = vunpack.c.h.b16 %v4777
    %v5074 = vunpack.c.l.b16 %v4778
    %v5075 = vunpack.c.h.b16 %v4778
    %v5076 = vunpack.c.l.b16 %v4779
    %v5077 = vunpack.c.h.b16 %v4779
    %v5078 = vunpack.c.l.b16 %v4780
    %v5079 = vunpack.c.h.b16 %v4780
    %v5080 = vunpack.c.l.b16 %v4781
    %v5081 = vunpack.c.h.b16 %v4781
    %v5082 = vunpack.c.l.b16 %v4782
    %v5083 = vunpack.c.h.b16 %v4782
    %v5084 = vunpack.c.l.b16 %v4783
    %v5085 = vunpack.c.h.b16 %v4783
    %v5086 = vunpack.c.l.b16 %v4784
    %v5087 = vunpack.c.h.b16 %v4784
    %v5088 = vunpack.c.l.b16 %v4785
    %v5089 = vunpack.c.h.b16 %v4785
    %v5090 = vunpack.c.l.b16 %v4786
    %v5091 = vunpack.c.h.b16 %v4786
    %v5092 = vunpack.c.l.b16 %v4787
    %v5093 = vunpack.c.h.b16 %v4787
    %v5094 = vunpack.c.l.b16 %v4788
    %v5095 = vunpack.c.h.b16 %v4788
    %v5096 = vunpack.c.l.b16 %v4789
    %v5097 = vunpack.c.h.b16 %v4789
    %v5098 = vunpack.c.l.b16 %v4790
    %v5099 = vunpack.c.h.b16 %v4790
    %v5100 = vunpack.c.l.b16 %v4791
    %v5101 = vunpack.c.h.b16 %v4791
    %v5102 = vunpack.c.l.b16 %v4792
    %v5103 = vunpack.c.h.b16 %v4792
    %v5104 = vunpack.c.l.b16 %v4793
    %v5105 = vunpack.c.h.b16 %v4793
    %v5106 = vunpack.c.l.b16 %v4794
    %v5107 = vunpack.c.h.b16 %v4794
    %v5108 = vunpack.c.l.b16 %v4795
    %v5109 = vunpack.c.h.b16 %v4795
    %v5110 = vunpack.c.l.b16 %v4796
    %v5111 = vunpack.c.h.b16 %v4796
    %v5112 = vunpack.c.l.b16 %v4797
    %v5113 = vunpack.c.h.b16 %v4797
    %v5114 = vunpack.c.l.b16 %v4798
    %v5115 = vunpack.c.h.b16 %v4798
    %v5116 = vunpack.c.l.b16 %v4799
    %v5117 = vunpack.c.h.b16 %v4799
    %v5118 = vunpack.c.l.b16 %v4800
    %v5119 = vunpack.c.h.b16 %v4800
    %v5120 = vunpack.c.l.b16 %v4801
    %v5121 = vunpack.c.h.b16 %v4801
    %v5122 = vunpack.c.l.b16 %v4802
    %v5123 = vunpack.c.h.b16 %v4802
    %v5124 = vunpack.c.l.b16 %v4803
    %v5125 = vunpack.c.h.b16 %v4803
    %v5126 = vunpack.c.l.b16 %v4804
    %v5127 = vunpack.c.h.b16 %v4804
    %v5128 = vunpack.c.l.b16 %v4805
    %v5129 = vunpack.c.h.b16 %v4805
    %v5130 = vunpack.c.l.b16 %v4806
    %v5131 = vunpack.c.h.b16 %v4806
    %v5132 = vunpack.c.l.b16 %v4807
    %v5133 = vunpack.c.h.b16 %v4807
    %v5134 = vunpack.c.l.b16 %v4808
    %v5135 = vunpack.c.h.b16 %v4808
    %v5136 = vunpack.c.l.b16 %v4809
    %v5137 = vunpack.c.h.b16 %v4809
    %v5138 = vunpack.c.l.b16 %v4810
    %v5139 = vunpack.c.h.b16 %v4810
    %v5140 = vunpack.c.l.b16 %v4811
    %v5141 = vunpack.c.h.b16 %v4811
    %v5142 = vunpack.c.l.b16 %v4812
    %v5143 = vunpack.c.h.b16 %v4812
    %v5144 = vunpack.c.l.b16 %v4813
    %v5145 = vunpack.c.h.b16 %v4813
    %v5146 = vunpack.c.l.b16 %v4814
    %v5147 = vunpack.c.h.b16 %v4814
    %v5148 = vunpack.c.l.b16 %v4815
    %v5149 = vunpack.c.h.b16 %v4815
    %v5150 = vunpack.c.l.b16 %v4816
    %v5151 = vunpack.c.h.b16 %v4816
    %v5152 = vunpack.c.l.b16 %v4817
    %v5153 = vunpack.c.h.b16 %v4817
    %v5154 = vunpack.c.l.b16 %v4818
    %v5155 = vunpack.c.h.b16 %v4818
    %v5156 = vunpack.c.l.b16 %v4819
    %v5157 = vunpack.c.h.b16 %v4819
    %v5158 = vunpack.c.l.b16 %v4820
    %v5159 = vunpack.c.h.b16 %v4820
    %v5160 = vunpack.c.l.b16 %v4821
    %v5161 = vunpack.c.h.b16 %v4821
    %v5162 = vunpack.c.l.b16 %v4822
    %v5163 = vunpack.c.h.b16 %v4822
    %v5164 = vunpack.c.l.b16 %v4823
    %v5165 = vunpack.c.h.b16 %v4823
    %v5166 = vunpack.c.l.b16 %v4824
    %v5167 = vunpack.c.h.b16 %v4824
    %v5168 = vunpack.c.l.b16 %v4825
    %v5169 = vunpack.c.h.b16 %v4825
    %v5170 = vunpack.c.l.b16 %v4826
    %v5171 = vunpack.c.h.b16 %v4826
    %v5172 = vunpack.c.l.b16 %v4827
    %v5173 = vunpack.c.h.b16 %v4827
    %v5174 = vunpack.c.l.b16 %v4828
    %v5175 = vunpack.c.h.b16 %v4828
    %v5176 = vunpack.c.l.b16 %v4829
    %v5177 = vunpack.c.h.b16 %v4829
    %v5178 = vunpack.c.l.b16 %v4830
    %v5179 = vunpack.c.h.b16 %v4830
    %v5180 = vunpack.c.l.b16 %v4831
    %v5181 = vunpack.c.h.b16 %v4831
    %v5182 = vunpack.c.l.b16 %v4832
    %v5183 = vunpack.c.h.b16 %v4832
    %v5184 = vunpack.c.l.b16 %v4833
    %v5185 = vunpack.c.h.b16 %v4833
    %v5186 = vunpack.c.l.b16 %v4834
    %v5187 = vunpack.c.h.b16 %v4834
    %v5188 = vunpack.c.l.b16 %v4835
    %v5189 = vunpack.c.h.b16 %v4835
    %v5190 = vunpack.c.l.b16 %v4836
    %v5191 = vunpack.c.h.b16 %v4836
    %v5192 = vunpack.c.l.b16 %v4837
    %v5193 = vunpack.c.h.b16 %v4837
    %v5194 = vunpack.c.l.b16 %v4838
    %v5195 = vunpack.c.h.b16 %v4838
    %v5196 = vunpack.c.l.b16 %v4839
    %v5197 = vunpack.c.h.b16 %v4839
    %v5198 = vunpack.c.l.b16 %v4840
    %v5199 = vunpack.c.h.b16 %v4840
    %v5200 = vunpack.c.l.b16 %v4841
    %v5201 = vunpack.c.h.b16 %v4841
    %v5202 = vunpack.c.l.b16 %v4842
    %v5203 = vunpack.c.h.b16 %v4842
    %v5204 = vunpack.c.l.b16 %v4843
    %v5205 = vunpack.c.h.b16 %v4843
    %v5206 = vunpack.c.l.b16 %v4844
    %v5207 = vunpack.c.h.b16 %v4844
    %v5208 = vunpack.c.l.b16 %v4845
    %v5209 = vunpack.c.h.b16 %v4845
    %v5210 = vunpack.c.l.b16 %v4846
    %v5211 = vunpack.c.h.b16 %v4846
    %v5212 = vunpack.c.l.b16 %v4847
    %v5213 = vunpack.c.h.b16 %v4847
    %v5214 = vunpack.c.l.b16 %v4848
    %v5215 = vunpack.c.h.b16 %v4848
    %v5216 = vunpack.c.l.b16 %v4849
    %v5217 = vunpack.c.h.b16 %v4849
    %v5218 = vunpack.c.l.b16 %v4850
    %v5219 = vunpack.c.h.b16 %v4850
    %v5220 = vunpack.c.l.b16 %v4851
    %v5221 = vunpack.c.h.b16 %v4851
    %v5222 = vunpack.c.l.b16 %v4852
    %v5223 = vunpack.c.h.b16 %v4852
    %v5224 = vunpack.c.l.b16 %v4853
    %v5225 = vunpack.c.h.b16 %v4853
    %v5226 = vunpack.c.l.b16 %v4854
    %v5227 = vunpack.c.h.b16 %v4854
    %v5228 = vunpack.c.l.b16 %v4855
    %v5229 = vunpack.c.h.b16 %v4855
    %v5230 = vunpack.c.l.b16 %v4856
    %v5231 = vunpack.c.h.b16 %v4856
    %v5232 = vunpack.c.l.b16 %v4857
    %v5233 = vunpack.c.h.b16 %v4857
    %v5234 = vunpack.c.l.b16 %v4858
    %v5235 = vunpack.c.h.b16 %v4858
    %v5236 = vunpack.c.l.b16 %v4859
    %v5237 = vunpack.c.h.b16 %v4859
    %v5238 = vunpack.c.l.b16 %v4860
    %v5239 = vunpack.c.h.b16 %v4860
    %v5240 = vunpack.c.l.b16 %v4861
    %v5241 = vunpack.c.h.b16 %v4861
    %v5242 = vunpack.c.l.b16 %v4862
    %v5243 = vunpack.c.h.b16 %v4862
    %v5244 = vunpack.c.l.b16 %v4863
    %v5245 = vunpack.c.h.b16 %v4863
    %v5246 = vunpack.c.l.b16 %v4864
    %v5247 = vunpack.c.h.b16 %v4864
    %v5248 = vunpack.c.l.b16 %v4865
    %v5249 = vunpack.c.h.b16 %v4865
    %v5250 = vpack.c.b16 %v4998, %v4994
    %v5251 = vpack.c.b16 %v4999, %v4995
    %v5252 = vpack.c.b16 %v5000, %v4996
    %v5253 = vpack.c.b16 %v5001, %v4997
    %v5254 = vpack.c.b16 %v5006, %v5002
    %v5255 = vpack.c.b16 %v5007, %v5003
    %v5256 = vpack.c.b16 %v5008, %v5004
    %v5257 = vpack.c.b16 %v5009, %v5005
    %v5258 = vpack.c.b16 %v5014, %v5010
    %v5259 = vpack.c.b16 %v5015, %v5011
    %v5260 = vpack.c.b16 %v5016, %v5012
    %v5261 = vpack.c.b16 %v5017, %v5013
    %v5262 = vpack.c.b16 %v5022, %v5018
    %v5263 = vpack.c.b16 %v5023, %v5019
    %v5264 = vpack.c.b16 %v5024, %v5020
    %v5265 = vpack.c.b16 %v5025, %v5021
    %v5266 = vpack.c.b16 %v5030, %v5026
    %v5267 = vpack.c.b16 %v5031, %v5027
    %v5268 = vpack.c.b16 %v5032, %v5028
    %v5269 = vpack.c.b16 %v5033, %v5029
    %v5270 = vpack.c.b16 %v5038, %v5034
    %v5271 = vpack.c.b16 %v5039, %v5035
    %v5272 = vpack.c.b16 %v5040, %v5036
    %v5273 = vpack.c.b16 %v5041, %v5037
    %v5274 = vpack.c.b16 %v5046, %v5042
    %v5275 = vpack.c.b16 %v5047, %v5043
    %v5276 = vpack.c.b16 %v5048, %v5044
    %v5277 = vpack.c.b16 %v5049, %v5045
    %v5278 = vpack.c.b16 %v5054, %v5050
    %v5279 = vpack.c.b16 %v5055, %v5051
    %v5280 = vpack.c.b16 %v5056, %v5052
    %v5281 = vpack.c.b16 %v5057, %v5053
    %v5282 = vpack.c.b16 %v5062, %v5058
    %v5283 = vpack.c.b16 %v5063, %v5059
    %v5284 = vpack.c.b16 %v5064, %v5060
    %v5285 = vpack.c.b16 %v5065, %v5061
    %v5286 = vpack.c.b16 %v5070, %v5066
    %v5287 = vpack.c.b16 %v5071, %v5067
    %v5288 = vpack.c.b16 %v5072, %v5068
    %v5289 = vpack.c.b16 %v5073, %v5069
    %v5290 = vpack.c.b16 %v5078, %v5074
    %v5291 = vpack.c.b16 %v5079, %v5075
    %v5292 = vpack.c.b16 %v5080, %v5076
    %v5293 = vpack.c.b16 %v5081, %v5077
    %v5294 = vpack.c.b16 %v5086, %v5082
    %v5295 = vpack.c.b16 %v5087, %v5083
    %v5296 = vpack.c.b16 %v5088, %v5084
    %v5297 = vpack.c.b16 %v5089, %v5085
    %v5298 = vpack.c.b16 %v5094, %v5090
    %v5299 = vpack.c.b16 %v5095, %v5091
    %v5300 = vpack.c.b16 %v5096, %v5092
    %v5301 = vpack.c.b16 %v5097, %v5093
    %v5302 = vpack.c.b16 %v5102, %v5098
    %v5303 = vpack.c.b16 %v5103, %v5099
    %v5304 = vpack.c.b16 %v5104, %v5100
    %v5305 = vpack.c.b16 %v5105, %v5101
    %v5306 = vpack.c.b16 %v5110, %v5106
    %v5307 = vpack.c.b16 %v5111, %v5107
    %v5308 = vpack.c.b16 %v5112, %v5108
    %v5309 = vpack.c.b16 %v5113, %v5109
    %v5310 = vpack.c.b16 %v5118, %v5114
    %v5311 = vpack.c.b16 %v5119, %v5115
    %v5312 = vpack.c.b16 %v5120, %v5116
    %v5313 = vpack.c.b16 %v5121, %v5117
    %v5314 = vpack.c.b16 %v5126, %v5122
    %v5315 = vpack.c.b16 %v5127, %v5123
    %v5316 = vpack.c.b16 %v5128, %v5124
    %v5317 = vpack.c.b16 %v5129, %v5125
    %v5318 = vpack.c.b16 %v5134, %v5130
    %v5319 = vpack.c.b16 %v5135, %v5131
    %v5320 = vpack.c.b16 %v5136, %v5132
    %v5321 = vpack.c.b16 %v5137, %v5133
    %v5322 = vpack.c.b16 %v5142, %v5138
    %v5323 = vpack.c.b16 %v5143, %v5139
    %v5324 = vpack.c.b16 %v5144, %v5140
    %v5325 = vpack.c.b16 %v5145, %v5141
    %v5326 = vpack.c.b16 %v5150, %v5146
    %v5327 = vpack.c.b16 %v5151, %v5147
    %v5328 = vpack.c.b16 %v5152, %v5148
    %v5329 = vpack.c.b16 %v5153, %v5149
    %v5330 = vpack.c.b16 %v5158, %v5154
    %v5331 = vpack.c.b16 %v5159, %v5155
    %v5332 = vpack.c.b16 %v5160, %v5156
    %v5333 = vpack.c.b16 %v5161, %v5157
    %v5334 = vpack.c.b16 %v5166, %v5162
    %v5335 = vpack.c.b16 %v5167, %v5163
    %v5336 = vpack.c.b16 %v5168, %v5164
    %v5337 = vpack.c.b16 %v5169, %v5165
    %v5338 = vpack.c.b16 %v5174, %v5170
    %v5339 = vpack.c.b16 %v5175, %v5171
    %v5340 = vpack.c.b16 %v5176, %v5172
    %v5341 = vpack.c.b16 %v5177, %v5173
    %v5342 = vpack.c.b16 %v5182, %v5178
    %v5343 = vpack.c.b16 %v5183, %v5179
    %v5344 = vpack.c.b16 %v5184, %v5180
    %v5345 = vpack.c.b16 %v5185, %v5181
    %v5346 = vpack.c.b16 %v5190, %v5186
    %v5347 = vpack.c.b16 %v5191, %v5187
    %v5348 = vpack.c.b16 %v5192, %v5188
    %v5349 = vpack.c.b16 %v5193, %v5189
    %v5350 = vpack.c.b16 %v5198, %v5194
    %v5351 = vpack.c.b16 %v5199, %v5195
    %v5352 = vpack.c.b16 %v5200, %v5196
    %v5353 = vpack.c.b16 %v5201, %v5197
    %v5354 = vpack.c.b16 %v5206, %v5202
    %v5355 = vpack.c.b16 %v5207, %v5203
    %v5356 = vpack.c.b16 %v5208, %v5204
    %v5357 = vpack.c.b16 %v5209, %v5205
    %v5358 = vpack.c.b16 %v5214, %v5210
    %v5359 = vpack.c.b16 %v5215, %v5211
    %v5360 = vpack.c.b16 %v5216, %v5212
    %v5361 = vpack.c.b16 %v5217, %v5213
    %v5362 = vpack.c.b16 %v5222, %v5218
    %v5363 = vpack.c.b16 %v5223, %v5219
    %v5364 = vpack.c.b16 %v5224, %v5220
    %v5365 = vpack.c.b16 %v5225, %v5221
    %v5366 = vpack.c.b16 %v5230, %v5226
    %v5367 = vpack.c.b16 %v5231, %v5227
    %v5368 = vpack.c.b16 %v5232, %v5228
    %v5369 = vpack.c.b16 %v5233, %v5229
    %v5370 = vpack.c.b16 %v5238, %v5234
    %v5371 = vpack.c.b16 %v5239, %v5235
    %v5372 = vpack.c.b16 %v5240, %v5236
    %v5373 = vpack.c.b16 %v5241, %v5237
    %v5374 = vpack.c.b16 %v5246, %v5242
    %v5375 = vpack.c.b16 %v5247, %v5243
    %v5376 = vpack.c.b16 %v5248, %v5244
    %v5377 = vpack.c.b16 %v5249, %v5245
    %5506 = vmatprep.subr.bf16.mxu0 %v5251
    %5507 = vmatpush1.bf16.msra.mxu0 %v5250
    %5508 = vmatprep.subr.bf16.mxu0 %v5255
    %5509 = vmatpush1.bf16.msra.mxu0 %v5254
    %5510 = vmatprep.subr.bf16.mxu0 %v5259
    %5511 = vmatpush1.bf16.msra.mxu0 %v5258
    %5512 = vmatprep.subr.bf16.mxu0 %v5263
    %5513 = vmatpush1.bf16.msra.mxu0 %v5262
    %5514 = vmatprep.subr.bf16.mxu0 %v5267
    %5515 = vmatpush1.bf16.msra.mxu0 %v5266
    %5516 = vmatprep.subr.bf16.mxu0 %v5271
    %5517 = vmatpush1.bf16.msra.mxu0 %v5270
    %5518 = vmatprep.subr.bf16.mxu0 %v5275
    %5519 = vmatpush1.bf16.msra.mxu0 %v5274
    %5520 = vmatprep.subr.bf16.mxu0 %v5279
    %5521 = vmatpush1.bf16.msra.mxu0 %v5278
    %5522 = vmatprep.subr.bf16.mxu0 %v5283
    %5523 = vmatpush1.bf16.msra.mxu0 %v5282
    %5524 = vmatprep.subr.bf16.mxu0 %v5287
    %5525 = vmatpush1.bf16.msra.mxu0 %v5286
    %5526 = vmatprep.subr.bf16.mxu0 %v5291
    %5527 = vmatpush1.bf16.msra.mxu0 %v5290
    %5528 = vmatprep.subr.bf16.mxu0 %v5295
    %5529 = vmatpush1.bf16.msra.mxu0 %v5294
    %5530 = vmatprep.subr.bf16.mxu0 %v5299
    %5531 = vmatpush1.bf16.msra.mxu0 %v5298
    %5532 = vmatprep.subr.bf16.mxu0 %v5303
    %5533 = vmatpush1.bf16.msra.mxu0 %v5302
    %5534 = vmatprep.subr.bf16.mxu0 %v5307
    %5535 = vmatpush1.bf16.msra.mxu0 %v5306
    %5536 = vmatprep.subr.bf16.mxu0 %v5311
    %5537 = vmatpush1.bf16.msra.mxu0 %v5310
    %5538 = vmatprep.mubr.bf16.mxu0 %v4321
    %5539 = vmatmul.mubr.bf16.gmra.mrb[0].mxu0 %v4320
    %v5540 = vpop.f32.mrb[0].mxu0
    %v5541 = vadd.f32 0.0, %v5540
    %v5542 = vpop.f32.mrb[0].mxu0
    %v5543 = vadd.f32 0.0, %v5542
    %v5544 = vpop.f32.mrb[0].mxu0
    %v5545 = vadd.f32 0.0, %v5544
    %v5546 = vpop.f32.mrb[0].mxu0
    %v5547 = vadd.f32 0.0, %v5546
    %5548 = vmatprep.mubr.bf16.mxu0 %v4325
    %5549 = vmatmul.mubr.bf16.gmra.mrb[0].mxu0 %v4324
    %v5550 = vpop.f32.mrb[0].mxu0
    %v5551 = vadd.f32 0.0, %v5550
    %v5552 = vpop.f32.mrb[0].mxu0
    %v5553 = vadd.f32 0.0, %v5552
    %v5554 = vpop.f32.mrb[0].mxu0
    %v5555 = vadd.f32 0.0, %v5554
    %v5556 = vpop.f32.mrb[0].mxu0
    %v5557 = vadd.f32 0.0, %v5556
    %5558 = vmatprep.mubr.bf16.mxu0 %v4329
    %5559 = vmatmul.mubr.bf16.gmra.mrb[0].mxu0 %v4328
    %v5560 = vpop.f32.mrb[0].mxu0
    %v5561 = vadd.f32 0.0, %v5560
    %v5562 = vpop.f32.mrb[0].mxu0
    %v5563 = vadd.f32 0.0, %v5562
    %v5564 = vpop.f32.mrb[0].mxu0
    %v5565 = vadd.f32 0.0, %v5564
    %v5566 = vpop.f32.mrb[0].mxu0
    %v5567 = vadd.f32 0.0, %v5566
    %5568 = vmatprep.mubr.bf16.mxu0 %v4333
    %5569 = vmatmul.mubr.bf16.gmra.mrb[0].mxu0 %v4332
    %v5570 = vpop.f32.mrb[0].mxu0
    %v5571 = vadd.f32 0.0, %v5570
    %v5572 = vpop.f32.mrb[0].mxu0
    %v5573 = vadd.f32 0.0, %v5572
    %v5574 = vpop.f32.mrb[0].mxu0
    %v5575 = vadd.f32 0.0, %v5574
    %v5576 = vpop.f32.mrb[0].mxu0
    %v5577 = vadd.f32 0.0, %v5576
    %5578 = vmatprep.mubr.bf16.mxu0 %v4337
    %5579 = vmatmul.mubr.bf16.gmra.mrb[0].mxu0 %v4336
    %v5580 = vpop.f32.mrb[0].mxu0
    %v5581 = vadd.f32 0.0, %v5580
    %v5582 = vpop.f32.mrb[0].mxu0
    %v5583 = vadd.f32 0.0, %v5582
    %v5584 = vpop.f32.mrb[0].mxu0
    %v5585 = vadd.f32 0.0, %v5584
    %v5586 = vpop.f32.mrb[0].mxu0
    %v5587 = vadd.f32 0.0, %v5586
    %5588 = vmatprep.mubr.bf16.mxu0 %v4341
    %5589 = vmatmul.mubr.bf16.gmra.mrb[0].mxu0 %v4340
    %v5590 = vpop.f32.mrb[0].mxu0
    %v5591 = vadd.f32 0.0, %v5590
    %v5592 = vpop.f32.mrb[0].mxu0
    %v5593 = vadd.f32 0.0, %v5592
    %v5594 = vpop.f32.mrb[0].mxu0
    %v5595 = vadd.f32 0.0, %v5594
    %v5596 = vpop.f32.mrb[0].mxu0
    %v5597 = vadd.f32 0.0, %v5596
    %5598 = vmatprep.mubr.bf16.mxu0 %v4345
    %5599 = vmatmul.mubr.bf16.gmra.mrb[0].mxu0 %v4344
    %v5600 = vpop.f32.mrb[0].mxu0
    %v5601 = vadd.f32 0.0, %v5600
    %v5602 = vpop.f32.mrb[0].mxu0
    %v5603 = vadd.f32 0.0, %v5602
    %v5604 = vpop.f32.mrb[0].mxu0
    %v5605 = vadd.f32 0.0, %v5604
    %v5606 = vpop.f32.mrb[0].mxu0
    %v5607 = vadd.f32 0.0, %v5606
    %5608 = vmatprep.mubr.bf16.mxu0 %v4349
    %5609 = vmatmul.mubr.bf16.gmra.mrb[0].mxu0 %v4348
    %v5610 = vpop.f32.mrb[0].mxu0
    %v5611 = vadd.f32 0.0, %v5610
    %v5612 = vpop.f32.mrb[0].mxu0
    %v5613 = vadd.f32 0.0, %v5612
    %v5614 = vpop.f32.mrb[0].mxu0
    %v5615 = vadd.f32 0.0, %v5614
    %v5616 = vpop.f32.mrb[0].mxu0
    %v5617 = vadd.f32 0.0, %v5616
    %5618 = vdwg.mxu0
    %5619 = vmatprep.subr.bf16.mxu0 %v5315
    %5620 = vmatpush1.bf16.msra.mxu0 %v5314
    %5621 = vmatprep.subr.bf16.mxu0 %v5319
    %5622 = vmatpush1.bf16.msra.mxu0 %v5318
    %5623 = vmatprep.subr.bf16.mxu0 %v5323
    %5624 = vmatpush1.bf16.msra.mxu0 %v5322
    %5625 = vmatprep.subr.bf16.mxu0 %v5327
    %5626 = vmatpush1.bf16.msra.mxu0 %v5326
    %5627 = vmatprep.subr.bf16.mxu0 %v5331
    %5628 = vmatpush1.bf16.msra.mxu0 %v5330
    %5629 = vmatprep.subr.bf16.mxu0 %v5335
    %5630 = vmatpush1.bf16.msra.mxu0 %v5334
    %5631 = vmatprep.subr.bf16.mxu0 %v5339
    %5632 = vmatpush1.bf16.msra.mxu0 %v5338
    %5633 = vmatprep.subr.bf16.mxu0 %v5343
    %5634 = vmatpush1.bf16.msra.mxu0 %v5342
    %5635 = vmatprep.subr.bf16.mxu0 %v5347
    %5636 = vmatpush1.bf16.msra.mxu0 %v5346
    %5637 = vmatprep.subr.bf16.mxu0 %v5351
    %5638 = vmatpush1.bf16.msra.mxu0 %v5350
    %5639 = vmatprep.subr.bf16.mxu0 %v5355
    %5640 = vmatpush1.bf16.msra.mxu0 %v5354
    %5641 = vmatprep.subr.bf16.mxu0 %v5359
    %5642 = vmatpush1.bf16.msra.mxu0 %v5358
    %5643 = vmatprep.subr.bf16.mxu0 %v5363
    %5644 = vmatpush1.bf16.msra.mxu0 %v5362
    %5645 = vmatprep.subr.bf16.mxu0 %v5367
    %5646 = vmatpush1.bf16.msra.mxu0 %v5366
    %5647 = vmatprep.subr.bf16.mxu0 %v5371
    %5648 = vmatpush1.bf16.msra.mxu0 %v5370
    %5649 = vmatprep.subr.bf16.mxu0 %v5375
    %5650 = vmatpush1.bf16.msra.mxu0 %v5374
    %5651 = vmatprep.mubr.bf16.mxu0 %v4323
    %5652 = vmatmul.mubr.bf16.gmra.mrb[0].mxu0 %v4322
    %v5653 = vpop.f32.mrb[0].mxu0
    %v5654 = vadd.f32 %v5541, %v5653
    %v5655 = vpop.f32.mrb[0].mxu0
    %v5656 = vadd.f32 %v5543, %v5655
    %v5657 = vpop.f32.mrb[0].mxu0
    %v5658 = vadd.f32 %v5545, %v5657
    %v5659 = vpop.f32.mrb[0].mxu0
    %v5660 = vadd.f32 %v5547, %v5659
    %5661 = vmatprep.mubr.bf16.mxu0 %v4327
    %5662 = vmatmul.mubr.bf16.gmra.mrb[0].mxu0 %v4326
    %v5663 = vpop.f32.mrb[0].mxu0
    %v5664 = vadd.f32 %v5551, %v5663
    %v5665 = vpop.f32.mrb[0].mxu0
    %v5666 = vadd.f32 %v5553, %v5665
    %v5667 = vpop.f32.mrb[0].mxu0
    %v5668 = vadd.f32 %v5555, %v5667
    %v5669 = vpop.f32.mrb[0].mxu0
    %v5670 = vadd.f32 %v5557, %v5669
    %5671 = vmatprep.mubr.bf16.mxu0 %v4331
    %5672 = vmatmul.mubr.bf16.gmra.mrb[0].mxu0 %v4330
    %v5673 = vpop.f32.mrb[0].mxu0
    %v5674 = vadd.f32 %v5561, %v5673
    %v5675 = vpop.f32.mrb[0].mxu0
    %v5676 = vadd.f32 %v5563, %v5675
    %v5677 = vpop.f32.mrb[0].mxu0
    %v5678 = vadd.f32 %v5565, %v5677
    %v5679 = vpop.f32.mrb[0].mxu0
    %v5680 = vadd.f32 %v5567, %v5679
    %5681 = vmatprep.mubr.bf16.mxu0 %v4335
    %5682 = vmatmul.mubr.bf16.gmra.mrb[0].mxu0 %v4334
    %v5683 = vpop.f32.mrb[0].mxu0
    %v5684 = vadd.f32 %v5571, %v5683
    %v5685 = vpop.f32.mrb[0].mxu0
    %v5686 = vadd.f32 %v5573, %v5685
    %v5687 = vpop.f32.mrb[0].mxu0
    %v5688 = vadd.f32 %v5575, %v5687
    %v5689 = vpop.f32.mrb[0].mxu0
    %v5690 = vadd.f32 %v5577, %v5689
    %5691 = vmatprep.mubr.bf16.mxu0 %v4339
    %5692 = vmatmul.mubr.bf16.gmra.mrb[0].mxu0 %v4338
    %v5693 = vpop.f32.mrb[0].mxu0
    %v5694 = vadd.f32 %v5581, %v5693
    %v5695 = vpop.f32.mrb[0].mxu0
    %v5696 = vadd.f32 %v5583, %v5695
    %v5697 = vpop.f32.mrb[0].mxu0
    %v5698 = vadd.f32 %v5585, %v5697
    %v5699 = vpop.f32.mrb[0].mxu0
    %v5700 = vadd.f32 %v5587, %v5699
    %5701 = vmatprep.mubr.bf16.mxu0 %v4343
    %5702 = vmatmul.mubr.bf16.gmra.mrb[0].mxu0 %v4342
    %v5703 = vpop.f32.mrb[0].mxu0
    %v5704 = vadd.f32 %v5591, %v5703
    %v5705 = vpop.f32.mrb[0].mxu0
    %v5706 = vadd.f32 %v5593, %v5705
    %v5707 = vpop.f32.mrb[0].mxu0
    %v5708 = vadd.f32 %v5595, %v5707
    %v5709 = vpop.f32.mrb[0].mxu0
    %v5710 = vadd.f32 %v5597, %v5709
    %5711 = vmatprep.mubr.bf16.mxu0 %v4347
    %5712 = vmatmul.mubr.bf16.gmra.mrb[0].mxu0 %v4346
    %v5713 = vpop.f32.mrb[0].mxu0
    %v5714 = vadd.f32 %v5601, %v5713
    %v5715 = vpop.f32.mrb[0].mxu0
    %v5716 = vadd.f32 %v5603, %v5715
    %v5717 = vpop.f32.mrb[0].mxu0
    %v5718 = vadd.f32 %v5605, %v5717
    %v5719 = vpop.f32.mrb[0].mxu0
    %v5720 = vadd.f32 %v5607, %v5719
    %5721 = vmatprep.mubr.bf16.mxu0 %v4351
    %5722 = vmatmul.mubr.bf16.gmra.mrb[0].mxu0 %v4350
    %v5723 = vpop.f32.mrb[0].mxu0
    %v5724 = vadd.f32 %v5611, %v5723
    %v5725 = vpop.f32.mrb[0].mxu0
    %v5726 = vadd.f32 %v5613, %v5725
    %v5727 = vpop.f32.mrb[0].mxu0
    %v5728 = vadd.f32 %v5615, %v5727
    %v5729 = vpop.f32.mrb[0].mxu0
    %v5730 = vadd.f32 %v5617, %v5729
    %5731 = vdwg.mxu0
    %5732 = vmatprep.subr.bf16.mxu0 %v5253
    %5733 = vmatpush1.bf16.msra.mxu0 %v5252
    %5734 = vmatprep.subr.bf16.mxu0 %v5257
    %5735 = vmatpush1.bf16.msra.mxu0 %v5256
    %5736 = vmatprep.subr.bf16.mxu0 %v5261
    %5737 = vmatpush1.bf16.msra.mxu0 %v5260
    %5738 = vmatprep.subr.bf16.mxu0 %v5265
    %5739 = vmatpush1.bf16.msra.mxu0 %v5264
    %5740 = vmatprep.subr.bf16.mxu0 %v5269
    %5741 = vmatpush1.bf16.msra.mxu0 %v5268
    %5742 = vmatprep.subr.bf16.mxu0 %v5273
    %5743 = vmatpush1.bf16.msra.mxu0 %v5272
    %5744 = vmatprep.subr.bf16.mxu0 %v5277
    %5745 = vmatpush1.bf16.msra.mxu0 %v5276
    %5746 = vmatprep.subr.bf16.mxu0 %v5281
    %5747 = vmatpush1.bf16.msra.mxu0 %v5280
    %5748 = vmatprep.subr.bf16.mxu0 %v5285
    %5749 = vmatpush1.bf16.msra.mxu0 %v5284
    %5750 = vmatprep.subr.bf16.mxu0 %v5289
    %5751 = vmatpush1.bf16.msra.mxu0 %v5288
    %5752 = vmatprep.subr.bf16.mxu0 %v5293
    %5753 = vmatpush1.bf16.msra.mxu0 %v5292
    %5754 = vmatprep.subr.bf16.mxu0 %v5297
    %5755 = vmatpush1.bf16.msra.mxu0 %v5296
    %5756 = vmatprep.subr.bf16.mxu0 %v5301
    %5757 = vmatpush1.bf16.msra.mxu0 %v5300
    %5758 = vmatprep.subr.bf16.mxu0 %v5305
    %5759 = vmatpush1.bf16.msra.mxu0 %v5304
    %5760 = vmatprep.subr.bf16.mxu0 %v5309
    %5761 = vmatpush1.bf16.msra.mxu0 %v5308
    %5762 = vmatprep.subr.bf16.mxu0 %v5313
    %5763 = vmatpush1.bf16.msra.mxu0 %v5312
    %5764 = vmatprep.mubr.bf16.mxu0 %v4321
    %5765 = vmatmul.mubr.bf16.gmra.mrb[0].mxu0 %v4320
    %v5766 = vpop.f32.mrb[0].mxu0
    %v5767 = vadd.f32 0.0, %v5766
    %v5768 = vpop.f32.mrb[0].mxu0
    %v5769 = vadd.f32 0.0, %v5768
    %v5770 = vpop.f32.mrb[0].mxu0
    %v5771 = vadd.f32 0.0, %v5770
    %v5772 = vpop.f32.mrb[0].mxu0
    %v5773 = vadd.f32 0.0, %v5772
    %5774 = vmatprep.mubr.bf16.mxu0 %v4325
    %5775 = vmatmul.mubr.bf16.gmra.mrb[0].mxu0 %v4324
    %v5776 = vpop.f32.mrb[0].mxu0
    %v5777 = vadd.f32 0.0, %v5776
    %v5778 = vpop.f32.mrb[0].mxu0
    %v5779 = vadd.f32 0.0, %v5778
    %v5780 = vpop.f32.mrb[0].mxu0
    %v5781 = vadd.f32 0.0, %v5780
    %v5782 = vpop.f32.mrb[0].mxu0
    %v5783 = vadd.f32 0.0, %v5782
    %5784 = vmatprep.mubr.bf16.mxu0 %v4329
    %5785 = vmatmul.mubr.bf16.gmra.mrb[0].mxu0 %v4328
    %v5786 = vpop.f32.mrb[0].mxu0
    %v5787 = vadd.f32 0.0, %v5786
    %v5788 = vpop.f32.mrb[0].mxu0
    %v5789 = vadd.f32 0.0, %v5788
    %v5790 = vpop.f32.mrb[0].mxu0
    %v5791 = vadd.f32 0.0, %v5790
    %v5792 = vpop.f32.mrb[0].mxu0
    %v5793 = vadd.f32 0.0, %v5792
    %5794 = vmatprep.mubr.bf16.mxu0 %v4333
    %5795 = vmatmul.mubr.bf16.gmra.mrb[0].mxu0 %v4332
    %v5796 = vpop.f32.mrb[0].mxu0
    %v5797 = vadd.f32 0.0, %v5796
    %v5798 = vpop.f32.mrb[0].mxu0
    %v5799 = vadd.f32 0.0, %v5798
    %v5800 = vpop.f32.mrb[0].mxu0
    %v5801 = vadd.f32 0.0, %v5800
    %v5802 = vpop.f32.mrb[0].mxu0
    %v5803 = vadd.f32 0.0, %v5802
    %5804 = vmatprep.mubr.bf16.mxu0 %v4337
    %5805 = vmatmul.mubr.bf16.gmra.mrb[0].mxu0 %v4336
    %v5806 = vpop.f32.mrb[0].mxu0
    %v5807 = vadd.f32 0.0, %v5806
    %v5808 = vpop.f32.mrb[0].mxu0
    %v5809 = vadd.f32 0.0, %v5808
    %v5810 = vpop.f32.mrb[0].mxu0
    %v5811 = vadd.f32 0.0, %v5810
    %v5812 = vpop.f32.mrb[0].mxu0
    %v5813 = vadd.f32 0.0, %v5812
    %5814 = vmatprep.mubr.bf16.mxu0 %v4341
    %5815 = vmatmul.mubr.bf16.gmra.mrb[0].mxu0 %v4340
    %v5816 = vpop.f32.mrb[0].mxu0
    %v5817 = vadd.f32 0.0, %v5816
    %v5818 = vpop.f32.mrb[0].mxu0
    %v5819 = vadd.f32 0.0, %v5818
    %v5820 = vpop.f32.mrb[0].mxu0
    %v5821 = vadd.f32 0.0, %v5820
    %v5822 = vpop.f32.mrb[0].mxu0
    %v5823 = vadd.f32 0.0, %v5822
    %5824 = vmatprep.mubr.bf16.mxu0 %v4345
    %5825 = vmatmul.mubr.bf16.gmra.mrb[0].mxu0 %v4344
    %v5826 = vpop.f32.mrb[0].mxu0
    %v5827 = vadd.f32 0.0, %v5826
    %v5828 = vpop.f32.mrb[0].mxu0
    %v5829 = vadd.f32 0.0, %v5828
    %v5830 = vpop.f32.mrb[0].mxu0
    %v5831 = vadd.f32 0.0, %v5830
    %v5832 = vpop.f32.mrb[0].mxu0
    %v5833 = vadd.f32 0.0, %v5832
    %5834 = vmatprep.mubr.bf16.mxu0 %v4349
    %5835 = vmatmul.mubr.bf16.gmra.mrb[0].mxu0 %v4348
    %v5836 = vpop.f32.mrb[0].mxu0
    %v5837 = vadd.f32 0.0, %v5836
    %v5838 = vpop.f32.mrb[0].mxu0
    %v5839 = vadd.f32 0.0, %v5838
    %v5840 = vpop.f32.mrb[0].mxu0
    %v5841 = vadd.f32 0.0, %v5840
    %v5842 = vpop.f32.mrb[0].mxu0
    %v5843 = vadd.f32 0.0, %v5842
    %5844 = vdwg.mxu0
    %5845 = vmatprep.subr.bf16.mxu0 %v5317
    %5846 = vmatpush1.bf16.msra.mxu0 %v5316
    %5847 = vmatprep.subr.bf16.mxu0 %v5321
    %5848 = vmatpush1.bf16.msra.mxu0 %v5320
    %5849 = vmatprep.subr.bf16.mxu0 %v5325
    %5850 = vmatpush1.bf16.msra.mxu0 %v5324
    %5851 = vmatprep.subr.bf16.mxu0 %v5329
    %5852 = vmatpush1.bf16.msra.mxu0 %v5328
    %5853 = vmatprep.subr.bf16.mxu0 %v5333
    %5854 = vmatpush1.bf16.msra.mxu0 %v5332
    %5855 = vmatprep.subr.bf16.mxu0 %v5337
    %5856 = vmatpush1.bf16.msra.mxu0 %v5336
    %5857 = vmatprep.subr.bf16.mxu0 %v5341
    %5858 = vmatpush1.bf16.msra.mxu0 %v5340
    %5859 = vmatprep.subr.bf16.mxu0 %v5345
    %5860 = vmatpush1.bf16.msra.mxu0 %v5344
    %5861 = vmatprep.subr.bf16.mxu0 %v5349
    %5862 = vmatpush1.bf16.msra.mxu0 %v5348
    %5863 = vmatprep.subr.bf16.mxu0 %v5353
    %5864 = vmatpush1.bf16.msra.mxu0 %v5352
    %5865 = vmatprep.subr.bf16.mxu0 %v5357
    %5866 = vmatpush1.bf16.msra.mxu0 %v5356
    %5867 = vmatprep.subr.bf16.mxu0 %v5361
    %5868 = vmatpush1.bf16.msra.mxu0 %v5360
    %5869 = vmatprep.subr.bf16.mxu0 %v5365
    %5870 = vmatpush1.bf16.msra.mxu0 %v5364
    %5871 = vmatprep.subr.bf16.mxu0 %v5369
    %5872 = vmatpush1.bf16.msra.mxu0 %v5368
    %5873 = vmatprep.subr.bf16.mxu0 %v5373
    %5874 = vmatpush1.bf16.msra.mxu0 %v5372
    %5875 = vmatprep.subr.bf16.mxu0 %v5377
    %5876 = vmatpush1.bf16.msra.mxu0 %v5376
    %5877 = vmatprep.mubr.bf16.mxu0 %v4323
    %5878 = vmatmul.mubr.bf16.gmra.mrb[0].mxu0 %v4322
    %v5879 = vpop.f32.mrb[0].mxu0
    %v5880 = vadd.f32 %v5767, %v5879
    %v5881 = vpop.f32.mrb[0].mxu0
    %v5882 = vadd.f32 %v5769, %v5881
    %v5883 = vpop.f32.mrb[0].mxu0
    %v5884 = vadd.f32 %v5771, %v5883
    %v5885 = vpop.f32.mrb[0].mxu0
    %v5886 = vadd.f32 %v5773, %v5885
    %5887 = vmatprep.mubr.bf16.mxu0 %v4327
    %5888 = vmatmul.mubr.bf16.gmra.mrb[0].mxu0 %v4326
    %v5889 = vpop.f32.mrb[0].mxu0
    %v5890 = vadd.f32 %v5777, %v5889
    %v5891 = vpop.f32.mrb[0].mxu0
    %v5892 = vadd.f32 %v5779, %v5891
    %v5893 = vpop.f32.mrb[0].mxu0
    %v5894 = vadd.f32 %v5781, %v5893
    %v5895 = vpop.f32.mrb[0].mxu0
    %v5896 = vadd.f32 %v5783, %v5895
    %5897 = vmatprep.mubr.bf16.mxu0 %v4331
    %5898 = vmatmul.mubr.bf16.gmra.mrb[0].mxu0 %v4330
    %v5899 = vpop.f32.mrb[0].mxu0
    %v5900 = vadd.f32 %v5787, %v5899
    %v5901 = vpop.f32.mrb[0].mxu0
    %v5902 = vadd.f32 %v5789, %v5901
    %v5903 = vpop.f32.mrb[0].mxu0
    %v5904 = vadd.f32 %v5791, %v5903
    %v5905 = vpop.f32.mrb[0].mxu0
    %v5906 = vadd.f32 %v5793, %v5905
    %5907 = vmatprep.mubr.bf16.mxu0 %v4335
    %5908 = vmatmul.mubr.bf16.gmra.mrb[0].mxu0 %v4334
    %v5909 = vpop.f32.mrb[0].mxu0
    %v5910 = vadd.f32 %v5797, %v5909
    %v5911 = vpop.f32.mrb[0].mxu0
    %v5912 = vadd.f32 %v5799, %v5911
    %v5913 = vpop.f32.mrb[0].mxu0
    %v5914 = vadd.f32 %v5801, %v5913
    %v5915 = vpop.f32.mrb[0].mxu0
    %v5916 = vadd.f32 %v5803, %v5915
    %5917 = vmatprep.mubr.bf16.mxu0 %v4339
    %5918 = vmatmul.mubr.bf16.gmra.mrb[0].mxu0 %v4338
    %v5919 = vpop.f32.mrb[0].mxu0
    %v5920 = vadd.f32 %v5807, %v5919
    %v5921 = vpop.f32.mrb[0].mxu0
    %v5922 = vadd.f32 %v5809, %v5921
    %v5923 = vpop.f32.mrb[0].mxu0
    %v5924 = vadd.f32 %v5811, %v5923
    %v5925 = vpop.f32.mrb[0].mxu0
    %v5926 = vadd.f32 %v5813, %v5925
    %5927 = vmatprep.mubr.bf16.mxu0 %v4343
    %5928 = vmatmul.mubr.bf16.gmra.mrb[0].mxu0 %v4342
    %v5929 = vpop.f32.mrb[0].mxu0
    %v5930 = vadd.f32 %v5817, %v5929
    %v5931 = vpop.f32.mrb[0].mxu0
    %v5932 = vadd.f32 %v5819, %v5931
    %v5933 = vpop.f32.mrb[0].mxu0
    %v5934 = vadd.f32 %v5821, %v5933
    %v5935 = vpop.f32.mrb[0].mxu0
    %v5936 = vadd.f32 %v5823, %v5935
    %5937 = vmatprep.mubr.bf16.mxu0 %v4347
    %5938 = vmatmul.mubr.bf16.gmra.mrb[0].mxu0 %v4346
    %v5939 = vpop.f32.mrb[0].mxu0
    %v5940 = vadd.f32 %v5827, %v5939
    %v5941 = vpop.f32.mrb[0].mxu0
    %v5942 = vadd.f32 %v5829, %v5941
    %v5943 = vpop.f32.mrb[0].mxu0
    %v5944 = vadd.f32 %v5831, %v5943
    %v5945 = vpop.f32.mrb[0].mxu0
    %v5946 = vadd.f32 %v5833, %v5945
    %5947 = vmatprep.mubr.bf16.mxu0 %v4351
    %5948 = vmatmul.mubr.bf16.gmra.mrb[0].mxu0 %v4350
    %v5949 = vpop.f32.mrb[0].mxu0
    %v5950 = vadd.f32 %v5837, %v5949
    %v5951 = vpop.f32.mrb[0].mxu0
    %v5952 = vadd.f32 %v5839, %v5951
    %v5953 = vpop.f32.mrb[0].mxu0
    %v5954 = vadd.f32 %v5841, %v5953
    %v5955 = vpop.f32.mrb[0].mxu0
    %v5956 = vadd.f32 %v5843, %v5955
    %5957 = vdwg.mxu0
    %v6086 = vunpack.c.l.b16 %v4610
    %v6087 = vunpack.c.h.b16 %v4610
    %v6088 = vunpack.c.l.b16 %v4611
    %v6089 = vunpack.c.h.b16 %v4611
    %v6090 = vunpack.c.l.b16 %v4612
    %v6091 = vunpack.c.h.b16 %v4612
    %v6092 = vunpack.c.l.b16 %v4613
    %v6093 = vunpack.c.h.b16 %v4613
    %v6094 = vunpack.c.l.b16 %v4614
    %v6095 = vunpack.c.h.b16 %v4614
    %v6096 = vunpack.c.l.b16 %v4615
    %v6097 = vunpack.c.h.b16 %v4615
    %v6098 = vunpack.c.l.b16 %v4616
    %v6099 = vunpack.c.h.b16 %v4616
    %v6100 = vunpack.c.l.b16 %v4617
    %v6101 = vunpack.c.h.b16 %v4617
    %v6102 = vunpack.c.l.b16 %v4618
    %v6103 = vunpack.c.h.b16 %v4618
    %v6104 = vunpack.c.l.b16 %v4619
    %v6105 = vunpack.c.h.b16 %v4619
    %v6106 = vunpack.c.l.b16 %v4620
    %v6107 = vunpack.c.h.b16 %v4620
    %v6108 = vunpack.c.l.b16 %v4621
    %v6109 = vunpack.c.h.b16 %v4621
    %v6110 = vunpack.c.l.b16 %v4622
    %v6111 = vunpack.c.h.b16 %v4622
    %v6112 = vunpack.c.l.b16 %v4623
    %v6113 = vunpack.c.h.b16 %v4623
    %v6114 = vunpack.c.l.b16 %v4624
    %v6115 = vunpack.c.h.b16 %v4624
    %v6116 = vunpack.c.l.b16 %v4625
    %v6117 = vunpack.c.h.b16 %v4625
    %v6118 = vunpack.c.l.b16 %v4626
    %v6119 = vunpack.c.h.b16 %v4626
    %v6120 = vunpack.c.l.b16 %v4627
    %v6121 = vunpack.c.h.b16 %v4627
    %v6122 = vunpack.c.l.b16 %v4628
    %v6123 = vunpack.c.h.b16 %v4628
    %v6124 = vunpack.c.l.b16 %v4629
    %v6125 = vunpack.c.h.b16 %v4629
    %v6126 = vunpack.c.l.b16 %v4630
    %v6127 = vunpack.c.h.b16 %v4630
    %v6128 = vunpack.c.l.b16 %v4631
    %v6129 = vunpack.c.h.b16 %v4631
    %v6130 = vunpack.c.l.b16 %v4632
    %v6131 = vunpack.c.h.b16 %v4632
    %v6132 = vunpack.c.l.b16 %v4633
    %v6133 = vunpack.c.h.b16 %v4633
    %v6134 = vunpack.c.l.b16 %v4634
    %v6135 = vunpack.c.h.b16 %v4634
    %v6136 = vunpack.c.l.b16 %v4635
    %v6137 = vunpack.c.h.b16 %v4635
    %v6138 = vunpack.c.l.b16 %v4636
    %v6139 = vunpack.c.h.b16 %v4636
    %v6140 = vunpack.c.l.b16 %v4637
    %v6141 = vunpack.c.h.b16 %v4637
    %v6142 = vunpack.c.l.b16 %v4638
    %v6143 = vunpack.c.h.b16 %v4638
    %v6144 = vunpack.c.l.b16 %v4639
    %v6145 = vunpack.c.h.b16 %v4639
    %v6146 = vunpack.c.l.b16 %v4640
    %v6147 = vunpack.c.h.b16 %v4640
    %v6148 = vunpack.c.l.b16 %v4641
    %v6149 = vunpack.c.h.b16 %v4641
    %v6150 = vunpack.c.l.b16 %v4642
    %v6151 = vunpack.c.h.b16 %v4642
    %v6152 = vunpack.c.l.b16 %v4643
    %v6153 = vunpack.c.h.b16 %v4643
    %v6154 = vunpack.c.l.b16 %v4644
    %v6155 = vunpack.c.h.b16 %v4644
    %v6156 = vunpack.c.l.b16 %v4645
    %v6157 = vunpack.c.h.b16 %v4645
    %v6158 = vunpack.c.l.b16 %v4646
    %v6159 = vunpack.c.h.b16 %v4646
    %v6160 = vunpack.c.l.b16 %v4647
    %v6161 = vunpack.c.h.b16 %v4647
    %v6162 = vunpack.c.l.b16 %v4648
    %v6163 = vunpack.c.h.b16 %v4648
    %v6164 = vunpack.c.l.b16 %v4649
    %v6165 = vunpack.c.h.b16 %v4649
    %v6166 = vunpack.c.l.b16 %v4650
    %v6167 = vunpack.c.h.b16 %v4650
    %v6168 = vunpack.c.l.b16 %v4651
    %v6169 = vunpack.c.h.b16 %v4651
    %v6170 = vunpack.c.l.b16 %v4652
    %v6171 = vunpack.c.h.b16 %v4652
    %v6172 = vunpack.c.l.b16 %v4653
    %v6173 = vunpack.c.h.b16 %v4653
    %v6174 = vunpack.c.l.b16 %v4654
    %v6175 = vunpack.c.h.b16 %v4654
    %v6176 = vunpack.c.l.b16 %v4655
    %v6177 = vunpack.c.h.b16 %v4655
    %v6178 = vunpack.c.l.b16 %v4656
    %v6179 = vunpack.c.h.b16 %v4656
    %v6180 = vunpack.c.l.b16 %v4657
    %v6181 = vunpack.c.h.b16 %v4657
    %v6182 = vunpack.c.l.b16 %v4658
    %v6183 = vunpack.c.h.b16 %v4658
    %v6184 = vunpack.c.l.b16 %v4659
    %v6185 = vunpack.c.h.b16 %v4659
    %v6186 = vunpack.c.l.b16 %v4660
    %v6187 = vunpack.c.h.b16 %v4660
    %v6188 = vunpack.c.l.b16 %v4661
    %v6189 = vunpack.c.h.b16 %v4661
    %v6190 = vunpack.c.l.b16 %v4662
    %v6191 = vunpack.c.h.b16 %v4662
    %v6192 = vunpack.c.l.b16 %v4663
    %v6193 = vunpack.c.h.b16 %v4663
    %v6194 = vunpack.c.l.b16 %v4664
    %v6195 = vunpack.c.h.b16 %v4664
    %v6196 = vunpack.c.l.b16 %v4665
    %v6197 = vunpack.c.h.b16 %v4665
    %v6198 = vunpack.c.l.b16 %v4666
    %v6199 = vunpack.c.h.b16 %v4666
    %v6200 = vunpack.c.l.b16 %v4667
    %v6201 = vunpack.c.h.b16 %v4667
    %v6202 = vunpack.c.l.b16 %v4668
    %v6203 = vunpack.c.h.b16 %v4668
    %v6204 = vunpack.c.l.b16 %v4669
    %v6205 = vunpack.c.h.b16 %v4669
    %v6206 = vunpack.c.l.b16 %v4670
    %v6207 = vunpack.c.h.b16 %v4670
    %v6208 = vunpack.c.l.b16 %v4671
    %v6209 = vunpack.c.h.b16 %v4671
    %v6210 = vunpack.c.l.b16 %v4672
    %v6211 = vunpack.c.h.b16 %v4672
    %v6212 = vunpack.c.l.b16 %v4673
    %v6213 = vunpack.c.h.b16 %v4673
    %v6214 = vunpack.c.l.b16 %v4674
    %v6215 = vunpack.c.h.b16 %v4674
    %v6216 = vunpack.c.l.b16 %v4675
    %v6217 = vunpack.c.h.b16 %v4675
    %v6218 = vunpack.c.l.b16 %v4676
    %v6219 = vunpack.c.h.b16 %v4676
    %v6220 = vunpack.c.l.b16 %v4677
    %v6221 = vunpack.c.h.b16 %v4677
    %v6222 = vunpack.c.l.b16 %v4678
    %v6223 = vunpack.c.h.b16 %v4678
    %v6224 = vunpack.c.l.b16 %v4679
    %v6225 = vunpack.c.h.b16 %v4679
    %v6226 = vunpack.c.l.b16 %v4680
    %v6227 = vunpack.c.h.b16 %v4680
    %v6228 = vunpack.c.l.b16 %v4681
    %v6229 = vunpack.c.h.b16 %v4681
    %v6230 = vunpack.c.l.b16 %v4682
    %v6231 = vunpack.c.h.b16 %v4682
    %v6232 = vunpack.c.l.b16 %v4683
    %v6233 = vunpack.c.h.b16 %v4683
    %v6234 = vunpack.c.l.b16 %v4684
    %v6235 = vunpack.c.h.b16 %v4684
    %v6236 = vunpack.c.l.b16 %v4685
    %v6237 = vunpack.c.h.b16 %v4685
    %v6238 = vunpack.c.l.b16 %v4686
    %v6239 = vunpack.c.h.b16 %v4686
    %v6240 = vunpack.c.l.b16 %v4687
    %v6241 = vunpack.c.h.b16 %v4687
    %v6242 = vunpack.c.l.b16 %v4688
    %v6243 = vunpack.c.h.b16 %v4688
    %v6244 = vunpack.c.l.b16 %v4689
    %v6245 = vunpack.c.h.b16 %v4689
    %v6246 = vunpack.c.l.b16 %v4690
    %v6247 = vunpack.c.h.b16 %v4690
    %v6248 = vunpack.c.l.b16 %v4691
    %v6249 = vunpack.c.h.b16 %v4691
    %v6250 = vunpack.c.l.b16 %v4692
    %v6251 = vunpack.c.h.b16 %v4692
    %v6252 = vunpack.c.l.b16 %v4693
    %v6253 = vunpack.c.h.b16 %v4693
    %v6254 = vunpack.c.l.b16 %v4694
    %v6255 = vunpack.c.h.b16 %v4694
    %v6256 = vunpack.c.l.b16 %v4695
    %v6257 = vunpack.c.h.b16 %v4695
    %v6258 = vunpack.c.l.b16 %v4696
    %v6259 = vunpack.c.h.b16 %v4696
    %v6260 = vunpack.c.l.b16 %v4697
    %v6261 = vunpack.c.h.b16 %v4697
    %v6262 = vunpack.c.l.b16 %v4698
    %v6263 = vunpack.c.h.b16 %v4698
    %v6264 = vunpack.c.l.b16 %v4699
    %v6265 = vunpack.c.h.b16 %v4699
    %v6266 = vunpack.c.l.b16 %v4700
    %v6267 = vunpack.c.h.b16 %v4700
    %v6268 = vunpack.c.l.b16 %v4701
    %v6269 = vunpack.c.h.b16 %v4701
    %v6270 = vunpack.c.l.b16 %v4702
    %v6271 = vunpack.c.h.b16 %v4702
    %v6272 = vunpack.c.l.b16 %v4703
    %v6273 = vunpack.c.h.b16 %v4703
    %v6274 = vunpack.c.l.b16 %v4704
    %v6275 = vunpack.c.h.b16 %v4704
    %v6276 = vunpack.c.l.b16 %v4705
    %v6277 = vunpack.c.h.b16 %v4705
    %v6278 = vunpack.c.l.b16 %v4706
    %v6279 = vunpack.c.h.b16 %v4706
    %v6280 = vunpack.c.l.b16 %v4707
    %v6281 = vunpack.c.h.b16 %v4707
    %v6282 = vunpack.c.l.b16 %v4708
    %v6283 = vunpack.c.h.b16 %v4708
    %v6284 = vunpack.c.l.b16 %v4709
    %v6285 = vunpack.c.h.b16 %v4709
    %v6286 = vunpack.c.l.b16 %v4710
    %v6287 = vunpack.c.h.b16 %v4710
    %v6288 = vunpack.c.l.b16 %v4711
    %v6289 = vunpack.c.h.b16 %v4711
    %v6290 = vunpack.c.l.b16 %v4712
    %v6291 = vunpack.c.h.b16 %v4712
    %v6292 = vunpack.c.l.b16 %v4713
    %v6293 = vunpack.c.h.b16 %v4713
    %v6294 = vunpack.c.l.b16 %v4714
    %v6295 = vunpack.c.h.b16 %v4714
    %v6296 = vunpack.c.l.b16 %v4715
    %v6297 = vunpack.c.h.b16 %v4715
    %v6298 = vunpack.c.l.b16 %v4716
    %v6299 = vunpack.c.h.b16 %v4716
    %v6300 = vunpack.c.l.b16 %v4717
    %v6301 = vunpack.c.h.b16 %v4717
    %v6302 = vunpack.c.l.b16 %v4718
    %v6303 = vunpack.c.h.b16 %v4718
    %v6304 = vunpack.c.l.b16 %v4719
    %v6305 = vunpack.c.h.b16 %v4719
    %v6306 = vunpack.c.l.b16 %v4720
    %v6307 = vunpack.c.h.b16 %v4720
    %v6308 = vunpack.c.l.b16 %v4721
    %v6309 = vunpack.c.h.b16 %v4721
    %v6310 = vunpack.c.l.b16 %v4722
    %v6311 = vunpack.c.h.b16 %v4722
    %v6312 = vunpack.c.l.b16 %v4723
    %v6313 = vunpack.c.h.b16 %v4723
    %v6314 = vunpack.c.l.b16 %v4724
    %v6315 = vunpack.c.h.b16 %v4724
    %v6316 = vunpack.c.l.b16 %v4725
    %v6317 = vunpack.c.h.b16 %v4725
    %v6318 = vunpack.c.l.b16 %v4726
    %v6319 = vunpack.c.h.b16 %v4726
    %v6320 = vunpack.c.l.b16 %v4727
    %v6321 = vunpack.c.h.b16 %v4727
    %v6322 = vunpack.c.l.b16 %v4728
    %v6323 = vunpack.c.h.b16 %v4728
    %v6324 = vunpack.c.l.b16 %v4729
    %v6325 = vunpack.c.h.b16 %v4729
    %v6326 = vunpack.c.l.b16 %v4730
    %v6327 = vunpack.c.h.b16 %v4730
    %v6328 = vunpack.c.l.b16 %v4731
    %v6329 = vunpack.c.h.b16 %v4731
    %v6330 = vunpack.c.l.b16 %v4732
    %v6331 = vunpack.c.h.b16 %v4732
    %v6332 = vunpack.c.l.b16 %v4733
    %v6333 = vunpack.c.h.b16 %v4733
    %v6334 = vunpack.c.l.b16 %v4734
    %v6335 = vunpack.c.h.b16 %v4734
    %v6336 = vunpack.c.l.b16 %v4735
    %v6337 = vunpack.c.h.b16 %v4735
    %v6338 = vunpack.c.l.b16 %v4736
    %v6339 = vunpack.c.h.b16 %v4736
    %v6340 = vunpack.c.l.b16 %v4737
    %v6341 = vunpack.c.h.b16 %v4737
    %v6342 = vpack.c.b16 %v6090, %v6086
    %v6343 = vpack.c.b16 %v6091, %v6087
    %v6344 = vpack.c.b16 %v6092, %v6088
    %v6345 = vpack.c.b16 %v6093, %v6089
    %v6346 = vpack.c.b16 %v6098, %v6094
    %v6347 = vpack.c.b16 %v6099, %v6095
    %v6348 = vpack.c.b16 %v6100, %v6096
    %v6349 = vpack.c.b16 %v6101, %v6097
    %v6350 = vpack.c.b16 %v6106, %v6102
    %v6351 = vpack.c.b16 %v6107, %v6103
    %v6352 = vpack.c.b16 %v6108, %v6104
    %v6353 = vpack.c.b16 %v6109, %v6105
    %v6354 = vpack.c.b16 %v6114, %v6110
    %v6355 = vpack.c.b16 %v6115, %v6111
    %v6356 = vpack.c.b16 %v6116, %v6112
    %v6357 = vpack.c.b16 %v6117, %v6113
    %v6358 = vpack.c.b16 %v6122, %v6118
    %v6359 = vpack.c.b16 %v6123, %v6119
    %v6360 = vpack.c.b16 %v6124, %v6120
    %v6361 = vpack.c.b16 %v6125, %v6121
    %v6362 = vpack.c.b16 %v6130, %v6126
    %v6363 = vpack.c.b16 %v6131, %v6127
    %v6364 = vpack.c.b16 %v6132, %v6128
    %v6365 = vpack.c.b16 %v6133, %v6129
    %v6366 = vpack.c.b16 %v6138, %v6134
    %v6367 = vpack.c.b16 %v6139, %v6135
    %v6368 = vpack.c.b16 %v6140, %v6136
    %v6369 = vpack.c.b16 %v6141, %v6137
    %v6370 = vpack.c.b16 %v6146, %v6142
    %v6371 = vpack.c.b16 %v6147, %v6143
    %v6372 = vpack.c.b16 %v6148, %v6144
    %v6373 = vpack.c.b16 %v6149, %v6145
    %v6374 = vpack.c.b16 %v6154, %v6150
    %v6375 = vpack.c.b16 %v6155, %v6151
    %v6376 = vpack.c.b16 %v6156, %v6152
    %v6377 = vpack.c.b16 %v6157, %v6153
    %v6378 = vpack.c.b16 %v6162, %v6158
    %v6379 = vpack.c.b16 %v6163, %v6159
    %v6380 = vpack.c.b16 %v6164, %v6160
    %v6381 = vpack.c.b16 %v6165, %v6161
    %v6382 = vpack.c.b16 %v6170, %v6166
    %v6383 = vpack.c.b16 %v6171, %v6167
    %v6384 = vpack.c.b16 %v6172, %v6168
    %v6385 = vpack.c.b16 %v6173, %v6169
    %v6386 = vpack.c.b16 %v6178, %v6174
    %v6387 = vpack.c.b16 %v6179, %v6175
    %v6388 = vpack.c.b16 %v6180, %v6176
    %v6389 = vpack.c.b16 %v6181, %v6177
    %v6390 = vpack.c.b16 %v6186, %v6182
    %v6391 = vpack.c.b16 %v6187, %v6183
    %v6392 = vpack.c.b16 %v6188, %v6184
    %v6393 = vpack.c.b16 %v6189, %v6185
    %v6394 = vpack.c.b16 %v6194, %v6190
    %v6395 = vpack.c.b16 %v6195, %v6191
    %v6396 = vpack.c.b16 %v6196, %v6192
    %v6397 = vpack.c.b16 %v6197, %v6193
    %v6398 = vpack.c.b16 %v6202, %v6198
    %v6399 = vpack.c.b16 %v6203, %v6199
    %v6400 = vpack.c.b16 %v6204, %v6200
    %v6401 = vpack.c.b16 %v6205, %v6201
    %v6402 = vpack.c.b16 %v6210, %v6206
    %v6403 = vpack.c.b16 %v6211, %v6207
    %v6404 = vpack.c.b16 %v6212, %v6208
    %v6405 = vpack.c.b16 %v6213, %v6209
    %v6406 = vpack.c.b16 %v6218, %v6214
    %v6407 = vpack.c.b16 %v6219, %v6215
    %v6408 = vpack.c.b16 %v6220, %v6216
    %v6409 = vpack.c.b16 %v6221, %v6217
    %v6410 = vpack.c.b16 %v6226, %v6222
    %v6411 = vpack.c.b16 %v6227, %v6223
    %v6412 = vpack.c.b16 %v6228, %v6224
    %v6413 = vpack.c.b16 %v6229, %v6225
    %v6414 = vpack.c.b16 %v6234, %v6230
    %v6415 = vpack.c.b16 %v6235, %v6231
    %v6416 = vpack.c.b16 %v6236, %v6232
    %v6417 = vpack.c.b16 %v6237, %v6233
    %v6418 = vpack.c.b16 %v6242, %v6238
    %v6419 = vpack.c.b16 %v6243, %v6239
    %v6420 = vpack.c.b16 %v6244, %v6240
    %v6421 = vpack.c.b16 %v6245, %v6241
    %v6422 = vpack.c.b16 %v6250, %v6246
    %v6423 = vpack.c.b16 %v6251, %v6247
    %v6424 = vpack.c.b16 %v6252, %v6248
    %v6425 = vpack.c.b16 %v6253, %v6249
    %v6426 = vpack.c.b16 %v6258, %v6254
    %v6427 = vpack.c.b16 %v6259, %v6255
    %v6428 = vpack.c.b16 %v6260, %v6256
    %v6429 = vpack.c.b16 %v6261, %v6257
    %v6430 = vpack.c.b16 %v6266, %v6262
    %v6431 = vpack.c.b16 %v6267, %v6263
    %v6432 = vpack.c.b16 %v6268, %v6264
    %v6433 = vpack.c.b16 %v6269, %v6265
    %v6434 = vpack.c.b16 %v6274, %v6270
    %v6435 = vpack.c.b16 %v6275, %v6271
    %v6436 = vpack.c.b16 %v6276, %v6272
    %v6437 = vpack.c.b16 %v6277, %v6273
    %v6438 = vpack.c.b16 %v6282, %v6278
    %v6439 = vpack.c.b16 %v6283, %v6279
    %v6440 = vpack.c.b16 %v6284, %v6280
    %v6441 = vpack.c.b16 %v6285, %v6281
    %v6442 = vpack.c.b16 %v6290, %v6286
    %v6443 = vpack.c.b16 %v6291, %v6287
    %v6444 = vpack.c.b16 %v6292, %v6288
    %v6445 = vpack.c.b16 %v6293, %v6289
    %v6446 = vpack.c.b16 %v6298, %v6294
    %v6447 = vpack.c.b16 %v6299, %v6295
    %v6448 = vpack.c.b16 %v6300, %v6296
    %v6449 = vpack.c.b16 %v6301, %v6297
    %v6450 = vpack.c.b16 %v6306, %v6302
    %v6451 = vpack.c.b16 %v6307, %v6303
    %v6452 = vpack.c.b16 %v6308, %v6304
    %v6453 = vpack.c.b16 %v6309, %v6305
    %v6454 = vpack.c.b16 %v6314, %v6310
    %v6455 = vpack.c.b16 %v6315, %v6311
    %v6456 = vpack.c.b16 %v6316, %v6312
    %v6457 = vpack.c.b16 %v6317, %v6313
    %v6458 = vpack.c.b16 %v6322, %v6318
    %v6459 = vpack.c.b16 %v6323, %v6319
    %v6460 = vpack.c.b16 %v6324, %v6320
    %v6461 = vpack.c.b16 %v6325, %v6321
    %v6462 = vpack.c.b16 %v6330, %v6326
    %v6463 = vpack.c.b16 %v6331, %v6327
    %v6464 = vpack.c.b16 %v6332, %v6328
    %v6465 = vpack.c.b16 %v6333, %v6329
    %v6466 = vpack.c.b16 %v6338, %v6334
    %v6467 = vpack.c.b16 %v6339, %v6335
    %v6468 = vpack.c.b16 %v6340, %v6336
    %v6469 = vpack.c.b16 %v6341, %v6337
    %6598 = vmatprep.subr.bf16.mxu0 %v6343
    %6599 = vmatpush1.bf16.msra.mxu0 %v6342
    %6600 = vmatprep.subr.bf16.mxu0 %v6347
    %6601 = vmatpush1.bf16.msra.mxu0 %v6346
    %6602 = vmatprep.subr.bf16.mxu0 %v6351
    %6603 = vmatpush1.bf16.msra.mxu0 %v6350
    %6604 = vmatprep.subr.bf16.mxu0 %v6355
    %6605 = vmatpush1.bf16.msra.mxu0 %v6354
    %6606 = vmatprep.subr.bf16.mxu0 %v6359
    %6607 = vmatpush1.bf16.msra.mxu0 %v6358
    %6608 = vmatprep.subr.bf16.mxu0 %v6363
    %6609 = vmatpush1.bf16.msra.mxu0 %v6362
    %6610 = vmatprep.subr.bf16.mxu0 %v6367
    %6611 = vmatpush1.bf16.msra.mxu0 %v6366
    %6612 = vmatprep.subr.bf16.mxu0 %v6371
    %6613 = vmatpush1.bf16.msra.mxu0 %v6370
    %6614 = vmatprep.subr.bf16.mxu0 %v6375
    %6615 = vmatpush1.bf16.msra.mxu0 %v6374
    %6616 = vmatprep.subr.bf16.mxu0 %v6379
    %6617 = vmatpush1.bf16.msra.mxu0 %v6378
    %6618 = vmatprep.subr.bf16.mxu0 %v6383
    %6619 = vmatpush1.bf16.msra.mxu0 %v6382
    %6620 = vmatprep.subr.bf16.mxu0 %v6387
    %6621 = vmatpush1.bf16.msra.mxu0 %v6386
    %6622 = vmatprep.subr.bf16.mxu0 %v6391
    %6623 = vmatpush1.bf16.msra.mxu0 %v6390
    %6624 = vmatprep.subr.bf16.mxu0 %v6395
    %6625 = vmatpush1.bf16.msra.mxu0 %v6394
    %6626 = vmatprep.subr.bf16.mxu0 %v6399
    %6627 = vmatpush1.bf16.msra.mxu0 %v6398
    %6628 = vmatprep.subr.bf16.mxu0 %v6403
    %6629 = vmatpush1.bf16.msra.mxu0 %v6402
    %6630 = vmatprep.mubr.bf16.mxu0 %v4579
    %6631 = vmatmul.mubr.bf16.gmra.mrb[0].mxu0 %v4578
    %v6632 = vpop.f32.mrb[0].mxu0
    %v6633 = vadd.f32 %v5654, %v6632
    %v6634 = vpop.f32.mrb[0].mxu0
    %v6635 = vadd.f32 %v5656, %v6634
    %v6636 = vpop.f32.mrb[0].mxu0
    %v6637 = vadd.f32 %v5658, %v6636
    %v6638 = vpop.f32.mrb[0].mxu0
    %v6639 = vadd.f32 %v5660, %v6638
    %6640 = vmatprep.mubr.bf16.mxu0 %v4583
    %6641 = vmatmul.mubr.bf16.gmra.mrb[0].mxu0 %v4582
    %v6642 = vpop.f32.mrb[0].mxu0
    %v6643 = vadd.f32 %v5664, %v6642
    %v6644 = vpop.f32.mrb[0].mxu0
    %v6645 = vadd.f32 %v5666, %v6644
    %v6646 = vpop.f32.mrb[0].mxu0
    %v6647 = vadd.f32 %v5668, %v6646
    %v6648 = vpop.f32.mrb[0].mxu0
    %v6649 = vadd.f32 %v5670, %v6648
    %6650 = vmatprep.mubr.bf16.mxu0 %v4587
    %6651 = vmatmul.mubr.bf16.gmra.mrb[0].mxu0 %v4586
    %v6652 = vpop.f32.mrb[0].mxu0
    %v6653 = vadd.f32 %v5674, %v6652
    %v6654 = vpop.f32.mrb[0].mxu0
    %v6655 = vadd.f32 %v5676, %v6654
    %v6656 = vpop.f32.mrb[0].mxu0
    %v6657 = vadd.f32 %v5678, %v6656
    %v6658 = vpop.f32.mrb[0].mxu0
    %v6659 = vadd.f32 %v5680, %v6658
    %6660 = vmatprep.mubr.bf16.mxu0 %v4591
    %6661 = vmatmul.mubr.bf16.gmra.mrb[0].mxu0 %v4590
    %v6662 = vpop.f32.mrb[0].mxu0
    %v6663 = vadd.f32 %v5684, %v6662
    %v6664 = vpop.f32.mrb[0].mxu0
    %v6665 = vadd.f32 %v5686, %v6664
    %v6666 = vpop.f32.mrb[0].mxu0
    %v6667 = vadd.f32 %v5688, %v6666
    %v6668 = vpop.f32.mrb[0].mxu0
    %v6669 = vadd.f32 %v5690, %v6668
    %6670 = vmatprep.mubr.bf16.mxu0 %v4595
    %6671 = vmatmul.mubr.bf16.gmra.mrb[0].mxu0 %v4594
    %v6672 = vpop.f32.mrb[0].mxu0
    %v6673 = vadd.f32 %v5694, %v6672
    %v6674 = vpop.f32.mrb[0].mxu0
    %v6675 = vadd.f32 %v5696, %v6674
    %v6676 = vpop.f32.mrb[0].mxu0
    %v6677 = vadd.f32 %v5698, %v6676
    %v6678 = vpop.f32.mrb[0].mxu0
    %v6679 = vadd.f32 %v5700, %v6678
    %6680 = vmatprep.mubr.bf16.mxu0 %v4599
    %6681 = vmatmul.mubr.bf16.gmra.mrb[0].mxu0 %v4598
    %v6682 = vpop.f32.mrb[0].mxu0
    %v6683 = vadd.f32 %v5704, %v6682
    %v6684 = vpop.f32.mrb[0].mxu0
    %v6685 = vadd.f32 %v5706, %v6684
    %v6686 = vpop.f32.mrb[0].mxu0
    %v6687 = vadd.f32 %v5708, %v6686
    %v6688 = vpop.f32.mrb[0].mxu0
    %v6689 = vadd.f32 %v5710, %v6688
    %6690 = vmatprep.mubr.bf16.mxu0 %v4603
    %6691 = vmatmul.mubr.bf16.gmra.mrb[0].mxu0 %v4602
    %v6692 = vpop.f32.mrb[0].mxu0
    %v6693 = vadd.f32 %v5714, %v6692
    %v6694 = vpop.f32.mrb[0].mxu0
    %v6695 = vadd.f32 %v5716, %v6694
    %v6696 = vpop.f32.mrb[0].mxu0
    %v6697 = vadd.f32 %v5718, %v6696
    %v6698 = vpop.f32.mrb[0].mxu0
    %v6699 = vadd.f32 %v5720, %v6698
    %6700 = vmatprep.mubr.bf16.mxu0 %v4607
    %6701 = vmatmul.mubr.bf16.gmra.mrb[0].mxu0 %v4606
    %v6702 = vpop.f32.mrb[0].mxu0
    %v6703 = vadd.f32 %v5724, %v6702
    %v6704 = vpop.f32.mrb[0].mxu0
    %v6705 = vadd.f32 %v5726, %v6704
    %v6706 = vpop.f32.mrb[0].mxu0
    %v6707 = vadd.f32 %v5728, %v6706
    %v6708 = vpop.f32.mrb[0].mxu0
    %v6709 = vadd.f32 %v5730, %v6708
    %6710 = vdwg.mxu0
    %6711 = vmatprep.subr.bf16.mxu0 %v6407
    %6712 = vmatpush1.bf16.msra.mxu0 %v6406
    %6713 = vmatprep.subr.bf16.mxu0 %v6411
    %6714 = vmatpush1.bf16.msra.mxu0 %v6410
    %6715 = vmatprep.subr.bf16.mxu0 %v6415
    %6716 = vmatpush1.bf16.msra.mxu0 %v6414
    %6717 = vmatprep.subr.bf16.mxu0 %v6419
    %6718 = vmatpush1.bf16.msra.mxu0 %v6418
    %6719 = vmatprep.subr.bf16.mxu0 %v6423
    %6720 = vmatpush1.bf16.msra.mxu0 %v6422
    %6721 = vmatprep.subr.bf16.mxu0 %v6427
    %6722 = vmatpush1.bf16.msra.mxu0 %v6426
    %6723 = vmatprep.subr.bf16.mxu0 %v6431
    %6724 = vmatpush1.bf16.msra.mxu0 %v6430
    %6725 = vmatprep.subr.bf16.mxu0 %v6435
    %6726 = vmatpush1.bf16.msra.mxu0 %v6434
    %6727 = vmatprep.subr.bf16.mxu0 %v6439
    %6728 = vmatpush1.bf16.msra.mxu0 %v6438
    %6729 = vmatprep.subr.bf16.mxu0 %v6443
    %6730 = vmatpush1.bf16.msra.mxu0 %v6442
    %6731 = vmatprep.subr.bf16.mxu0 %v6447
    %6732 = vmatpush1.bf16.msra.mxu0 %v6446
    %6733 = vmatprep.subr.bf16.mxu0 %v6451
    %6734 = vmatpush1.bf16.msra.mxu0 %v6450
    %6735 = vmatprep.subr.bf16.mxu0 %v6455
    %6736 = vmatpush1.bf16.msra.mxu0 %v6454
    %6737 = vmatprep.subr.bf16.mxu0 %v6459
    %6738 = vmatpush1.bf16.msra.mxu0 %v6458
    %6739 = vmatprep.subr.bf16.mxu0 %v6463
    %6740 = vmatpush1.bf16.msra.mxu0 %v6462
    %6741 = vmatprep.subr.bf16.mxu0 %v6467
    %6742 = vmatpush1.bf16.msra.mxu0 %v6466
    %6743 = vmatprep.mubr.bf16.mxu0 %v4581
    %6744 = vmatmul.mubr.bf16.gmra.mrb[0].mxu0 %v4580
    %v6745 = vpop.f32.mrb[0].mxu0
    %v6746 = vadd.f32 %v6633, %v6745
    %v6747 = vpop.f32.mrb[0].mxu0
    %v6748 = vadd.f32 %v6635, %v6747
    %v6749 = vpop.f32.mrb[0].mxu0
    %v6750 = vadd.f32 %v6637, %v6749
    %v6751 = vpop.f32.mrb[0].mxu0
    %v6752 = vadd.f32 %v6639, %v6751
    %6753 = vmatprep.mubr.bf16.mxu0 %v4585
    %6754 = vmatmul.mubr.bf16.gmra.mrb[0].mxu0 %v4584
    %v6755 = vpop.f32.mrb[0].mxu0
    %v6756 = vadd.f32 %v6643, %v6755
    %v6757 = vpop.f32.mrb[0].mxu0
    %v6758 = vadd.f32 %v6645, %v6757
    %v6759 = vpop.f32.mrb[0].mxu0
    %v6760 = vadd.f32 %v6647, %v6759
    %v6761 = vpop.f32.mrb[0].mxu0
    %v6762 = vadd.f32 %v6649, %v6761
    %6763 = vmatprep.mubr.bf16.mxu0 %v4589
    %6764 = vmatmul.mubr.bf16.gmra.mrb[0].mxu0 %v4588
    %v6765 = vpop.f32.mrb[0].mxu0
    %v6766 = vadd.f32 %v6653, %v6765
    %v6767 = vpop.f32.mrb[0].mxu0
    %v6768 = vadd.f32 %v6655, %v6767
    %v6769 = vpop.f32.mrb[0].mxu0
    %v6770 = vadd.f32 %v6657, %v6769
    %v6771 = vpop.f32.mrb[0].mxu0
    %v6772 = vadd.f32 %v6659, %v6771
    %6773 = vmatprep.mubr.bf16.mxu0 %v4593
    %6774 = vmatmul.mubr.bf16.gmra.mrb[0].mxu0 %v4592
    %v6775 = vpop.f32.mrb[0].mxu0
    %v6776 = vadd.f32 %v6663, %v6775
    %v6777 = vpop.f32.mrb[0].mxu0
    %v6778 = vadd.f32 %v6665, %v6777
    %v6779 = vpop.f32.mrb[0].mxu0
    %v6780 = vadd.f32 %v6667, %v6779
    %v6781 = vpop.f32.mrb[0].mxu0
    %v6782 = vadd.f32 %v6669, %v6781
    %6783 = vmatprep.mubr.bf16.mxu0 %v4597
    %6784 = vmatmul.mubr.bf16.gmra.mrb[0].mxu0 %v4596
    %v6785 = vpop.f32.mrb[0].mxu0
    %v6786 = vadd.f32 %v6673, %v6785
    %v6787 = vpop.f32.mrb[0].mxu0
    %v6788 = vadd.f32 %v6675, %v6787
    %v6789 = vpop.f32.mrb[0].mxu0
    %v6790 = vadd.f32 %v6677, %v6789
    %v6791 = vpop.f32.mrb[0].mxu0
    %v6792 = vadd.f32 %v6679, %v6791
    %6793 = vmatprep.mubr.bf16.mxu0 %v4601
    %6794 = vmatmul.mubr.bf16.gmra.mrb[0].mxu0 %v4600
    %v6795 = vpop.f32.mrb[0].mxu0
    %v6796 = vadd.f32 %v6683, %v6795
    %v6797 = vpop.f32.mrb[0].mxu0
    %v6798 = vadd.f32 %v6685, %v6797
    %v6799 = vpop.f32.mrb[0].mxu0
    %v6800 = vadd.f32 %v6687, %v6799
    %v6801 = vpop.f32.mrb[0].mxu0
    %v6802 = vadd.f32 %v6689, %v6801
    %6803 = vmatprep.mubr.bf16.mxu0 %v4605
    %6804 = vmatmul.mubr.bf16.gmra.mrb[0].mxu0 %v4604
    %v6805 = vpop.f32.mrb[0].mxu0
    %v6806 = vadd.f32 %v6693, %v6805
    %v6807 = vpop.f32.mrb[0].mxu0
    %v6808 = vadd.f32 %v6695, %v6807
    %v6809 = vpop.f32.mrb[0].mxu0
    %v6810 = vadd.f32 %v6697, %v6809
    %v6811 = vpop.f32.mrb[0].mxu0
    %v6812 = vadd.f32 %v6699, %v6811
    %6813 = vmatprep.mubr.bf16.mxu0 %v4609
    %6814 = vmatmul.mubr.bf16.gmra.mrb[0].mxu0 %v4608
    %v6815 = vpop.f32.mrb[0].mxu0
    %v6816 = vadd.f32 %v6703, %v6815
    %v6817 = vpop.f32.mrb[0].mxu0
    %v6818 = vadd.f32 %v6705, %v6817
    %v6819 = vpop.f32.mrb[0].mxu0
    %v6820 = vadd.f32 %v6707, %v6819
    %v6821 = vpop.f32.mrb[0].mxu0
    %v6822 = vadd.f32 %v6709, %v6821
    %6823 = vdwg.mxu0
    %6824 = vmatprep.subr.bf16.mxu0 %v6345
    %6825 = vmatpush1.bf16.msra.mxu0 %v6344
    %6826 = vmatprep.subr.bf16.mxu0 %v6349
    %6827 = vmatpush1.bf16.msra.mxu0 %v6348
    %6828 = vmatprep.subr.bf16.mxu0 %v6353
    %6829 = vmatpush1.bf16.msra.mxu0 %v6352
    %6830 = vmatprep.subr.bf16.mxu0 %v6357
    %6831 = vmatpush1.bf16.msra.mxu0 %v6356
    %6832 = vmatprep.subr.bf16.mxu0 %v6361
    %6833 = vmatpush1.bf16.msra.mxu0 %v6360
    %6834 = vmatprep.subr.bf16.mxu0 %v6365
    %6835 = vmatpush1.bf16.msra.mxu0 %v6364
    %6836 = vmatprep.subr.bf16.mxu0 %v6369
    %6837 = vmatpush1.bf16.msra.mxu0 %v6368
    %6838 = vmatprep.subr.bf16.mxu0 %v6373
    %6839 = vmatpush1.bf16.msra.mxu0 %v6372
    %6840 = vmatprep.subr.bf16.mxu0 %v6377
    %6841 = vmatpush1.bf16.msra.mxu0 %v6376
    %6842 = vmatprep.subr.bf16.mxu0 %v6381
    %6843 = vmatpush1.bf16.msra.mxu0 %v6380
    %6844 = vmatprep.subr.bf16.mxu0 %v6385
    %6845 = vmatpush1.bf16.msra.mxu0 %v6384
    %6846 = vmatprep.subr.bf16.mxu0 %v6389
    %6847 = vmatpush1.bf16.msra.mxu0 %v6388
    %6848 = vmatprep.subr.bf16.mxu0 %v6393
    %6849 = vmatpush1.bf16.msra.mxu0 %v6392
    %6850 = vmatprep.subr.bf16.mxu0 %v6397
    %6851 = vmatpush1.bf16.msra.mxu0 %v6396
    %6852 = vmatprep.subr.bf16.mxu0 %v6401
    %6853 = vmatpush1.bf16.msra.mxu0 %v6400
    %6854 = vmatprep.subr.bf16.mxu0 %v6405
    %6855 = vmatpush1.bf16.msra.mxu0 %v6404
    %6856 = vmatprep.mubr.bf16.mxu0 %v4579
    %6857 = vmatmul.mubr.bf16.gmra.mrb[0].mxu0 %v4578
    %v6858 = vpop.f32.mrb[0].mxu0
    %v6859 = vadd.f32 %v5880, %v6858
    %v6860 = vpop.f32.mrb[0].mxu0
    %v6861 = vadd.f32 %v5882, %v6860
    %v6862 = vpop.f32.mrb[0].mxu0
    %v6863 = vadd.f32 %v5884, %v6862
    %v6864 = vpop.f32.mrb[0].mxu0
    %v6865 = vadd.f32 %v5886, %v6864
    %6866 = vmatprep.mubr.bf16.mxu0 %v4583
    %6867 = vmatmul.mubr.bf16.gmra.mrb[0].mxu0 %v4582
    %v6868 = vpop.f32.mrb[0].mxu0
    %v6869 = vadd.f32 %v5890, %v6868
    %v6870 = vpop.f32.mrb[0].mxu0
    %v6871 = vadd.f32 %v5892, %v6870
    %v6872 = vpop.f32.mrb[0].mxu0
    %v6873 = vadd.f32 %v5894, %v6872
    %v6874 = vpop.f32.mrb[0].mxu0
    %v6875 = vadd.f32 %v5896, %v6874
    %6876 = vmatprep.mubr.bf16.mxu0 %v4587
    %6877 = vmatmul.mubr.bf16.gmra.mrb[0].mxu0 %v4586
    %v6878 = vpop.f32.mrb[0].mxu0
    %v6879 = vadd.f32 %v5900, %v6878
    %v6880 = vpop.f32.mrb[0].mxu0
    %v6881 = vadd.f32 %v5902, %v6880
    %v6882 = vpop.f32.mrb[0].mxu0
    %v6883 = vadd.f32 %v5904, %v6882
    %v6884 = vpop.f32.mrb[0].mxu0
    %v6885 = vadd.f32 %v5906, %v6884
    %6886 = vmatprep.mubr.bf16.mxu0 %v4591
    %6887 = vmatmul.mubr.bf16.gmra.mrb[0].mxu0 %v4590
    %v6888 = vpop.f32.mrb[0].mxu0
    %v6889 = vadd.f32 %v5910, %v6888
    %v6890 = vpop.f32.mrb[0].mxu0
    %v6891 = vadd.f32 %v5912, %v6890
    %v6892 = vpop.f32.mrb[0].mxu0
    %v6893 = vadd.f32 %v5914, %v6892
    %v6894 = vpop.f32.mrb[0].mxu0
    %v6895 = vadd.f32 %v5916, %v6894
    %6896 = vmatprep.mubr.bf16.mxu0 %v4595
    %6897 = vmatmul.mubr.bf16.gmra.mrb[0].mxu0 %v4594
    %v6898 = vpop.f32.mrb[0].mxu0
    %v6899 = vadd.f32 %v5920, %v6898
    %v6900 = vpop.f32.mrb[0].mxu0
    %v6901 = vadd.f32 %v5922, %v6900
    %v6902 = vpop.f32.mrb[0].mxu0
    %v6903 = vadd.f32 %v5924, %v6902
    %v6904 = vpop.f32.mrb[0].mxu0
    %v6905 = vadd.f32 %v5926, %v6904
    %6906 = vmatprep.mubr.bf16.mxu0 %v4599
    %6907 = vmatmul.mubr.bf16.gmra.mrb[0].mxu0 %v4598
    %v6908 = vpop.f32.mrb[0].mxu0
    %v6909 = vadd.f32 %v5930, %v6908
    %v6910 = vpop.f32.mrb[0].mxu0
    %v6911 = vadd.f32 %v5932, %v6910
    %v6912 = vpop.f32.mrb[0].mxu0
    %v6913 = vadd.f32 %v5934, %v6912
    %v6914 = vpop.f32.mrb[0].mxu0
    %v6915 = vadd.f32 %v5936, %v6914
    %6916 = vmatprep.mubr.bf16.mxu0 %v4603
    %6917 = vmatmul.mubr.bf16.gmra.mrb[0].mxu0 %v4602
    %v6918 = vpop.f32.mrb[0].mxu0
    %v6919 = vadd.f32 %v5940, %v6918
    %v6920 = vpop.f32.mrb[0].mxu0
    %v6921 = vadd.f32 %v5942, %v6920
    %v6922 = vpop.f32.mrb[0].mxu0
    %v6923 = vadd.f32 %v5944, %v6922
    %v6924 = vpop.f32.mrb[0].mxu0
    %v6925 = vadd.f32 %v5946, %v6924
    %6926 = vmatprep.mubr.bf16.mxu0 %v4607
    %6927 = vmatmul.mubr.bf16.gmra.mrb[0].mxu0 %v4606
    %v6928 = vpop.f32.mrb[0].mxu0
    %v6929 = vadd.f32 %v5950, %v6928
    %v6930 = vpop.f32.mrb[0].mxu0
    %v6931 = vadd.f32 %v5952, %v6930
    %v6932 = vpop.f32.mrb[0].mxu0
    %v6933 = vadd.f32 %v5954, %v6932
    %v6934 = vpop.f32.mrb[0].mxu0
    %v6935 = vadd.f32 %v5956, %v6934
    %6936 = vdwg.mxu0
    %6937 = vmatprep.subr.bf16.mxu0 %v6409
    %6938 = vmatpush1.bf16.msra.mxu0 %v6408
    %6939 = vmatprep.subr.bf16.mxu0 %v6413
    %6940 = vmatpush1.bf16.msra.mxu0 %v6412
    %6941 = vmatprep.subr.bf16.mxu0 %v6417
    %6942 = vmatpush1.bf16.msra.mxu0 %v6416
    %6943 = vmatprep.subr.bf16.mxu0 %v6421
    %6944 = vmatpush1.bf16.msra.mxu0 %v6420
    %6945 = vmatprep.subr.bf16.mxu0 %v6425
    %6946 = vmatpush1.bf16.msra.mxu0 %v6424
    %6947 = vmatprep.subr.bf16.mxu0 %v6429
    %6948 = vmatpush1.bf16.msra.mxu0 %v6428
    %6949 = vmatprep.subr.bf16.mxu0 %v6433
    %6950 = vmatpush1.bf16.msra.mxu0 %v6432
    %6951 = vmatprep.subr.bf16.mxu0 %v6437
    %6952 = vmatpush1.bf16.msra.mxu0 %v6436
    %6953 = vmatprep.subr.bf16.mxu0 %v6441
    %6954 = vmatpush1.bf16.msra.mxu0 %v6440
    %6955 = vmatprep.subr.bf16.mxu0 %v6445
    %6956 = vmatpush1.bf16.msra.mxu0 %v6444
    %6957 = vmatprep.subr.bf16.mxu0 %v6449
    %6958 = vmatpush1.bf16.msra.mxu0 %v6448
    %6959 = vmatprep.subr.bf16.mxu0 %v6453
    %6960 = vmatpush1.bf16.msra.mxu0 %v6452
    %6961 = vmatprep.subr.bf16.mxu0 %v6457
    %6962 = vmatpush1.bf16.msra.mxu0 %v6456
    %6963 = vmatprep.subr.bf16.mxu0 %v6461
    %6964 = vmatpush1.bf16.msra.mxu0 %v6460
    %6965 = vmatprep.subr.bf16.mxu0 %v6465
    %6966 = vmatpush1.bf16.msra.mxu0 %v6464
    %6967 = vmatprep.subr.bf16.mxu0 %v6469
    %6968 = vmatpush1.bf16.msra.mxu0 %v6468
    %6969 = vmatprep.mubr.bf16.mxu0 %v4581
    %6970 = vmatmul.mubr.bf16.gmra.mrb[0].mxu0 %v4580
    %v6971 = vpop.f32.mrb[0].mxu0
    %v6972 = vadd.f32 %v6859, %v6971
    %v6973 = vpop.f32.mrb[0].mxu0
    %v6974 = vadd.f32 %v6861, %v6973
    %v6975 = vpop.f32.mrb[0].mxu0
    %v6976 = vadd.f32 %v6863, %v6975
    %v6977 = vpop.f32.mrb[0].mxu0
    %v6978 = vadd.f32 %v6865, %v6977
    %6979 = vmatprep.mubr.bf16.mxu0 %v4585
    %6980 = vmatmul.mubr.bf16.gmra.mrb[0].mxu0 %v4584
    %v6981 = vpop.f32.mrb[0].mxu0
    %v6982 = vadd.f32 %v6869, %v6981
    %v6983 = vpop.f32.mrb[0].mxu0
    %v6984 = vadd.f32 %v6871, %v6983
    %v6985 = vpop.f32.mrb[0].mxu0
    %v6986 = vadd.f32 %v6873, %v6985
    %v6987 = vpop.f32.mrb[0].mxu0
    %v6988 = vadd.f32 %v6875, %v6987
    %6989 = vmatprep.mubr.bf16.mxu0 %v4589
    %6990 = vmatmul.mubr.bf16.gmra.mrb[0].mxu0 %v4588
    %v6991 = vpop.f32.mrb[0].mxu0
    %v6992 = vadd.f32 %v6879, %v6991
    %v6993 = vpop.f32.mrb[0].mxu0
    %v6994 = vadd.f32 %v6881, %v6993
    %v6995 = vpop.f32.mrb[0].mxu0
    %v6996 = vadd.f32 %v6883, %v6995
    %v6997 = vpop.f32.mrb[0].mxu0
    %v6998 = vadd.f32 %v6885, %v6997
    %6999 = vmatprep.mubr.bf16.mxu0 %v4593
    %7000 = vmatmul.mubr.bf16.gmra.mrb[0].mxu0 %v4592
    %v7001 = vpop.f32.mrb[0].mxu0
    %v7002 = vadd.f32 %v6889, %v7001
    %v7003 = vpop.f32.mrb[0].mxu0
    %v7004 = vadd.f32 %v6891, %v7003
    %v7005 = vpop.f32.mrb[0].mxu0
    %v7006 = vadd.f32 %v6893, %v7005
    %v7007 = vpop.f32.mrb[0].mxu0
    %v7008 = vadd.f32 %v6895, %v7007
    %7009 = vmatprep.mubr.bf16.mxu0 %v4597
    %7010 = vmatmul.mubr.bf16.gmra.mrb[0].mxu0 %v4596
    %v7011 = vpop.f32.mrb[0].mxu0
    %v7012 = vadd.f32 %v6899, %v7011
    %v7013 = vpop.f32.mrb[0].mxu0
    %v7014 = vadd.f32 %v6901, %v7013
    %v7015 = vpop.f32.mrb[0].mxu0
    %v7016 = vadd.f32 %v6903, %v7015
    %v7017 = vpop.f32.mrb[0].mxu0
    %v7018 = vadd.f32 %v6905, %v7017
    %7019 = vmatprep.mubr.bf16.mxu0 %v4601
    %7020 = vmatmul.mubr.bf16.gmra.mrb[0].mxu0 %v4600
    %v7021 = vpop.f32.mrb[0].mxu0
    %v7022 = vadd.f32 %v6909, %v7021
    %v7023 = vpop.f32.mrb[0].mxu0
    %v7024 = vadd.f32 %v6911, %v7023
    %v7025 = vpop.f32.mrb[0].mxu0
    %v7026 = vadd.f32 %v6913, %v7025
    %v7027 = vpop.f32.mrb[0].mxu0
    %v7028 = vadd.f32 %v6915, %v7027
    %7029 = vmatprep.mubr.bf16.mxu0 %v4605
    %7030 = vmatmul.mubr.bf16.gmra.mrb[0].mxu0 %v4604
    %v7031 = vpop.f32.mrb[0].mxu0
    %v7032 = vadd.f32 %v6919, %v7031
    %v7033 = vpop.f32.mrb[0].mxu0
    %v7034 = vadd.f32 %v6921, %v7033
    %v7035 = vpop.f32.mrb[0].mxu0
    %v7036 = vadd.f32 %v6923, %v7035
    %v7037 = vpop.f32.mrb[0].mxu0
    %v7038 = vadd.f32 %v6925, %v7037
    %7039 = vmatprep.mubr.bf16.mxu0 %v4609
    %7040 = vmatmul.mubr.bf16.gmra.mrb[0].mxu0 %v4608
    %v7041 = vpop.f32.mrb[0].mxu0
    %v7042 = vadd.f32 %v6929, %v7041
    %v7043 = vpop.f32.mrb[0].mxu0
    %v7044 = vadd.f32 %v6931, %v7043
    %v7045 = vpop.f32.mrb[0].mxu0
    %v7046 = vadd.f32 %v6933, %v7045
    %v7047 = vpop.f32.mrb[0].mxu0
    %v7048 = vadd.f32 %v6935, %v7047
    %7049 = vdwg.mxu0
    %v7050 = vld [vmem:[%s10] sm:$0xf]
    %v7052 = vlaneseq
    %v7053 = vshrl.u32 %v7052, 7
    %v7054 = vsub.s32 0, %v7053
    %v7055 = vrot.slane %v7050, %v7054
    %v7056 = vlaneseq
    %v7057 = vshrl.u32 %v7056, 7
    %v7058 = vsub.s32 1, %v7057
    %v7059 = vrot.slane %v7050, %v7058
    %v7060 = vlaneseq
    %v7061 = vshrl.u32 %v7060, 7
    %v7062 = vsub.s32 2, %v7061
    %v7063 = vrot.slane %v7050, %v7062
    %v7064 = vlaneseq
    %v7065 = vshrl.u32 %v7064, 7
    %v7066 = vsub.s32 3, %v7065
    %v7067 = vrot.slane %v7050, %v7066
    %v7072 = vadd.f32 %v6746, %v7055
    %v7073 = vadd.f32 %v6748, %v7059
    %v7074 = vadd.f32 %v6972, %v7063
    %v7075 = vadd.f32 %v6974, %v7067
    %v7076 = vadd.f32 %v6750, %v7055
    %v7077 = vadd.f32 %v6752, %v7059
    %v7078 = vadd.f32 %v6976, %v7063
    %v7079 = vadd.f32 %v6978, %v7067
    %v7080 = vadd.f32 %v6756, %v7055
    %v7081 = vadd.f32 %v6758, %v7059
    %v7082 = vadd.f32 %v6982, %v7063
    %v7083 = vadd.f32 %v6984, %v7067
    %v7084 = vadd.f32 %v6760, %v7055
    %v7085 = vadd.f32 %v6762, %v7059
    %v7086 = vadd.f32 %v6986, %v7063
    %v7087 = vadd.f32 %v6988, %v7067
    %v7088 = vadd.f32 %v6766, %v7055
    %v7089 = vadd.f32 %v6768, %v7059
    %v7090 = vadd.f32 %v6992, %v7063
    %v7091 = vadd.f32 %v6994, %v7067
    %v7092 = vadd.f32 %v6770, %v7055
    %v7093 = vadd.f32 %v6772, %v7059
    %v7094 = vadd.f32 %v6996, %v7063
    %v7095 = vadd.f32 %v6998, %v7067
    %v7096 = vadd.f32 %v6776, %v7055
    %v7097 = vadd.f32 %v6778, %v7059
    %v7098 = vadd.f32 %v7002, %v7063
    %v7099 = vadd.f32 %v7004, %v7067
    %v7100 = vadd.f32 %v6780, %v7055
    %v7101 = vadd.f32 %v6782, %v7059
    %v7102 = vadd.f32 %v7006, %v7063
    %v7103 = vadd.f32 %v7008, %v7067
    %v7104 = vadd.f32 %v6786, %v7055
    %v7105 = vadd.f32 %v6788, %v7059
    %v7106 = vadd.f32 %v7012, %v7063
    %v7107 = vadd.f32 %v7014, %v7067
    %v7108 = vadd.f32 %v6790, %v7055
    %v7109 = vadd.f32 %v6792, %v7059
    %v7110 = vadd.f32 %v7016, %v7063
    %v7111 = vadd.f32 %v7018, %v7067
    %v7112 = vadd.f32 %v6796, %v7055
    %v7113 = vadd.f32 %v6798, %v7059
    %v7114 = vadd.f32 %v7022, %v7063
    %v7115 = vadd.f32 %v7024, %v7067
    %v7116 = vadd.f32 %v6800, %v7055
    %v7117 = vadd.f32 %v6802, %v7059
    %v7118 = vadd.f32 %v7026, %v7063
    %v7119 = vadd.f32 %v7028, %v7067
    %v7120 = vadd.f32 %v6806, %v7055
    %v7121 = vadd.f32 %v6808, %v7059
    %v7122 = vadd.f32 %v7032, %v7063
    %v7123 = vadd.f32 %v7034, %v7067
    %v7124 = vadd.f32 %v6810, %v7055
    %v7125 = vadd.f32 %v6812, %v7059
    %v7126 = vadd.f32 %v7036, %v7063
    %v7127 = vadd.f32 %v7038, %v7067
    %v7128 = vadd.f32 %v6816, %v7055
    %v7129 = vadd.f32 %v6818, %v7059
    %v7130 = vadd.f32 %v7042, %v7063
    %v7131 = vadd.f32 %v7044, %v7067
    %v7132 = vadd.f32 %v6820, %v7055
    %v7133 = vadd.f32 %v6822, %v7059
    %v7134 = vadd.f32 %v7046, %v7063
    %v7135 = vadd.f32 %v7048, %v7067
    %v7136 = vadd.f32 %v7072, %v4256
    %v7137 = vadd.f32 %v7073, %v4257
    %v7138 = vadd.f32 %v7074, %v4258
    %v7139 = vadd.f32 %v7075, %v4259
    %v7140 = vadd.f32 %v7076, %v4260
    %v7141 = vadd.f32 %v7077, %v4261
    %v7142 = vadd.f32 %v7078, %v4262
    %v7143 = vadd.f32 %v7079, %v4263
    %v7144 = vadd.f32 %v7080, %v4264
    %v7145 = vadd.f32 %v7081, %v4265
    %v7146 = vadd.f32 %v7082, %v4266
    %v7147 = vadd.f32 %v7083, %v4267
    %v7148 = vadd.f32 %v7084, %v4268
    %v7149 = vadd.f32 %v7085, %v4269
    %v7150 = vadd.f32 %v7086, %v4270
    %v7151 = vadd.f32 %v7087, %v4271
    %v7152 = vadd.f32 %v7088, %v4272
    %v7153 = vadd.f32 %v7089, %v4273
    %v7154 = vadd.f32 %v7090, %v4274
    %v7155 = vadd.f32 %v7091, %v4275
    %v7156 = vadd.f32 %v7092, %v4276
    %v7157 = vadd.f32 %v7093, %v4277
    %v7158 = vadd.f32 %v7094, %v4278
    %v7159 = vadd.f32 %v7095, %v4279
    %v7160 = vadd.f32 %v7096, %v4280
    %v7161 = vadd.f32 %v7097, %v4281
    %v7162 = vadd.f32 %v7098, %v4282
    %v7163 = vadd.f32 %v7099, %v4283
    %v7164 = vadd.f32 %v7100, %v4284
    %v7165 = vadd.f32 %v7101, %v4285
    %v7166 = vadd.f32 %v7102, %v4286
    %v7167 = vadd.f32 %v7103, %v4287
    %v7168 = vadd.f32 %v7104, %v4288
    %v7169 = vadd.f32 %v7105, %v4289
    %v7170 = vadd.f32 %v7106, %v4290
    %v7171 = vadd.f32 %v7107, %v4291
    %v7172 = vadd.f32 %v7108, %v4292
    %v7173 = vadd.f32 %v7109, %v4293
    %v7174 = vadd.f32 %v7110, %v4294
    %v7175 = vadd.f32 %v7111, %v4295
    %v7176 = vadd.f32 %v7112, %v4296
    %v7177 = vadd.f32 %v7113, %v4297
    %v7178 = vadd.f32 %v7114, %v4298
    %v7179 = vadd.f32 %v7115, %v4299
    %v7180 = vadd.f32 %v7116, %v4300
    %v7181 = vadd.f32 %v7117, %v4301
    %v7182 = vadd.f32 %v7118, %v4302
    %v7183 = vadd.f32 %v7119, %v4303
    %v7184 = vadd.f32 %v7120, %v4304
    %v7185 = vadd.f32 %v7121, %v4305
    %v7186 = vadd.f32 %v7122, %v4306
    %v7187 = vadd.f32 %v7123, %v4307
    %v7188 = vadd.f32 %v7124, %v4308
    %v7189 = vadd.f32 %v7125, %v4309
    %v7190 = vadd.f32 %v7126, %v4310
    %v7191 = vadd.f32 %v7127, %v4311
    %v7192 = vadd.f32 %v7128, %v4312
    %v7193 = vadd.f32 %v7129, %v4313
    %v7194 = vadd.f32 %v7130, %v4314
    %v7195 = vadd.f32 %v7131, %v4315
    %v7196 = vadd.f32 %v7132, %v4316
    %v7197 = vadd.f32 %v7133, %v4317
    %v7198 = vadd.f32 %v7134, %v4318
    %v7199 = vadd.f32 %v7135, %v4319
    %v7200 = vpack.c.bf16 %v7140, %v7136
    %v7201 = vpack.c.bf16 %v7141, %v7137
    %v7202 = vpack.c.bf16 %v7142, %v7138
    %v7203 = vpack.c.bf16 %v7143, %v7139
    %v7204 = vpack.c.bf16 %v7148, %v7144
    %v7205 = vpack.c.bf16 %v7149, %v7145
    %v7206 = vpack.c.bf16 %v7150, %v7146
    %v7207 = vpack.c.bf16 %v7151, %v7147
    %v7208 = vpack.c.bf16 %v7156, %v7152
    %v7209 = vpack.c.bf16 %v7157, %v7153
    %v7210 = vpack.c.bf16 %v7158, %v7154
    %v7211 = vpack.c.bf16 %v7159, %v7155
    %v7212 = vpack.c.bf16 %v7164, %v7160
    %v7213 = vpack.c.bf16 %v7165, %v7161
    %v7214 = vpack.c.bf16 %v7166, %v7162
    %v7215 = vpack.c.bf16 %v7167, %v7163
    %v7216 = vpack.c.bf16 %v7172, %v7168
    %v7217 = vpack.c.bf16 %v7173, %v7169
    %v7218 = vpack.c.bf16 %v7174, %v7170
    %v7219 = vpack.c.bf16 %v7175, %v7171
    %v7220 = vpack.c.bf16 %v7180, %v7176
    %v7221 = vpack.c.bf16 %v7181, %v7177
    %v7222 = vpack.c.bf16 %v7182, %v7178
    %v7223 = vpack.c.bf16 %v7183, %v7179
    %v7224 = vpack.c.bf16 %v7188, %v7184
    %v7225 = vpack.c.bf16 %v7189, %v7185
    %v7226 = vpack.c.bf16 %v7190, %v7186
    %v7227 = vpack.c.bf16 %v7191, %v7187
    %v7228 = vpack.c.bf16 %v7196, %v7192
    %v7229 = vpack.c.bf16 %v7197, %v7193
    %v7230 = vpack.c.bf16 %v7198, %v7194
    %v7231 = vpack.c.bf16 %v7199, %v7195
    %7232 = vmatprep.subr.bf16.mxu0 %v7201
    %7233 = vmatpush1.bf16.msra.mxu0 %v7200
    %7234 = vmatprep.subr.bf16.mxu0 %v7205
    %7235 = vmatpush1.bf16.msra.mxu0 %v7204
    %7236 = vmatprep.subr.bf16.mxu0 %v7209
    %7237 = vmatpush1.bf16.msra.mxu0 %v7208
    %7238 = vmatprep.subr.bf16.mxu0 %v7213
    %7239 = vmatpush1.bf16.msra.mxu0 %v7212
    %7240 = vmatprep.subr.bf16.mxu0 %v7217
    %7241 = vmatpush1.bf16.msra.mxu0 %v7216
    %7242 = vmatprep.subr.bf16.mxu0 %v7221
    %7243 = vmatpush1.bf16.msra.mxu0 %v7220
    %7244 = vmatprep.subr.bf16.mxu0 %v7225
    %7245 = vmatpush1.bf16.msra.mxu0 %v7224
    %7246 = vmatprep.subr.bf16.mxu0 %v7229
    %7247 = vmatpush1.bf16.msra.mxu0 %v7228
    %7248 = vmatprep.subr.bf16.mxu0 0
    %7249 = vmatpush1.bf16.msra.mxu0 0
    %7250 = vmatprep.subr.bf16.mxu0 0
    %7251 = vmatpush1.bf16.msra.mxu0 0
    %7252 = vmatprep.subr.bf16.mxu0 0
    %7253 = vmatpush1.bf16.msra.mxu0 0
    %7254 = vmatprep.subr.bf16.mxu0 0
    %7255 = vmatpush1.bf16.msra.mxu0 0
    %7256 = vmatprep.subr.bf16.mxu0 0
    %7257 = vmatpush1.bf16.msra.mxu0 0
    %7258 = vmatprep.subr.bf16.mxu0 0
    %7259 = vmatpush1.bf16.msra.mxu0 0
    %7260 = vmatprep.subr.bf16.mxu0 0
    %7261 = vmatpush1.bf16.msra.mxu0 0
    %7262 = vmatprep.subr.bf16.mxu0 0
    %7263 = vmatpush1.bf16.msra.mxu0 0
    %7264 = vmatprep.mubr.bf16.mxu0 0
    %7265 = vmatmul.mubr.bf16.gmra.mrb[0].mxu0 %v221
    %v7266 = vpop.f32.mrb[0].mxu0
    %v7267 = vadd.f32 0.0, %v7266
    %v7268 = vpop.f32.mrb[0].mxu0
    %v7269 = vadd.f32 0.0, %v7268
    %v7270 = vpop.f32.mrb[0].mxu0
    %v7271 = vadd.f32 0.0, %v7270
    %v7272 = vpop.f32.mrb[0].mxu0
    %v7273 = vadd.f32 0.0, %v7272
    %7274 = vmatprep.mubr.bf16.mxu0 0
    %7275 = vmatmul.mubr.bf16.gmra.mrb[0].mxu0 %v222
    %v7276 = vpop.f32.mrb[0].mxu0
    %v7277 = vadd.f32 0.0, %v7276
    %v7278 = vpop.f32.mrb[0].mxu0
    %v7279 = vadd.f32 0.0, %v7278
    %v7280 = vpop.f32.mrb[0].mxu0
    %v7281 = vadd.f32 0.0, %v7280
    %v7282 = vpop.f32.mrb[0].mxu0
    %v7283 = vadd.f32 0.0, %v7282
    %7284 = vmatprep.mubr.bf16.mxu0 0
    %7285 = vmatmul.mubr.bf16.gmra.mrb[0].mxu0 %v223
    %v7286 = vpop.f32.mrb[0].mxu0
    %v7287 = vadd.f32 0.0, %v7286
    %v7288 = vpop.f32.mrb[0].mxu0
    %v7289 = vadd.f32 0.0, %v7288
    %v7290 = vpop.f32.mrb[0].mxu0
    %v7291 = vadd.f32 0.0, %v7290
    %v7292 = vpop.f32.mrb[0].mxu0
    %v7293 = vadd.f32 0.0, %v7292
    %7294 = vmatprep.mubr.bf16.mxu0 0
    %7295 = vmatmul.mubr.bf16.gmra.mrb[0].mxu0 %v224
    %v7296 = vpop.f32.mrb[0].mxu0
    %v7297 = vadd.f32 0.0, %v7296
    %v7298 = vpop.f32.mrb[0].mxu0
    %v7299 = vadd.f32 0.0, %v7298
    %v7300 = vpop.f32.mrb[0].mxu0
    %v7301 = vadd.f32 0.0, %v7300
    %v7302 = vpop.f32.mrb[0].mxu0
    %v7303 = vadd.f32 0.0, %v7302
    %7304 = vmatprep.mubr.bf16.mxu0 0
    %7305 = vmatmul.mubr.bf16.gmra.mrb[0].mxu0 %v225
    %v7306 = vpop.f32.mrb[0].mxu0
    %v7307 = vadd.f32 0.0, %v7306
    %v7308 = vpop.f32.mrb[0].mxu0
    %v7309 = vadd.f32 0.0, %v7308
    %v7310 = vpop.f32.mrb[0].mxu0
    %v7311 = vadd.f32 0.0, %v7310
    %v7312 = vpop.f32.mrb[0].mxu0
    %v7313 = vadd.f32 0.0, %v7312
    %7314 = vmatprep.mubr.bf16.mxu0 0
    %7315 = vmatmul.mubr.bf16.gmra.mrb[0].mxu0 %v226
    %v7316 = vpop.f32.mrb[0].mxu0
    %v7317 = vadd.f32 0.0, %v7316
    %v7318 = vpop.f32.mrb[0].mxu0
    %v7319 = vadd.f32 0.0, %v7318
    %v7320 = vpop.f32.mrb[0].mxu0
    %v7321 = vadd.f32 0.0, %v7320
    %v7322 = vpop.f32.mrb[0].mxu0
    %v7323 = vadd.f32 0.0, %v7322
    %7324 = vmatprep.mubr.bf16.mxu0 0
    %7325 = vmatmul.mubr.bf16.gmra.mrb[0].mxu0 %v227
    %v7326 = vpop.f32.mrb[0].mxu0
    %v7327 = vadd.f32 0.0, %v7326
    %v7328 = vpop.f32.mrb[0].mxu0
    %v7329 = vadd.f32 0.0, %v7328
    %v7330 = vpop.f32.mrb[0].mxu0
    %v7331 = vadd.f32 0.0, %v7330
    %v7332 = vpop.f32.mrb[0].mxu0
    %v7333 = vadd.f32 0.0, %v7332
    %7334 = vmatprep.mubr.bf16.mxu0 0
    %7335 = vmatmul.mubr.bf16.gmra.mrb[0].mxu0 %v228
    %v7336 = vpop.f32.mrb[0].mxu0
    %v7337 = vadd.f32 0.0, %v7336
    %v7338 = vpop.f32.mrb[0].mxu0
    %v7339 = vadd.f32 0.0, %v7338
    %v7340 = vpop.f32.mrb[0].mxu0
    %v7341 = vadd.f32 0.0, %v7340
    %v7342 = vpop.f32.mrb[0].mxu0
    %v7343 = vadd.f32 0.0, %v7342
    %7344 = vdwg.mxu0
    %7345 = vmatprep.subr.bf16.mxu0 %v7203
    %7346 = vmatpush1.bf16.msra.mxu0 %v7202
    %7347 = vmatprep.subr.bf16.mxu0 %v7207
    %7348 = vmatpush1.bf16.msra.mxu0 %v7206
    %7349 = vmatprep.subr.bf16.mxu0 %v7211
    %7350 = vmatpush1.bf16.msra.mxu0 %v7210
    %7351 = vmatprep.subr.bf16.mxu0 %v7215
    %7352 = vmatpush1.bf16.msra.mxu0 %v7214
    %7353 = vmatprep.subr.bf16.mxu0 %v7219
    %7354 = vmatpush1.bf16.msra.mxu0 %v7218
    %7355 = vmatprep.subr.bf16.mxu0 %v7223
    %7356 = vmatpush1.bf16.msra.mxu0 %v7222
    %7357 = vmatprep.subr.bf16.mxu0 %v7227
    %7358 = vmatpush1.bf16.msra.mxu0 %v7226
    %7359 = vmatprep.subr.bf16.mxu0 %v7231
    %7360 = vmatpush1.bf16.msra.mxu0 %v7230
    %7361 = vmatprep.subr.bf16.mxu0 0
    %7362 = vmatpush1.bf16.msra.mxu0 0
    %7363 = vmatprep.subr.bf16.mxu0 0
    %7364 = vmatpush1.bf16.msra.mxu0 0
    %7365 = vmatprep.subr.bf16.mxu0 0
    %7366 = vmatpush1.bf16.msra.mxu0 0
    %7367 = vmatprep.subr.bf16.mxu0 0
    %7368 = vmatpush1.bf16.msra.mxu0 0
    %7369 = vmatprep.subr.bf16.mxu0 0
    %7370 = vmatpush1.bf16.msra.mxu0 0
    %7371 = vmatprep.subr.bf16.mxu0 0
    %7372 = vmatpush1.bf16.msra.mxu0 0
    %7373 = vmatprep.subr.bf16.mxu0 0
    %7374 = vmatpush1.bf16.msra.mxu0 0
    %7375 = vmatprep.subr.bf16.mxu0 0
    %7376 = vmatpush1.bf16.msra.mxu0 0
    %7377 = vmatprep.mubr.bf16.mxu0 0
    %7378 = vmatmul.mubr.bf16.gmra.mrb[0].mxu0 %v221
    %v7379 = vpop.f32.mrb[0].mxu0
    %v7380 = vadd.f32 0.0, %v7379
    %v7381 = vpop.f32.mrb[0].mxu0
    %v7382 = vadd.f32 0.0, %v7381
    %v7383 = vpop.f32.mrb[0].mxu0
    %v7384 = vadd.f32 0.0, %v7383
    %v7385 = vpop.f32.mrb[0].mxu0
    %v7386 = vadd.f32 0.0, %v7385
    %7387 = vmatprep.mubr.bf16.mxu0 0
    %7388 = vmatmul.mubr.bf16.gmra.mrb[0].mxu0 %v222
    %v7389 = vpop.f32.mrb[0].mxu0
    %v7390 = vadd.f32 0.0, %v7389
    %v7391 = vpop.f32.mrb[0].mxu0
    %v7392 = vadd.f32 0.0, %v7391
    %v7393 = vpop.f32.mrb[0].mxu0
    %v7394 = vadd.f32 0.0, %v7393
    %v7395 = vpop.f32.mrb[0].mxu0
    %v7396 = vadd.f32 0.0, %v7395
    %7397 = vmatprep.mubr.bf16.mxu0 0
    %7398 = vmatmul.mubr.bf16.gmra.mrb[0].mxu0 %v223
    %v7399 = vpop.f32.mrb[0].mxu0
    %v7400 = vadd.f32 0.0, %v7399
    %v7401 = vpop.f32.mrb[0].mxu0
    %v7402 = vadd.f32 0.0, %v7401
    %v7403 = vpop.f32.mrb[0].mxu0
    %v7404 = vadd.f32 0.0, %v7403
    %v7405 = vpop.f32.mrb[0].mxu0
    %v7406 = vadd.f32 0.0, %v7405
    %7407 = vmatprep.mubr.bf16.mxu0 0
    %7408 = vmatmul.mubr.bf16.gmra.mrb[0].mxu0 %v224
    %v7409 = vpop.f32.mrb[0].mxu0
    %v7410 = vadd.f32 0.0, %v7409
    %v7411 = vpop.f32.mrb[0].mxu0
    %v7412 = vadd.f32 0.0, %v7411
    %v7413 = vpop.f32.mrb[0].mxu0
    %v7414 = vadd.f32 0.0, %v7413
    %v7415 = vpop.f32.mrb[0].mxu0
    %v7416 = vadd.f32 0.0, %v7415
    %7417 = vmatprep.mubr.bf16.mxu0 0
    %7418 = vmatmul.mubr.bf16.gmra.mrb[0].mxu0 %v225
    %v7419 = vpop.f32.mrb[0].mxu0
    %v7420 = vadd.f32 0.0, %v7419
    %v7421 = vpop.f32.mrb[0].mxu0
    %v7422 = vadd.f32 0.0, %v7421
    %v7423 = vpop.f32.mrb[0].mxu0
    %v7424 = vadd.f32 0.0, %v7423
    %v7425 = vpop.f32.mrb[0].mxu0
    %v7426 = vadd.f32 0.0, %v7425
    %7427 = vmatprep.mubr.bf16.mxu0 0
    %7428 = vmatmul.mubr.bf16.gmra.mrb[0].mxu0 %v226
    %v7429 = vpop.f32.mrb[0].mxu0
    %v7430 = vadd.f32 0.0, %v7429
    %v7431 = vpop.f32.mrb[0].mxu0
    %v7432 = vadd.f32 0.0, %v7431
    %v7433 = vpop.f32.mrb[0].mxu0
    %v7434 = vadd.f32 0.0, %v7433
    %v7435 = vpop.f32.mrb[0].mxu0
    %v7436 = vadd.f32 0.0, %v7435
    %7437 = vmatprep.mubr.bf16.mxu0 0
    %7438 = vmatmul.mubr.bf16.gmra.mrb[0].mxu0 %v227
    %v7439 = vpop.f32.mrb[0].mxu0
    %v7440 = vadd.f32 0.0, %v7439
    %v7441 = vpop.f32.mrb[0].mxu0
    %v7442 = vadd.f32 0.0, %v7441
    %v7443 = vpop.f32.mrb[0].mxu0
    %v7444 = vadd.f32 0.0, %v7443
    %v7445 = vpop.f32.mrb[0].mxu0
    %v7446 = vadd.f32 0.0, %v7445
    %7447 = vmatprep.mubr.bf16.mxu0 0
    %7448 = vmatmul.mubr.bf16.gmra.mrb[0].mxu0 %v228
    %v7449 = vpop.f32.mrb[0].mxu0
    %v7450 = vadd.f32 0.0, %v7449
    %v7451 = vpop.f32.mrb[0].mxu0
    %v7452 = vadd.f32 0.0, %v7451
    %v7453 = vpop.f32.mrb[0].mxu0
    %v7454 = vadd.f32 0.0, %v7453
    %v7455 = vpop.f32.mrb[0].mxu0
    %v7456 = vadd.f32 0.0, %v7455
    %7457 = vdwg.mxu0
    %v7458 = vpack.c.bf16 %v7271, %v7267
    %v7459 = vpack.c.bf16 %v7273, %v7269
    %v7460 = vpack.c.bf16 %v7384, %v7380
    %v7461 = vpack.c.bf16 %v7386, %v7382
    %v7462 = vpack.c.bf16 %v7281, %v7277
    %v7463 = vpack.c.bf16 %v7283, %v7279
    %v7464 = vpack.c.bf16 %v7394, %v7390
    %v7465 = vpack.c.bf16 %v7396, %v7392
    %v7466 = vpack.c.bf16 %v7291, %v7287
    %v7467 = vpack.c.bf16 %v7293, %v7289
    %v7468 = vpack.c.bf16 %v7404, %v7400
    %v7469 = vpack.c.bf16 %v7406, %v7402
    %v7470 = vpack.c.bf16 %v7301, %v7297
    %v7471 = vpack.c.bf16 %v7303, %v7299
    %v7472 = vpack.c.bf16 %v7414, %v7410
    %v7473 = vpack.c.bf16 %v7416, %v7412
    %v7474 = vpack.c.bf16 %v7311, %v7307
    %v7475 = vpack.c.bf16 %v7313, %v7309
    %v7476 = vpack.c.bf16 %v7424, %v7420
    %v7477 = vpack.c.bf16 %v7426, %v7422
    %v7478 = vpack.c.bf16 %v7321, %v7317
    %v7479 = vpack.c.bf16 %v7323, %v7319
    %v7480 = vpack.c.bf16 %v7434, %v7430
    %v7481 = vpack.c.bf16 %v7436, %v7432
    %v7482 = vpack.c.bf16 %v7331, %v7327
    %v7483 = vpack.c.bf16 %v7333, %v7329
    %v7484 = vpack.c.bf16 %v7444, %v7440
    %v7485 = vpack.c.bf16 %v7446, %v7442
    %v7486 = vpack.c.bf16 %v7341, %v7337
    %v7487 = vpack.c.bf16 %v7343, %v7339
    %v7488 = vpack.c.bf16 %v7454, %v7450
    %v7489 = vpack.c.bf16 %v7456, %v7452
    %v7490 = vld [vmem:[#allocation2] sm:$0xff]
    %v7491 = vld [vmem:[#allocation2 + $0x8] sm:$0xff]
    %v7492 = vld [vmem:[#allocation2 + $0x10] sm:$0xff]
    %v7493 = vld [vmem:[#allocation2 + $0x18] sm:$0xff]
    %v7494 = vld [vmem:[#allocation2 + $0x20] sm:$0xff]
    %v7495 = vld [vmem:[#allocation2 + $0x28] sm:$0xff]
    %v7496 = vld [vmem:[#allocation2 + $0x30] sm:$0xff]
    %v7497 = vld [vmem:[#allocation2 + $0x38] sm:$0xff]
    %v7498 = vld [vmem:[#allocation2 + $0x40] sm:$0xff]
    %v7499 = vld [vmem:[#allocation2 + $0x48] sm:$0xff]
    %v7500 = vld [vmem:[#allocation2 + $0x50] sm:$0xff]
    %v7501 = vld [vmem:[#allocation2 + $0x58] sm:$0xff]
    %v7502 = vld [vmem:[#allocation2 + $0x60] sm:$0xff]
    %v7503 = vld [vmem:[#allocation2 + $0x68] sm:$0xff]
    %v7504 = vld [vmem:[#allocation2 + $0x70] sm:$0xff]
    %v7505 = vld [vmem:[#allocation2 + $0x78] sm:$0xff]
    %v7506 = vld [vmem:[#allocation2 + $0x80] sm:$0xff]
    %v7507 = vld [vmem:[#allocation2 + $0x88] sm:$0xff]
    %v7508 = vld [vmem:[#allocation2 + $0x90] sm:$0xff]
    %v7509 = vld [vmem:[#allocation2 + $0x98] sm:$0xff]
    %v7510 = vld [vmem:[#allocation2 + $0xa0] sm:$0xff]
    %v7511 = vld [vmem:[#allocation2 + $0xa8] sm:$0xff]
    %v7512 = vld [vmem:[#allocation2 + $0xb0] sm:$0xff]
    %v7513 = vld [vmem:[#allocation2 + $0xb8] sm:$0xff]
    %v7514 = vld [vmem:[#allocation2 + $0xc0] sm:$0xff]
    %v7515 = vld [vmem:[#allocation2 + $0xc8] sm:$0xff]
    %v7516 = vld [vmem:[#allocation2 + $0xd0] sm:$0xff]
    %v7517 = vld [vmem:[#allocation2 + $0xd8] sm:$0xff]
    %v7518 = vld [vmem:[#allocation2 + $0xe0] sm:$0xff]
    %v7519 = vld [vmem:[#allocation2 + $0xe8] sm:$0xff]
    %v7520 = vld [vmem:[#allocation2 + $0xf0] sm:$0xff]
    %v7521 = vld [vmem:[#allocation2 + $0xf8] sm:$0xff]
    %v7522 = vld [vmem:[#allocation2 + $0x100] sm:$0xff]
    %v7523 = vld [vmem:[#allocation2 + $0x108] sm:$0xff]
    %v7524 = vld [vmem:[#allocation2 + $0x110] sm:$0xff]
    %v7525 = vld [vmem:[#allocation2 + $0x118] sm:$0xff]
    %v7526 = vld [vmem:[#allocation2 + $0x120] sm:$0xff]
    %v7527 = vld [vmem:[#allocation2 + $0x128] sm:$0xff]
    %v7528 = vld [vmem:[#allocation2 + $0x130] sm:$0xff]
    %v7529 = vld [vmem:[#allocation2 + $0x138] sm:$0xff]
    %v7530 = vld [vmem:[#allocation2 + $0x140] sm:$0xff]
    %v7531 = vld [vmem:[#allocation2 + $0x148] sm:$0xff]
    %v7532 = vld [vmem:[#allocation2 + $0x150] sm:$0xff]
    %v7533 = vld [vmem:[#allocation2 + $0x158] sm:$0xff]
    %v7534 = vld [vmem:[#allocation2 + $0x160] sm:$0xff]
    %v7535 = vld [vmem:[#allocation2 + $0x168] sm:$0xff]
    %v7536 = vld [vmem:[#allocation2 + $0x170] sm:$0xff]
    %v7537 = vld [vmem:[#allocation2 + $0x178] sm:$0xff]
    %v7538 = vld [vmem:[#allocation2 + $0x180] sm:$0xff]
    %v7539 = vld [vmem:[#allocation2 + $0x188] sm:$0xff]
    %v7540 = vld [vmem:[#allocation2 + $0x190] sm:$0xff]
    %v7541 = vld [vmem:[#allocation2 + $0x198] sm:$0xff]
    %v7542 = vld [vmem:[#allocation2 + $0x1a0] sm:$0xff]
    %v7543 = vld [vmem:[#allocation2 + $0x1a8] sm:$0xff]
    %v7544 = vld [vmem:[#allocation2 + $0x1b0] sm:$0xff]
    %v7545 = vld [vmem:[#allocation2 + $0x1b8] sm:$0xff]
    %v7546 = vld [vmem:[#allocation2 + $0x1c0] sm:$0xff]
    %v7547 = vld [vmem:[#allocation2 + $0x1c8] sm:$0xff]
    %v7548 = vld [vmem:[#allocation2 + $0x1d0] sm:$0xff]
    %v7549 = vld [vmem:[#allocation2 + $0x1d8] sm:$0xff]
    %v7550 = vld [vmem:[#allocation2 + $0x1e0] sm:$0xff]
    %v7551 = vld [vmem:[#allocation2 + $0x1e8] sm:$0xff]
    %v7552 = vld [vmem:[#allocation2 + $0x1f0] sm:$0xff]
    %v7553 = vld [vmem:[#allocation2 + $0x1f8] sm:$0xff]
    %v7554 = vld [vmem:[#allocation2 + $0x200] sm:$0xff]
    %v7555 = vld [vmem:[#allocation2 + $0x208] sm:$0xff]
    %v7556 = vld [vmem:[#allocation2 + $0x210] sm:$0xff]
    %v7557 = vld [vmem:[#allocation2 + $0x218] sm:$0xff]
    %v7558 = vld [vmem:[#allocation2 + $0x220] sm:$0xff]
    %v7559 = vld [vmem:[#allocation2 + $0x228] sm:$0xff]
    %v7560 = vld [vmem:[#allocation2 + $0x230] sm:$0xff]
    %v7561 = vld [vmem:[#allocation2 + $0x238] sm:$0xff]
    %v7562 = vld [vmem:[#allocation2 + $0x240] sm:$0xff]
    %v7563 = vld [vmem:[#allocation2 + $0x248] sm:$0xff]
    %v7564 = vld [vmem:[#allocation2 + $0x250] sm:$0xff]
    %v7565 = vld [vmem:[#allocation2 + $0x258] sm:$0xff]
    %v7566 = vld [vmem:[#allocation2 + $0x260] sm:$0xff]
    %v7567 = vld [vmem:[#allocation2 + $0x268] sm:$0xff]
    %v7568 = vld [vmem:[#allocation2 + $0x270] sm:$0xff]
    %v7569 = vld [vmem:[#allocation2 + $0x278] sm:$0xff]
    %v7570 = vld [vmem:[#allocation2 + $0x280] sm:$0xff]
    %v7571 = vld [vmem:[#allocation2 + $0x288] sm:$0xff]
    %v7572 = vld [vmem:[#allocation2 + $0x290] sm:$0xff]
    %v7573 = vld [vmem:[#allocation2 + $0x298] sm:$0xff]
    %v7574 = vld [vmem:[#allocation2 + $0x2a0] sm:$0xff]
    %v7575 = vld [vmem:[#allocation2 + $0x2a8] sm:$0xff]
    %v7576 = vld [vmem:[#allocation2 + $0x2b0] sm:$0xff]
    %v7577 = vld [vmem:[#allocation2 + $0x2b8] sm:$0xff]
    %v7578 = vld [vmem:[#allocation2 + $0x2c0] sm:$0xff]
    %v7579 = vld [vmem:[#allocation2 + $0x2c8] sm:$0xff]
    %v7580 = vld [vmem:[#allocation2 + $0x2d0] sm:$0xff]
    %v7581 = vld [vmem:[#allocation2 + $0x2d8] sm:$0xff]
    %v7582 = vld [vmem:[#allocation2 + $0x2e0] sm:$0xff]
    %v7583 = vld [vmem:[#allocation2 + $0x2e8] sm:$0xff]
    %v7584 = vld [vmem:[#allocation2 + $0x2f0] sm:$0xff]
    %v7585 = vld [vmem:[#allocation2 + $0x2f8] sm:$0xff]
    %v7586 = vld [vmem:[#allocation2 + $0x300] sm:$0xff]
    %v7587 = vld [vmem:[#allocation2 + $0x308] sm:$0xff]
    %v7588 = vld [vmem:[#allocation2 + $0x310] sm:$0xff]
    %v7589 = vld [vmem:[#allocation2 + $0x318] sm:$0xff]
    %v7590 = vld [vmem:[#allocation2 + $0x320] sm:$0xff]
    %v7591 = vld [vmem:[#allocation2 + $0x328] sm:$0xff]
    %v7592 = vld [vmem:[#allocation2 + $0x330] sm:$0xff]
    %v7593 = vld [vmem:[#allocation2 + $0x338] sm:$0xff]
    %v7594 = vld [vmem:[#allocation2 + $0x340] sm:$0xff]
    %v7595 = vld [vmem:[#allocation2 + $0x348] sm:$0xff]
    %v7596 = vld [vmem:[#allocation2 + $0x350] sm:$0xff]
    %v7597 = vld [vmem:[#allocation2 + $0x358] sm:$0xff]
    %v7598 = vld [vmem:[#allocation2 + $0x360] sm:$0xff]
    %v7599 = vld [vmem:[#allocation2 + $0x368] sm:$0xff]
    %v7600 = vld [vmem:[#allocation2 + $0x370] sm:$0xff]
    %v7601 = vld [vmem:[#allocation2 + $0x378] sm:$0xff]
    %v7602 = vld [vmem:[#allocation2 + $0x380] sm:$0xff]
    %v7603 = vld [vmem:[#allocation2 + $0x388] sm:$0xff]
    %v7604 = vld [vmem:[#allocation2 + $0x390] sm:$0xff]
    %v7605 = vld [vmem:[#allocation2 + $0x398] sm:$0xff]
    %v7606 = vld [vmem:[#allocation2 + $0x3a0] sm:$0xff]
    %v7607 = vld [vmem:[#allocation2 + $0x3a8] sm:$0xff]
    %v7608 = vld [vmem:[#allocation2 + $0x3b0] sm:$0xff]
    %v7609 = vld [vmem:[#allocation2 + $0x3b8] sm:$0xff]
    %v7610 = vld [vmem:[#allocation2 + $0x3c0] sm:$0xff]
    %v7611 = vld [vmem:[#allocation2 + $0x3c8] sm:$0xff]
    %v7612 = vld [vmem:[#allocation2 + $0x3d0] sm:$0xff]
    %v7613 = vld [vmem:[#allocation2 + $0x3d8] sm:$0xff]
    %v7614 = vld [vmem:[#allocation2 + $0x3e0] sm:$0xff]
    %v7615 = vld [vmem:[#allocation2 + $0x3e8] sm:$0xff]
    %v7616 = vld [vmem:[#allocation2 + $0x3f0] sm:$0xff]
    %v7617 = vld [vmem:[#allocation2 + $0x3f8] sm:$0xff]
    %v7618 = vld [vmem:[#allocation4] sm:$0xff]
    %v7619 = vld [vmem:[#allocation4 + $0x8] sm:$0xff]
    %v7620 = vld [vmem:[#allocation4 + $0x10] sm:$0xff]
    %v7621 = vld [vmem:[#allocation4 + $0x18] sm:$0xff]
    %v7622 = vld [vmem:[#allocation4 + $0x20] sm:$0xff]
    %v7623 = vld [vmem:[#allocation4 + $0x28] sm:$0xff]
    %v7624 = vld [vmem:[#allocation4 + $0x30] sm:$0xff]
    %v7625 = vld [vmem:[#allocation4 + $0x38] sm:$0xff]
    %v7626 = vld [vmem:[#allocation4 + $0x40] sm:$0xff]
    %v7627 = vld [vmem:[#allocation4 + $0x48] sm:$0xff]
    %v7628 = vld [vmem:[#allocation4 + $0x50] sm:$0xff]
    %v7629 = vld [vmem:[#allocation4 + $0x58] sm:$0xff]
    %v7630 = vld [vmem:[#allocation4 + $0x60] sm:$0xff]
    %v7631 = vld [vmem:[#allocation4 + $0x68] sm:$0xff]
    %v7632 = vld [vmem:[#allocation4 + $0x70] sm:$0xff]
    %v7633 = vld [vmem:[#allocation4 + $0x78] sm:$0xff]
    %v7634 = vld [vmem:[#allocation4 + $0x80] sm:$0xff]
    %v7635 = vld [vmem:[#allocation4 + $0x88] sm:$0xff]
    %v7636 = vld [vmem:[#allocation4 + $0x90] sm:$0xff]
    %v7637 = vld [vmem:[#allocation4 + $0x98] sm:$0xff]
    %v7638 = vld [vmem:[#allocation4 + $0xa0] sm:$0xff]
    %v7639 = vld [vmem:[#allocation4 + $0xa8] sm:$0xff]
    %v7640 = vld [vmem:[#allocation4 + $0xb0] sm:$0xff]
    %v7641 = vld [vmem:[#allocation4 + $0xb8] sm:$0xff]
    %v7642 = vld [vmem:[#allocation4 + $0xc0] sm:$0xff]
    %v7643 = vld [vmem:[#allocation4 + $0xc8] sm:$0xff]
    %v7644 = vld [vmem:[#allocation4 + $0xd0] sm:$0xff]
    %v7645 = vld [vmem:[#allocation4 + $0xd8] sm:$0xff]
    %v7646 = vld [vmem:[#allocation4 + $0xe0] sm:$0xff]
    %v7647 = vld [vmem:[#allocation4 + $0xe8] sm:$0xff]
    %v7648 = vld [vmem:[#allocation4 + $0xf0] sm:$0xff]
    %v7649 = vld [vmem:[#allocation4 + $0xf8] sm:$0xff]
    %v7650 = vld [vmem:[#allocation4 + $0x100] sm:$0xff]
    %v7651 = vld [vmem:[#allocation4 + $0x108] sm:$0xff]
    %v7652 = vld [vmem:[#allocation4 + $0x110] sm:$0xff]
    %v7653 = vld [vmem:[#allocation4 + $0x118] sm:$0xff]
    %v7654 = vld [vmem:[#allocation4 + $0x120] sm:$0xff]
    %v7655 = vld [vmem:[#allocation4 + $0x128] sm:$0xff]
    %v7656 = vld [vmem:[#allocation4 + $0x130] sm:$0xff]
    %v7657 = vld [vmem:[#allocation4 + $0x138] sm:$0xff]
    %v7658 = vld [vmem:[#allocation4 + $0x140] sm:$0xff]
    %v7659 = vld [vmem:[#allocation4 + $0x148] sm:$0xff]
    %v7660 = vld [vmem:[#allocation4 + $0x150] sm:$0xff]
    %v7661 = vld [vmem:[#allocation4 + $0x158] sm:$0xff]
    %v7662 = vld [vmem:[#allocation4 + $0x160] sm:$0xff]
    %v7663 = vld [vmem:[#allocation4 + $0x168] sm:$0xff]
    %v7664 = vld [vmem:[#allocation4 + $0x170] sm:$0xff]
    %v7665 = vld [vmem:[#allocation4 + $0x178] sm:$0xff]
    %v7666 = vld [vmem:[#allocation4 + $0x180] sm:$0xff]
    %v7667 = vld [vmem:[#allocation4 + $0x188] sm:$0xff]
    %v7668 = vld [vmem:[#allocation4 + $0x190] sm:$0xff]
    %v7669 = vld [vmem:[#allocation4 + $0x198] sm:$0xff]
    %v7670 = vld [vmem:[#allocation4 + $0x1a0] sm:$0xff]
    %v7671 = vld [vmem:[#allocation4 + $0x1a8] sm:$0xff]
    %v7672 = vld [vmem:[#allocation4 + $0x1b0] sm:$0xff]
    %v7673 = vld [vmem:[#allocation4 + $0x1b8] sm:$0xff]
    %v7674 = vld [vmem:[#allocation4 + $0x1c0] sm:$0xff]
    %v7675 = vld [vmem:[#allocation4 + $0x1c8] sm:$0xff]
    %v7676 = vld [vmem:[#allocation4 + $0x1d0] sm:$0xff]
    %v7677 = vld [vmem:[#allocation4 + $0x1d8] sm:$0xff]
    %v7678 = vld [vmem:[#allocation4 + $0x1e0] sm:$0xff]
    %v7679 = vld [vmem:[#allocation4 + $0x1e8] sm:$0xff]
    %v7680 = vld [vmem:[#allocation4 + $0x1f0] sm:$0xff]
    %v7681 = vld [vmem:[#allocation4 + $0x1f8] sm:$0xff]
    %v7682 = vld [vmem:[#allocation4 + $0x200] sm:$0xff]
    %v7683 = vld [vmem:[#allocation4 + $0x208] sm:$0xff]
    %v7684 = vld [vmem:[#allocation4 + $0x210] sm:$0xff]
    %v7685 = vld [vmem:[#allocation4 + $0x218] sm:$0xff]
    %v7686 = vld [vmem:[#allocation4 + $0x220] sm:$0xff]
    %v7687 = vld [vmem:[#allocation4 + $0x228] sm:$0xff]
    %v7688 = vld [vmem:[#allocation4 + $0x230] sm:$0xff]
    %v7689 = vld [vmem:[#allocation4 + $0x238] sm:$0xff]
    %v7690 = vld [vmem:[#allocation4 + $0x240] sm:$0xff]
    %v7691 = vld [vmem:[#allocation4 + $0x248] sm:$0xff]
    %v7692 = vld [vmem:[#allocation4 + $0x250] sm:$0xff]
    %v7693 = vld [vmem:[#allocation4 + $0x258] sm:$0xff]
    %v7694 = vld [vmem:[#allocation4 + $0x260] sm:$0xff]
    %v7695 = vld [vmem:[#allocation4 + $0x268] sm:$0xff]
    %v7696 = vld [vmem:[#allocation4 + $0x270] sm:$0xff]
    %v7697 = vld [vmem:[#allocation4 + $0x278] sm:$0xff]
    %v7698 = vld [vmem:[#allocation4 + $0x280] sm:$0xff]
    %v7699 = vld [vmem:[#allocation4 + $0x288] sm:$0xff]
    %v7700 = vld [vmem:[#allocation4 + $0x290] sm:$0xff]
    %v7701 = vld [vmem:[#allocation4 + $0x298] sm:$0xff]
    %v7702 = vld [vmem:[#allocation4 + $0x2a0] sm:$0xff]
    %v7703 = vld [vmem:[#allocation4 + $0x2a8] sm:$0xff]
    %v7704 = vld [vmem:[#allocation4 + $0x2b0] sm:$0xff]
    %v7705 = vld [vmem:[#allocation4 + $0x2b8] sm:$0xff]
    %v7706 = vld [vmem:[#allocation4 + $0x2c0] sm:$0xff]
    %v7707 = vld [vmem:[#allocation4 + $0x2c8] sm:$0xff]
    %v7708 = vld [vmem:[#allocation4 + $0x2d0] sm:$0xff]
    %v7709 = vld [vmem:[#allocation4 + $0x2d8] sm:$0xff]
    %v7710 = vld [vmem:[#allocation4 + $0x2e0] sm:$0xff]
    %v7711 = vld [vmem:[#allocation4 + $0x2e8] sm:$0xff]
    %v7712 = vld [vmem:[#allocation4 + $0x2f0] sm:$0xff]
    %v7713 = vld [vmem:[#allocation4 + $0x2f8] sm:$0xff]
    %v7714 = vld [vmem:[#allocation4 + $0x300] sm:$0xff]
    %v7715 = vld [vmem:[#allocation4 + $0x308] sm:$0xff]
    %v7716 = vld [vmem:[#allocation4 + $0x310] sm:$0xff]
    %v7717 = vld [vmem:[#allocation4 + $0x318] sm:$0xff]
    %v7718 = vld [vmem:[#allocation4 + $0x320] sm:$0xff]
    %v7719 = vld [vmem:[#allocation4 + $0x328] sm:$0xff]
    %v7720 = vld [vmem:[#allocation4 + $0x330] sm:$0xff]
    %v7721 = vld [vmem:[#allocation4 + $0x338] sm:$0xff]
    %v7722 = vld [vmem:[#allocation4 + $0x340] sm:$0xff]
    %v7723 = vld [vmem:[#allocation4 + $0x348] sm:$0xff]
    %v7724 = vld [vmem:[#allocation4 + $0x350] sm:$0xff]
    %v7725 = vld [vmem:[#allocation4 + $0x358] sm:$0xff]
    %v7726 = vld [vmem:[#allocation4 + $0x360] sm:$0xff]
    %v7727 = vld [vmem:[#allocation4 + $0x368] sm:$0xff]
    %v7728 = vld [vmem:[#allocation4 + $0x370] sm:$0xff]
    %v7729 = vld [vmem:[#allocation4 + $0x378] sm:$0xff]
    %v7730 = vld [vmem:[#allocation4 + $0x380] sm:$0xff]
    %v7731 = vld [vmem:[#allocation4 + $0x388] sm:$0xff]
    %v7732 = vld [vmem:[#allocation4 + $0x390] sm:$0xff]
    %v7733 = vld [vmem:[#allocation4 + $0x398] sm:$0xff]
    %v7734 = vld [vmem:[#allocation4 + $0x3a0] sm:$0xff]
    %v7735 = vld [vmem:[#allocation4 + $0x3a8] sm:$0xff]
    %v7736 = vld [vmem:[#allocation4 + $0x3b0] sm:$0xff]
    %v7737 = vld [vmem:[#allocation4 + $0x3b8] sm:$0xff]
    %v7738 = vld [vmem:[#allocation4 + $0x3c0] sm:$0xff]
    %v7739 = vld [vmem:[#allocation4 + $0x3c8] sm:$0xff]
    %v7740 = vld [vmem:[#allocation4 + $0x3d0] sm:$0xff]
    %v7741 = vld [vmem:[#allocation4 + $0x3d8] sm:$0xff]
    %v7742 = vld [vmem:[#allocation4 + $0x3e0] sm:$0xff]
    %v7743 = vld [vmem:[#allocation4 + $0x3e8] sm:$0xff]
    %v7744 = vld [vmem:[#allocation4 + $0x3f0] sm:$0xff]
    %v7745 = vld [vmem:[#allocation4 + $0x3f8] sm:$0xff]
    %v7874 = vunpack.c.l.b16 %v7618
    %v7875 = vunpack.c.h.b16 %v7618
    %v7876 = vunpack.c.l.b16 %v7619
    %v7877 = vunpack.c.h.b16 %v7619
    %v7878 = vunpack.c.l.b16 %v7620
    %v7879 = vunpack.c.h.b16 %v7620
    %v7880 = vunpack.c.l.b16 %v7621
    %v7881 = vunpack.c.h.b16 %v7621
    %v7882 = vunpack.c.l.b16 %v7622
    %v7883 = vunpack.c.h.b16 %v7622
    %v7884 = vunpack.c.l.b16 %v7623
    %v7885 = vunpack.c.h.b16 %v7623
    %v7886 = vunpack.c.l.b16 %v7624
    %v7887 = vunpack.c.h.b16 %v7624
    %v7888 = vunpack.c.l.b16 %v7625
    %v7889 = vunpack.c.h.b16 %v7625
    %v7890 = vunpack.c.l.b16 %v7626
    %v7891 = vunpack.c.h.b16 %v7626
    %v7892 = vunpack.c.l.b16 %v7627
    %v7893 = vunpack.c.h.b16 %v7627
    %v7894 = vunpack.c.l.b16 %v7628
    %v7895 = vunpack.c.h.b16 %v7628
    %v7896 = vunpack.c.l.b16 %v7629
    %v7897 = vunpack.c.h.b16 %v7629
    %v7898 = vunpack.c.l.b16 %v7630
    %v7899 = vunpack.c.h.b16 %v7630
    %v7900 = vunpack.c.l.b16 %v7631
    %v7901 = vunpack.c.h.b16 %v7631
    %v7902 = vunpack.c.l.b16 %v7632
    %v7903 = vunpack.c.h.b16 %v7632
    %v7904 = vunpack.c.l.b16 %v7633
    %v7905 = vunpack.c.h.b16 %v7633
    %v7906 = vunpack.c.l.b16 %v7634
    %v7907 = vunpack.c.h.b16 %v7634
    %v7908 = vunpack.c.l.b16 %v7635
    %v7909 = vunpack.c.h.b16 %v7635
    %v7910 = vunpack.c.l.b16 %v7636
    %v7911 = vunpack.c.h.b16 %v7636
    %v7912 = vunpack.c.l.b16 %v7637
    %v7913 = vunpack.c.h.b16 %v7637
    %v7914 = vunpack.c.l.b16 %v7638
    %v7915 = vunpack.c.h.b16 %v7638
    %v7916 = vunpack.c.l.b16 %v7639
    %v7917 = vunpack.c.h.b16 %v7639
    %v7918 = vunpack.c.l.b16 %v7640
    %v7919 = vunpack.c.h.b16 %v7640
    %v7920 = vunpack.c.l.b16 %v7641
    %v7921 = vunpack.c.h.b16 %v7641
    %v7922 = vunpack.c.l.b16 %v7642
    %v7923 = vunpack.c.h.b16 %v7642
    %v7924 = vunpack.c.l.b16 %v7643
    %v7925 = vunpack.c.h.b16 %v7643
    %v7926 = vunpack.c.l.b16 %v7644
    %v7927 = vunpack.c.h.b16 %v7644
    %v7928 = vunpack.c.l.b16 %v7645
    %v7929 = vunpack.c.h.b16 %v7645
    %v7930 = vunpack.c.l.b16 %v7646
    %v7931 = vunpack.c.h.b16 %v7646
    %v7932 = vunpack.c.l.b16 %v7647
    %v7933 = vunpack.c.h.b16 %v7647
    %v7934 = vunpack.c.l.b16 %v7648
    %v7935 = vunpack.c.h.b16 %v7648
    %v7936 = vunpack.c.l.b16 %v7649
    %v7937 = vunpack.c.h.b16 %v7649
    %v7938 = vunpack.c.l.b16 %v7650
    %v7939 = vunpack.c.h.b16 %v7650
    %v7940 = vunpack.c.l.b16 %v7651
    %v7941 = vunpack.c.h.b16 %v7651
    %v7942 = vunpack.c.l.b16 %v7652
    %v7943 = vunpack.c.h.b16 %v7652
    %v7944 = vunpack.c.l.b16 %v7653
    %v7945 = vunpack.c.h.b16 %v7653
    %v7946 = vunpack.c.l.b16 %v7654
    %v7947 = vunpack.c.h.b16 %v7654
    %v7948 = vunpack.c.l.b16 %v7655
    %v7949 = vunpack.c.h.b16 %v7655
    %v7950 = vunpack.c.l.b16 %v7656
    %v7951 = vunpack.c.h.b16 %v7656
    %v7952 = vunpack.c.l.b16 %v7657
    %v7953 = vunpack.c.h.b16 %v7657
    %v7954 = vunpack.c.l.b16 %v7658
    %v7955 = vunpack.c.h.b16 %v7658
    %v7956 = vunpack.c.l.b16 %v7659
    %v7957 = vunpack.c.h.b16 %v7659
    %v7958 = vunpack.c.l.b16 %v7660
    %v7959 = vunpack.c.h.b16 %v7660
    %v7960 = vunpack.c.l.b16 %v7661
    %v7961 = vunpack.c.h.b16 %v7661
    %v7962 = vunpack.c.l.b16 %v7662
    %v7963 = vunpack.c.h.b16 %v7662
    %v7964 = vunpack.c.l.b16 %v7663
    %v7965 = vunpack.c.h.b16 %v7663
    %v7966 = vunpack.c.l.b16 %v7664
    %v7967 = vunpack.c.h.b16 %v7664
    %v7968 = vunpack.c.l.b16 %v7665
    %v7969 = vunpack.c.h.b16 %v7665
    %v7970 = vunpack.c.l.b16 %v7666
    %v7971 = vunpack.c.h.b16 %v7666
    %v7972 = vunpack.c.l.b16 %v7667
    %v7973 = vunpack.c.h.b16 %v7667
    %v7974 = vunpack.c.l.b16 %v7668
    %v7975 = vunpack.c.h.b16 %v7668
    %v7976 = vunpack.c.l.b16 %v7669
    %v7977 = vunpack.c.h.b16 %v7669
    %v7978 = vunpack.c.l.b16 %v7670
    %v7979 = vunpack.c.h.b16 %v7670
    %v7980 = vunpack.c.l.b16 %v7671
    %v7981 = vunpack.c.h.b16 %v7671
    %v7982 = vunpack.c.l.b16 %v7672
    %v7983 = vunpack.c.h.b16 %v7672
    %v7984 = vunpack.c.l.b16 %v7673
    %v7985 = vunpack.c.h.b16 %v7673
    %v7986 = vunpack.c.l.b16 %v7674
    %v7987 = vunpack.c.h.b16 %v7674
    %v7988 = vunpack.c.l.b16 %v7675
    %v7989 = vunpack.c.h.b16 %v7675
    %v7990 = vunpack.c.l.b16 %v7676
    %v7991 = vunpack.c.h.b16 %v7676
    %v7992 = vunpack.c.l.b16 %v7677
    %v7993 = vunpack.c.h.b16 %v7677
    %v7994 = vunpack.c.l.b16 %v7678
    %v7995 = vunpack.c.h.b16 %v7678
    %v7996 = vunpack.c.l.b16 %v7679
    %v7997 = vunpack.c.h.b16 %v7679
    %v7998 = vunpack.c.l.b16 %v7680
    %v7999 = vunpack.c.h.b16 %v7680
    %v8000 = vunpack.c.l.b16 %v7681
    %v8001 = vunpack.c.h.b16 %v7681
    %v8002 = vunpack.c.l.b16 %v7682
    %v8003 = vunpack.c.h.b16 %v7682
    %v8004 = vunpack.c.l.b16 %v7683
    %v8005 = vunpack.c.h.b16 %v7683
    %v8006 = vunpack.c.l.b16 %v7684
    %v8007 = vunpack.c.h.b16 %v7684
    %v8008 = vunpack.c.l.b16 %v7685
    %v8009 = vunpack.c.h.b16 %v7685
    %v8010 = vunpack.c.l.b16 %v7686
    %v8011 = vunpack.c.h.b16 %v7686
    %v8012 = vunpack.c.l.b16 %v7687
    %v8013 = vunpack.c.h.b16 %v7687
    %v8014 = vunpack.c.l.b16 %v7688
    %v8015 = vunpack.c.h.b16 %v7688
    %v8016 = vunpack.c.l.b16 %v7689
    %v8017 = vunpack.c.h.b16 %v7689
    %v8018 = vunpack.c.l.b16 %v7690
    %v8019 = vunpack.c.h.b16 %v7690
    %v8020 = vunpack.c.l.b16 %v7691
    %v8021 = vunpack.c.h.b16 %v7691
    %v8022 = vunpack.c.l.b16 %v7692
    %v8023 = vunpack.c.h.b16 %v7692
    %v8024 = vunpack.c.l.b16 %v7693
    %v8025 = vunpack.c.h.b16 %v7693
    %v8026 = vunpack.c.l.b16 %v7694
    %v8027 = vunpack.c.h.b16 %v7694
    %v8028 = vunpack.c.l.b16 %v7695
    %v8029 = vunpack.c.h.b16 %v7695
    %v8030 = vunpack.c.l.b16 %v7696
    %v8031 = vunpack.c.h.b16 %v7696
    %v8032 = vunpack.c.l.b16 %v7697
    %v8033 = vunpack.c.h.b16 %v7697
    %v8034 = vunpack.c.l.b16 %v7698
    %v8035 = vunpack.c.h.b16 %v7698
    %v8036 = vunpack.c.l.b16 %v7699
    %v8037 = vunpack.c.h.b16 %v7699
    %v8038 = vunpack.c.l.b16 %v7700
    %v8039 = vunpack.c.h.b16 %v7700
    %v8040 = vunpack.c.l.b16 %v7701
    %v8041 = vunpack.c.h.b16 %v7701
    %v8042 = vunpack.c.l.b16 %v7702
    %v8043 = vunpack.c.h.b16 %v7702
    %v8044 = vunpack.c.l.b16 %v7703
    %v8045 = vunpack.c.h.b16 %v7703
    %v8046 = vunpack.c.l.b16 %v7704
    %v8047 = vunpack.c.h.b16 %v7704
    %v8048 = vunpack.c.l.b16 %v7705
    %v8049 = vunpack.c.h.b16 %v7705
    %v8050 = vunpack.c.l.b16 %v7706
    %v8051 = vunpack.c.h.b16 %v7706
    %v8052 = vunpack.c.l.b16 %v7707
    %v8053 = vunpack.c.h.b16 %v7707
    %v8054 = vunpack.c.l.b16 %v7708
    %v8055 = vunpack.c.h.b16 %v7708
    %v8056 = vunpack.c.l.b16 %v7709
    %v8057 = vunpack.c.h.b16 %v7709
    %v8058 = vunpack.c.l.b16 %v7710
    %v8059 = vunpack.c.h.b16 %v7710
    %v8060 = vunpack.c.l.b16 %v7711
    %v8061 = vunpack.c.h.b16 %v7711
    %v8062 = vunpack.c.l.b16 %v7712
    %v8063 = vunpack.c.h.b16 %v7712
    %v8064 = vunpack.c.l.b16 %v7713
    %v8065 = vunpack.c.h.b16 %v7713
    %v8066 = vunpack.c.l.b16 %v7714
    %v8067 = vunpack.c.h.b16 %v7714
    %v8068 = vunpack.c.l.b16 %v7715
    %v8069 = vunpack.c.h.b16 %v7715
    %v8070 = vunpack.c.l.b16 %v7716
    %v8071 = vunpack.c.h.b16 %v7716
    %v8072 = vunpack.c.l.b16 %v7717
    %v8073 = vunpack.c.h.b16 %v7717
    %v8074 = vunpack.c.l.b16 %v7718
    %v8075 = vunpack.c.h.b16 %v7718
    %v8076 = vunpack.c.l.b16 %v7719
    %v8077 = vunpack.c.h.b16 %v7719
    %v8078 = vunpack.c.l.b16 %v7720
    %v8079 = vunpack.c.h.b16 %v7720
    %v8080 = vunpack.c.l.b16 %v7721
    %v8081 = vunpack.c.h.b16 %v7721
    %v8082 = vunpack.c.l.b16 %v7722
    %v8083 = vunpack.c.h.b16 %v7722
    %v8084 = vunpack.c.l.b16 %v7723
    %v8085 = vunpack.c.h.b16 %v7723
    %v8086 = vunpack.c.l.b16 %v7724
    %v8087 = vunpack.c.h.b16 %v7724
    %v8088 = vunpack.c.l.b16 %v7725
    %v8089 = vunpack.c.h.b16 %v7725
    %v8090 = vunpack.c.l.b16 %v7726
    %v8091 = vunpack.c.h.b16 %v7726
    %v8092 = vunpack.c.l.b16 %v7727
    %v8093 = vunpack.c.h.b16 %v7727
    %v8094 = vunpack.c.l.b16 %v7728
    %v8095 = vunpack.c.h.b16 %v7728
    %v8096 = vunpack.c.l.b16 %v7729
    %v8097 = vunpack.c.h.b16 %v7729
    %v8098 = vunpack.c.l.b16 %v7730
    %v8099 = vunpack.c.h.b16 %v7730
    %v8100 = vunpack.c.l.b16 %v7731
    %v8101 = vunpack.c.h.b16 %v7731
    %v8102 = vunpack.c.l.b16 %v7732
    %v8103 = vunpack.c.h.b16 %v7732
    %v8104 = vunpack.c.l.b16 %v7733
    %v8105 = vunpack.c.h.b16 %v7733
    %v8106 = vunpack.c.l.b16 %v7734
    %v8107 = vunpack.c.h.b16 %v7734
    %v8108 = vunpack.c.l.b16 %v7735
    %v8109 = vunpack.c.h.b16 %v7735
    %v8110 = vunpack.c.l.b16 %v7736
    %v8111 = vunpack.c.h.b16 %v7736
    %v8112 = vunpack.c.l.b16 %v7737
    %v8113 = vunpack.c.h.b16 %v7737
    %v8114 = vunpack.c.l.b16 %v7738
    %v8115 = vunpack.c.h.b16 %v7738
    %v8116 = vunpack.c.l.b16 %v7739
    %v8117 = vunpack.c.h.b16 %v7739
    %v8118 = vunpack.c.l.b16 %v7740
    %v8119 = vunpack.c.h.b16 %v7740
    %v8120 = vunpack.c.l.b16 %v7741
    %v8121 = vunpack.c.h.b16 %v7741
    %v8122 = vunpack.c.l.b16 %v7742
    %v8123 = vunpack.c.h.b16 %v7742
    %v8124 = vunpack.c.l.b16 %v7743
    %v8125 = vunpack.c.h.b16 %v7743
    %v8126 = vunpack.c.l.b16 %v7744
    %v8127 = vunpack.c.h.b16 %v7744
    %v8128 = vunpack.c.l.b16 %v7745
    %v8129 = vunpack.c.h.b16 %v7745
    %v8130 = vpack.c.b16 %v7878, %v7874
    %v8131 = vpack.c.b16 %v7879, %v7875
    %v8132 = vpack.c.b16 %v7880, %v7876
    %v8133 = vpack.c.b16 %v7881, %v7877
    %v8134 = vpack.c.b16 %v7886, %v7882
    %v8135 = vpack.c.b16 %v7887, %v7883
    %v8136 = vpack.c.b16 %v7888, %v7884
    %v8137 = vpack.c.b16 %v7889, %v7885
    %v8138 = vpack.c.b16 %v7894, %v7890
    %v8139 = vpack.c.b16 %v7895, %v7891
    %v8140 = vpack.c.b16 %v7896, %v7892
    %v8141 = vpack.c.b16 %v7897, %v7893
    %v8142 = vpack.c.b16 %v7902, %v7898
    %v8143 = vpack.c.b16 %v7903, %v7899
    %v8144 = vpack.c.b16 %v7904, %v7900
    %v8145 = vpack.c.b16 %v7905, %v7901
    %v8146 = vpack.c.b16 %v7910, %v7906
    %v8147 = vpack.c.b16 %v7911, %v7907
    %v8148 = vpack.c.b16 %v7912, %v7908
    %v8149 = vpack.c.b16 %v7913, %v7909
    %v8150 = vpack.c.b16 %v7918, %v7914
    %v8151 = vpack.c.b16 %v7919, %v7915
    %v8152 = vpack.c.b16 %v7920, %v7916
    %v8153 = vpack.c.b16 %v7921, %v7917
    %v8154 = vpack.c.b16 %v7926, %v7922
    %v8155 = vpack.c.b16 %v7927, %v7923
    %v8156 = vpack.c.b16 %v7928, %v7924
    %v8157 = vpack.c.b16 %v7929, %v7925
    %v8158 = vpack.c.b16 %v7934, %v7930
    %v8159 = vpack.c.b16 %v7935, %v7931
    %v8160 = vpack.c.b16 %v7936, %v7932
    %v8161 = vpack.c.b16 %v7937, %v7933
    %v8162 = vpack.c.b16 %v7942, %v7938
    %v8163 = vpack.c.b16 %v7943, %v7939
    %v8164 = vpack.c.b16 %v7944, %v7940
    %v8165 = vpack.c.b16 %v7945, %v7941
    %v8166 = vpack.c.b16 %v7950, %v7946
    %v8167 = vpack.c.b16 %v7951, %v7947
    %v8168 = vpack.c.b16 %v7952, %v7948
    %v8169 = vpack.c.b16 %v7953, %v7949
    %v8170 = vpack.c.b16 %v7958, %v7954
    %v8171 = vpack.c.b16 %v7959, %v7955
    %v8172 = vpack.c.b16 %v7960, %v7956
    %v8173 = vpack.c.b16 %v7961, %v7957
    %v8174 = vpack.c.b16 %v7966, %v7962
    %v8175 = vpack.c.b16 %v7967, %v7963
    %v8176 = vpack.c.b16 %v7968, %v7964
    %v8177 = vpack.c.b16 %v7969, %v7965
    %v8178 = vpack.c.b16 %v7974, %v7970
    %v8179 = vpack.c.b16 %v7975, %v7971
    %v8180 = vpack.c.b16 %v7976, %v7972
    %v8181 = vpack.c.b16 %v7977, %v7973
    %v8182 = vpack.c.b16 %v7982, %v7978
    %v8183 = vpack.c.b16 %v7983, %v7979
    %v8184 = vpack.c.b16 %v7984, %v7980
    %v8185 = vpack.c.b16 %v7985, %v7981
    %v8186 = vpack.c.b16 %v7990, %v7986
    %v8187 = vpack.c.b16 %v7991, %v7987
    %v8188 = vpack.c.b16 %v7992, %v7988
    %v8189 = vpack.c.b16 %v7993, %v7989
    %v8190 = vpack.c.b16 %v7998, %v7994
    %v8191 = vpack.c.b16 %v7999, %v7995
    %v8192 = vpack.c.b16 %v8000, %v7996
    %v8193 = vpack.c.b16 %v8001, %v7997
    %v8194 = vpack.c.b16 %v8006, %v8002
    %v8195 = vpack.c.b16 %v8007, %v8003
    %v8196 = vpack.c.b16 %v8008, %v8004
    %v8197 = vpack.c.b16 %v8009, %v8005
    %v8198 = vpack.c.b16 %v8014, %v8010
    %v8199 = vpack.c.b16 %v8015, %v8011
    %v8200 = vpack.c.b16 %v8016, %v8012
    %v8201 = vpack.c.b16 %v8017, %v8013
    %v8202 = vpack.c.b16 %v8022, %v8018
    %v8203 = vpack.c.b16 %v8023, %v8019
    %v8204 = vpack.c.b16 %v8024, %v8020
    %v8205 = vpack.c.b16 %v8025, %v8021
    %v8206 = vpack.c.b16 %v8030, %v8026
    %v8207 = vpack.c.b16 %v8031, %v8027
    %v8208 = vpack.c.b16 %v8032, %v8028
    %v8209 = vpack.c.b16 %v8033, %v8029
    %v8210 = vpack.c.b16 %v8038, %v8034
    %v8211 = vpack.c.b16 %v8039, %v8035
    %v8212 = vpack.c.b16 %v8040, %v8036
    %v8213 = vpack.c.b16 %v8041, %v8037
    %v8214 = vpack.c.b16 %v8046, %v8042
    %v8215 = vpack.c.b16 %v8047, %v8043
    %v8216 = vpack.c.b16 %v8048, %v8044
    %v8217 = vpack.c.b16 %v8049, %v8045
    %v8218 = vpack.c.b16 %v8054, %v8050
    %v8219 = vpack.c.b16 %v8055, %v8051
    %v8220 = vpack.c.b16 %v8056, %v8052
    %v8221 = vpack.c.b16 %v8057, %v8053
    %v8222 = vpack.c.b16 %v8062, %v8058
    %v8223 = vpack.c.b16 %v8063, %v8059
    %v8224 = vpack.c.b16 %v8064, %v8060
    %v8225 = vpack.c.b16 %v8065, %v8061
    %v8226 = vpack.c.b16 %v8070, %v8066
    %v8227 = vpack.c.b16 %v8071, %v8067
    %v8228 = vpack.c.b16 %v8072, %v8068
    %v8229 = vpack.c.b16 %v8073, %v8069
    %v8230 = vpack.c.b16 %v8078, %v8074
    %v8231 = vpack.c.b16 %v8079, %v8075
    %v8232 = vpack.c.b16 %v8080, %v8076
    %v8233 = vpack.c.b16 %v8081, %v8077
    %v8234 = vpack.c.b16 %v8086, %v8082
    %v8235 = vpack.c.b16 %v8087, %v8083
    %v8236 = vpack.c.b16 %v8088, %v8084
    %v8237 = vpack.c.b16 %v8089, %v8085
    %v8238 = vpack.c.b16 %v8094, %v8090
    %v8239 = vpack.c.b16 %v8095, %v8091
    %v8240 = vpack.c.b16 %v8096, %v8092
    %v8241 = vpack.c.b16 %v8097, %v8093
    %v8242 = vpack.c.b16 %v8102, %v8098
    %v8243 = vpack.c.b16 %v8103, %v8099
    %v8244 = vpack.c.b16 %v8104, %v8100
    %v8245 = vpack.c.b16 %v8105, %v8101
    %v8246 = vpack.c.b16 %v8110, %v8106
    %v8247 = vpack.c.b16 %v8111, %v8107
    %v8248 = vpack.c.b16 %v8112, %v8108
    %v8249 = vpack.c.b16 %v8113, %v8109
    %v8250 = vpack.c.b16 %v8118, %v8114
    %v8251 = vpack.c.b16 %v8119, %v8115
    %v8252 = vpack.c.b16 %v8120, %v8116
    %v8253 = vpack.c.b16 %v8121, %v8117
    %v8254 = vpack.c.b16 %v8126, %v8122
    %v8255 = vpack.c.b16 %v8127, %v8123
    %v8256 = vpack.c.b16 %v8128, %v8124
    %v8257 = vpack.c.b16 %v8129, %v8125
    %8386 = vmatprep.subr.bf16.mxu0 %v8131
    %8387 = vmatpush1.bf16.msra.mxu0 %v8130
    %8388 = vmatprep.subr.bf16.mxu0 %v8135
    %8389 = vmatpush1.bf16.msra.mxu0 %v8134
    %8390 = vmatprep.subr.bf16.mxu0 %v8139
    %8391 = vmatpush1.bf16.msra.mxu0 %v8138
    %8392 = vmatprep.subr.bf16.mxu0 %v8143
    %8393 = vmatpush1.bf16.msra.mxu0 %v8142
    %8394 = vmatprep.subr.bf16.mxu0 %v8147
    %8395 = vmatpush1.bf16.msra.mxu0 %v8146
    %8396 = vmatprep.subr.bf16.mxu0 %v8151
    %8397 = vmatpush1.bf16.msra.mxu0 %v8150
    %8398 = vmatprep.subr.bf16.mxu0 %v8155
    %8399 = vmatpush1.bf16.msra.mxu0 %v8154
    %8400 = vmatprep.subr.bf16.mxu0 %v8159
    %8401 = vmatpush1.bf16.msra.mxu0 %v8158
    %8402 = vmatprep.subr.bf16.mxu0 %v8163
    %8403 = vmatpush1.bf16.msra.mxu0 %v8162
    %8404 = vmatprep.subr.bf16.mxu0 %v8167
    %8405 = vmatpush1.bf16.msra.mxu0 %v8166
    %8406 = vmatprep.subr.bf16.mxu0 %v8171
    %8407 = vmatpush1.bf16.msra.mxu0 %v8170
    %8408 = vmatprep.subr.bf16.mxu0 %v8175
    %8409 = vmatpush1.bf16.msra.mxu0 %v8174
    %8410 = vmatprep.subr.bf16.mxu0 %v8179
    %8411 = vmatpush1.bf16.msra.mxu0 %v8178
    %8412 = vmatprep.subr.bf16.mxu0 %v8183
    %8413 = vmatpush1.bf16.msra.mxu0 %v8182
    %8414 = vmatprep.subr.bf16.mxu0 %v8187
    %8415 = vmatpush1.bf16.msra.mxu0 %v8186
    %8416 = vmatprep.subr.bf16.mxu0 %v8191
    %8417 = vmatpush1.bf16.msra.mxu0 %v8190
    %8418 = vmatprep.mubr.bf16.mxu0 %v7201
    %8419 = vmatmul.mubr.bf16.gmra.mrb[0].mxu0 %v7200
    %v8420 = vpop.f32.mrb[0].mxu0
    %v8421 = vadd.f32 0.0, %v8420
    %v8422 = vpop.f32.mrb[0].mxu0
    %v8423 = vadd.f32 0.0, %v8422
    %v8424 = vpop.f32.mrb[0].mxu0
    %v8425 = vadd.f32 0.0, %v8424
    %v8426 = vpop.f32.mrb[0].mxu0
    %v8427 = vadd.f32 0.0, %v8426
    %8428 = vmatprep.mubr.bf16.mxu0 %v7205
    %8429 = vmatmul.mubr.bf16.gmra.mrb[0].mxu0 %v7204
    %v8430 = vpop.f32.mrb[0].mxu0
    %v8431 = vadd.f32 0.0, %v8430
    %v8432 = vpop.f32.mrb[0].mxu0
    %v8433 = vadd.f32 0.0, %v8432
    %v8434 = vpop.f32.mrb[0].mxu0
    %v8435 = vadd.f32 0.0, %v8434
    %v8436 = vpop.f32.mrb[0].mxu0
    %v8437 = vadd.f32 0.0, %v8436
    %8438 = vmatprep.mubr.bf16.mxu0 %v7209
    %8439 = vmatmul.mubr.bf16.gmra.mrb[0].mxu0 %v7208
    %v8440 = vpop.f32.mrb[0].mxu0
    %v8441 = vadd.f32 0.0, %v8440
    %v8442 = vpop.f32.mrb[0].mxu0
    %v8443 = vadd.f32 0.0, %v8442
    %v8444 = vpop.f32.mrb[0].mxu0
    %v8445 = vadd.f32 0.0, %v8444
    %v8446 = vpop.f32.mrb[0].mxu0
    %v8447 = vadd.f32 0.0, %v8446
    %8448 = vmatprep.mubr.bf16.mxu0 %v7213
    %8449 = vmatmul.mubr.bf16.gmra.mrb[0].mxu0 %v7212
    %v8450 = vpop.f32.mrb[0].mxu0
    %v8451 = vadd.f32 0.0, %v8450
    %v8452 = vpop.f32.mrb[0].mxu0
    %v8453 = vadd.f32 0.0, %v8452
    %v8454 = vpop.f32.mrb[0].mxu0
    %v8455 = vadd.f32 0.0, %v8454
    %v8456 = vpop.f32.mrb[0].mxu0
    %v8457 = vadd.f32 0.0, %v8456
    %8458 = vmatprep.mubr.bf16.mxu0 %v7217
    %8459 = vmatmul.mubr.bf16.gmra.mrb[0].mxu0 %v7216
    %v8460 = vpop.f32.mrb[0].mxu0
    %v8461 = vadd.f32 0.0, %v8460
    %v8462 = vpop.f32.mrb[0].mxu0
    %v8463 = vadd.f32 0.0, %v8462
    %v8464 = vpop.f32.mrb[0].mxu0
    %v8465 = vadd.f32 0.0, %v8464
    %v8466 = vpop.f32.mrb[0].mxu0
    %v8467 = vadd.f32 0.0, %v8466
    %8468 = vmatprep.mubr.bf16.mxu0 %v7221
    %8469 = vmatmul.mubr.bf16.gmra.mrb[0].mxu0 %v7220
    %v8470 = vpop.f32.mrb[0].mxu0
    %v8471 = vadd.f32 0.0, %v8470
    %v8472 = vpop.f32.mrb[0].mxu0
    %v8473 = vadd.f32 0.0, %v8472
    %v8474 = vpop.f32.mrb[0].mxu0
    %v8475 = vadd.f32 0.0, %v8474
    %v8476 = vpop.f32.mrb[0].mxu0
    %v8477 = vadd.f32 0.0, %v8476
    %8478 = vmatprep.mubr.bf16.mxu0 %v7225
    %8479 = vmatmul.mubr.bf16.gmra.mrb[0].mxu0 %v7224
    %v8480 = vpop.f32.mrb[0].mxu0
    %v8481 = vadd.f32 0.0, %v8480
    %v8482 = vpop.f32.mrb[0].mxu0
    %v8483 = vadd.f32 0.0, %v8482
    %v8484 = vpop.f32.mrb[0].mxu0
    %v8485 = vadd.f32 0.0, %v8484
    %v8486 = vpop.f32.mrb[0].mxu0
    %v8487 = vadd.f32 0.0, %v8486
    %8488 = vmatprep.mubr.bf16.mxu0 %v7229
    %8489 = vmatmul.mubr.bf16.gmra.mrb[0].mxu0 %v7228
    %v8490 = vpop.f32.mrb[0].mxu0
    %v8491 = vadd.f32 0.0, %v8490
    %v8492 = vpop.f32.mrb[0].mxu0
    %v8493 = vadd.f32 0.0, %v8492
    %v8494 = vpop.f32.mrb[0].mxu0
    %v8495 = vadd.f32 0.0, %v8494
    %v8496 = vpop.f32.mrb[0].mxu0
    %v8497 = vadd.f32 0.0, %v8496
    %8498 = vdwg.mxu0
    %8499 = vmatprep.subr.bf16.mxu0 %v8195
    %8500 = vmatpush1.bf16.msra.mxu0 %v8194
    %8501 = vmatprep.subr.bf16.mxu0 %v8199
    %8502 = vmatpush1.bf16.msra.mxu0 %v8198
    %8503 = vmatprep.subr.bf16.mxu0 %v8203
    %8504 = vmatpush1.bf16.msra.mxu0 %v8202
    %8505 = vmatprep.subr.bf16.mxu0 %v8207
    %8506 = vmatpush1.bf16.msra.mxu0 %v8206
    %8507 = vmatprep.subr.bf16.mxu0 %v8211
    %8508 = vmatpush1.bf16.msra.mxu0 %v8210
    %8509 = vmatprep.subr.bf16.mxu0 %v8215
    %8510 = vmatpush1.bf16.msra.mxu0 %v8214
    %8511 = vmatprep.subr.bf16.mxu0 %v8219
    %8512 = vmatpush1.bf16.msra.mxu0 %v8218
    %8513 = vmatprep.subr.bf16.mxu0 %v8223
    %8514 = vmatpush1.bf16.msra.mxu0 %v8222
    %8515 = vmatprep.subr.bf16.mxu0 %v8227
    %8516 = vmatpush1.bf16.msra.mxu0 %v8226
    %8517 = vmatprep.subr.bf16.mxu0 %v8231
    %8518 = vmatpush1.bf16.msra.mxu0 %v8230
    %8519 = vmatprep.subr.bf16.mxu0 %v8235
    %8520 = vmatpush1.bf16.msra.mxu0 %v8234
    %8521 = vmatprep.subr.bf16.mxu0 %v8239
    %8522 = vmatpush1.bf16.msra.mxu0 %v8238
    %8523 = vmatprep.subr.bf16.mxu0 %v8243
    %8524 = vmatpush1.bf16.msra.mxu0 %v8242
    %8525 = vmatprep.subr.bf16.mxu0 %v8247
    %8526 = vmatpush1.bf16.msra.mxu0 %v8246
    %8527 = vmatprep.subr.bf16.mxu0 %v8251
    %8528 = vmatpush1.bf16.msra.mxu0 %v8250
    %8529 = vmatprep.subr.bf16.mxu0 %v8255
    %8530 = vmatpush1.bf16.msra.mxu0 %v8254
    %8531 = vmatprep.mubr.bf16.mxu0 %v7203
    %8532 = vmatmul.mubr.bf16.gmra.mrb[0].mxu0 %v7202
    %v8533 = vpop.f32.mrb[0].mxu0
    %v8534 = vadd.f32 %v8421, %v8533
    %v8535 = vpop.f32.mrb[0].mxu0
    %v8536 = vadd.f32 %v8423, %v8535
    %v8537 = vpop.f32.mrb[0].mxu0
    %v8538 = vadd.f32 %v8425, %v8537
    %v8539 = vpop.f32.mrb[0].mxu0
    %v8540 = vadd.f32 %v8427, %v8539
    %8541 = vmatprep.mubr.bf16.mxu0 %v7207
    %8542 = vmatmul.mubr.bf16.gmra.mrb[0].mxu0 %v7206
    %v8543 = vpop.f32.mrb[0].mxu0
    %v8544 = vadd.f32 %v8431, %v8543
    %v8545 = vpop.f32.mrb[0].mxu0
    %v8546 = vadd.f32 %v8433, %v8545
    %v8547 = vpop.f32.mrb[0].mxu0
    %v8548 = vadd.f32 %v8435, %v8547
    %v8549 = vpop.f32.mrb[0].mxu0
    %v8550 = vadd.f32 %v8437, %v8549
    %8551 = vmatprep.mubr.bf16.mxu0 %v7211
    %8552 = vmatmul.mubr.bf16.gmra.mrb[0].mxu0 %v7210
    %v8553 = vpop.f32.mrb[0].mxu0
    %v8554 = vadd.f32 %v8441, %v8553
    %v8555 = vpop.f32.mrb[0].mxu0
    %v8556 = vadd.f32 %v8443, %v8555
    %v8557 = vpop.f32.mrb[0].mxu0
    %v8558 = vadd.f32 %v8445, %v8557
    %v8559 = vpop.f32.mrb[0].mxu0
    %v8560 = vadd.f32 %v8447, %v8559
    %8561 = vmatprep.mubr.bf16.mxu0 %v7215
    %8562 = vmatmul.mubr.bf16.gmra.mrb[0].mxu0 %v7214
    %v8563 = vpop.f32.mrb[0].mxu0
    %v8564 = vadd.f32 %v8451, %v8563
    %v8565 = vpop.f32.mrb[0].mxu0
    %v8566 = vadd.f32 %v8453, %v8565
    %v8567 = vpop.f32.mrb[0].mxu0
    %v8568 = vadd.f32 %v8455, %v8567
    %v8569 = vpop.f32.mrb[0].mxu0
    %v8570 = vadd.f32 %v8457, %v8569
    %8571 = vmatprep.mubr.bf16.mxu0 %v7219
    %8572 = vmatmul.mubr.bf16.gmra.mrb[0].mxu0 %v7218
    %v8573 = vpop.f32.mrb[0].mxu0
    %v8574 = vadd.f32 %v8461, %v8573
    %v8575 = vpop.f32.mrb[0].mxu0
    %v8576 = vadd.f32 %v8463, %v8575
    %v8577 = vpop.f32.mrb[0].mxu0
    %v8578 = vadd.f32 %v8465, %v8577
    %v8579 = vpop.f32.mrb[0].mxu0
    %v8580 = vadd.f32 %v8467, %v8579
    %8581 = vmatprep.mubr.bf16.mxu0 %v7223
    %8582 = vmatmul.mubr.bf16.gmra.mrb[0].mxu0 %v7222
    %v8583 = vpop.f32.mrb[0].mxu0
    %v8584 = vadd.f32 %v8471, %v8583
    %v8585 = vpop.f32.mrb[0].mxu0
    %v8586 = vadd.f32 %v8473, %v8585
    %v8587 = vpop.f32.mrb[0].mxu0
    %v8588 = vadd.f32 %v8475, %v8587
    %v8589 = vpop.f32.mrb[0].mxu0
    %v8590 = vadd.f32 %v8477, %v8589
    %8591 = vmatprep.mubr.bf16.mxu0 %v7227
    %8592 = vmatmul.mubr.bf16.gmra.mrb[0].mxu0 %v7226
    %v8593 = vpop.f32.mrb[0].mxu0
    %v8594 = vadd.f32 %v8481, %v8593
    %v8595 = vpop.f32.mrb[0].mxu0
    %v8596 = vadd.f32 %v8483, %v8595
    %v8597 = vpop.f32.mrb[0].mxu0
    %v8598 = vadd.f32 %v8485, %v8597
    %v8599 = vpop.f32.mrb[0].mxu0
    %v8600 = vadd.f32 %v8487, %v8599
    %8601 = vmatprep.mubr.bf16.mxu0 %v7231
    %8602 = vmatmul.mubr.bf16.gmra.mrb[0].mxu0 %v7230
    %v8603 = vpop.f32.mrb[0].mxu0
    %v8604 = vadd.f32 %v8491, %v8603
    %v8605 = vpop.f32.mrb[0].mxu0
    %v8606 = vadd.f32 %v8493, %v8605
    %v8607 = vpop.f32.mrb[0].mxu0
    %v8608 = vadd.f32 %v8495, %v8607
    %v8609 = vpop.f32.mrb[0].mxu0
    %v8610 = vadd.f32 %v8497, %v8609
    %8611 = vdwg.mxu0
    %8612 = vmatprep.subr.bf16.mxu0 %v8133
    %8613 = vmatpush1.bf16.msra.mxu0 %v8132
    %8614 = vmatprep.subr.bf16.mxu0 %v8137
    %8615 = vmatpush1.bf16.msra.mxu0 %v8136
    %8616 = vmatprep.subr.bf16.mxu0 %v8141
    %8617 = vmatpush1.bf16.msra.mxu0 %v8140
    %8618 = vmatprep.subr.bf16.mxu0 %v8145
    %8619 = vmatpush1.bf16.msra.mxu0 %v8144
    %8620 = vmatprep.subr.bf16.mxu0 %v8149
    %8621 = vmatpush1.bf16.msra.mxu0 %v8148
    %8622 = vmatprep.subr.bf16.mxu0 %v8153
    %8623 = vmatpush1.bf16.msra.mxu0 %v8152
    %8624 = vmatprep.subr.bf16.mxu0 %v8157
    %8625 = vmatpush1.bf16.msra.mxu0 %v8156
    %8626 = vmatprep.subr.bf16.mxu0 %v8161
    %8627 = vmatpush1.bf16.msra.mxu0 %v8160
    %8628 = vmatprep.subr.bf16.mxu0 %v8165
    %8629 = vmatpush1.bf16.msra.mxu0 %v8164
    %8630 = vmatprep.subr.bf16.mxu0 %v8169
    %8631 = vmatpush1.bf16.msra.mxu0 %v8168
    %8632 = vmatprep.subr.bf16.mxu0 %v8173
    %8633 = vmatpush1.bf16.msra.mxu0 %v8172
    %8634 = vmatprep.subr.bf16.mxu0 %v8177
    %8635 = vmatpush1.bf16.msra.mxu0 %v8176
    %8636 = vmatprep.subr.bf16.mxu0 %v8181
    %8637 = vmatpush1.bf16.msra.mxu0 %v8180
    %8638 = vmatprep.subr.bf16.mxu0 %v8185
    %8639 = vmatpush1.bf16.msra.mxu0 %v8184
    %8640 = vmatprep.subr.bf16.mxu0 %v8189
    %8641 = vmatpush1.bf16.msra.mxu0 %v8188
    %8642 = vmatprep.subr.bf16.mxu0 %v8193
    %8643 = vmatpush1.bf16.msra.mxu0 %v8192
    %8644 = vmatprep.mubr.bf16.mxu0 %v7201
    %8645 = vmatmul.mubr.bf16.gmra.mrb[0].mxu0 %v7200
    %v8646 = vpop.f32.mrb[0].mxu0
    %v8647 = vadd.f32 0.0, %v8646
    %v8648 = vpop.f32.mrb[0].mxu0
    %v8649 = vadd.f32 0.0, %v8648
    %v8650 = vpop.f32.mrb[0].mxu0
    %v8651 = vadd.f32 0.0, %v8650
    %v8652 = vpop.f32.mrb[0].mxu0
    %v8653 = vadd.f32 0.0, %v8652
    %8654 = vmatprep.mubr.bf16.mxu0 %v7205
    %8655 = vmatmul.mubr.bf16.gmra.mrb[0].mxu0 %v7204
    %v8656 = vpop.f32.mrb[0].mxu0
    %v8657 = vadd.f32 0.0, %v8656
    %v8658 = vpop.f32.mrb[0].mxu0
    %v8659 = vadd.f32 0.0, %v8658
    %v8660 = vpop.f32.mrb[0].mxu0
    %v8661 = vadd.f32 0.0, %v8660
    %v8662 = vpop.f32.mrb[0].mxu0
    %v8663 = vadd.f32 0.0, %v8662
    %8664 = vmatprep.mubr.bf16.mxu0 %v7209
    %8665 = vmatmul.mubr.bf16.gmra.mrb[0].mxu0 %v7208
    %v8666 = vpop.f32.mrb[0].mxu0
    %v8667 = vadd.f32 0.0, %v8666
    %v8668 = vpop.f32.mrb[0].mxu0
    %v8669 = vadd.f32 0.0, %v8668
    %v8670 = vpop.f32.mrb[0].mxu0
    %v8671 = vadd.f32 0.0, %v8670
    %v8672 = vpop.f32.mrb[0].mxu0
    %v8673 = vadd.f32 0.0, %v8672
    %8674 = vmatprep.mubr.bf16.mxu0 %v7213
    %8675 = vmatmul.mubr.bf16.gmra.mrb[0].mxu0 %v7212
    %v8676 = vpop.f32.mrb[0].mxu0
    %v8677 = vadd.f32 0.0, %v8676
    %v8678 = vpop.f32.mrb[0].mxu0
    %v8679 = vadd.f32 0.0, %v8678
    %v8680 = vpop.f32.mrb[0].mxu0
    %v8681 = vadd.f32 0.0, %v8680
    %v8682 = vpop.f32.mrb[0].mxu0
    %v8683 = vadd.f32 0.0, %v8682
    %8684 = vmatprep.mubr.bf16.mxu0 %v7217
    %8685 = vmatmul.mubr.bf16.gmra.mrb[0].mxu0 %v7216
    %v8686 = vpop.f32.mrb[0].mxu0
    %v8687 = vadd.f32 0.0, %v8686
    %v8688 = vpop.f32.mrb[0].mxu0
    %v8689 = vadd.f32 0.0, %v8688
    %v8690 = vpop.f32.mrb[0].mxu0
    %v8691 = vadd.f32 0.0, %v8690
    %v8692 = vpop.f32.mrb[0].mxu0
    %v8693 = vadd.f32 0.0, %v8692
    %8694 = vmatprep.mubr.bf16.mxu0 %v7221
    %8695 = vmatmul.mubr.bf16.gmra.mrb[0].mxu0 %v7220
    %v8696 = vpop.f32.mrb[0].mxu0
    %v8697 = vadd.f32 0.0, %v8696
    %v8698 = vpop.f32.mrb[0].mxu0
    %v8699 = vadd.f32 0.0, %v8698
    %v8700 = vpop.f32.mrb[0].mxu0
    %v8701 = vadd.f32 0.0, %v8700
    %v8702 = vpop.f32.mrb[0].mxu0
    %v8703 = vadd.f32 0.0, %v8702
    %8704 = vmatprep.mubr.bf16.mxu0 %v7225
    %8705 = vmatmul.mubr.bf16.gmra.mrb[0].mxu0 %v7224
    %v8706 = vpop.f32.mrb[0].mxu0
    %v8707 = vadd.f32 0.0, %v8706
    %v8708 = vpop.f32.mrb[0].mxu0
    %v8709 = vadd.f32 0.0, %v8708
    %v8710 = vpop.f32.mrb[0].mxu0
    %v8711 = vadd.f32 0.0, %v8710
    %v8712 = vpop.f32.mrb[0].mxu0
    %v8713 = vadd.f32 0.0, %v8712
    %8714 = vmatprep.mubr.bf16.mxu0 %v7229
    %8715 = vmatmul.mubr.bf16.gmra.mrb[0].mxu0 %v7228
    %v8716 = vpop.f32.mrb[0].mxu0
    %v8717 = vadd.f32 0.0, %v8716
    %v8718 = vpop.f32.mrb[0].mxu0
    %v8719 = vadd.f32 0.0, %v8718
    %v8720 = vpop.f32.mrb[0].mxu0
    %v8721 = vadd.f32 0.0, %v8720
    %v8722 = vpop.f32.mrb[0].mxu0
    %v8723 = vadd.f32 0.0, %v8722
    %8724 = vdwg.mxu0
    %8725 = vmatprep.subr.bf16.mxu0 %v8197
    %8726 = vmatpush1.bf16.msra.mxu0 %v8196
    %8727 = vmatprep.subr.bf16.mxu0 %v8201
    %8728 = vmatpush1.bf16.msra.mxu0 %v8200
    %8729 = vmatprep.subr.bf16.mxu0 %v8205
    %8730 = vmatpush1.bf16.msra.mxu0 %v8204
    %8731 = vmatprep.subr.bf16.mxu0 %v8209
    %8732 = vmatpush1.bf16.msra.mxu0 %v8208
    %8733 = vmatprep.subr.bf16.mxu0 %v8213
    %8734 = vmatpush1.bf16.msra.mxu0 %v8212
    %8735 = vmatprep.subr.bf16.mxu0 %v8217
    %8736 = vmatpush1.bf16.msra.mxu0 %v8216
    %8737 = vmatprep.subr.bf16.mxu0 %v8221
    %8738 = vmatpush1.bf16.msra.mxu0 %v8220
    %8739 = vmatprep.subr.bf16.mxu0 %v8225
    %8740 = vmatpush1.bf16.msra.mxu0 %v8224
    %8741 = vmatprep.subr.bf16.mxu0 %v8229
    %8742 = vmatpush1.bf16.msra.mxu0 %v8228
    %8743 = vmatprep.subr.bf16.mxu0 %v8233
    %8744 = vmatpush1.bf16.msra.mxu0 %v8232
    %8745 = vmatprep.subr.bf16.mxu0 %v8237
    %8746 = vmatpush1.bf16.msra.mxu0 %v8236
    %8747 = vmatprep.subr.bf16.mxu0 %v8241
    %8748 = vmatpush1.bf16.msra.mxu0 %v8240
    %8749 = vmatprep.subr.bf16.mxu0 %v8245
    %8750 = vmatpush1.bf16.msra.mxu0 %v8244
    %8751 = vmatprep.subr.bf16.mxu0 %v8249
    %8752 = vmatpush1.bf16.msra.mxu0 %v8248
    %8753 = vmatprep.subr.bf16.mxu0 %v8253
    %8754 = vmatpush1.bf16.msra.mxu0 %v8252
    %8755 = vmatprep.subr.bf16.mxu0 %v8257
    %8756 = vmatpush1.bf16.msra.mxu0 %v8256
    %8757 = vmatprep.mubr.bf16.mxu0 %v7203
    %8758 = vmatmul.mubr.bf16.gmra.mrb[0].mxu0 %v7202
    %v8759 = vpop.f32.mrb[0].mxu0
    %v8760 = vadd.f32 %v8647, %v8759
    %v8761 = vpop.f32.mrb[0].mxu0
    %v8762 = vadd.f32 %v8649, %v8761
    %v8763 = vpop.f32.mrb[0].mxu0
    %v8764 = vadd.f32 %v8651, %v8763
    %v8765 = vpop.f32.mrb[0].mxu0
    %v8766 = vadd.f32 %v8653, %v8765
    %8767 = vmatprep.mubr.bf16.mxu0 %v7207
    %8768 = vmatmul.mubr.bf16.gmra.mrb[0].mxu0 %v7206
    %v8769 = vpop.f32.mrb[0].mxu0
    %v8770 = vadd.f32 %v8657, %v8769
    %v8771 = vpop.f32.mrb[0].mxu0
    %v8772 = vadd.f32 %v8659, %v8771
    %v8773 = vpop.f32.mrb[0].mxu0
    %v8774 = vadd.f32 %v8661, %v8773
    %v8775 = vpop.f32.mrb[0].mxu0
    %v8776 = vadd.f32 %v8663, %v8775
    %8777 = vmatprep.mubr.bf16.mxu0 %v7211
    %8778 = vmatmul.mubr.bf16.gmra.mrb[0].mxu0 %v7210
    %v8779 = vpop.f32.mrb[0].mxu0
    %v8780 = vadd.f32 %v8667, %v8779
    %v8781 = vpop.f32.mrb[0].mxu0
    %v8782 = vadd.f32 %v8669, %v8781
    %v8783 = vpop.f32.mrb[0].mxu0
    %v8784 = vadd.f32 %v8671, %v8783
    %v8785 = vpop.f32.mrb[0].mxu0
    %v8786 = vadd.f32 %v8673, %v8785
    %8787 = vmatprep.mubr.bf16.mxu0 %v7215
    %8788 = vmatmul.mubr.bf16.gmra.mrb[0].mxu0 %v7214
    %v8789 = vpop.f32.mrb[0].mxu0
    %v8790 = vadd.f32 %v8677, %v8789
    %v8791 = vpop.f32.mrb[0].mxu0
    %v8792 = vadd.f32 %v8679, %v8791
    %v8793 = vpop.f32.mrb[0].mxu0
    %v8794 = vadd.f32 %v8681, %v8793
    %v8795 = vpop.f32.mrb[0].mxu0
    %v8796 = vadd.f32 %v8683, %v8795
    %8797 = vmatprep.mubr.bf16.mxu0 %v7219
    %8798 = vmatmul.mubr.bf16.gmra.mrb[0].mxu0 %v7218
    %v8799 = vpop.f32.mrb[0].mxu0
    %v8800 = vadd.f32 %v8687, %v8799
    %v8801 = vpop.f32.mrb[0].mxu0
    %v8802 = vadd.f32 %v8689, %v8801
    %v8803 = vpop.f32.mrb[0].mxu0
    %v8804 = vadd.f32 %v8691, %v8803
    %v8805 = vpop.f32.mrb[0].mxu0
    %v8806 = vadd.f32 %v8693, %v8805
    %8807 = vmatprep.mubr.bf16.mxu0 %v7223
    %8808 = vmatmul.mubr.bf16.gmra.mrb[0].mxu0 %v7222
    %v8809 = vpop.f32.mrb[0].mxu0
    %v8810 = vadd.f32 %v8697, %v8809
    %v8811 = vpop.f32.mrb[0].mxu0
    %v8812 = vadd.f32 %v8699, %v8811
    %v8813 = vpop.f32.mrb[0].mxu0
    %v8814 = vadd.f32 %v8701, %v8813
    %v8815 = vpop.f32.mrb[0].mxu0
    %v8816 = vadd.f32 %v8703, %v8815
    %8817 = vmatprep.mubr.bf16.mxu0 %v7227
    %8818 = vmatmul.mubr.bf16.gmra.mrb[0].mxu0 %v7226
    %v8819 = vpop.f32.mrb[0].mxu0
    %v8820 = vadd.f32 %v8707, %v8819
    %v8821 = vpop.f32.mrb[0].mxu0
    %v8822 = vadd.f32 %v8709, %v8821
    %v8823 = vpop.f32.mrb[0].mxu0
    %v8824 = vadd.f32 %v8711, %v8823
    %v8825 = vpop.f32.mrb[0].mxu0
    %v8826 = vadd.f32 %v8713, %v8825
    %8827 = vmatprep.mubr.bf16.mxu0 %v7231
    %8828 = vmatmul.mubr.bf16.gmra.mrb[0].mxu0 %v7230
    %v8829 = vpop.f32.mrb[0].mxu0
    %v8830 = vadd.f32 %v8717, %v8829
    %v8831 = vpop.f32.mrb[0].mxu0
    %v8832 = vadd.f32 %v8719, %v8831
    %v8833 = vpop.f32.mrb[0].mxu0
    %v8834 = vadd.f32 %v8721, %v8833
    %v8835 = vpop.f32.mrb[0].mxu0
    %v8836 = vadd.f32 %v8723, %v8835
    %8837 = vdwg.mxu0
    %v8966 = vunpack.c.l.b16 %v7490
    %v8967 = vunpack.c.h.b16 %v7490
    %v8968 = vunpack.c.l.b16 %v7491
    %v8969 = vunpack.c.h.b16 %v7491
    %v8970 = vunpack.c.l.b16 %v7492
    %v8971 = vunpack.c.h.b16 %v7492
    %v8972 = vunpack.c.l.b16 %v7493
    %v8973 = vunpack.c.h.b16 %v7493
    %v8974 = vunpack.c.l.b16 %v7494
    %v8975 = vunpack.c.h.b16 %v7494
    %v8976 = vunpack.c.l.b16 %v7495
    %v8977 = vunpack.c.h.b16 %v7495
    %v8978 = vunpack.c.l.b16 %v7496
    %v8979 = vunpack.c.h.b16 %v7496
    %v8980 = vunpack.c.l.b16 %v7497
    %v8981 = vunpack.c.h.b16 %v7497
    %v8982 = vunpack.c.l.b16 %v7498
    %v8983 = vunpack.c.h.b16 %v7498
    %v8984 = vunpack.c.l.b16 %v7499
    %v8985 = vunpack.c.h.b16 %v7499
    %v8986 = vunpack.c.l.b16 %v7500
    %v8987 = vunpack.c.h.b16 %v7500
    %v8988 = vunpack.c.l.b16 %v7501
    %v8989 = vunpack.c.h.b16 %v7501
    %v8990 = vunpack.c.l.b16 %v7502
    %v8991 = vunpack.c.h.b16 %v7502
    %v8992 = vunpack.c.l.b16 %v7503
    %v8993 = vunpack.c.h.b16 %v7503
    %v8994 = vunpack.c.l.b16 %v7504
    %v8995 = vunpack.c.h.b16 %v7504
    %v8996 = vunpack.c.l.b16 %v7505
    %v8997 = vunpack.c.h.b16 %v7505
    %v8998 = vunpack.c.l.b16 %v7506
    %v8999 = vunpack.c.h.b16 %v7506
    %v9000 = vunpack.c.l.b16 %v7507
    %v9001 = vunpack.c.h.b16 %v7507
    %v9002 = vunpack.c.l.b16 %v7508
    %v9003 = vunpack.c.h.b16 %v7508
    %v9004 = vunpack.c.l.b16 %v7509
    %v9005 = vunpack.c.h.b16 %v7509
    %v9006 = vunpack.c.l.b16 %v7510
    %v9007 = vunpack.c.h.b16 %v7510
    %v9008 = vunpack.c.l.b16 %v7511
    %v9009 = vunpack.c.h.b16 %v7511
    %v9010 = vunpack.c.l.b16 %v7512
    %v9011 = vunpack.c.h.b16 %v7512
    %v9012 = vunpack.c.l.b16 %v7513
    %v9013 = vunpack.c.h.b16 %v7513
    %v9014 = vunpack.c.l.b16 %v7514
    %v9015 = vunpack.c.h.b16 %v7514
    %v9016 = vunpack.c.l.b16 %v7515
    %v9017 = vunpack.c.h.b16 %v7515
    %v9018 = vunpack.c.l.b16 %v7516
    %v9019 = vunpack.c.h.b16 %v7516
    %v9020 = vunpack.c.l.b16 %v7517
    %v9021 = vunpack.c.h.b16 %v7517
    %v9022 = vunpack.c.l.b16 %v7518
    %v9023 = vunpack.c.h.b16 %v7518
    %v9024 = vunpack.c.l.b16 %v7519
    %v9025 = vunpack.c.h.b16 %v7519
    %v9026 = vunpack.c.l.b16 %v7520
    %v9027 = vunpack.c.h.b16 %v7520
    %v9028 = vunpack.c.l.b16 %v7521
    %v9029 = vunpack.c.h.b16 %v7521
    %v9030 = vunpack.c.l.b16 %v7522
    %v9031 = vunpack.c.h.b16 %v7522
    %v9032 = vunpack.c.l.b16 %v7523
    %v9033 = vunpack.c.h.b16 %v7523
    %v9034 = vunpack.c.l.b16 %v7524
    %v9035 = vunpack.c.h.b16 %v7524
    %v9036 = vunpack.c.l.b16 %v7525
    %v9037 = vunpack.c.h.b16 %v7525
    %v9038 = vunpack.c.l.b16 %v7526
    %v9039 = vunpack.c.h.b16 %v7526
    %v9040 = vunpack.c.l.b16 %v7527
    %v9041 = vunpack.c.h.b16 %v7527
    %v9042 = vunpack.c.l.b16 %v7528
    %v9043 = vunpack.c.h.b16 %v7528
    %v9044 = vunpack.c.l.b16 %v7529
    %v9045 = vunpack.c.h.b16 %v7529
    %v9046 = vunpack.c.l.b16 %v7530
    %v9047 = vunpack.c.h.b16 %v7530
    %v9048 = vunpack.c.l.b16 %v7531
    %v9049 = vunpack.c.h.b16 %v7531
    %v9050 = vunpack.c.l.b16 %v7532
    %v9051 = vunpack.c.h.b16 %v7532
    %v9052 = vunpack.c.l.b16 %v7533
    %v9053 = vunpack.c.h.b16 %v7533
    %v9054 = vunpack.c.l.b16 %v7534
    %v9055 = vunpack.c.h.b16 %v7534
    %v9056 = vunpack.c.l.b16 %v7535
    %v9057 = vunpack.c.h.b16 %v7535
    %v9058 = vunpack.c.l.b16 %v7536
    %v9059 = vunpack.c.h.b16 %v7536
    %v9060 = vunpack.c.l.b16 %v7537
    %v9061 = vunpack.c.h.b16 %v7537
    %v9062 = vunpack.c.l.b16 %v7538
    %v9063 = vunpack.c.h.b16 %v7538
    %v9064 = vunpack.c.l.b16 %v7539
    %v9065 = vunpack.c.h.b16 %v7539
    %v9066 = vunpack.c.l.b16 %v7540
    %v9067 = vunpack.c.h.b16 %v7540
    %v9068 = vunpack.c.l.b16 %v7541
    %v9069 = vunpack.c.h.b16 %v7541
    %v9070 = vunpack.c.l.b16 %v7542
    %v9071 = vunpack.c.h.b16 %v7542
    %v9072 = vunpack.c.l.b16 %v7543
    %v9073 = vunpack.c.h.b16 %v7543
    %v9074 = vunpack.c.l.b16 %v7544
    %v9075 = vunpack.c.h.b16 %v7544
    %v9076 = vunpack.c.l.b16 %v7545
    %v9077 = vunpack.c.h.b16 %v7545
    %v9078 = vunpack.c.l.b16 %v7546
    %v9079 = vunpack.c.h.b16 %v7546
    %v9080 = vunpack.c.l.b16 %v7547
    %v9081 = vunpack.c.h.b16 %v7547
    %v9082 = vunpack.c.l.b16 %v7548
    %v9083 = vunpack.c.h.b16 %v7548
    %v9084 = vunpack.c.l.b16 %v7549
    %v9085 = vunpack.c.h.b16 %v7549
    %v9086 = vunpack.c.l.b16 %v7550
    %v9087 = vunpack.c.h.b16 %v7550
    %v9088 = vunpack.c.l.b16 %v7551
    %v9089 = vunpack.c.h.b16 %v7551
    %v9090 = vunpack.c.l.b16 %v7552
    %v9091 = vunpack.c.h.b16 %v7552
    %v9092 = vunpack.c.l.b16 %v7553
    %v9093 = vunpack.c.h.b16 %v7553
    %v9094 = vunpack.c.l.b16 %v7554
    %v9095 = vunpack.c.h.b16 %v7554
    %v9096 = vunpack.c.l.b16 %v7555
    %v9097 = vunpack.c.h.b16 %v7555
    %v9098 = vunpack.c.l.b16 %v7556
    %v9099 = vunpack.c.h.b16 %v7556
    %v9100 = vunpack.c.l.b16 %v7557
    %v9101 = vunpack.c.h.b16 %v7557
    %v9102 = vunpack.c.l.b16 %v7558
    %v9103 = vunpack.c.h.b16 %v7558
    %v9104 = vunpack.c.l.b16 %v7559
    %v9105 = vunpack.c.h.b16 %v7559
    %v9106 = vunpack.c.l.b16 %v7560
    %v9107 = vunpack.c.h.b16 %v7560
    %v9108 = vunpack.c.l.b16 %v7561
    %v9109 = vunpack.c.h.b16 %v7561
    %v9110 = vunpack.c.l.b16 %v7562
    %v9111 = vunpack.c.h.b16 %v7562
    %v9112 = vunpack.c.l.b16 %v7563
    %v9113 = vunpack.c.h.b16 %v7563
    %v9114 = vunpack.c.l.b16 %v7564
    %v9115 = vunpack.c.h.b16 %v7564
    %v9116 = vunpack.c.l.b16 %v7565
    %v9117 = vunpack.c.h.b16 %v7565
    %v9118 = vunpack.c.l.b16 %v7566
    %v9119 = vunpack.c.h.b16 %v7566
    %v9120 = vunpack.c.l.b16 %v7567
    %v9121 = vunpack.c.h.b16 %v7567
    %v9122 = vunpack.c.l.b16 %v7568
    %v9123 = vunpack.c.h.b16 %v7568
    %v9124 = vunpack.c.l.b16 %v7569
    %v9125 = vunpack.c.h.b16 %v7569
    %v9126 = vunpack.c.l.b16 %v7570
    %v9127 = vunpack.c.h.b16 %v7570
    %v9128 = vunpack.c.l.b16 %v7571
    %v9129 = vunpack.c.h.b16 %v7571
    %v9130 = vunpack.c.l.b16 %v7572
    %v9131 = vunpack.c.h.b16 %v7572
    %v9132 = vunpack.c.l.b16 %v7573
    %v9133 = vunpack.c.h.b16 %v7573
    %v9134 = vunpack.c.l.b16 %v7574
    %v9135 = vunpack.c.h.b16 %v7574
    %v9136 = vunpack.c.l.b16 %v7575
    %v9137 = vunpack.c.h.b16 %v7575
    %v9138 = vunpack.c.l.b16 %v7576
    %v9139 = vunpack.c.h.b16 %v7576
    %v9140 = vunpack.c.l.b16 %v7577
    %v9141 = vunpack.c.h.b16 %v7577
    %v9142 = vunpack.c.l.b16 %v7578
    %v9143 = vunpack.c.h.b16 %v7578
    %v9144 = vunpack.c.l.b16 %v7579
    %v9145 = vunpack.c.h.b16 %v7579
    %v9146 = vunpack.c.l.b16 %v7580
    %v9147 = vunpack.c.h.b16 %v7580
    %v9148 = vunpack.c.l.b16 %v7581
    %v9149 = vunpack.c.h.b16 %v7581
    %v9150 = vunpack.c.l.b16 %v7582
    %v9151 = vunpack.c.h.b16 %v7582
    %v9152 = vunpack.c.l.b16 %v7583
    %v9153 = vunpack.c.h.b16 %v7583
    %v9154 = vunpack.c.l.b16 %v7584
    %v9155 = vunpack.c.h.b16 %v7584
    %v9156 = vunpack.c.l.b16 %v7585
    %v9157 = vunpack.c.h.b16 %v7585
    %v9158 = vunpack.c.l.b16 %v7586
    %v9159 = vunpack.c.h.b16 %v7586
    %v9160 = vunpack.c.l.b16 %v7587
    %v9161 = vunpack.c.h.b16 %v7587
    %v9162 = vunpack.c.l.b16 %v7588
    %v9163 = vunpack.c.h.b16 %v7588
    %v9164 = vunpack.c.l.b16 %v7589
    %v9165 = vunpack.c.h.b16 %v7589
    %v9166 = vunpack.c.l.b16 %v7590
    %v9167 = vunpack.c.h.b16 %v7590
    %v9168 = vunpack.c.l.b16 %v7591
    %v9169 = vunpack.c.h.b16 %v7591
    %v9170 = vunpack.c.l.b16 %v7592
    %v9171 = vunpack.c.h.b16 %v7592
    %v9172 = vunpack.c.l.b16 %v7593
    %v9173 = vunpack.c.h.b16 %v7593
    %v9174 = vunpack.c.l.b16 %v7594
    %v9175 = vunpack.c.h.b16 %v7594
    %v9176 = vunpack.c.l.b16 %v7595
    %v9177 = vunpack.c.h.b16 %v7595
    %v9178 = vunpack.c.l.b16 %v7596
    %v9179 = vunpack.c.h.b16 %v7596
    %v9180 = vunpack.c.l.b16 %v7597
    %v9181 = vunpack.c.h.b16 %v7597
    %v9182 = vunpack.c.l.b16 %v7598
    %v9183 = vunpack.c.h.b16 %v7598
    %v9184 = vunpack.c.l.b16 %v7599
    %v9185 = vunpack.c.h.b16 %v7599
    %v9186 = vunpack.c.l.b16 %v7600
    %v9187 = vunpack.c.h.b16 %v7600
    %v9188 = vunpack.c.l.b16 %v7601
    %v9189 = vunpack.c.h.b16 %v7601
    %v9190 = vunpack.c.l.b16 %v7602
    %v9191 = vunpack.c.h.b16 %v7602
    %v9192 = vunpack.c.l.b16 %v7603
    %v9193 = vunpack.c.h.b16 %v7603
    %v9194 = vunpack.c.l.b16 %v7604
    %v9195 = vunpack.c.h.b16 %v7604
    %v9196 = vunpack.c.l.b16 %v7605
    %v9197 = vunpack.c.h.b16 %v7605
    %v9198 = vunpack.c.l.b16 %v7606
    %v9199 = vunpack.c.h.b16 %v7606
    %v9200 = vunpack.c.l.b16 %v7607
    %v9201 = vunpack.c.h.b16 %v7607
    %v9202 = vunpack.c.l.b16 %v7608
    %v9203 = vunpack.c.h.b16 %v7608
    %v9204 = vunpack.c.l.b16 %v7609
    %v9205 = vunpack.c.h.b16 %v7609
    %v9206 = vunpack.c.l.b16 %v7610
    %v9207 = vunpack.c.h.b16 %v7610
    %v9208 = vunpack.c.l.b16 %v7611
    %v9209 = vunpack.c.h.b16 %v7611
    %v9210 = vunpack.c.l.b16 %v7612
    %v9211 = vunpack.c.h.b16 %v7612
    %v9212 = vunpack.c.l.b16 %v7613
    %v9213 = vunpack.c.h.b16 %v7613
    %v9214 = vunpack.c.l.b16 %v7614
    %v9215 = vunpack.c.h.b16 %v7614
    %v9216 = vunpack.c.l.b16 %v7615
    %v9217 = vunpack.c.h.b16 %v7615
    %v9218 = vunpack.c.l.b16 %v7616
    %v9219 = vunpack.c.h.b16 %v7616
    %v9220 = vunpack.c.l.b16 %v7617
    %v9221 = vunpack.c.h.b16 %v7617
    %v9222 = vpack.c.b16 %v8970, %v8966
    %v9223 = vpack.c.b16 %v8971, %v8967
    %v9224 = vpack.c.b16 %v8972, %v8968
    %v9225 = vpack.c.b16 %v8973, %v8969
    %v9226 = vpack.c.b16 %v8978, %v8974
    %v9227 = vpack.c.b16 %v8979, %v8975
    %v9228 = vpack.c.b16 %v8980, %v8976
    %v9229 = vpack.c.b16 %v8981, %v8977
    %v9230 = vpack.c.b16 %v8986, %v8982
    %v9231 = vpack.c.b16 %v8987, %v8983
    %v9232 = vpack.c.b16 %v8988, %v8984
    %v9233 = vpack.c.b16 %v8989, %v8985
    %v9234 = vpack.c.b16 %v8994, %v8990
    %v9235 = vpack.c.b16 %v8995, %v8991
    %v9236 = vpack.c.b16 %v8996, %v8992
    %v9237 = vpack.c.b16 %v8997, %v8993
    %v9238 = vpack.c.b16 %v9002, %v8998
    %v9239 = vpack.c.b16 %v9003, %v8999
    %v9240 = vpack.c.b16 %v9004, %v9000
    %v9241 = vpack.c.b16 %v9005, %v9001
    %v9242 = vpack.c.b16 %v9010, %v9006
    %v9243 = vpack.c.b16 %v9011, %v9007
    %v9244 = vpack.c.b16 %v9012, %v9008
    %v9245 = vpack.c.b16 %v9013, %v9009
    %v9246 = vpack.c.b16 %v9018, %v9014
    %v9247 = vpack.c.b16 %v9019, %v9015
    %v9248 = vpack.c.b16 %v9020, %v9016
    %v9249 = vpack.c.b16 %v9021, %v9017
    %v9250 = vpack.c.b16 %v9026, %v9022
    %v9251 = vpack.c.b16 %v9027, %v9023
    %v9252 = vpack.c.b16 %v9028, %v9024
    %v9253 = vpack.c.b16 %v9029, %v9025
    %v9254 = vpack.c.b16 %v9034, %v9030
    %v9255 = vpack.c.b16 %v9035, %v9031
    %v9256 = vpack.c.b16 %v9036, %v9032
    %v9257 = vpack.c.b16 %v9037, %v9033
    %v9258 = vpack.c.b16 %v9042, %v9038
    %v9259 = vpack.c.b16 %v9043, %v9039
    %v9260 = vpack.c.b16 %v9044, %v9040
    %v9261 = vpack.c.b16 %v9045, %v9041
    %v9262 = vpack.c.b16 %v9050, %v9046
    %v9263 = vpack.c.b16 %v9051, %v9047
    %v9264 = vpack.c.b16 %v9052, %v9048
    %v9265 = vpack.c.b16 %v9053, %v9049
    %v9266 = vpack.c.b16 %v9058, %v9054
    %v9267 = vpack.c.b16 %v9059, %v9055
    %v9268 = vpack.c.b16 %v9060, %v9056
    %v9269 = vpack.c.b16 %v9061, %v9057
    %v9270 = vpack.c.b16 %v9066, %v9062
    %v9271 = vpack.c.b16 %v9067, %v9063
    %v9272 = vpack.c.b16 %v9068, %v9064
    %v9273 = vpack.c.b16 %v9069, %v9065
    %v9274 = vpack.c.b16 %v9074, %v9070
    %v9275 = vpack.c.b16 %v9075, %v9071
    %v9276 = vpack.c.b16 %v9076, %v9072
    %v9277 = vpack.c.b16 %v9077, %v9073
    %v9278 = vpack.c.b16 %v9082, %v9078
    %v9279 = vpack.c.b16 %v9083, %v9079
    %v9280 = vpack.c.b16 %v9084, %v9080
    %v9281 = vpack.c.b16 %v9085, %v9081
    %v9282 = vpack.c.b16 %v9090, %v9086
    %v9283 = vpack.c.b16 %v9091, %v9087
    %v9284 = vpack.c.b16 %v9092, %v9088
    %v9285 = vpack.c.b16 %v9093, %v9089
    %v9286 = vpack.c.b16 %v9098, %v9094
    %v9287 = vpack.c.b16 %v9099, %v9095
    %v9288 = vpack.c.b16 %v9100, %v9096
    %v9289 = vpack.c.b16 %v9101, %v9097
    %v9290 = vpack.c.b16 %v9106, %v9102
    %v9291 = vpack.c.b16 %v9107, %v9103
    %v9292 = vpack.c.b16 %v9108, %v9104
    %v9293 = vpack.c.b16 %v9109, %v9105
    %v9294 = vpack.c.b16 %v9114, %v9110
    %v9295 = vpack.c.b16 %v9115, %v9111
    %v9296 = vpack.c.b16 %v9116, %v9112
    %v9297 = vpack.c.b16 %v9117, %v9113
    %v9298 = vpack.c.b16 %v9122, %v9118
    %v9299 = vpack.c.b16 %v9123, %v9119
    %v9300 = vpack.c.b16 %v9124, %v9120
    %v9301 = vpack.c.b16 %v9125, %v9121
    %v9302 = vpack.c.b16 %v9130, %v9126
    %v9303 = vpack.c.b16 %v9131, %v9127
    %v9304 = vpack.c.b16 %v9132, %v9128
    %v9305 = vpack.c.b16 %v9133, %v9129
    %v9306 = vpack.c.b16 %v9138, %v9134
    %v9307 = vpack.c.b16 %v9139, %v9135
    %v9308 = vpack.c.b16 %v9140, %v9136
    %v9309 = vpack.c.b16 %v9141, %v9137
    %v9310 = vpack.c.b16 %v9146, %v9142
    %v9311 = vpack.c.b16 %v9147, %v9143
    %v9312 = vpack.c.b16 %v9148, %v9144
    %v9313 = vpack.c.b16 %v9149, %v9145
    %v9314 = vpack.c.b16 %v9154, %v9150
    %v9315 = vpack.c.b16 %v9155, %v9151
    %v9316 = vpack.c.b16 %v9156, %v9152
    %v9317 = vpack.c.b16 %v9157, %v9153
    %v9318 = vpack.c.b16 %v9162, %v9158
    %v9319 = vpack.c.b16 %v9163, %v9159
    %v9320 = vpack.c.b16 %v9164, %v9160
    %v9321 = vpack.c.b16 %v9165, %v9161
    %v9322 = vpack.c.b16 %v9170, %v9166
    %v9323 = vpack.c.b16 %v9171, %v9167
    %v9324 = vpack.c.b16 %v9172, %v9168
    %v9325 = vpack.c.b16 %v9173, %v9169
    %v9326 = vpack.c.b16 %v9178, %v9174
    %v9327 = vpack.c.b16 %v9179, %v9175
    %v9328 = vpack.c.b16 %v9180, %v9176
    %v9329 = vpack.c.b16 %v9181, %v9177
    %v9330 = vpack.c.b16 %v9186, %v9182
    %v9331 = vpack.c.b16 %v9187, %v9183
    %v9332 = vpack.c.b16 %v9188, %v9184
    %v9333 = vpack.c.b16 %v9189, %v9185
    %v9334 = vpack.c.b16 %v9194, %v9190
    %v9335 = vpack.c.b16 %v9195, %v9191
    %v9336 = vpack.c.b16 %v9196, %v9192
    %v9337 = vpack.c.b16 %v9197, %v9193
    %v9338 = vpack.c.b16 %v9202, %v9198
    %v9339 = vpack.c.b16 %v9203, %v9199
    %v9340 = vpack.c.b16 %v9204, %v9200
    %v9341 = vpack.c.b16 %v9205, %v9201
    %v9342 = vpack.c.b16 %v9210, %v9206
    %v9343 = vpack.c.b16 %v9211, %v9207
    %v9344 = vpack.c.b16 %v9212, %v9208
    %v9345 = vpack.c.b16 %v9213, %v9209
    %v9346 = vpack.c.b16 %v9218, %v9214
    %v9347 = vpack.c.b16 %v9219, %v9215
    %v9348 = vpack.c.b16 %v9220, %v9216
    %v9349 = vpack.c.b16 %v9221, %v9217
    %9478 = vmatprep.subr.bf16.mxu0 %v9223
    %9479 = vmatpush1.bf16.msra.mxu0 %v9222
    %9480 = vmatprep.subr.bf16.mxu0 %v9227
    %9481 = vmatpush1.bf16.msra.mxu0 %v9226
    %9482 = vmatprep.subr.bf16.mxu0 %v9231
    %9483 = vmatpush1.bf16.msra.mxu0 %v9230
    %9484 = vmatprep.subr.bf16.mxu0 %v9235
    %9485 = vmatpush1.bf16.msra.mxu0 %v9234
    %9486 = vmatprep.subr.bf16.mxu0 %v9239
    %9487 = vmatpush1.bf16.msra.mxu0 %v9238
    %9488 = vmatprep.subr.bf16.mxu0 %v9243
    %9489 = vmatpush1.bf16.msra.mxu0 %v9242
    %9490 = vmatprep.subr.bf16.mxu0 %v9247
    %9491 = vmatpush1.bf16.msra.mxu0 %v9246
    %9492 = vmatprep.subr.bf16.mxu0 %v9251
    %9493 = vmatpush1.bf16.msra.mxu0 %v9250
    %9494 = vmatprep.subr.bf16.mxu0 %v9255
    %9495 = vmatpush1.bf16.msra.mxu0 %v9254
    %9496 = vmatprep.subr.bf16.mxu0 %v9259
    %9497 = vmatpush1.bf16.msra.mxu0 %v9258
    %9498 = vmatprep.subr.bf16.mxu0 %v9263
    %9499 = vmatpush1.bf16.msra.mxu0 %v9262
    %9500 = vmatprep.subr.bf16.mxu0 %v9267
    %9501 = vmatpush1.bf16.msra.mxu0 %v9266
    %9502 = vmatprep.subr.bf16.mxu0 %v9271
    %9503 = vmatpush1.bf16.msra.mxu0 %v9270
    %9504 = vmatprep.subr.bf16.mxu0 %v9275
    %9505 = vmatpush1.bf16.msra.mxu0 %v9274
    %9506 = vmatprep.subr.bf16.mxu0 %v9279
    %9507 = vmatpush1.bf16.msra.mxu0 %v9278
    %9508 = vmatprep.subr.bf16.mxu0 %v9283
    %9509 = vmatpush1.bf16.msra.mxu0 %v9282
    %9510 = vmatprep.mubr.bf16.mxu0 %v7459
    %9511 = vmatmul.mubr.bf16.gmra.mrb[0].mxu0 %v7458
    %v9512 = vpop.f32.mrb[0].mxu0
    %v9513 = vadd.f32 %v8534, %v9512
    %v9514 = vpop.f32.mrb[0].mxu0
    %v9515 = vadd.f32 %v8536, %v9514
    %v9516 = vpop.f32.mrb[0].mxu0
    %v9517 = vadd.f32 %v8538, %v9516
    %v9518 = vpop.f32.mrb[0].mxu0
    %v9519 = vadd.f32 %v8540, %v9518
    %9520 = vmatprep.mubr.bf16.mxu0 %v7463
    %9521 = vmatmul.mubr.bf16.gmra.mrb[0].mxu0 %v7462
    %v9522 = vpop.f32.mrb[0].mxu0
    %v9523 = vadd.f32 %v8544, %v9522
    %v9524 = vpop.f32.mrb[0].mxu0
    %v9525 = vadd.f32 %v8546, %v9524
    %v9526 = vpop.f32.mrb[0].mxu0
    %v9527 = vadd.f32 %v8548, %v9526
    %v9528 = vpop.f32.mrb[0].mxu0
    %v9529 = vadd.f32 %v8550, %v9528
    %9530 = vmatprep.mubr.bf16.mxu0 %v7467
    %9531 = vmatmul.mubr.bf16.gmra.mrb[0].mxu0 %v7466
    %v9532 = vpop.f32.mrb[0].mxu0
    %v9533 = vadd.f32 %v8554, %v9532
    %v9534 = vpop.f32.mrb[0].mxu0
    %v9535 = vadd.f32 %v8556, %v9534
    %v9536 = vpop.f32.mrb[0].mxu0
    %v9537 = vadd.f32 %v8558, %v9536
    %v9538 = vpop.f32.mrb[0].mxu0
    %v9539 = vadd.f32 %v8560, %v9538
    %9540 = vmatprep.mubr.bf16.mxu0 %v7471
    %9541 = vmatmul.mubr.bf16.gmra.mrb[0].mxu0 %v7470
    %v9542 = vpop.f32.mrb[0].mxu0
    %v9543 = vadd.f32 %v8564, %v9542
    %v9544 = vpop.f32.mrb[0].mxu0
    %v9545 = vadd.f32 %v8566, %v9544
    %v9546 = vpop.f32.mrb[0].mxu0
    %v9547 = vadd.f32 %v8568, %v9546
    %v9548 = vpop.f32.mrb[0].mxu0
    %v9549 = vadd.f32 %v8570, %v9548
    %9550 = vmatprep.mubr.bf16.mxu0 %v7475
    %9551 = vmatmul.mubr.bf16.gmra.mrb[0].mxu0 %v7474
    %v9552 = vpop.f32.mrb[0].mxu0
    %v9553 = vadd.f32 %v8574, %v9552
    %v9554 = vpop.f32.mrb[0].mxu0
    %v9555 = vadd.f32 %v8576, %v9554
    %v9556 = vpop.f32.mrb[0].mxu0
    %v9557 = vadd.f32 %v8578, %v9556
    %v9558 = vpop.f32.mrb[0].mxu0
    %v9559 = vadd.f32 %v8580, %v9558
    %9560 = vmatprep.mubr.bf16.mxu0 %v7479
    %9561 = vmatmul.mubr.bf16.gmra.mrb[0].mxu0 %v7478
    %v9562 = vpop.f32.mrb[0].mxu0
    %v9563 = vadd.f32 %v8584, %v9562
    %v9564 = vpop.f32.mrb[0].mxu0
    %v9565 = vadd.f32 %v8586, %v9564
    %v9566 = vpop.f32.mrb[0].mxu0
    %v9567 = vadd.f32 %v8588, %v9566
    %v9568 = vpop.f32.mrb[0].mxu0
    %v9569 = vadd.f32 %v8590, %v9568
    %9570 = vmatprep.mubr.bf16.mxu0 %v7483
    %9571 = vmatmul.mubr.bf16.gmra.mrb[0].mxu0 %v7482
    %v9572 = vpop.f32.mrb[0].mxu0
    %v9573 = vadd.f32 %v8594, %v9572
    %v9574 = vpop.f32.mrb[0].mxu0
    %v9575 = vadd.f32 %v8596, %v9574
    %v9576 = vpop.f32.mrb[0].mxu0
    %v9577 = vadd.f32 %v8598, %v9576
    %v9578 = vpop.f32.mrb[0].mxu0
    %v9579 = vadd.f32 %v8600, %v9578
    %9580 = vmatprep.mubr.bf16.mxu0 %v7487
    %9581 = vmatmul.mubr.bf16.gmra.mrb[0].mxu0 %v7486
    %v9582 = vpop.f32.mrb[0].mxu0
    %v9583 = vadd.f32 %v8604, %v9582
    %v9584 = vpop.f32.mrb[0].mxu0
    %v9585 = vadd.f32 %v8606, %v9584
    %v9586 = vpop.f32.mrb[0].mxu0
    %v9587 = vadd.f32 %v8608, %v9586
    %v9588 = vpop.f32.mrb[0].mxu0
    %v9589 = vadd.f32 %v8610, %v9588
    %9590 = vdwg.mxu0
    %9591 = vmatprep.subr.bf16.mxu0 %v9287
    %9592 = vmatpush1.bf16.msra.mxu0 %v9286
    %9593 = vmatprep.subr.bf16.mxu0 %v9291
    %9594 = vmatpush1.bf16.msra.mxu0 %v9290
    %9595 = vmatprep.subr.bf16.mxu0 %v9295
    %9596 = vmatpush1.bf16.msra.mxu0 %v9294
    %9597 = vmatprep.subr.bf16.mxu0 %v9299
    %9598 = vmatpush1.bf16.msra.mxu0 %v9298
    %9599 = vmatprep.subr.bf16.mxu0 %v9303
    %9600 = vmatpush1.bf16.msra.mxu0 %v9302
    %9601 = vmatprep.subr.bf16.mxu0 %v9307
    %9602 = vmatpush1.bf16.msra.mxu0 %v9306
    %9603 = vmatprep.subr.bf16.mxu0 %v9311
    %9604 = vmatpush1.bf16.msra.mxu0 %v9310
    %9605 = vmatprep.subr.bf16.mxu0 %v9315
    %9606 = vmatpush1.bf16.msra.mxu0 %v9314
    %9607 = vmatprep.subr.bf16.mxu0 %v9319
    %9608 = vmatpush1.bf16.msra.mxu0 %v9318
    %9609 = vmatprep.subr.bf16.mxu0 %v9323
    %9610 = vmatpush1.bf16.msra.mxu0 %v9322
    %9611 = vmatprep.subr.bf16.mxu0 %v9327
    %9612 = vmatpush1.bf16.msra.mxu0 %v9326
    %9613 = vmatprep.subr.bf16.mxu0 %v9331
    %9614 = vmatpush1.bf16.msra.mxu0 %v9330
    %9615 = vmatprep.subr.bf16.mxu0 %v9335
    %9616 = vmatpush1.bf16.msra.mxu0 %v9334
    %9617 = vmatprep.subr.bf16.mxu0 %v9339
    %9618 = vmatpush1.bf16.msra.mxu0 %v9338
    %9619 = vmatprep.subr.bf16.mxu0 %v9343
    %9620 = vmatpush1.bf16.msra.mxu0 %v9342
    %9621 = vmatprep.subr.bf16.mxu0 %v9347
    %9622 = vmatpush1.bf16.msra.mxu0 %v9346
    %9623 = vmatprep.mubr.bf16.mxu0 %v7461
    %9624 = vmatmul.mubr.bf16.gmra.mrb[0].mxu0 %v7460
    %v9625 = vpop.f32.mrb[0].mxu0
    %v9626 = vadd.f32 %v9513, %v9625
    %v9627 = vpop.f32.mrb[0].mxu0
    %v9628 = vadd.f32 %v9515, %v9627
    %v9629 = vpop.f32.mrb[0].mxu0
    %v9630 = vadd.f32 %v9517, %v9629
    %v9631 = vpop.f32.mrb[0].mxu0
    %v9632 = vadd.f32 %v9519, %v9631
    %9633 = vmatprep.mubr.bf16.mxu0 %v7465
    %9634 = vmatmul.mubr.bf16.gmra.mrb[0].mxu0 %v7464
    %v9635 = vpop.f32.mrb[0].mxu0
    %v9636 = vadd.f32 %v9523, %v9635
    %v9637 = vpop.f32.mrb[0].mxu0
    %v9638 = vadd.f32 %v9525, %v9637
    %v9639 = vpop.f32.mrb[0].mxu0
    %v9640 = vadd.f32 %v9527, %v9639
    %v9641 = vpop.f32.mrb[0].mxu0
    %v9642 = vadd.f32 %v9529, %v9641
    %9643 = vmatprep.mubr.bf16.mxu0 %v7469
    %9644 = vmatmul.mubr.bf16.gmra.mrb[0].mxu0 %v7468
    %v9645 = vpop.f32.mrb[0].mxu0
    %v9646 = vadd.f32 %v9533, %v9645
    %v9647 = vpop.f32.mrb[0].mxu0
    %v9648 = vadd.f32 %v9535, %v9647
    %v9649 = vpop.f32.mrb[0].mxu0
    %v9650 = vadd.f32 %v9537, %v9649
    %v9651 = vpop.f32.mrb[0].mxu0
    %v9652 = vadd.f32 %v9539, %v9651
    %9653 = vmatprep.mubr.bf16.mxu0 %v7473
    %9654 = vmatmul.mubr.bf16.gmra.mrb[0].mxu0 %v7472
    %v9655 = vpop.f32.mrb[0].mxu0
    %v9656 = vadd.f32 %v9543, %v9655
    %v9657 = vpop.f32.mrb[0].mxu0
    %v9658 = vadd.f32 %v9545, %v9657
    %v9659 = vpop.f32.mrb[0].mxu0
    %v9660 = vadd.f32 %v9547, %v9659
    %v9661 = vpop.f32.mrb[0].mxu0
    %v9662 = vadd.f32 %v9549, %v9661
    %9663 = vmatprep.mubr.bf16.mxu0 %v7477
    %9664 = vmatmul.mubr.bf16.gmra.mrb[0].mxu0 %v7476
    %v9665 = vpop.f32.mrb[0].mxu0
    %v9666 = vadd.f32 %v9553, %v9665
    %v9667 = vpop.f32.mrb[0].mxu0
    %v9668 = vadd.f32 %v9555, %v9667
    %v9669 = vpop.f32.mrb[0].mxu0
    %v9670 = vadd.f32 %v9557, %v9669
    %v9671 = vpop.f32.mrb[0].mxu0
    %v9672 = vadd.f32 %v9559, %v9671
    %9673 = vmatprep.mubr.bf16.mxu0 %v7481
    %9674 = vmatmul.mubr.bf16.gmra.mrb[0].mxu0 %v7480
    %v9675 = vpop.f32.mrb[0].mxu0
    %v9676 = vadd.f32 %v9563, %v9675
    %v9677 = vpop.f32.mrb[0].mxu0
    %v9678 = vadd.f32 %v9565, %v9677
    %v9679 = vpop.f32.mrb[0].mxu0
    %v9680 = vadd.f32 %v9567, %v9679
    %v9681 = vpop.f32.mrb[0].mxu0
    %v9682 = vadd.f32 %v9569, %v9681
    %9683 = vmatprep.mubr.bf16.mxu0 %v7485
    %9684 = vmatmul.mubr.bf16.gmra.mrb[0].mxu0 %v7484
    %v9685 = vpop.f32.mrb[0].mxu0
    %v9686 = vadd.f32 %v9573, %v9685
    %v9687 = vpop.f32.mrb[0].mxu0
    %v9688 = vadd.f32 %v9575, %v9687
    %v9689 = vpop.f32.mrb[0].mxu0
    %v9690 = vadd.f32 %v9577, %v9689
    %v9691 = vpop.f32.mrb[0].mxu0
    %v9692 = vadd.f32 %v9579, %v9691
    %9693 = vmatprep.mubr.bf16.mxu0 %v7489
    %9694 = vmatmul.mubr.bf16.gmra.mrb[0].mxu0 %v7488
    %v9695 = vpop.f32.mrb[0].mxu0
    %v9696 = vadd.f32 %v9583, %v9695
    %v9697 = vpop.f32.mrb[0].mxu0
    %v9698 = vadd.f32 %v9585, %v9697
    %v9699 = vpop.f32.mrb[0].mxu0
    %v9700 = vadd.f32 %v9587, %v9699
    %v9701 = vpop.f32.mrb[0].mxu0
    %v9702 = vadd.f32 %v9589, %v9701
    %9703 = vdwg.mxu0
    %9704 = vmatprep.subr.bf16.mxu0 %v9225
    %9705 = vmatpush1.bf16.msra.mxu0 %v9224
    %9706 = vmatprep.subr.bf16.mxu0 %v9229
    %9707 = vmatpush1.bf16.msra.mxu0 %v9228
    %9708 = vmatprep.subr.bf16.mxu0 %v9233
    %9709 = vmatpush1.bf16.msra.mxu0 %v9232
    %9710 = vmatprep.subr.bf16.mxu0 %v9237
    %9711 = vmatpush1.bf16.msra.mxu0 %v9236
    %9712 = vmatprep.subr.bf16.mxu0 %v9241
    %9713 = vmatpush1.bf16.msra.mxu0 %v9240
    %9714 = vmatprep.subr.bf16.mxu0 %v9245
    %9715 = vmatpush1.bf16.msra.mxu0 %v9244
    %9716 = vmatprep.subr.bf16.mxu0 %v9249
    %9717 = vmatpush1.bf16.msra.mxu0 %v9248
    %9718 = vmatprep.subr.bf16.mxu0 %v9253
    %9719 = vmatpush1.bf16.msra.mxu0 %v9252
    %9720 = vmatprep.subr.bf16.mxu0 %v9257
    %9721 = vmatpush1.bf16.msra.mxu0 %v9256
    %9722 = vmatprep.subr.bf16.mxu0 %v9261
    %9723 = vmatpush1.bf16.msra.mxu0 %v9260
    %9724 = vmatprep.subr.bf16.mxu0 %v9265
    %9725 = vmatpush1.bf16.msra.mxu0 %v9264
    %9726 = vmatprep.subr.bf16.mxu0 %v9269
    %9727 = vmatpush1.bf16.msra.mxu0 %v9268
    %9728 = vmatprep.subr.bf16.mxu0 %v9273
    %9729 = vmatpush1.bf16.msra.mxu0 %v9272
    %9730 = vmatprep.subr.bf16.mxu0 %v9277
    %9731 = vmatpush1.bf16.msra.mxu0 %v9276
    %9732 = vmatprep.subr.bf16.mxu0 %v9281
    %9733 = vmatpush1.bf16.msra.mxu0 %v9280
    %9734 = vmatprep.subr.bf16.mxu0 %v9285
    %9735 = vmatpush1.bf16.msra.mxu0 %v9284
    %9736 = vmatprep.mubr.bf16.mxu0 %v7459
    %9737 = vmatmul.mubr.bf16.gmra.mrb[0].mxu0 %v7458
    %v9738 = vpop.f32.mrb[0].mxu0
    %v9739 = vadd.f32 %v8760, %v9738
    %v9740 = vpop.f32.mrb[0].mxu0
    %v9741 = vadd.f32 %v8762, %v9740
    %v9742 = vpop.f32.mrb[0].mxu0
    %v9743 = vadd.f32 %v8764, %v9742
    %v9744 = vpop.f32.mrb[0].mxu0
    %v9745 = vadd.f32 %v8766, %v9744
    %9746 = vmatprep.mubr.bf16.mxu0 %v7463
    %9747 = vmatmul.mubr.bf16.gmra.mrb[0].mxu0 %v7462
    %v9748 = vpop.f32.mrb[0].mxu0
    %v9749 = vadd.f32 %v8770, %v9748
    %v9750 = vpop.f32.mrb[0].mxu0
    %v9751 = vadd.f32 %v8772, %v9750
    %v9752 = vpop.f32.mrb[0].mxu0
    %v9753 = vadd.f32 %v8774, %v9752
    %v9754 = vpop.f32.mrb[0].mxu0
    %v9755 = vadd.f32 %v8776, %v9754
    %9756 = vmatprep.mubr.bf16.mxu0 %v7467
    %9757 = vmatmul.mubr.bf16.gmra.mrb[0].mxu0 %v7466
    %v9758 = vpop.f32.mrb[0].mxu0
    %v9759 = vadd.f32 %v8780, %v9758
    %v9760 = vpop.f32.mrb[0].mxu0
    %v9761 = vadd.f32 %v8782, %v9760
    %v9762 = vpop.f32.mrb[0].mxu0
    %v9763 = vadd.f32 %v8784, %v9762
    %v9764 = vpop.f32.mrb[0].mxu0
    %v9765 = vadd.f32 %v8786, %v9764
    %9766 = vmatprep.mubr.bf16.mxu0 %v7471
    %9767 = vmatmul.mubr.bf16.gmra.mrb[0].mxu0 %v7470
    %v9768 = vpop.f32.mrb[0].mxu0
    %v9769 = vadd.f32 %v8790, %v9768
    %v9770 = vpop.f32.mrb[0].mxu0
    %v9771 = vadd.f32 %v8792, %v9770
    %v9772 = vpop.f32.mrb[0].mxu0
    %v9773 = vadd.f32 %v8794, %v9772
    %v9774 = vpop.f32.mrb[0].mxu0
    %v9775 = vadd.f32 %v8796, %v9774
    %9776 = vmatprep.mubr.bf16.mxu0 %v7475
    %9777 = vmatmul.mubr.bf16.gmra.mrb[0].mxu0 %v7474
    %v9778 = vpop.f32.mrb[0].mxu0
    %v9779 = vadd.f32 %v8800, %v9778
    %v9780 = vpop.f32.mrb[0].mxu0
    %v9781 = vadd.f32 %v8802, %v9780
    %v9782 = vpop.f32.mrb[0].mxu0
    %v9783 = vadd.f32 %v8804, %v9782
    %v9784 = vpop.f32.mrb[0].mxu0
    %v9785 = vadd.f32 %v8806, %v9784
    %9786 = vmatprep.mubr.bf16.mxu0 %v7479
    %9787 = vmatmul.mubr.bf16.gmra.mrb[0].mxu0 %v7478
    %v9788 = vpop.f32.mrb[0].mxu0
    %v9789 = vadd.f32 %v8810, %v9788
    %v9790 = vpop.f32.mrb[0].mxu0
    %v9791 = vadd.f32 %v8812, %v9790
    %v9792 = vpop.f32.mrb[0].mxu0
    %v9793 = vadd.f32 %v8814, %v9792
    %v9794 = vpop.f32.mrb[0].mxu0
    %v9795 = vadd.f32 %v8816, %v9794
    %9796 = vmatprep.mubr.bf16.mxu0 %v7483
    %9797 = vmatmul.mubr.bf16.gmra.mrb[0].mxu0 %v7482
    %v9798 = vpop.f32.mrb[0].mxu0
    %v9799 = vadd.f32 %v8820, %v9798
    %v9800 = vpop.f32.mrb[0].mxu0
    %v9801 = vadd.f32 %v8822, %v9800
    %v9802 = vpop.f32.mrb[0].mxu0
    %v9803 = vadd.f32 %v8824, %v9802
    %v9804 = vpop.f32.mrb[0].mxu0
    %v9805 = vadd.f32 %v8826, %v9804
    %9806 = vmatprep.mubr.bf16.mxu0 %v7487
    %9807 = vmatmul.mubr.bf16.gmra.mrb[0].mxu0 %v7486
    %v9808 = vpop.f32.mrb[0].mxu0
    %v9809 = vadd.f32 %v8830, %v9808
    %v9810 = vpop.f32.mrb[0].mxu0
    %v9811 = vadd.f32 %v8832, %v9810
    %v9812 = vpop.f32.mrb[0].mxu0
    %v9813 = vadd.f32 %v8834, %v9812
    %v9814 = vpop.f32.mrb[0].mxu0
    %v9815 = vadd.f32 %v8836, %v9814
    %9816 = vdwg.mxu0
    %9817 = vmatprep.subr.bf16.mxu0 %v9289
    %9818 = vmatpush1.bf16.msra.mxu0 %v9288
    %9819 = vmatprep.subr.bf16.mxu0 %v9293
    %9820 = vmatpush1.bf16.msra.mxu0 %v9292
    %9821 = vmatprep.subr.bf16.mxu0 %v9297
    %9822 = vmatpush1.bf16.msra.mxu0 %v9296
    %9823 = vmatprep.subr.bf16.mxu0 %v9301
    %9824 = vmatpush1.bf16.msra.mxu0 %v9300
    %9825 = vmatprep.subr.bf16.mxu0 %v9305
    %9826 = vmatpush1.bf16.msra.mxu0 %v9304
    %9827 = vmatprep.subr.bf16.mxu0 %v9309
    %9828 = vmatpush1.bf16.msra.mxu0 %v9308
    %9829 = vmatprep.subr.bf16.mxu0 %v9313
    %9830 = vmatpush1.bf16.msra.mxu0 %v9312
    %9831 = vmatprep.subr.bf16.mxu0 %v9317
    %9832 = vmatpush1.bf16.msra.mxu0 %v9316
    %9833 = vmatprep.subr.bf16.mxu0 %v9321
    %9834 = vmatpush1.bf16.msra.mxu0 %v9320
    %9835 = vmatprep.subr.bf16.mxu0 %v9325
    %9836 = vmatpush1.bf16.msra.mxu0 %v9324
    %9837 = vmatprep.subr.bf16.mxu0 %v9329
    %9838 = vmatpush1.bf16.msra.mxu0 %v9328
    %9839 = vmatprep.subr.bf16.mxu0 %v9333
    %9840 = vmatpush1.bf16.msra.mxu0 %v9332
    %9841 = vmatprep.subr.bf16.mxu0 %v9337
    %9842 = vmatpush1.bf16.msra.mxu0 %v9336
    %9843 = vmatprep.subr.bf16.mxu0 %v9341
    %9844 = vmatpush1.bf16.msra.mxu0 %v9340
    %9845 = vmatprep.subr.bf16.mxu0 %v9345
    %9846 = vmatpush1.bf16.msra.mxu0 %v9344
    %9847 = vmatprep.subr.bf16.mxu0 %v9349
    %9848 = vmatpush1.bf16.msra.mxu0 %v9348
    %9849 = vmatprep.mubr.bf16.mxu0 %v7461
    %9850 = vmatmul.mubr.bf16.gmra.mrb[0].mxu0 %v7460
    %v9851 = vpop.f32.mrb[0].mxu0
    %v9852 = vadd.f32 %v9739, %v9851
    %v9853 = vpop.f32.mrb[0].mxu0
    %v9854 = vadd.f32 %v9741, %v9853
    %v9855 = vpop.f32.mrb[0].mxu0
    %v9856 = vadd.f32 %v9743, %v9855
    %v9857 = vpop.f32.mrb[0].mxu0
    %v9858 = vadd.f32 %v9745, %v9857
    %9859 = vmatprep.mubr.bf16.mxu0 %v7465
    %9860 = vmatmul.mubr.bf16.gmra.mrb[0].mxu0 %v7464
    %v9861 = vpop.f32.mrb[0].mxu0
    %v9862 = vadd.f32 %v9749, %v9861
    %v9863 = vpop.f32.mrb[0].mxu0
    %v9864 = vadd.f32 %v9751, %v9863
    %v9865 = vpop.f32.mrb[0].mxu0
    %v9866 = vadd.f32 %v9753, %v9865
    %v9867 = vpop.f32.mrb[0].mxu0
    %v9868 = vadd.f32 %v9755, %v9867
    %9869 = vmatprep.mubr.bf16.mxu0 %v7469
    %9870 = vmatmul.mubr.bf16.gmra.mrb[0].mxu0 %v7468
    %v9871 = vpop.f32.mrb[0].mxu0
    %v9872 = vadd.f32 %v9759, %v9871
    %v9873 = vpop.f32.mrb[0].mxu0
    %v9874 = vadd.f32 %v9761, %v9873
    %v9875 = vpop.f32.mrb[0].mxu0
    %v9876 = vadd.f32 %v9763, %v9875
    %v9877 = vpop.f32.mrb[0].mxu0
    %v9878 = vadd.f32 %v9765, %v9877
    %9879 = vmatprep.mubr.bf16.mxu0 %v7473
    %9880 = vmatmul.mubr.bf16.gmra.mrb[0].mxu0 %v7472
    %v9881 = vpop.f32.mrb[0].mxu0
    %v9882 = vadd.f32 %v9769, %v9881
    %v9883 = vpop.f32.mrb[0].mxu0
    %v9884 = vadd.f32 %v9771, %v9883
    %v9885 = vpop.f32.mrb[0].mxu0
    %v9886 = vadd.f32 %v9773, %v9885
    %v9887 = vpop.f32.mrb[0].mxu0
    %v9888 = vadd.f32 %v9775, %v9887
    %9889 = vmatprep.mubr.bf16.mxu0 %v7477
    %9890 = vmatmul.mubr.bf16.gmra.mrb[0].mxu0 %v7476
    %v9891 = vpop.f32.mrb[0].mxu0
    %v9892 = vadd.f32 %v9779, %v9891
    %v9893 = vpop.f32.mrb[0].mxu0
    %v9894 = vadd.f32 %v9781, %v9893
    %v9895 = vpop.f32.mrb[0].mxu0
    %v9896 = vadd.f32 %v9783, %v9895
    %v9897 = vpop.f32.mrb[0].mxu0
    %v9898 = vadd.f32 %v9785, %v9897
    %9899 = vmatprep.mubr.bf16.mxu0 %v7481
    %9900 = vmatmul.mubr.bf16.gmra.mrb[0].mxu0 %v7480
    %v9901 = vpop.f32.mrb[0].mxu0
    %v9902 = vadd.f32 %v9789, %v9901
    %v9903 = vpop.f32.mrb[0].mxu0
    %v9904 = vadd.f32 %v9791, %v9903
    %v9905 = vpop.f32.mrb[0].mxu0
    %v9906 = vadd.f32 %v9793, %v9905
    %v9907 = vpop.f32.mrb[0].mxu0
    %v9908 = vadd.f32 %v9795, %v9907
    %9909 = vmatprep.mubr.bf16.mxu0 %v7485
    %9910 = vmatmul.mubr.bf16.gmra.mrb[0].mxu0 %v7484
    %v9911 = vpop.f32.mrb[0].mxu0
    %v9912 = vadd.f32 %v9799, %v9911
    %v9913 = vpop.f32.mrb[0].mxu0
    %v9914 = vadd.f32 %v9801, %v9913
    %v9915 = vpop.f32.mrb[0].mxu0
    %v9916 = vadd.f32 %v9803, %v9915
    %v9917 = vpop.f32.mrb[0].mxu0
    %v9918 = vadd.f32 %v9805, %v9917
    %9919 = vmatprep.mubr.bf16.mxu0 %v7489
    %9920 = vmatmul.mubr.bf16.gmra.mrb[0].mxu0 %v7488
    %v9921 = vpop.f32.mrb[0].mxu0
    %v9922 = vadd.f32 %v9809, %v9921
    %v9923 = vpop.f32.mrb[0].mxu0
    %v9924 = vadd.f32 %v9811, %v9923
    %v9925 = vpop.f32.mrb[0].mxu0
    %v9926 = vadd.f32 %v9813, %v9925
    %v9927 = vpop.f32.mrb[0].mxu0
    %v9928 = vadd.f32 %v9815, %v9927
    %9929 = vdwg.mxu0
    %v9930 = vld [vmem:[%s13] sm:$0xf]
    %v9932 = vlaneseq
    %v9933 = vshrl.u32 %v9932, 7
    %v9934 = vsub.s32 0, %v9933
    %v9935 = vrot.slane %v9930, %v9934
    %v9936 = vlaneseq
    %v9937 = vshrl.u32 %v9936, 7
    %v9938 = vsub.s32 1, %v9937
    %v9939 = vrot.slane %v9930, %v9938
    %v9940 = vlaneseq
    %v9941 = vshrl.u32 %v9940, 7
    %v9942 = vsub.s32 2, %v9941
    %v9943 = vrot.slane %v9930, %v9942
    %v9944 = vlaneseq
    %v9945 = vshrl.u32 %v9944, 7
    %v9946 = vsub.s32 3, %v9945
    %v9947 = vrot.slane %v9930, %v9946
    %v9952 = vadd.f32 %v9626, %v9935
    %v9953 = vadd.f32 %v9628, %v9939
    %v9954 = vadd.f32 %v9852, %v9943
    %v9955 = vadd.f32 %v9854, %v9947
    %v9956 = vadd.f32 %v9630, %v9935
    %v9957 = vadd.f32 %v9632, %v9939
    %v9958 = vadd.f32 %v9856, %v9943
    %v9959 = vadd.f32 %v9858, %v9947
    %v9960 = vadd.f32 %v9636, %v9935
    %v9961 = vadd.f32 %v9638, %v9939
    %v9962 = vadd.f32 %v9862, %v9943
    %v9963 = vadd.f32 %v9864, %v9947
    %v9964 = vadd.f32 %v9640, %v9935
    %v9965 = vadd.f32 %v9642, %v9939
    %v9966 = vadd.f32 %v9866, %v9943
    %v9967 = vadd.f32 %v9868, %v9947
    %v9968 = vadd.f32 %v9646, %v9935
    %v9969 = vadd.f32 %v9648, %v9939
    %v9970 = vadd.f32 %v9872, %v9943
    %v9971 = vadd.f32 %v9874, %v9947
    %v9972 = vadd.f32 %v9650, %v9935
    %v9973 = vadd.f32 %v9652, %v9939
    %v9974 = vadd.f32 %v9876, %v9943
    %v9975 = vadd.f32 %v9878, %v9947
    %v9976 = vadd.f32 %v9656, %v9935
    %v9977 = vadd.f32 %v9658, %v9939
    %v9978 = vadd.f32 %v9882, %v9943
    %v9979 = vadd.f32 %v9884, %v9947
    %v9980 = vadd.f32 %v9660, %v9935
    %v9981 = vadd.f32 %v9662, %v9939
    %v9982 = vadd.f32 %v9886, %v9943
    %v9983 = vadd.f32 %v9888, %v9947
    %v9984 = vadd.f32 %v9666, %v9935
    %v9985 = vadd.f32 %v9668, %v9939
    %v9986 = vadd.f32 %v9892, %v9943
    %v9987 = vadd.f32 %v9894, %v9947
    %v9988 = vadd.f32 %v9670, %v9935
    %v9989 = vadd.f32 %v9672, %v9939
    %v9990 = vadd.f32 %v9896, %v9943
    %v9991 = vadd.f32 %v9898, %v9947
    %v9992 = vadd.f32 %v9676, %v9935
    %v9993 = vadd.f32 %v9678, %v9939
    %v9994 = vadd.f32 %v9902, %v9943
    %v9995 = vadd.f32 %v9904, %v9947
    %v9996 = vadd.f32 %v9680, %v9935
    %v9997 = vadd.f32 %v9682, %v9939
    %v9998 = vadd.f32 %v9906, %v9943
    %v9999 = vadd.f32 %v9908, %v9947
    %v10000 = vadd.f32 %v9686, %v9935
    %v10001 = vadd.f32 %v9688, %v9939
    %v10002 = vadd.f32 %v9912, %v9943
    %v10003 = vadd.f32 %v9914, %v9947
    %v10004 = vadd.f32 %v9690, %v9935
    %v10005 = vadd.f32 %v9692, %v9939
    %v10006 = vadd.f32 %v9916, %v9943
    %v10007 = vadd.f32 %v9918, %v9947
    %v10008 = vadd.f32 %v9696, %v9935
    %v10009 = vadd.f32 %v9698, %v9939
    %v10010 = vadd.f32 %v9922, %v9943
    %v10011 = vadd.f32 %v9924, %v9947
    %v10012 = vadd.f32 %v9700, %v9935
    %v10013 = vadd.f32 %v9702, %v9939
    %v10014 = vadd.f32 %v9926, %v9943
    %v10015 = vadd.f32 %v9928, %v9947
    %v10016 = vadd.f32 %v9952, %v7136
    %v10017 = vadd.f32 %v9953, %v7137
    %v10018 = vadd.f32 %v9954, %v7138
    %v10019 = vadd.f32 %v9955, %v7139
    %v10020 = vadd.f32 %v9956, %v7140
    %v10021 = vadd.f32 %v9957, %v7141
    %v10022 = vadd.f32 %v9958, %v7142
    %v10023 = vadd.f32 %v9959, %v7143
    %v10024 = vadd.f32 %v9960, %v7144
    %v10025 = vadd.f32 %v9961, %v7145
    %v10026 = vadd.f32 %v9962, %v7146
    %v10027 = vadd.f32 %v9963, %v7147
    %v10028 = vadd.f32 %v9964, %v7148
    %v10029 = vadd.f32 %v9965, %v7149
    %v10030 = vadd.f32 %v9966, %v7150
    %v10031 = vadd.f32 %v9967, %v7151
    %v10032 = vadd.f32 %v9968, %v7152
    %v10033 = vadd.f32 %v9969, %v7153
    %v10034 = vadd.f32 %v9970, %v7154
    %v10035 = vadd.f32 %v9971, %v7155
    %v10036 = vadd.f32 %v9972, %v7156
    %v10037 = vadd.f32 %v9973, %v7157
    %v10038 = vadd.f32 %v9974, %v7158
    %v10039 = vadd.f32 %v9975, %v7159
    %v10040 = vadd.f32 %v9976, %v7160
    %v10041 = vadd.f32 %v9977, %v7161
    %v10042 = vadd.f32 %v9978, %v7162
    %v10043 = vadd.f32 %v9979, %v7163
    %v10044 = vadd.f32 %v9980, %v7164
    %v10045 = vadd.f32 %v9981, %v7165
    %v10046 = vadd.f32 %v9982, %v7166
    %v10047 = vadd.f32 %v9983, %v7167
    %v10048 = vadd.f32 %v9984, %v7168
    %v10049 = vadd.f32 %v9985, %v7169
    %v10050 = vadd.f32 %v9986, %v7170
    %v10051 = vadd.f32 %v9987, %v7171
    %v10052 = vadd.f32 %v9988, %v7172
    %v10053 = vadd.f32 %v9989, %v7173
    %v10054 = vadd.f32 %v9990, %v7174
    %v10055 = vadd.f32 %v9991, %v7175
    %v10056 = vadd.f32 %v9992, %v7176
    %v10057 = vadd.f32 %v9993, %v7177
    %v10058 = vadd.f32 %v9994, %v7178
    %v10059 = vadd.f32 %v9995, %v7179
    %v10060 = vadd.f32 %v9996, %v7180
    %v10061 = vadd.f32 %v9997, %v7181
    %v10062 = vadd.f32 %v9998, %v7182
    %v10063 = vadd.f32 %v9999, %v7183
    %v10064 = vadd.f32 %v10000, %v7184
    %v10065 = vadd.f32 %v10001, %v7185
    %v10066 = vadd.f32 %v10002, %v7186
    %v10067 = vadd.f32 %v10003, %v7187
    %v10068 = vadd.f32 %v10004, %v7188
    %v10069 = vadd.f32 %v10005, %v7189
    %v10070 = vadd.f32 %v10006, %v7190
    %v10071 = vadd.f32 %v10007, %v7191
    %v10072 = vadd.f32 %v10008, %v7192
    %v10073 = vadd.f32 %v10009, %v7193
    %v10074 = vadd.f32 %v10010, %v7194
    %v10075 = vadd.f32 %v10011, %v7195
    %v10076 = vadd.f32 %v10012, %v7196
    %v10077 = vadd.f32 %v10013, %v7197
    %v10078 = vadd.f32 %v10014, %v7198
    %v10079 = vadd.f32 %v10015, %v7199
    %v10080 = vld [vmem:[%s14] sm:$0xf]
    %v10081 = vpack.c.bf16 %v10020, %v10016
    %v10082 = vpack.c.bf16 %v10021, %v10017
    %v10083 = vpack.c.bf16 %v10022, %v10018
    %v10084 = vpack.c.bf16 %v10023, %v10019
    %v10085 = vpack.c.bf16 %v10028, %v10024
    %v10086 = vpack.c.bf16 %v10029, %v10025
    %v10087 = vpack.c.bf16 %v10030, %v10026
    %v10088 = vpack.c.bf16 %v10031, %v10027
    %v10089 = vpack.c.bf16 %v10036, %v10032
    %v10090 = vpack.c.bf16 %v10037, %v10033
    %v10091 = vpack.c.bf16 %v10038, %v10034
    %v10092 = vpack.c.bf16 %v10039, %v10035
    %v10093 = vpack.c.bf16 %v10044, %v10040
    %v10094 = vpack.c.bf16 %v10045, %v10041
    %v10095 = vpack.c.bf16 %v10046, %v10042
    %v10096 = vpack.c.bf16 %v10047, %v10043
    %v10097 = vpack.c.bf16 %v10052, %v10048
    %v10098 = vpack.c.bf16 %v10053, %v10049
    %v10099 = vpack.c.bf16 %v10054, %v10050
    %v10100 = vpack.c.bf16 %v10055, %v10051
    %v10101 = vpack.c.bf16 %v10060, %v10056
    %v10102 = vpack.c.bf16 %v10061, %v10057
    %v10103 = vpack.c.bf16 %v10062, %v10058
    %v10104 = vpack.c.bf16 %v10063, %v10059
    %v10105 = vpack.c.bf16 %v10068, %v10064
    %v10106 = vpack.c.bf16 %v10069, %v10065
    %v10107 = vpack.c.bf16 %v10070, %v10066
    %v10108 = vpack.c.bf16 %v10071, %v10067
    %v10109 = vpack.c.bf16 %v10076, %v10072
    %v10110 = vpack.c.bf16 %v10077, %v10073
    %v10111 = vpack.c.bf16 %v10078, %v10074
    %v10112 = vpack.c.bf16 %v10079, %v10075
    %10113 = vmatprep.subr.bf16.mxu0 %v10082
    %10114 = vmatpush1.bf16.msra.mxu0 %v10081
    %10115 = vmatprep.subr.bf16.mxu0 %v10086
    %10116 = vmatpush1.bf16.msra.mxu0 %v10085
    %10117 = vmatprep.subr.bf16.mxu0 %v10090
    %10118 = vmatpush1.bf16.msra.mxu0 %v10089
    %10119 = vmatprep.subr.bf16.mxu0 %v10094
    %10120 = vmatpush1.bf16.msra.mxu0 %v10093
    %10121 = vmatprep.subr.bf16.mxu0 %v10098
    %10122 = vmatpush1.bf16.msra.mxu0 %v10097
    %10123 = vmatprep.subr.bf16.mxu0 %v10102
    %10124 = vmatpush1.bf16.msra.mxu0 %v10101
    %10125 = vmatprep.subr.bf16.mxu0 %v10106
    %10126 = vmatpush1.bf16.msra.mxu0 %v10105
    %10127 = vmatprep.subr.bf16.mxu0 %v10110
    %10128 = vmatpush1.bf16.msra.mxu0 %v10109
    %10129 = vmatprep.subr.bf16.mxu0 0
    %10130 = vmatpush1.bf16.msra.mxu0 0
    %10131 = vmatprep.subr.bf16.mxu0 0
    %10132 = vmatpush1.bf16.msra.mxu0 0
    %10133 = vmatprep.subr.bf16.mxu0 0
    %10134 = vmatpush1.bf16.msra.mxu0 0
    %10135 = vmatprep.subr.bf16.mxu0 0
    %10136 = vmatpush1.bf16.msra.mxu0 0
    %10137 = vmatprep.subr.bf16.mxu0 0
    %10138 = vmatpush1.bf16.msra.mxu0 0
    %10139 = vmatprep.subr.bf16.mxu0 0
    %10140 = vmatpush1.bf16.msra.mxu0 0
    %10141 = vmatprep.subr.bf16.mxu0 0
    %10142 = vmatpush1.bf16.msra.mxu0 0
    %10143 = vmatprep.subr.bf16.mxu0 0
    %10144 = vmatpush1.bf16.msra.mxu0 0
    %10145 = vmatprep.mubr.bf16.mxu0 0
    %10146 = vmatmul.mubr.bf16.gmra.mrb[0].mxu0 %v10080
    %v10147 = vpop.f32.mrb[0].mxu0
    %v10148 = vadd.f32 0.0, %v10147
    %v10149 = vpop.f32.mrb[0].mxu0
    %v10150 = vadd.f32 0.0, %v10149
    %v10151 = vpop.f32.mrb[0].mxu0
    %v10152 = vpop.f32.mrb[0].mxu0
    %10153 = vdwg.mxu0
    %10154 = vmatprep.subr.bf16.mxu0 %v10084
    %10155 = vmatpush1.bf16.msra.mxu0 %v10083
    %10156 = vmatprep.subr.bf16.mxu0 %v10088
    %10157 = vmatpush1.bf16.msra.mxu0 %v10087
    %10158 = vmatprep.subr.bf16.mxu0 %v10092
    %10159 = vmatpush1.bf16.msra.mxu0 %v10091
    %10160 = vmatprep.subr.bf16.mxu0 %v10096
    %10161 = vmatpush1.bf16.msra.mxu0 %v10095
    %10162 = vmatprep.subr.bf16.mxu0 %v10100
    %10163 = vmatpush1.bf16.msra.mxu0 %v10099
    %10164 = vmatprep.subr.bf16.mxu0 %v10104
    %10165 = vmatpush1.bf16.msra.mxu0 %v10103
    %10166 = vmatprep.subr.bf16.mxu0 %v10108
    %10167 = vmatpush1.bf16.msra.mxu0 %v10107
    %10168 = vmatprep.subr.bf16.mxu0 %v10112
    %10169 = vmatpush1.bf16.msra.mxu0 %v10111
    %10170 = vmatprep.subr.bf16.mxu0 0
    %10171 = vmatpush1.bf16.msra.mxu0 0
    %10172 = vmatprep.subr.bf16.mxu0 0
    %10173 = vmatpush1.bf16.msra.mxu0 0
    %10174 = vmatprep.subr.bf16.mxu0 0
    %10175 = vmatpush1.bf16.msra.mxu0 0
    %10176 = vmatprep.subr.bf16.mxu0 0
    %10177 = vmatpush1.bf16.msra.mxu0 0
    %10178 = vmatprep.subr.bf16.mxu0 0
    %10179 = vmatpush1.bf16.msra.mxu0 0
    %10180 = vmatprep.subr.bf16.mxu0 0
    %10181 = vmatpush1.bf16.msra.mxu0 0
    %10182 = vmatprep.subr.bf16.mxu0 0
    %10183 = vmatpush1.bf16.msra.mxu0 0
    %10184 = vmatprep.subr.bf16.mxu0 0
    %10185 = vmatpush1.bf16.msra.mxu0 0
    %10186 = vmatprep.mubr.bf16.mxu0 0
    %10187 = vmatmul.mubr.bf16.gmra.mrb[0].mxu0 %v10080
    %v10188 = vpop.f32.mrb[0].mxu0
    %v10189 = vadd.f32 0.0, %v10188
    %v10190 = vpop.f32.mrb[0].mxu0
    %v10191 = vadd.f32 0.0, %v10190
    %v10192 = vpop.f32.mrb[0].mxu0
    %v10193 = vpop.f32.mrb[0].mxu0
    %10194 = vdwg.mxu0
    %v10195 = vpack.c.bf16 %v10148, %v10148
    %v10196 = vpack.c.bf16 %v10150, %v10150
    %v10197 = vpack.c.bf16 %v10189, %v10189
    %v10198 = vpack.c.bf16 %v10191, %v10191
    %v10199 = vld [vmem:[#allocation6] sm:$0xff]
    %v10200 = vld [vmem:[#allocation6 + $0x8] sm:$0xff]
    %v10201 = vld [vmem:[#allocation6 + $0x10] sm:$0xff]
    %v10202 = vld [vmem:[#allocation6 + $0x18] sm:$0xff]
    %v10203 = vld [vmem:[#allocation6 + $0x20] sm:$0xff]
    %v10204 = vld [vmem:[#allocation6 + $0x28] sm:$0xff]
    %v10205 = vld [vmem:[#allocation6 + $0x30] sm:$0xff]
    %v10206 = vld [vmem:[#allocation6 + $0x38] sm:$0xff]
    %v10207 = vld [vmem:[#allocation6 + $0x40] sm:$0xff]
    %v10208 = vld [vmem:[#allocation6 + $0x48] sm:$0xff]
    %v10209 = vld [vmem:[#allocation6 + $0x50] sm:$0xff]
    %v10210 = vld [vmem:[#allocation6 + $0x58] sm:$0xff]
    %v10211 = vld [vmem:[#allocation6 + $0x60] sm:$0xff]
    %v10212 = vld [vmem:[#allocation6 + $0x68] sm:$0xff]
    %v10213 = vld [vmem:[#allocation6 + $0x70] sm:$0xff]
    %v10214 = vld [vmem:[#allocation6 + $0x78] sm:$0xff]
    %v10215 = vld [vmem:[#allocation6 + $0x80] sm:$0xff]
    %v10216 = vld [vmem:[#allocation6 + $0x88] sm:$0xff]
    %v10217 = vld [vmem:[#allocation6 + $0x90] sm:$0xff]
    %v10218 = vld [vmem:[#allocation6 + $0x98] sm:$0xff]
    %v10219 = vld [vmem:[#allocation6 + $0xa0] sm:$0xff]
    %v10220 = vld [vmem:[#allocation6 + $0xa8] sm:$0xff]
    %v10221 = vld [vmem:[#allocation6 + $0xb0] sm:$0xff]
    %v10222 = vld [vmem:[#allocation6 + $0xb8] sm:$0xff]
    %v10223 = vld [vmem:[#allocation6 + $0xc0] sm:$0xff]
    %v10224 = vld [vmem:[#allocation6 + $0xc8] sm:$0xff]
    %v10225 = vld [vmem:[#allocation6 + $0xd0] sm:$0xff]
    %v10226 = vld [vmem:[#allocation6 + $0xd8] sm:$0xff]
    %v10227 = vld [vmem:[#allocation6 + $0xe0] sm:$0xff]
    %v10228 = vld [vmem:[#allocation6 + $0xe8] sm:$0xff]
    %v10229 = vld [vmem:[#allocation6 + $0xf0] sm:$0xff]
    %v10230 = vld [vmem:[#allocation6 + $0xf8] sm:$0xff]
    %v10231 = vld [vmem:[#allocation6 + $0x100] sm:$0xff]
    %v10232 = vld [vmem:[#allocation6 + $0x108] sm:$0xff]
    %v10233 = vld [vmem:[#allocation6 + $0x110] sm:$0xff]
    %v10234 = vld [vmem:[#allocation6 + $0x118] sm:$0xff]
    %v10235 = vld [vmem:[#allocation6 + $0x120] sm:$0xff]
    %v10236 = vld [vmem:[#allocation6 + $0x128] sm:$0xff]
    %v10237 = vld [vmem:[#allocation6 + $0x130] sm:$0xff]
    %v10238 = vld [vmem:[#allocation6 + $0x138] sm:$0xff]
    %v10239 = vld [vmem:[#allocation6 + $0x140] sm:$0xff]
    %v10240 = vld [vmem:[#allocation6 + $0x148] sm:$0xff]
    %v10241 = vld [vmem:[#allocation6 + $0x150] sm:$0xff]
    %v10242 = vld [vmem:[#allocation6 + $0x158] sm:$0xff]
    %v10243 = vld [vmem:[#allocation6 + $0x160] sm:$0xff]
    %v10244 = vld [vmem:[#allocation6 + $0x168] sm:$0xff]
    %v10245 = vld [vmem:[#allocation6 + $0x170] sm:$0xff]
    %v10246 = vld [vmem:[#allocation6 + $0x178] sm:$0xff]
    %v10247 = vld [vmem:[#allocation6 + $0x180] sm:$0xff]
    %v10248 = vld [vmem:[#allocation6 + $0x188] sm:$0xff]
    %v10249 = vld [vmem:[#allocation6 + $0x190] sm:$0xff]
    %v10250 = vld [vmem:[#allocation6 + $0x198] sm:$0xff]
    %v10251 = vld [vmem:[#allocation6 + $0x1a0] sm:$0xff]
    %v10252 = vld [vmem:[#allocation6 + $0x1a8] sm:$0xff]
    %v10253 = vld [vmem:[#allocation6 + $0x1b0] sm:$0xff]
    %v10254 = vld [vmem:[#allocation6 + $0x1b8] sm:$0xff]
    %v10255 = vld [vmem:[#allocation6 + $0x1c0] sm:$0xff]
    %v10256 = vld [vmem:[#allocation6 + $0x1c8] sm:$0xff]
    %v10257 = vld [vmem:[#allocation6 + $0x1d0] sm:$0xff]
    %v10258 = vld [vmem:[#allocation6 + $0x1d8] sm:$0xff]
    %v10259 = vld [vmem:[#allocation6 + $0x1e0] sm:$0xff]
    %v10260 = vld [vmem:[#allocation6 + $0x1e8] sm:$0xff]
    %v10261 = vld [vmem:[#allocation6 + $0x1f0] sm:$0xff]
    %v10262 = vld [vmem:[#allocation6 + $0x1f8] sm:$0xff]
    %v10263 = vld [vmem:[%s16] sm:$0x3]
    %v10265 = vlaneseq
    %v10266 = vshrl.u32 %v10265, 7
    %v10267 = vsub.s32 0, %v10266
    %v10268 = vrot.slane %v10263, %v10267
    %v10269 = vlaneseq
    %v10270 = vshrl.u32 %v10269, 7
    %v10271 = vsub.s32 1, %v10270
    %v10272 = vrot.slane %v10263, %v10271
    %v10339 = vunpack.c.l.b16 %v10199
    %v10340 = vunpack.c.h.b16 %v10199
    %v10341 = vunpack.c.l.b16 %v10200
    %v10342 = vunpack.c.h.b16 %v10200
    %v10343 = vunpack.c.l.b16 %v10201
    %v10344 = vunpack.c.h.b16 %v10201
    %v10345 = vunpack.c.l.b16 %v10202
    %v10346 = vunpack.c.h.b16 %v10202
    %v10347 = vunpack.c.l.b16 %v10203
    %v10348 = vunpack.c.h.b16 %v10203
    %v10349 = vunpack.c.l.b16 %v10204
    %v10350 = vunpack.c.h.b16 %v10204
    %v10351 = vunpack.c.l.b16 %v10205
    %v10352 = vunpack.c.h.b16 %v10205
    %v10353 = vunpack.c.l.b16 %v10206
    %v10354 = vunpack.c.h.b16 %v10206
    %v10355 = vunpack.c.l.b16 %v10207
    %v10356 = vunpack.c.h.b16 %v10207
    %v10357 = vunpack.c.l.b16 %v10208
    %v10358 = vunpack.c.h.b16 %v10208
    %v10359 = vunpack.c.l.b16 %v10209
    %v10360 = vunpack.c.h.b16 %v10209
    %v10361 = vunpack.c.l.b16 %v10210
    %v10362 = vunpack.c.h.b16 %v10210
    %v10363 = vunpack.c.l.b16 %v10211
    %v10364 = vunpack.c.h.b16 %v10211
    %v10365 = vunpack.c.l.b16 %v10212
    %v10366 = vunpack.c.h.b16 %v10212
    %v10367 = vunpack.c.l.b16 %v10213
    %v10368 = vunpack.c.h.b16 %v10213
    %v10369 = vunpack.c.l.b16 %v10214
    %v10370 = vunpack.c.h.b16 %v10214
    %v10371 = vunpack.c.l.b16 %v10215
    %v10372 = vunpack.c.h.b16 %v10215
    %v10373 = vunpack.c.l.b16 %v10216
    %v10374 = vunpack.c.h.b16 %v10216
    %v10375 = vunpack.c.l.b16 %v10217
    %v10376 = vunpack.c.h.b16 %v10217
    %v10377 = vunpack.c.l.b16 %v10218
    %v10378 = vunpack.c.h.b16 %v10218
    %v10379 = vunpack.c.l.b16 %v10219
    %v10380 = vunpack.c.h.b16 %v10219
    %v10381 = vunpack.c.l.b16 %v10220
    %v10382 = vunpack.c.h.b16 %v10220
    %v10383 = vunpack.c.l.b16 %v10221
    %v10384 = vunpack.c.h.b16 %v10221
    %v10385 = vunpack.c.l.b16 %v10222
    %v10386 = vunpack.c.h.b16 %v10222
    %v10387 = vunpack.c.l.b16 %v10223
    %v10388 = vunpack.c.h.b16 %v10223
    %v10389 = vunpack.c.l.b16 %v10224
    %v10390 = vunpack.c.h.b16 %v10224
    %v10391 = vunpack.c.l.b16 %v10225
    %v10392 = vunpack.c.h.b16 %v10225
    %v10393 = vunpack.c.l.b16 %v10226
    %v10394 = vunpack.c.h.b16 %v10226
    %v10395 = vunpack.c.l.b16 %v10227
    %v10396 = vunpack.c.h.b16 %v10227
    %v10397 = vunpack.c.l.b16 %v10228
    %v10398 = vunpack.c.h.b16 %v10228
    %v10399 = vunpack.c.l.b16 %v10229
    %v10400 = vunpack.c.h.b16 %v10229
    %v10401 = vunpack.c.l.b16 %v10230
    %v10402 = vunpack.c.h.b16 %v10230
    %v10403 = vunpack.c.l.b16 %v10231
    %v10404 = vunpack.c.h.b16 %v10231
    %v10405 = vunpack.c.l.b16 %v10232
    %v10406 = vunpack.c.h.b16 %v10232
    %v10407 = vunpack.c.l.b16 %v10233
    %v10408 = vunpack.c.h.b16 %v10233
    %v10409 = vunpack.c.l.b16 %v10234
    %v10410 = vunpack.c.h.b16 %v10234
    %v10411 = vunpack.c.l.b16 %v10235
    %v10412 = vunpack.c.h.b16 %v10235
    %v10413 = vunpack.c.l.b16 %v10236
    %v10414 = vunpack.c.h.b16 %v10236
    %v10415 = vunpack.c.l.b16 %v10237
    %v10416 = vunpack.c.h.b16 %v10237
    %v10417 = vunpack.c.l.b16 %v10238
    %v10418 = vunpack.c.h.b16 %v10238
    %v10419 = vunpack.c.l.b16 %v10239
    %v10420 = vunpack.c.h.b16 %v10239
    %v10421 = vunpack.c.l.b16 %v10240
    %v10422 = vunpack.c.h.b16 %v10240
    %v10423 = vunpack.c.l.b16 %v10241
    %v10424 = vunpack.c.h.b16 %v10241
    %v10425 = vunpack.c.l.b16 %v10242
    %v10426 = vunpack.c.h.b16 %v10242
    %v10427 = vunpack.c.l.b16 %v10243
    %v10428 = vunpack.c.h.b16 %v10243
    %v10429 = vunpack.c.l.b16 %v10244
    %v10430 = vunpack.c.h.b16 %v10244
    %v10431 = vunpack.c.l.b16 %v10245
    %v10432 = vunpack.c.h.b16 %v10245
    %v10433 = vunpack.c.l.b16 %v10246
    %v10434 = vunpack.c.h.b16 %v10246
    %v10435 = vunpack.c.l.b16 %v10247
    %v10436 = vunpack.c.h.b16 %v10247
    %v10437 = vunpack.c.l.b16 %v10248
    %v10438 = vunpack.c.h.b16 %v10248
    %v10439 = vunpack.c.l.b16 %v10249
    %v10440 = vunpack.c.h.b16 %v10249
    %v10441 = vunpack.c.l.b16 %v10250
    %v10442 = vunpack.c.h.b16 %v10250
    %v10443 = vunpack.c.l.b16 %v10251
    %v10444 = vunpack.c.h.b16 %v10251
    %v10445 = vunpack.c.l.b16 %v10252
    %v10446 = vunpack.c.h.b16 %v10252
    %v10447 = vunpack.c.l.b16 %v10253
    %v10448 = vunpack.c.h.b16 %v10253
    %v10449 = vunpack.c.l.b16 %v10254
    %v10450 = vunpack.c.h.b16 %v10254
    %v10451 = vunpack.c.l.b16 %v10255
    %v10452 = vunpack.c.h.b16 %v10255
    %v10453 = vunpack.c.l.b16 %v10256
    %v10454 = vunpack.c.h.b16 %v10256
    %v10455 = vunpack.c.l.b16 %v10257
    %v10456 = vunpack.c.h.b16 %v10257
    %v10457 = vunpack.c.l.b16 %v10258
    %v10458 = vunpack.c.h.b16 %v10258
    %v10459 = vunpack.c.l.b16 %v10259
    %v10460 = vunpack.c.h.b16 %v10259
    %v10461 = vunpack.c.l.b16 %v10260
    %v10462 = vunpack.c.h.b16 %v10260
    %v10463 = vunpack.c.l.b16 %v10261
    %v10464 = vunpack.c.h.b16 %v10261
    %v10465 = vunpack.c.l.b16 %v10262
    %v10466 = vunpack.c.h.b16 %v10262
    %v10467 = vpack.c.b16 %v10341, %v10339
    %v10468 = vpack.c.b16 %v10342, %v10340
    %v10469 = vpack.c.b16 %v10345, %v10343
    %v10470 = vpack.c.b16 %v10346, %v10344
    %v10471 = vpack.c.b16 %v10349, %v10347
    %v10472 = vpack.c.b16 %v10350, %v10348
    %v10473 = vpack.c.b16 %v10353, %v10351
    %v10474 = vpack.c.b16 %v10354, %v10352
    %v10475 = vpack.c.b16 %v10357, %v10355
    %v10476 = vpack.c.b16 %v10358, %v10356
    %v10477 = vpack.c.b16 %v10361, %v10359
    %v10478 = vpack.c.b16 %v10362, %v10360
    %v10479 = vpack.c.b16 %v10365, %v10363
    %v10480 = vpack.c.b16 %v10366, %v10364
    %v10481 = vpack.c.b16 %v10369, %v10367
    %v10482 = vpack.c.b16 %v10370, %v10368
    %v10483 = vpack.c.b16 %v10373, %v10371
    %v10484 = vpack.c.b16 %v10374, %v10372
    %v10485 = vpack.c.b16 %v10377, %v10375
    %v10486 = vpack.c.b16 %v10378, %v10376
    %v10487 = vpack.c.b16 %v10381, %v10379
    %v10488 = vpack.c.b16 %v10382, %v10380
    %v10489 = vpack.c.b16 %v10385, %v10383
    %v10490 = vpack.c.b16 %v10386, %v10384
    %v10491 = vpack.c.b16 %v10389, %v10387
    %v10492 = vpack.c.b16 %v10390, %v10388
    %v10493 = vpack.c.b16 %v10393, %v10391
    %v10494 = vpack.c.b16 %v10394, %v10392
    %v10495 = vpack.c.b16 %v10397, %v10395
    %v10496 = vpack.c.b16 %v10398, %v10396
    %v10497 = vpack.c.b16 %v10401, %v10399
    %v10498 = vpack.c.b16 %v10402, %v10400
    %v10499 = vpack.c.b16 %v10405, %v10403
    %v10500 = vpack.c.b16 %v10406, %v10404
    %v10501 = vpack.c.b16 %v10409, %v10407
    %v10502 = vpack.c.b16 %v10410, %v10408
    %v10503 = vpack.c.b16 %v10413, %v10411
    %v10504 = vpack.c.b16 %v10414, %v10412
    %v10505 = vpack.c.b16 %v10417, %v10415
    %v10506 = vpack.c.b16 %v10418, %v10416
    %v10507 = vpack.c.b16 %v10421, %v10419
    %v10508 = vpack.c.b16 %v10422, %v10420
    %v10509 = vpack.c.b16 %v10425, %v10423
    %v10510 = vpack.c.b16 %v10426, %v10424
    %v10511 = vpack.c.b16 %v10429, %v10427
    %v10512 = vpack.c.b16 %v10430, %v10428
    %v10513 = vpack.c.b16 %v10433, %v10431
    %v10514 = vpack.c.b16 %v10434, %v10432
    %v10515 = vpack.c.b16 %v10437, %v10435
    %v10516 = vpack.c.b16 %v10438, %v10436
    %v10517 = vpack.c.b16 %v10441, %v10439
    %v10518 = vpack.c.b16 %v10442, %v10440
    %v10519 = vpack.c.b16 %v10445, %v10443
    %v10520 = vpack.c.b16 %v10446, %v10444
    %v10521 = vpack.c.b16 %v10449, %v10447
    %v10522 = vpack.c.b16 %v10450, %v10448
    %v10523 = vpack.c.b16 %v10453, %v10451
    %v10524 = vpack.c.b16 %v10454, %v10452
    %v10525 = vpack.c.b16 %v10457, %v10455
    %v10526 = vpack.c.b16 %v10458, %v10456
    %v10527 = vpack.c.b16 %v10461, %v10459
    %v10528 = vpack.c.b16 %v10462, %v10460
    %v10529 = vpack.c.b16 %v10465, %v10463
    %v10530 = vpack.c.b16 %v10466, %v10464
    %10595 = vmatprep.subr.bf16.mxu0 %v10468
    %10596 = vmatpush1.bf16.msra.mxu0 %v10467
    %10597 = vmatprep.subr.bf16.mxu0 %v10470
    %10598 = vmatpush1.bf16.msra.mxu0 %v10469
    %10599 = vmatprep.subr.bf16.mxu0 %v10472
    %10600 = vmatpush1.bf16.msra.mxu0 %v10471
    %10601 = vmatprep.subr.bf16.mxu0 %v10474
    %10602 = vmatpush1.bf16.msra.mxu0 %v10473
    %10603 = vmatprep.subr.bf16.mxu0 %v10476
    %10604 = vmatpush1.bf16.msra.mxu0 %v10475
    %10605 = vmatprep.subr.bf16.mxu0 %v10478
    %10606 = vmatpush1.bf16.msra.mxu0 %v10477
    %10607 = vmatprep.subr.bf16.mxu0 %v10480
    %10608 = vmatpush1.bf16.msra.mxu0 %v10479
    %10609 = vmatprep.subr.bf16.mxu0 %v10482
    %10610 = vmatpush1.bf16.msra.mxu0 %v10481
    %10611 = vmatprep.subr.bf16.mxu0 %v10484
    %10612 = vmatpush1.bf16.msra.mxu0 %v10483
    %10613 = vmatprep.subr.bf16.mxu0 %v10486
    %10614 = vmatpush1.bf16.msra.mxu0 %v10485
    %10615 = vmatprep.subr.bf16.mxu0 %v10488
    %10616 = vmatpush1.bf16.msra.mxu0 %v10487
    %10617 = vmatprep.subr.bf16.mxu0 %v10490
    %10618 = vmatpush1.bf16.msra.mxu0 %v10489
    %10619 = vmatprep.subr.bf16.mxu0 %v10492
    %10620 = vmatpush1.bf16.msra.mxu0 %v10491
    %10621 = vmatprep.subr.bf16.mxu0 %v10494
    %10622 = vmatpush1.bf16.msra.mxu0 %v10493
    %10623 = vmatprep.subr.bf16.mxu0 %v10496
    %10624 = vmatpush1.bf16.msra.mxu0 %v10495
    %10625 = vmatprep.subr.bf16.mxu0 %v10498
    %10626 = vmatpush1.bf16.msra.mxu0 %v10497
    %10627 = vmatprep.mubr.bf16.mxu0 %v10196
    %10628 = vmatmul.mubr.bf16.gmra.mrb[0].mxu0 %v10195
    %v10629 = vpop.f32.mrb[0].mxu0
    %v10630 = vadd.f32 %v10268, %v10629
    %v10631 = vpop.f32.mrb[0].mxu0
    %v10632 = vadd.f32 %v10272, %v10631
    %v10633 = vpop.f32.mrb[0].mxu0
    %v10634 = vpop.f32.mrb[0].mxu0
    %10635 = vdwg.mxu0
    %10636 = vmatprep.subr.bf16.mxu0 %v10500
    %10637 = vmatpush1.bf16.msra.mxu0 %v10499
    %10638 = vmatprep.subr.bf16.mxu0 %v10502
    %10639 = vmatpush1.bf16.msra.mxu0 %v10501
    %10640 = vmatprep.subr.bf16.mxu0 %v10504
    %10641 = vmatpush1.bf16.msra.mxu0 %v10503
    %10642 = vmatprep.subr.bf16.mxu0 %v10506
    %10643 = vmatpush1.bf16.msra.mxu0 %v10505
    %10644 = vmatprep.subr.bf16.mxu0 %v10508
    %10645 = vmatpush1.bf16.msra.mxu0 %v10507
    %10646 = vmatprep.subr.bf16.mxu0 %v10510
    %10647 = vmatpush1.bf16.msra.mxu0 %v10509
    %10648 = vmatprep.subr.bf16.mxu0 %v10512
    %10649 = vmatpush1.bf16.msra.mxu0 %v10511
    %10650 = vmatprep.subr.bf16.mxu0 %v10514
    %10651 = vmatpush1.bf16.msra.mxu0 %v10513
    %10652 = vmatprep.subr.bf16.mxu0 %v10516
    %10653 = vmatpush1.bf16.msra.mxu0 %v10515
    %10654 = vmatprep.subr.bf16.mxu0 %v10518
    %10655 = vmatpush1.bf16.msra.mxu0 %v10517
    %10656 = vmatprep.subr.bf16.mxu0 %v10520
    %10657 = vmatpush1.bf16.msra.mxu0 %v10519
    %10658 = vmatprep.subr.bf16.mxu0 %v10522
    %10659 = vmatpush1.bf16.msra.mxu0 %v10521
    %10660 = vmatprep.subr.bf16.mxu0 %v10524
    %10661 = vmatpush1.bf16.msra.mxu0 %v10523
    %10662 = vmatprep.subr.bf16.mxu0 %v10526
    %10663 = vmatpush1.bf16.msra.mxu0 %v10525
    %10664 = vmatprep.subr.bf16.mxu0 %v10528
    %10665 = vmatpush1.bf16.msra.mxu0 %v10527
    %10666 = vmatprep.subr.bf16.mxu0 %v10530
    %10667 = vmatpush1.bf16.msra.mxu0 %v10529
    %10668 = vmatprep.mubr.bf16.mxu0 %v10198
    %10669 = vmatmul.mubr.bf16.gmra.mrb[0].mxu0 %v10197
    %v10670 = vpop.f32.mrb[0].mxu0
    %v10671 = vadd.f32 %v10630, %v10670
    %v10672 = vpop.f32.mrb[0].mxu0
    %v10673 = vadd.f32 %v10632, %v10672
    %v10674 = vpop.f32.mrb[0].mxu0
    %v10675 = vpop.f32.mrb[0].mxu0
    %10676 = vdwg.mxu0
    %v10677 = vmax.f32 %v10671, 0.0
    %v10678 = vmax.f32 %v10673, 0.0
    %v10679 = vpack.c.bf16 %v10677, %v10677
    %v10680 = vpack.c.bf16 %v10678, %v10678
    %v10681 = vld [vmem:[#allocation7] sm:$0xf]
    %v10682 = vld [vmem:[#allocation7 + $0x4] sm:$0xf]
    %v10683 = vld [vmem:[#allocation7 + $0x8] sm:$0xf]
    %v10684 = vld [vmem:[#allocation7 + $0xc] sm:$0xf]
    %v10685 = vld [vmem:[#allocation7 + $0x10] sm:$0xf]
    %v10686 = vld [vmem:[#allocation7 + $0x14] sm:$0xf]
    %v10687 = vld [vmem:[#allocation7 + $0x18] sm:$0xf]
    %v10688 = vld [vmem:[#allocation7 + $0x1c] sm:$0xf]
    %v10689 = vld [vmem:[#allocation7 + $0x20] sm:$0xf]
    %v10690 = vld [vmem:[#allocation7 + $0x24] sm:$0xf]
    %v10691 = vld [vmem:[#allocation7 + $0x28] sm:$0xf]
    %v10692 = vld [vmem:[#allocation7 + $0x2c] sm:$0xf]
    %v10693 = vld [vmem:[#allocation7 + $0x30] sm:$0xf]
    %v10694 = vld [vmem:[#allocation7 + $0x34] sm:$0xf]
    %v10695 = vld [vmem:[#allocation7 + $0x38] sm:$0xf]
    %v10696 = vld [vmem:[#allocation7 + $0x3c] sm:$0xf]
    %v10697 = vld [vmem:[#allocation7 + $0x40] sm:$0xf]
    %v10698 = vld [vmem:[#allocation7 + $0x44] sm:$0xf]
    %v10699 = vld [vmem:[#allocation7 + $0x48] sm:$0xf]
    %v10700 = vld [vmem:[#allocation7 + $0x4c] sm:$0xf]
    %v10701 = vld [vmem:[#allocation7 + $0x50] sm:$0xf]
    %v10702 = vld [vmem:[#allocation7 + $0x54] sm:$0xf]
    %v10703 = vld [vmem:[#allocation7 + $0x58] sm:$0xf]
    %v10704 = vld [vmem:[#allocation7 + $0x5c] sm:$0xf]
    %v10705 = vld [vmem:[#allocation7 + $0x60] sm:$0xf]
    %v10706 = vld [vmem:[#allocation7 + $0x64] sm:$0xf]
    %v10707 = vld [vmem:[#allocation7 + $0x68] sm:$0xf]
    %v10708 = vld [vmem:[#allocation7 + $0x6c] sm:$0xf]
    %v10709 = vld [vmem:[#allocation7 + $0x70] sm:$0xf]
    %v10710 = vld [vmem:[#allocation7 + $0x74] sm:$0xf]
    %v10711 = vld [vmem:[#allocation7 + $0x78] sm:$0xf]
    %v10712 = vld [vmem:[#allocation7 + $0x7c] sm:$0xf]
    %v10713 = vld [vmem:[%s18] sm:$0x1]
    %v10715 = vlaneseq
    %v10716 = vshrl.u32 %v10715, 7
    %v10717 = vsub.s32 0, %v10716
    %v10718 = vrot.slane %v10713, %v10717
    %v10752 = vunpack.c.l.b16 %v10681
    %v10753 = vunpack.c.l.b16 %v10682
    %v10754 = vunpack.c.l.b16 %v10683
    %v10755 = vunpack.c.l.b16 %v10684
    %v10756 = vunpack.c.l.b16 %v10685
    %v10757 = vunpack.c.l.b16 %v10686
    %v10758 = vunpack.c.l.b16 %v10687
    %v10759 = vunpack.c.l.b16 %v10688
    %v10760 = vunpack.c.l.b16 %v10689
    %v10761 = vunpack.c.l.b16 %v10690
    %v10762 = vunpack.c.l.b16 %v10691
    %v10763 = vunpack.c.l.b16 %v10692
    %v10764 = vunpack.c.l.b16 %v10693
    %v10765 = vunpack.c.l.b16 %v10694
    %v10766 = vunpack.c.l.b16 %v10695
    %v10767 = vunpack.c.l.b16 %v10696
    %v10768 = vunpack.c.l.b16 %v10697
    %v10769 = vunpack.c.l.b16 %v10698
    %v10770 = vunpack.c.l.b16 %v10699
    %v10771 = vunpack.c.l.b16 %v10700
    %v10772 = vunpack.c.l.b16 %v10701
    %v10773 = vunpack.c.l.b16 %v10702
    %v10774 = vunpack.c.l.b16 %v10703
    %v10775 = vunpack.c.l.b16 %v10704
    %v10776 = vunpack.c.l.b16 %v10705
    %v10777 = vunpack.c.l.b16 %v10706
    %v10778 = vunpack.c.l.b16 %v10707
    %v10779 = vunpack.c.l.b16 %v10708
    %v10780 = vunpack.c.l.b16 %v10709
    %v10781 = vunpack.c.l.b16 %v10710
    %v10782 = vunpack.c.l.b16 %v10711
    %v10783 = vunpack.c.l.b16 %v10712
    %v10784 = vpack.c.b16 %v10753, %v10752
    %v10785 = vpack.c.b16 %v10755, %v10754
    %v10786 = vpack.c.b16 %v10757, %v10756
    %v10787 = vpack.c.b16 %v10759, %v10758
    %v10788 = vpack.c.b16 %v10761, %v10760
    %v10789 = vpack.c.b16 %v10763, %v10762
    %v10790 = vpack.c.b16 %v10765, %v10764
    %v10791 = vpack.c.b16 %v10767, %v10766
    %v10792 = vpack.c.b16 %v10769, %v10768
    %v10793 = vpack.c.b16 %v10771, %v10770
    %v10794 = vpack.c.b16 %v10773, %v10772
    %v10795 = vpack.c.b16 %v10775, %v10774
    %v10796 = vpack.c.b16 %v10777, %v10776
    %v10797 = vpack.c.b16 %v10779, %v10778
    %v10798 = vpack.c.b16 %v10781, %v10780
    %v10799 = vpack.c.b16 %v10783, %v10782
    %10816 = vmatprep.subr.bf16.mxu0 0
    %10817 = vmatpush1.bf16.msra.mxu0 %v10784
    %10818 = vmatprep.subr.bf16.mxu0 0
    %10819 = vmatpush1.bf16.msra.mxu0 %v10785
    %10820 = vmatprep.subr.bf16.mxu0 0
    %10821 = vmatpush1.bf16.msra.mxu0 %v10786
    %10822 = vmatprep.subr.bf16.mxu0 0
    %10823 = vmatpush1.bf16.msra.mxu0 %v10787
    %10824 = vmatprep.subr.bf16.mxu0 0
    %10825 = vmatpush1.bf16.msra.mxu0 %v10788
    %10826 = vmatprep.subr.bf16.mxu0 0
    %10827 = vmatpush1.bf16.msra.mxu0 %v10789
    %10828 = vmatprep.subr.bf16.mxu0 0
    %10829 = vmatpush1.bf16.msra.mxu0 %v10790
    %10830 = vmatprep.subr.bf16.mxu0 0
    %10831 = vmatpush1.bf16.msra.mxu0 %v10791
    %10832 = vmatprep.subr.bf16.mxu0 0
    %10833 = vmatpush1.bf16.msra.mxu0 %v10792
    %10834 = vmatprep.subr.bf16.mxu0 0
    %10835 = vmatpush1.bf16.msra.mxu0 %v10793
    %10836 = vmatprep.subr.bf16.mxu0 0
    %10837 = vmatpush1.bf16.msra.mxu0 %v10794
    %10838 = vmatprep.subr.bf16.mxu0 0
    %10839 = vmatpush1.bf16.msra.mxu0 %v10795
    %10840 = vmatprep.subr.bf16.mxu0 0
    %10841 = vmatpush1.bf16.msra.mxu0 %v10796
    %10842 = vmatprep.subr.bf16.mxu0 0
    %10843 = vmatpush1.bf16.msra.mxu0 %v10797
    %10844 = vmatprep.subr.bf16.mxu0 0
    %10845 = vmatpush1.bf16.msra.mxu0 %v10798
    %10846 = vmatprep.subr.bf16.mxu0 0
    %10847 = vmatpush1.bf16.msra.mxu0 %v10799
    %10848 = vmatprep.mubr.bf16.mxu0 %v10680
    %10849 = vmatmul.mubr.bf16.gmra.mrb[0].mxu0 %v10679
    %v10850 = vpop.f32.mrb[0].mxu0
    %v10851 = vadd.f32 %v10718, %v10850
    %v10852 = vpop.f32.mrb[0].mxu0
    %v10853 = vpop.f32.mrb[0].mxu0
    %v10854 = vpop.f32.mrb[0].mxu0
    %10855 = vdwg.mxu0
    %v10856 = vmax.f32 %v10851, 0.0
    %v10857 = vpack.c.bf16 %v10856, %v10856
    %v10858 = vld [vmem:[#allocation9] sm:$0xf]
    %v10859 = vld [vmem:[#allocation9 + $0x4] sm:$0xf]
    %v10860 = vld [vmem:[#allocation9 + $0x8] sm:$0xf]
    %v10861 = vld [vmem:[#allocation9 + $0xc] sm:$0xf]
    %v10862 = vld [vmem:[#allocation9 + $0x10] sm:$0xf]
    %v10863 = vld [vmem:[#allocation9 + $0x14] sm:$0xf]
    %v10864 = vld [vmem:[#allocation9 + $0x18] sm:$0xf]
    %v10865 = vld [vmem:[#allocation9 + $0x1c] sm:$0xf]
    %v10866 = vld [vmem:[#allocation9 + $0x20] sm:$0xf]
    %v10867 = vld [vmem:[#allocation9 + $0x24] sm:$0xf]
    %v10868 = vld [vmem:[#allocation9 + $0x28] sm:$0xf]
    %v10869 = vld [vmem:[#allocation9 + $0x2c] sm:$0xf]
    %v10870 = vld [vmem:[#allocation9 + $0x30] sm:$0xf]
    %v10871 = vld [vmem:[#allocation9 + $0x34] sm:$0xf]
    %v10872 = vld [vmem:[#allocation9 + $0x38] sm:$0xf]
    %v10873 = vld [vmem:[#allocation9 + $0x3c] sm:$0xf]
    %v10874 = vld [vmem:[%s20] sm:$0x1]
    %v10876 = vlaneseq
    %v10877 = vshrl.u32 %v10876, 7
    %v10878 = vsub.s32 0, %v10877
    %v10879 = vrot.slane %v10874, %v10878
    %v10897 = vunpack.c.l.b16 %v10858
    %v10898 = vunpack.c.l.b16 %v10859
    %v10899 = vunpack.c.l.b16 %v10860
    %v10900 = vunpack.c.l.b16 %v10861
    %v10901 = vunpack.c.l.b16 %v10862
    %v10902 = vunpack.c.l.b16 %v10863
    %v10903 = vunpack.c.l.b16 %v10864
    %v10904 = vunpack.c.l.b16 %v10865
    %v10905 = vunpack.c.l.b16 %v10866
    %v10906 = vunpack.c.l.b16 %v10867
    %v10907 = vunpack.c.l.b16 %v10868
    %v10908 = vunpack.c.l.b16 %v10869
    %v10909 = vunpack.c.l.b16 %v10870
    %v10910 = vunpack.c.l.b16 %v10871
    %v10911 = vunpack.c.l.b16 %v10872
    %v10912 = vunpack.c.l.b16 %v10873
    %v10913 = vpack.c.b16 %v10898, %v10897
    %v10914 = vpack.c.b16 %v10900, %v10899
    %v10915 = vpack.c.b16 %v10902, %v10901
    %v10916 = vpack.c.b16 %v10904, %v10903
    %v10917 = vpack.c.b16 %v10906, %v10905
    %v10918 = vpack.c.b16 %v10908, %v10907
    %v10919 = vpack.c.b16 %v10910, %v10909
    %v10920 = vpack.c.b16 %v10912, %v10911
    %10929 = vmatprep.subr.bf16.mxu0 0
    %10930 = vmatpush1.bf16.msra.mxu0 %v10913
    %10931 = vmatprep.subr.bf16.mxu0 0
    %10932 = vmatpush1.bf16.msra.mxu0 %v10914
    %10933 = vmatprep.subr.bf16.mxu0 0
    %10934 = vmatpush1.bf16.msra.mxu0 %v10915
    %10935 = vmatprep.subr.bf16.mxu0 0
    %10936 = vmatpush1.bf16.msra.mxu0 %v10916
    %10937 = vmatprep.subr.bf16.mxu0 0
    %10938 = vmatpush1.bf16.msra.mxu0 %v10917
    %10939 = vmatprep.subr.bf16.mxu0 0
    %10940 = vmatpush1.bf16.msra.mxu0 %v10918
    %10941 = vmatprep.subr.bf16.mxu0 0
    %10942 = vmatpush1.bf16.msra.mxu0 %v10919
    %10943 = vmatprep.subr.bf16.mxu0 0
    %10944 = vmatpush1.bf16.msra.mxu0 %v10920
    %10945 = vmatprep.subr.bf16.mxu0 0
    %10946 = vmatpush1.bf16.msra.mxu0 0
    %10947 = vmatprep.subr.bf16.mxu0 0
    %10948 = vmatpush1.bf16.msra.mxu0 0
    %10949 = vmatprep.subr.bf16.mxu0 0
    %10950 = vmatpush1.bf16.msra.mxu0 0
    %10951 = vmatprep.subr.bf16.mxu0 0
    %10952 = vmatpush1.bf16.msra.mxu0 0
    %10953 = vmatprep.subr.bf16.mxu0 0
    %10954 = vmatpush1.bf16.msra.mxu0 0
    %10955 = vmatprep.subr.bf16.mxu0 0
    %10956 = vmatpush1.bf16.msra.mxu0 0
    %10957 = vmatprep.subr.bf16.mxu0 0
    %10958 = vmatpush1.bf16.msra.mxu0 0
    %10959 = vmatprep.subr.bf16.mxu0 0
    %10960 = vmatpush1.bf16.msra.mxu0 0
    %10961 = vmatprep.mubr.bf16.mxu0 0
    %10962 = vmatmul.mubr.bf16.gmra.mrb[0].mxu0 %v10857
    %v10963 = vpop.f32.mrb[0].mxu0
    %v10964 = vadd.f32 %v10879, %v10963
    %v10965 = vpop.f32.mrb[0].mxu0
    %v10966 = vpop.f32.mrb[0].mxu0
    %v10967 = vpop.f32.mrb[0].mxu0
    %10968 = vdwg.mxu0
    %v10969 = vmax.f32 %v10964, 0.0
    %v10970 = vpack.c.bf16 %v10969, %v10969
    %v10971 = vld [vmem:[#allocation10] sm:$0xf]
    %v10972 = vld [vmem:[#allocation10 + $0x4] sm:$0xf]
    %v10973 = vld [vmem:[#allocation10 + $0x8] sm:$0xf]
    %v10974 = vld [vmem:[#allocation10 + $0xc] sm:$0xf]
    %v10975 = vld [vmem:[#allocation10 + $0x10] sm:$0xf]
    %v10976 = vld [vmem:[#allocation10 + $0x14] sm:$0xf]
    %v10977 = vld [vmem:[#allocation10 + $0x18] sm:$0xf]
    %v10978 = vld [vmem:[#allocation10 + $0x1c] sm:$0xf]
    %v10979 = vld [vmem:[#allocation10 + $0x20] sm:$0xf]
    %v10980 = vld [vmem:[#allocation10 + $0x24] sm:$0xf]
    %v10981 = vld [vmem:[#allocation10 + $0x28] sm:$0xf]
    %v10982 = vld [vmem:[#allocation10 + $0x2c] sm:$0xf]
    %v10983 = vld [vmem:[#allocation10 + $0x30] sm:$0xf]
    %v10984 = vld [vmem:[#allocation10 + $0x34] sm:$0xf]
    %v10985 = vld [vmem:[#allocation10 + $0x38] sm:$0xf]
    %v10986 = vld [vmem:[#allocation10 + $0x3c] sm:$0xf]
    %v10987 = vld [vmem:[%s22] sm:$0x1]
    %v10989 = vlaneseq
    %v10990 = vshrl.u32 %v10989, 7
    %v10991 = vsub.s32 0, %v10990
    %v10992 = vrot.slane %v10987, %v10991
    %v11010 = vunpack.c.l.b16 %v10971
    %v11011 = vunpack.c.l.b16 %v10972
    %v11012 = vunpack.c.l.b16 %v10973
    %v11013 = vunpack.c.l.b16 %v10974
    %v11014 = vunpack.c.l.b16 %v10975
    %v11015 = vunpack.c.l.b16 %v10976
    %v11016 = vunpack.c.l.b16 %v10977
    %v11017 = vunpack.c.l.b16 %v10978
    %v11018 = vunpack.c.l.b16 %v10979
    %v11019 = vunpack.c.l.b16 %v10980
    %v11020 = vunpack.c.l.b16 %v10981
    %v11021 = vunpack.c.l.b16 %v10982
    %v11022 = vunpack.c.l.b16 %v10983
    %v11023 = vunpack.c.l.b16 %v10984
    %v11024 = vunpack.c.l.b16 %v10985
    %v11025 = vunpack.c.l.b16 %v10986
    %v11026 = vpack.c.b16 %v11011, %v11010
    %v11027 = vpack.c.b16 %v11013, %v11012
    %v11028 = vpack.c.b16 %v11015, %v11014
    %v11029 = vpack.c.b16 %v11017, %v11016
    %v11030 = vpack.c.b16 %v11019, %v11018
    %v11031 = vpack.c.b16 %v11021, %v11020
    %v11032 = vpack.c.b16 %v11023, %v11022
    %v11033 = vpack.c.b16 %v11025, %v11024
    %11042 = vmatprep.subr.bf16.mxu0 0
    %11043 = vmatpush1.bf16.msra.mxu0 %v11026
    %11044 = vmatprep.subr.bf16.mxu0 0
    %11045 = vmatpush1.bf16.msra.mxu0 %v11027
    %11046 = vmatprep.subr.bf16.mxu0 0
    %11047 = vmatpush1.bf16.msra.mxu0 %v11028
    %11048 = vmatprep.subr.bf16.mxu0 0
    %11049 = vmatpush1.bf16.msra.mxu0 %v11029
    %11050 = vmatprep.subr.bf16.mxu0 0
    %11051 = vmatpush1.bf16.msra.mxu0 %v11030
    %11052 = vmatprep.subr.bf16.mxu0 0
    %11053 = vmatpush1.bf16.msra.mxu0 %v11031
    %11054 = vmatprep.subr.bf16.mxu0 0
    %11055 = vmatpush1.bf16.msra.mxu0 %v11032
    %11056 = vmatprep.subr.bf16.mxu0 0
    %11057 = vmatpush1.bf16.msra.mxu0 %v11033
    %11058 = vmatprep.subr.bf16.mxu0 0
    %11059 = vmatpush1.bf16.msra.mxu0 0
    %11060 = vmatprep.subr.bf16.mxu0 0
    %11061 = vmatpush1.bf16.msra.mxu0 0
    %11062 = vmatprep.subr.bf16.mxu0 0
    %11063 = vmatpush1.bf16.msra.mxu0 0
    %11064 = vmatprep.subr.bf16.mxu0 0
    %11065 = vmatpush1.bf16.msra.mxu0 0
    %11066 = vmatprep.subr.bf16.mxu0 0
    %11067 = vmatpush1.bf16.msra.mxu0 0
    %11068 = vmatprep.subr.bf16.mxu0 0
    %11069 = vmatpush1.bf16.msra.mxu0 0
    %11070 = vmatprep.subr.bf16.mxu0 0
    %11071 = vmatpush1.bf16.msra.mxu0 0
    %11072 = vmatprep.subr.bf16.mxu0 0
    %11073 = vmatpush1.bf16.msra.mxu0 0
    %11074 = vmatprep.mubr.bf16.mxu0 0
    %11075 = vmatmul.mubr.bf16.gmra.mrb[0].mxu0 %v10970
    %v11076 = vpop.f32.mrb[0].mxu0
    %v11077 = vadd.f32 %v10992, %v11076
    %v11078 = vpop.f32.mrb[0].mxu0
    %v11079 = vpop.f32.mrb[0].mxu0
    %v11080 = vpop.f32.mrb[0].mxu0
    %11081 = vdwg.mxu0
    %11082 = vst [vmem:[%s23] sm:$0xff] %v11077
    // Predicated region
    $region118: #{latency_model.1} parent=1 // pred_check
      _
    $region119: #{latency_model.1} parent=1 // pred_check_branch
      %11084 = sbr.rel (0) target = $region121
    $region120: #{latency_model.1} parent=1 // pred_region
      _
    $region121: #{latency_model.1} parent=1 // pred_fallthru
      _
    // Predicated region
    $region122: #{latency_model.1} parent=1 // pred_check
      _
    $region123: #{latency_model.1} parent=1 // pred_check_branch
      %11086 = sbr.rel (0) target = $region125
    $region124: #{latency_model.1} parent=1 // pred_region
      _
    $region125: #{latency_model.1} parent=1 // pred_fallthru
      _
    %11087 = vsyncpa [#allocation3], 1
    %11088 = vsyncpa [#allocation5], 1
    %11089 = vsyncpa [#allocation8], 1
    %11090 = vsyncpa [#allocation11], 1

</llo_original>
